<compile_context>
chip_gen: v7x
topology: tpu7x:2x2x1
jax: 0.10.0
libtpu: 0.0.40
codegen_flags: <defaults>
</compile_context>

<pallas_src>
import math
import numpy as np
import jax
import jax.numpy as jnp
from jax.experimental import pallas as pl
from jax.experimental.pallas import tpu as pltpu

HP = jax.lax.Precision.HIGHEST
EPS = 1e-5  # PyTorch LayerNorm default


def _silu(a):
    # a * sigmoid(a); sigmoid via tanh keeps it on the EUP (no vector divide)
    return a * (0.5 * (jnp.tanh(0.5 * a) + 1.0))


def _ln_last(v, g, b):
    mu = jnp.mean(v, axis=-1, keepdims=True)
    var = jnp.mean(jnp.square(v - mu), axis=-1, keepdims=True)
    return (v - mu) * jax.lax.rsqrt(var + EPS) * g + b


def _f_iota(shape, dim):
    return jax.lax.broadcasted_iota(jnp.int32, shape, dim).astype(jnp.float32)


def _const_layout(B, N, T, D, O, C, F):
    """Row layout of the single packed f32 constant slab (width = C*N lanes)."""
    BT = B * T
    rows, r = {}, 0

    def alloc(name, n):
        nonlocal r
        rows[name] = r
        r += n

    alloc("w1n", N)      # kron(w1, I_N)            (N, C*N)
    alloc("xw", N)       # kron(xw, I_N)            (N, F*N)
    alloc("post", BT)    # pos_TEmbedding tiled     (B*T, N)
    alloc("wt", N)       # T_conv weight            (N, D)
    alloc("wot", O)      # GAU.to_out weight^T      (O, N)
    for nm in ("tn_g", "tn_b", "bt", "g0", "g1", "be0", "be1", "bo",
               "b1l", "b2l", "xbl"):
        alloc(nm, 1)     # one packed row each
    alloc("lncols", BT)  # [sg|sb|fg|fb] as columns (B*T, 4)
    nrows = ((r + 7) // 8) * 8
    width = ((max(C * N, F * N, D, O, N) + 127) // 128) * 128
    return rows, nrows, width


def prepare_params(p, batch_size):
    """One-time host-side packing of the PyTorch-layout params into 2 constant arrays."""
    f32 = np.float32
    wt = np.asarray(p["wt"], f32)
    N, D = wt.shape
    posT = np.asarray(p["posT"], f32)
    T = posT.shape[0]
    gam = np.asarray(p["gau_gamma"], f32)
    bet = np.asarray(p["gau_beta"], f32)
    O = gam.shape[1]
    w1 = np.asarray(p["w1"], f32)
    C = w1.shape[0]
    w2 = np.asarray(p["w2"], f32)
    F = w2.shape[0]
    B = batch_size
    dims = (B, N, T, D, O, C, F)

    rows, nrows, width = _const_layout(*dims)
    slab = np.zeros((nrows, width), f32)

    def put(name, arr):
        a = np.atleast_2d(np.asarray(arr, f32))
        r0 = rows[name]
        slab[r0:r0 + a.shape[0], :a.shape[1]] = a

    eyeN = np.eye(N, dtype=f32)
    put("w1n", np.kron(w1.reshape(1, C), eyeN))                          # (N, C*N)
    put("xw", np.kron(np.asarray(p["xw"], f32).reshape(1, F), eyeN))     # (N, F*N)
    put("post", np.tile(posT, (B, 1)))                                   # (B*T, N)
    put("wt", wt)
    put("wot", np.asarray(p["wo"], f32).T)                               # (O, N)
    put("tn_g", p["tn_g"]); put("tn_b", p["tn_b"]); put("bt", p["bt"])
    put("g0", gam[0]); put("g1", gam[1]); put("be0", bet[0]); put("be1", bet[1])
    put("bo", p["bo"])
    put("b1l", np.repeat(np.asarray(p["b1"], f32), N))                   # (C*N,)
    put("b2l", np.repeat(np.asarray(p["b2"], f32), N))                   # (F*N,)
    put("xbl", np.repeat(np.asarray(p["xb"], f32), N))                   # (F*N,)
    put("lncols", np.stack([np.tile(np.asarray(p[k], f32), B)
                            for k in ("sg", "sb", "fg", "fb")], axis=1))  # (B*T, 4)

    w2n = np.kron(w2.T, eyeN)                                            # (C*N, F*N)
    return dims, dict(slab=jnp.asarray(slab), w2n=jnp.asarray(w2n))


def make_forward(dims, kp):
    B, N, T, D, O, C, F = dims
    BT = B * T
    rows, _, _ = _const_layout(*dims)
    scale = 1.0 / math.sqrt(O)
    NEG = -1e30  # keep in f32 (exp underflows to 0)

    def kernel(x_ref, uvz_ref, cst_ref, w2n_ref, out_ref):
        def vec(name, w):
            r = rows[name]
            return cst_ref[r:r + 1, 0:w]

        def blk(name, h, w):
            r = rows[name]
            return cst_ref[r:r + h, 0:w]

        # ---- structured constants generated in-kernel (no DMA, VPU only) ----
        ri = _f_iota((BT, BT), 0)
        ci = _f_iota((BT, BT), 1)
        same_b = jnp.floor(ri / T) == jnp.floor(ci / T)
        mask = jnp.where(same_b, 0.0, NEG)          # per-batch softmax block mask
        avg_t = jnp.where(same_b, 1.0 / T, 0.0)     # LN-over-T averaging matrix
        rr = _f_iota((D, D * O), 0)
        rc = _f_iota((D, D * O), 1)
        Rm = jnp.where(jnp.floor(rc / O) == rr, 1.0, 0.0)     # lane-repeat matrix
        sr = _f_iota((D * O, O), 0)
        sc = _f_iota((D * O, O), 1)
        Sm = jnp.where(sr - jnp.floor(sr / O) * O == sc, 1.0, 0.0)  # fold matrix

        x_tn = x_ref[...]                                          # (B*T, N)

        # ---- Embedding('T') + LayerNorm(N) + T_conv (1x1 conv == matmul) ----
        emb = x_tn + blk("post", BT, N)
        normed = _ln_last(emb, vec("tn_g", N), vec("tn_b", N))
        t_x = jnp.dot(normed, blk("wt", N, D), precision=HP,
                      preferred_element_type=jnp.float32) + vec("bt", D)
        # Dropout(p=0.1): identity at inference.
        # TODO(synk): training-mode dropout / unused Spos_x branch not implemented.

        # ---- GAU projections: ONE stacked MXU dot for U/V/Z ----
        t_x3 = jnp.concatenate([t_x, t_x, t_x], axis=0)            # (3*B*T, D)
        t_xk3 = jnp.dot(t_x3, Rm, precision=HP,
                        preferred_element_type=jnp.float32)        # (3*B*T, D*O)
        proj3 = jnp.dot(t_xk3 * uvz_ref[...], Sm, precision=HP,
                        preferred_element_type=jnp.float32)        # (3*B*T, O)
        act = _silu(proj3)
        gate, v_, z_ = act[0:BT], act[BT:2 * BT], act[2 * BT:3 * BT]

        q = z_ * vec("g0", O) + vec("be0", O)
        k = z_ * vec("g1", O) + vec("be1", O)
        # torch.einsum('btt,bto->bto') only uses the DIAGONAL of A; row stats come
        # from one block-masked (BT,BT) matmul, the diagonal from a q*k row-sum.
        sim = jax.lax.dot_general(q, k, (((1,), (1,)), ((), ())), precision=HP,
                                  preferred_element_type=jnp.float32) * scale + mask
        m = jnp.max(sim, axis=-1, keepdims=True)
        rowsum = jnp.sum(jnp.exp(sim - m), axis=-1, keepdims=True)
        diag = jnp.sum(q * k, axis=-1, keepdims=True) * scale
        a_diag = jnp.exp(diag - m) / rowsum                        # exact divide
        vg = a_diag * v_ * gate                                    # (B*T, O)

        # ---- to_out Linear(O -> N): one dot, stays in (B*T, N) layout ----
        out_btn = jnp.dot(vg, blk("wot", O, N), precision=HP,
                          preferred_element_type=jnp.float32) + vec("bo", N)

        # ---- STAttentionfusion + x_conv + ReLU + LayerNorm(T) ----
        h1 = jnp.maximum(jnp.dot(out_btn, blk("w1n", N, C * N), precision=HP,
                                 preferred_element_type=jnp.float32)
                         + vec("b1l", C * N), 0.0)                 # (B*T, C*N)
        h2 = jnp.dot(h1, w2n_ref[...], precision=HP,
                     preferred_element_type=jnp.float32) + vec("b2l", F * N)

        ln = blk("lncols", BT, 4)
        sg, sb, fg, fb = ln[:, 0:1], ln[:, 1:2], ln[:, 2:3], ln[:, 3:4]

        mu1 = jnp.dot(avg_t, h2, precision=HP, preferred_element_type=jnp.float32)
        d1 = h2 - mu1
        va1 = jnp.dot(avg_t, d1 * d1, precision=HP, preferred_element_type=jnp.float32)
        stf = d1 * jax.lax.rsqrt(va1 + EPS) * sg + sb

        xc = jnp.dot(x_tn, blk("xw", N, F * N), precision=HP,
                     preferred_element_type=jnp.float32) + vec("xbl", F * N)
        y = jnp.maximum(xc + stf, 0.0)

        mu2 = jnp.dot(avg_t, y, precision=HP, preferred_element_type=jnp.float32)
        d2 = y - mu2
        va2 = jnp.dot(avg_t, d2 * d2, precision=HP, preferred_element_type=jnp.float32)
        out_ref[...] = d2 * jax.lax.rsqrt(va2 + EPS) * fg + fb     # (B*T, F*N)

    def _spec(shape):
        return pl.BlockSpec(shape, lambda i: (0,) * len(shape))

    @jax.jit
    def forward(x, U, V, Z):
        """x: (B, 1, N, T); U/V/Z: (B, T, D*O).  Returns (B, F, N, T)."""
        # Tiny wrapper-side XLA ops only: one transpose of x and one concat of U/V/Z.
        x_tn = x.reshape(B, N, T).transpose(0, 2, 1).reshape(BT, N)
        uvz = jnp.concatenate([U, V, Z], axis=0).reshape(3 * BT, D * O)
        out2d = pl.pallas_call(
            kernel,
            out_shape=jax.ShapeDtypeStruct((BT, F * N), jnp.float32),
            # grid=(1,): single TensorCore.  For large batches add a leading
            # "parallel" batch grid axis so v7x's second core gets work.
            grid=(1,),
            in_specs=[_spec(x_tn.shape), _spec(uvz.shape),
                      _spec(kp["slab"].shape), _spec(kp["w2n"].shape)],
            out_specs=pl.BlockSpec((BT, F * N), lambda i: (0, 0)),
            compiler_params=pltpu.CompilerParams(dimension_semantics=("arbitrary",)),
        )(x_tn, uvz, kp["slab"], kp["w2n"])
        return out2d.reshape(B, T, F, N).transpose(0, 2, 3, 1)

    return forward


def reference_forward(x, U, V, Z, p):
    """Pure-JAX reference mirroring the PyTorch forward (inference mode)."""
    B, Fin, N, T = x.shape
    D = p["wt"].shape[1]
    O = p["gau_gamma"].shape[1]
    x_sq = x[:, 0]
    emb = jnp.transpose(x_sq, (0, 2, 1)) + p["posT"][None]
    normed = _ln_last(emb, p["tn_g"], p["tn_b"])
    t_x = jnp.einsum("btn,nd->btd", normed, p["wt"], precision=HP) + p["bt"]
    Up, Vp, Zp = (w.reshape(B, T, D, O) for w in (U, V, Z))

    def silu_ref(a):
        return a / (1.0 + jnp.exp(-a))

    v = silu_ref(jnp.einsum("btd,btdo->bto", t_x, Vp, precision=HP))
    gate = silu_ref(jnp.einsum("btd,btdo->bto", t_x, Up, precision=HP))
    z = silu_ref(jnp.einsum("btd,btdo->bto", t_x, Zp, precision=HP))
    QK = jnp.einsum("bto,ho->btho", z, p["gau_gamma"]) + p["gau_beta"]
    q, k = QK[:, :, 0, :], QK[:, :, 1, :]
    sim = jnp.einsum("bio,bjo->bij", q, k, precision=HP) / np.sqrt(O)
    A = jax.nn.softmax(sim, axis=-1)
    a_diag = jnp.einsum("btt->bt", A)
    Vv = a_diag[..., None] * v * gate
    out = jnp.einsum("bto,no->btn", Vv, p["wo"], precision=HP) + p["bo"]
    gau = jnp.transpose(out, (0, 2, 1))[:, None]                       # (B, 1, N, T)
    h1 = jnp.maximum(p["w1"][None, :, None, None] * gau + p["b1"][None, :, None, None], 0.0)
    h2 = jnp.einsum("fc,bcnt->bfnt", p["w2"], h1, precision=HP) + p["b2"][None, :, None, None]
    stf = _ln_last(h2, p["sg"], p["sb"])
    xc = x * p["xw"][None, :, None, None] + p["xb"][None, :, None, None]
    y = jnp.maximum(xc + stf, 0.0)
    return _ln_last(y, p["fg"], p["fb"])


if __name__ == "__main__":
    B, N, T = 2, 8, 8            # batch, nodes, num_of_hour
    D, O, F_OUT = 16, 16, 4      # d_model, time_features_out, features_out

    keys = jax.random.split(jax.random.PRNGKey(0), 20)
    nrm = jax.random.normal

    p = dict(
        posT=0.1 * nrm(keys[0], (T, N), jnp.float32),        # pos_TEmbedding table
        tn_g=jnp.ones((N,), jnp.float32), tn_b=jnp.zeros((N,), jnp.float32),  # Tnorm
        wt=0.2 * nrm(keys[1], (N, D), jnp.float32),           # T_conv weight (N x D)
        bt=0.1 * nrm(keys[2], (D,), jnp.float32),
        gau_gamma=0.02 * nrm(keys[3], (2, O), jnp.float32),
        gau_beta=jnp.zeros((2, O), jnp.float32),
        wo=0.2 * nrm(keys[4], (N, O), jnp.float32),           # GAU.to_out Linear(O, N)
        bo=0.1 * nrm(keys[5], (N,), jnp.float32),
        w1=0.3 * nrm(keys[6], (32,), jnp.float32),            # STF Conv2d(1, 32, 1)
        b1=0.1 * nrm(keys[7], (32,), jnp.float32),
        w2=0.2 * nrm(keys[8], (F_OUT, 32), jnp.float32),      # STF Conv2d(32, F_out, 1)
        b2=0.1 * nrm(keys[9], (F_OUT,), jnp.float32),
        sg=jnp.ones((T,), jnp.float32), sb=jnp.zeros((T,), jnp.float32),      # STF LayerNorm(T)
        xw=0.3 * nrm(keys[10], (F_OUT,), jnp.float32),        # x_conv Conv2d(1, F_out, 1)
        xb=0.1 * nrm(keys[11], (F_OUT,), jnp.float32),
        fg=jnp.ones((T,), jnp.float32), fb=jnp.zeros((T,), jnp.float32),      # final LayerNorm(T)
    )

    x = 0.5 * nrm(keys[12], (B, 1, N, T), jnp.float32)
    U = 0.2 * nrm(keys[13], (B, T, D * O), jnp.float32)
    V = 0.2 * nrm(keys[14], (B, T, D * O), jnp.float32)
    Z = 0.2 * nrm(keys[15], (B, T, D * O), jnp.float32)

    dims, kp = prepare_params(p, B)        # one-time weight packing (not on hot path)
    fwd = make_forward(dims, kp)

    out = jax.block_until_ready(fwd(x, U, V, Z))
    ref = jax.block_until_ready(reference_forward(x, U, V, Z, p))
    np.testing.assert_allclose(np.asarray(out), np.asarray(ref), rtol=2e-3, atol=2e-3)
    print("KERNEL_OK")
</pallas_src>

<mosaic_0001>
module attributes {stable_mosaic.version = 11 : i64} {
  func.func @kernel(%arg0: i32, %arg1: memref<16x8xf32, #tpu.memory_space<vmem>>, %arg2: memref<48x256xf32, #tpu.memory_space<vmem>>, %arg3: memref<88x256xf32, #tpu.memory_space<vmem>>, %arg4: memref<256x32xf32, #tpu.memory_space<vmem>>, %arg5: memref<16x32xf32, #tpu.memory_space<vmem>>) attributes {dimension_semantics = [#tpu.dimension_semantics<arbitrary>], iteration_bounds = array<i64: 1>, scalar_prefetch = 0 : i64, scratch_operands = 0 : i64, tpu.core_type = #tpu.core_type<tc>, window_params = [{pipeline_mode = #tpu.pipeline_mode<synchronous>, transform_indices = @transform_0, window_bounds = array<i64: 16, 8>}, {pipeline_mode = #tpu.pipeline_mode<synchronous>, transform_indices = @transform_1, window_bounds = array<i64: 48, 256>}, {pipeline_mode = #tpu.pipeline_mode<synchronous>, transform_indices = @transform_2, window_bounds = array<i64: 88, 256>}, {pipeline_mode = #tpu.pipeline_mode<synchronous>, transform_indices = @transform_3, window_bounds = array<i64: 256, 32>}, {pipeline_mode = #tpu.pipeline_mode<synchronous>, transform_indices = @transform_4, window_bounds = array<i64: 16, 32>}]} {
    %0 = tpu.iota {dimensions = array<i32: 0>} : vector<16x16xi32>
    %1 = arith.sitofp %0 : vector<16x16xi32> to vector<16x16xf32>
    %2 = tpu.iota {dimensions = array<i32: 1>} : vector<16x16xi32>
    %3 = arith.sitofp %2 : vector<16x16xi32> to vector<16x16xf32>
    %cst = arith.constant 8.000000e+00 : f32
    %4 = vector.broadcast %cst : f32 to vector<16x16xf32>
    %5 = arith.divf %1, %4 : vector<16x16xf32>
    %6 = math.floor %5 : vector<16x16xf32>
    %cst_0 = arith.constant 8.000000e+00 : f32
    %7 = vector.broadcast %cst_0 : f32 to vector<16x16xf32>
    %8 = arith.divf %3, %7 : vector<16x16xf32>
    %9 = math.floor %8 : vector<16x16xf32>
    %10 = arith.cmpf oeq, %6, %9 : vector<16x16xf32>
    %cst_1 = arith.constant 0.000000e+00 : f32
    %cst_2 = arith.constant -1.000000e+30 : f32
    %11 = vector.broadcast %cst_1 : f32 to vector<16x16xf32>
    %12 = vector.broadcast %cst_2 : f32 to vector<16x16xf32>
    %13 = arith.select %10, %11, %12 : vector<16x16xi1>, vector<16x16xf32>
    %cst_3 = arith.constant 1.250000e-01 : f32
    %cst_4 = arith.constant 0.000000e+00 : f32
    %14 = vector.broadcast %cst_3 : f32 to vector<16x16xf32>
    %15 = vector.broadcast %cst_4 : f32 to vector<16x16xf32>
    %16 = arith.select %10, %14, %15 : vector<16x16xi1>, vector<16x16xf32>
    %17 = tpu.iota {dimensions = array<i32: 0>} : vector<16x256xi32>
    %18 = arith.sitofp %17 : vector<16x256xi32> to vector<16x256xf32>
    %19 = tpu.iota {dimensions = array<i32: 1>} : vector<16x256xi32>
    %20 = arith.sitofp %19 : vector<16x256xi32> to vector<16x256xf32>
    %cst_5 = arith.constant 1.600000e+01 : f32
    %21 = vector.broadcast %cst_5 : f32 to vector<16x256xf32>
    %22 = arith.divf %20, %21 : vector<16x256xf32>
    %23 = math.floor %22 : vector<16x256xf32>
    %24 = arith.cmpf oeq, %23, %18 : vector<16x256xf32>
    %cst_6 = arith.constant 1.000000e+00 : f32
    %cst_7 = arith.constant 0.000000e+00 : f32
    %25 = vector.broadcast %cst_6 : f32 to vector<16x256xf32>
    %26 = vector.broadcast %cst_7 : f32 to vector<16x256xf32>
    %27 = arith.select %24, %25, %26 : vector<16x256xi1>, vector<16x256xf32>
    %28 = tpu.iota {dimensions = array<i32: 0>} : vector<256x16xi32>
    %29 = arith.sitofp %28 : vector<256x16xi32> to vector<256x16xf32>
    %30 = tpu.iota {dimensions = array<i32: 1>} : vector<256x16xi32>
    %31 = arith.sitofp %30 : vector<256x16xi32> to vector<256x16xf32>
    %cst_8 = arith.constant 1.600000e+01 : f32
    %32 = vector.broadcast %cst_8 : f32 to vector<256x16xf32>
    %33 = arith.divf %29, %32 : vector<256x16xf32>
    %34 = math.floor %33 : vector<256x16xf32>
    %cst_9 = arith.constant 1.600000e+01 : f32
    %35 = vector.broadcast %cst_9 : f32 to vector<256x16xf32>
    %36 = arith.mulf %34, %35 : vector<256x16xf32>
    %37 = arith.subf %29, %36 : vector<256x16xf32>
    %38 = arith.cmpf oeq, %37, %31 : vector<256x16xf32>
    %cst_10 = arith.constant 1.000000e+00 : f32
    %cst_11 = arith.constant 0.000000e+00 : f32
    %39 = vector.broadcast %cst_10 : f32 to vector<256x16xf32>
    %40 = vector.broadcast %cst_11 : f32 to vector<256x16xf32>
    %41 = arith.select %38, %39, %40 : vector<256x16xi1>, vector<256x16xf32>
    %c0 = arith.constant 0 : index
    %c0_12 = arith.constant 0 : index
    %42 = vector.load %arg1[%c0, %c0_12] : memref<16x8xf32, #tpu.memory_space<vmem>>, vector<16x8xf32>
    %c16 = arith.constant 16 : index
    %c0_13 = arith.constant 0 : index
    %43 = vector.load %arg3[%c16, %c0_13] : memref<88x256xf32, #tpu.memory_space<vmem>>, vector<16x8xf32>
    %44 = arith.addf %42, %43 : vector<16x8xf32>
    %c56 = arith.constant 56 : index
    %c0_14 = arith.constant 0 : index
    %45 = vector.load %arg3[%c56, %c0_14] : memref<88x256xf32, #tpu.memory_space<vmem>>, vector<1x8xf32>
    %c57 = arith.constant 57 : index
    %c0_15 = arith.constant 0 : index
    %46 = vector.load %arg3[%c57, %c0_15] : memref<88x256xf32, #tpu.memory_space<vmem>>, vector<1x8xf32>
    %cst_16 = arith.constant dense<0.000000e+00> : vector<16xf32>
    %47 = vector.multi_reduction <add>, %44, %cst_16 [1] : vector<16x8xf32> to vector<16xf32>
    %48 = vector.shape_cast %47 : vector<16xf32> to vector<16x1xf32>
    %cst_17 = arith.constant 8.000000e+00 : f32
    %49 = vector.broadcast %cst_17 : f32 to vector<16x1xf32>
    %50 = arith.divf %48, %49 : vector<16x1xf32>
    %51 = vector.broadcast %50 : vector<16x1xf32> to vector<16x8xf32>
    %52 = arith.subf %44, %51 : vector<16x8xf32>
    %53 = arith.mulf %52, %52 : vector<16x8xf32>
    %cst_18 = arith.constant dense<0.000000e+00> : vector<16xf32>
    %54 = vector.multi_reduction <add>, %53, %cst_18 [1] : vector<16x8xf32> to vector<16xf32>
    %55 = vector.shape_cast %54 : vector<16xf32> to vector<16x1xf32>
    %cst_19 = arith.constant 8.000000e+00 : f32
    %56 = vector.broadcast %cst_19 : f32 to vector<16x1xf32>
    %57 = arith.divf %55, %56 : vector<16x1xf32>
    %58 = vector.broadcast %50 : vector<16x1xf32> to vector<16x8xf32>
    %59 = arith.subf %44, %58 : vector<16x8xf32>
    %cst_20 = arith.constant 9.99999974E-6 : f32
    %60 = vector.broadcast %cst_20 : f32 to vector<16x1xf32>
    %61 = arith.addf %57, %60 : vector<16x1xf32>
    %62 = math.rsqrt %61 : vector<16x1xf32>
    %63 = vector.broadcast %62 : vector<16x1xf32> to vector<16x8xf32>
    %64 = arith.mulf %59, %63 : vector<16x8xf32>
    %65 = vector.broadcast %45 : vector<1x8xf32> to vector<16x8xf32>
    %66 = arith.mulf %64, %65 : vector<16x8xf32>
    %67 = vector.broadcast %46 : vector<1x8xf32> to vector<16x8xf32>
    %68 = arith.addf %66, %67 : vector<16x8xf32>
    %c32 = arith.constant 32 : index
    %c0_21 = arith.constant 0 : index
    %69 = vector.load %arg3[%c32, %c0_21] : memref<88x256xf32, #tpu.memory_space<vmem>>, vector<8x16xf32>
    %cst_22 = arith.constant dense<0.000000e+00> : vector<16x16xf32>
    %70 = tpu.matmul %68, %69, %cst_22 {dimension_numbers = #tpu.dot_dimension_numbers<[1], [0], [0], [1], [0, 0, 1, 1], [], []>, precision = #tpu.contract_precision<fp32>} : vector<16x8xf32>, vector<8x16xf32>, vector<16x16xf32> -> vector<16x16xf32>
    %c58 = arith.constant 58 : index
    %c0_23 = arith.constant 0 : index
    %71 = vector.load %arg3[%c58, %c0_23] : memref<88x256xf32, #tpu.memory_space<vmem>>, vector<1x16xf32>
    %72 = vector.broadcast %71 : vector<1x16xf32> to vector<16x16xf32>
    %73 = arith.addf %70, %72 : vector<16x16xf32>
    %74 = tpu.concatenate %73, %73, %73 in 0 : vector<16x16xf32>, vector<16x16xf32>, vector<16x16xf32> -> vector<48x16xf32>
    %cst_24 = arith.constant dense<0.000000e+00> : vector<48x256xf32>
    %75 = tpu.matmul %74, %27, %cst_24 {dimension_numbers = #tpu.dot_dimension_numbers<[1], [0], [0], [1], [0, 0, 1, 1], [], []>, precision = #tpu.contract_precision<fp32>} : vector<48x16xf32>, vector<16x256xf32>, vector<48x256xf32> -> vector<48x256xf32>
    %c0_25 = arith.constant 0 : index
    %c0_26 = arith.constant 0 : index
    %76 = vector.load %arg2[%c0_25, %c0_26] : memref<48x256xf32, #tpu.memory_space<vmem>>, vector<48x256xf32>
    %77 = arith.mulf %75, %76 : vector<48x256xf32>
    %cst_27 = arith.constant dense<0.000000e+00> : vector<48x16xf32>
    %78 = tpu.matmul %77, %41, %cst_27 {dimension_numbers = #tpu.dot_dimension_numbers<[1], [0], [0], [1], [0, 0, 1, 1], [], []>, precision = #tpu.contract_precision<fp32>} : vector<48x256xf32>, vector<256x16xf32>, vector<48x16xf32> -> vector<48x16xf32>
    %cst_28 = arith.constant 5.000000e-01 : f32
    %79 = vector.broadcast %cst_28 : f32 to vector<48x16xf32>
    %80 = arith.mulf %79, %78 : vector<48x16xf32>
    %81 = math.tanh %80 : vector<48x16xf32>
    %cst_29 = arith.constant 1.000000e+00 : f32
    %82 = vector.broadcast %cst_29 : f32 to vector<48x16xf32>
    %83 = arith.addf %81, %82 : vector<48x16xf32>
    %cst_30 = arith.constant 5.000000e-01 : f32
    %84 = vector.broadcast %cst_30 : f32 to vector<48x16xf32>
    %85 = arith.mulf %84, %83 : vector<48x16xf32>
    %86 = arith.mulf %78, %85 : vector<48x16xf32>
    %87 = vector.extract_strided_slice %86 {offsets = [0, 0], sizes = [16, 16], strides = [1, 1]} : vector<48x16xf32> to vector<16x16xf32>
    %88 = vector.extract_strided_slice %86 {offsets = [16, 0], sizes = [16, 16], strides = [1, 1]} : vector<48x16xf32> to vector<16x16xf32>
    %89 = vector.extract_strided_slice %86 {offsets = [32, 0], sizes = [16, 16], strides = [1, 1]} : vector<48x16xf32> to vector<16x16xf32>
    %c59 = arith.constant 59 : index
    %c0_31 = arith.constant 0 : index
    %90 = vector.load %arg3[%c59, %c0_31] : memref<88x256xf32, #tpu.memory_space<vmem>>, vector<1x16xf32>
    %91 = vector.broadcast %90 : vector<1x16xf32> to vector<16x16xf32>
    %92 = arith.mulf %89, %91 : vector<16x16xf32>
    %c61 = arith.constant 61 : index
    %c0_32 = arith.constant 0 : index
    %93 = vector.load %arg3[%c61, %c0_32] : memref<88x256xf32, #tpu.memory_space<vmem>>, vector<1x16xf32>
    %94 = vector.broadcast %93 : vector<1x16xf32> to vector<16x16xf32>
    %95 = arith.addf %92, %94 : vector<16x16xf32>
    %c60 = arith.constant 60 : index
    %c0_33 = arith.constant 0 : index
    %96 = vector.load %arg3[%c60, %c0_33] : memref<88x256xf32, #tpu.memory_space<vmem>>, vector<1x16xf32>
    %97 = vector.broadcast %96 : vector<1x16xf32> to vector<16x16xf32>
    %98 = arith.mulf %89, %97 : vector<16x16xf32>
    %c62 = arith.constant 62 : index
    %c0_34 = arith.constant 0 : index
    %99 = vector.load %arg3[%c62, %c0_34] : memref<88x256xf32, #tpu.memory_space<vmem>>, vector<1x16xf32>
    %100 = vector.broadcast %99 : vector<1x16xf32> to vector<16x16xf32>
    %101 = arith.addf %98, %100 : vector<16x16xf32>
    %cst_35 = arith.constant dense<0.000000e+00> : vector<16x16xf32>
    %102 = tpu.matmul %95, %101, %cst_35 {dimension_numbers = #tpu.dot_dimension_numbers<[1], [1], [0], [0], [0, 0, 1, 0], [], []>, precision = #tpu.contract_precision<fp32>} : vector<16x16xf32>, vector<16x16xf32>, vector<16x16xf32> -> vector<16x16xf32>
    %cst_36 = arith.constant 2.500000e-01 : f32
    %103 = vector.broadcast %cst_36 : f32 to vector<16x16xf32>
    %104 = arith.mulf %102, %103 : vector<16x16xf32>
    %105 = arith.addf %104, %13 : vector<16x16xf32>
    %cst_37 = arith.constant dense<0xFF800000> : vector<16xf32>
    %106 = vector.multi_reduction <maximumf>, %105, %cst_37 [1] : vector<16x16xf32> to vector<16xf32>
    %107 = vector.shape_cast %106 : vector<16xf32> to vector<16x1xf32>
    %108 = vector.broadcast %107 : vector<16x1xf32> to vector<16x16xf32>
    %109 = arith.subf %105, %108 : vector<16x16xf32>
    %110 = math.exp %109 : vector<16x16xf32>
    %cst_38 = arith.constant dense<0.000000e+00> : vector<16xf32>
    %111 = vector.multi_reduction <add>, %110, %cst_38 [1] : vector<16x16xf32> to vector<16xf32>
    %112 = vector.shape_cast %111 : vector<16xf32> to vector<16x1xf32>
    %113 = arith.mulf %95, %101 : vector<16x16xf32>
    %cst_39 = arith.constant dense<0.000000e+00> : vector<16xf32>
    %114 = vector.multi_reduction <add>, %113, %cst_39 [1] : vector<16x16xf32> to vector<16xf32>
    %115 = vector.shape_cast %114 : vector<16xf32> to vector<16x1xf32>
    %cst_40 = arith.constant 2.500000e-01 : f32
    %116 = vector.broadcast %cst_40 : f32 to vector<16x1xf32>
    %117 = arith.mulf %115, %116 : vector<16x1xf32>
    %118 = arith.subf %117, %107 : vector<16x1xf32>
    %119 = math.exp %118 : vector<16x1xf32>
    %120 = arith.divf %119, %112 : vector<16x1xf32>
    %121 = vector.broadcast %120 : vector<16x1xf32> to vector<16x16xf32>
    %122 = arith.mulf %121, %88 : vector<16x16xf32>
    %123 = arith.mulf %122, %87 : vector<16x16xf32>
    %c40 = arith.constant 40 : index
    %c0_41 = arith.constant 0 : index
    %124 = vector.load %arg3[%c40, %c0_41] : memref<88x256xf32, #tpu.memory_space<vmem>>, vector<16x8xf32>
    %cst_42 = arith.constant dense<0.000000e+00> : vector<16x8xf32>
    %125 = tpu.matmul %123, %124, %cst_42 {dimension_numbers = #tpu.dot_dimension_numbers<[1], [0], [0], [1], [0, 0, 1, 1], [], []>, precision = #tpu.contract_precision<fp32>} : vector<16x16xf32>, vector<16x8xf32>, vector<16x8xf32> -> vector<16x8xf32>
    %c63 = arith.constant 63 : index
    %c0_43 = arith.constant 0 : index
    %126 = vector.load %arg3[%c63, %c0_43] : memref<88x256xf32, #tpu.memory_space<vmem>>, vector<1x8xf32>
    %127 = vector.broadcast %126 : vector<1x8xf32> to vector<16x8xf32>
    %128 = arith.addf %125, %127 : vector<16x8xf32>
    %c0_44 = arith.constant 0 : index
    %c0_45 = arith.constant 0 : index
    %129 = vector.load %arg3[%c0_44, %c0_45] : memref<88x256xf32, #tpu.memory_space<vmem>>, vector<8x256xf32>
    %cst_46 = arith.constant dense<0.000000e+00> : vector<16x256xf32>
    %130 = tpu.matmul %128, %129, %cst_46 {dimension_numbers = #tpu.dot_dimension_numbers<[1], [0], [0], [1], [0, 0, 1, 1], [], []>, precision = #tpu.contract_precision<fp32>} : vector<16x8xf32>, vector<8x256xf32>, vector<16x256xf32> -> vector<16x256xf32>
    %c64 = arith.constant 64 : index
    %c0_47 = arith.constant 0 : index
    %131 = vector.load %arg3[%c64, %c0_47] : memref<88x256xf32, #tpu.memory_space<vmem>>, vector<1x256xf32>
    %132 = vector.broadcast %131 : vector<1x256xf32> to vector<16x256xf32>
    %133 = arith.addf %130, %132 : vector<16x256xf32>
    %cst_48 = arith.constant 0.000000e+00 : f32
    %134 = vector.broadcast %cst_48 : f32 to vector<16x256xf32>
    %135 = arith.maximumf %133, %134 : vector<16x256xf32>
    %c0_49 = arith.constant 0 : index
    %c0_50 = arith.constant 0 : index
    %136 = vector.load %arg4[%c0_49, %c0_50] : memref<256x32xf32, #tpu.memory_space<vmem>>, vector<256x32xf32>
    %cst_51 = arith.constant dense<0.000000e+00> : vector<16x32xf32>
    %137 = tpu.matmul %135, %136, %cst_51 {dimension_numbers = #tpu.dot_dimension_numbers<[1], [0], [0], [1], [0, 0, 1, 1], [], []>, precision = #tpu.contract_precision<fp32>} : vector<16x256xf32>, vector<256x32xf32>, vector<16x32xf32> -> vector<16x32xf32>
    %c65 = arith.constant 65 : index
    %c0_52 = arith.constant 0 : index
    %138 = vector.load %arg3[%c65, %c0_52] : memref<88x256xf32, #tpu.memory_space<vmem>>, vector<1x32xf32>
    %139 = vector.broadcast %138 : vector<1x32xf32> to vector<16x32xf32>
    %140 = arith.addf %137, %139 : vector<16x32xf32>
    %c67 = arith.constant 67 : index
    %c0_53 = arith.constant 0 : index
    %141 = vector.load %arg3[%c67, %c0_53] : memref<88x256xf32, #tpu.memory_space<vmem>>, vector<16x4xf32>
    %142 = vector.extract_strided_slice %141 {offsets = [0, 0], sizes = [16, 1], strides = [1, 1]} : vector<16x4xf32> to vector<16x1xf32>
    %143 = vector.extract_strided_slice %141 {offsets = [0, 1], sizes = [16, 1], strides = [1, 1]} : vector<16x4xf32> to vector<16x1xf32>
    %144 = vector.extract_strided_slice %141 {offsets = [0, 2], sizes = [16, 1], strides = [1, 1]} : vector<16x4xf32> to vector<16x1xf32>
    %145 = vector.extract_strided_slice %141 {offsets = [0, 3], sizes = [16, 1], strides = [1, 1]} : vector<16x4xf32> to vector<16x1xf32>
    %cst_54 = arith.constant dense<0.000000e+00> : vector<16x32xf32>
    %146 = tpu.matmul %16, %140, %cst_54 {dimension_numbers = #tpu.dot_dimension_numbers<[1], [0], [0], [1], [0, 0, 1, 1], [], []>, precision = #tpu.contract_precision<fp32>} : vector<16x16xf32>, vector<16x32xf32>, vector<16x32xf32> -> vector<16x32xf32>
    %147 = arith.subf %140, %146 : vector<16x32xf32>
    %148 = arith.mulf %147, %147 : vector<16x32xf32>
    %cst_55 = arith.constant dense<0.000000e+00> : vector<16x32xf32>
    %149 = tpu.matmul %16, %148, %cst_55 {dimension_numbers = #tpu.dot_dimension_numbers<[1], [0], [0], [1], [0, 0, 1, 1], [], []>, precision = #tpu.contract_precision<fp32>} : vector<16x16xf32>, vector<16x32xf32>, vector<16x32xf32> -> vector<16x32xf32>
    %cst_56 = arith.constant 9.99999974E-6 : f32
    %150 = vector.broadcast %cst_56 : f32 to vector<16x32xf32>
    %151 = arith.addf %149, %150 : vector<16x32xf32>
    %152 = math.rsqrt %151 : vector<16x32xf32>
    %153 = arith.mulf %147, %152 : vector<16x32xf32>
    %154 = vector.broadcast %142 : vector<16x1xf32> to vector<16x32xf32>
    %155 = arith.mulf %153, %154 : vector<16x32xf32>
    %156 = vector.broadcast %143 : vector<16x1xf32> to vector<16x32xf32>
    %157 = arith.addf %155, %156 : vector<16x32xf32>
    %c8 = arith.constant 8 : index
    %c0_57 = arith.constant 0 : index
    %158 = vector.load %arg3[%c8, %c0_57] : memref<88x256xf32, #tpu.memory_space<vmem>>, vector<8x32xf32>
    %cst_58 = arith.constant dense<0.000000e+00> : vector<16x32xf32>
    %159 = tpu.matmul %42, %158, %cst_58 {dimension_numbers = #tpu.dot_dimension_numbers<[1], [0], [0], [1], [0, 0, 1, 1], [], []>, precision = #tpu.contract_precision<fp32>} : vector<16x8xf32>, vector<8x32xf32>, vector<16x32xf32> -> vector<16x32xf32>
    %c66 = arith.constant 66 : index
    %c0_59 = arith.constant 0 : index
    %160 = vector.load %arg3[%c66, %c0_59] : memref<88x256xf32, #tpu.memory_space<vmem>>, vector<1x32xf32>
    %161 = vector.broadcast %160 : vector<1x32xf32> to vector<16x32xf32>
    %162 = arith.addf %159, %161 : vector<16x32xf32>
    %163 = arith.addf %162, %157 : vector<16x32xf32>
    %cst_60 = arith.constant 0.000000e+00 : f32
    %164 = vector.broadcast %cst_60 : f32 to vector<16x32xf32>
    %165 = arith.maximumf %163, %164 : vector<16x32xf32>
    %cst_61 = arith.constant dense<0.000000e+00> : vector<16x32xf32>
    %166 = tpu.matmul %16, %165, %cst_61 {dimension_numbers = #tpu.dot_dimension_numbers<[1], [0], [0], [1], [0, 0, 1, 1], [], []>, precision = #tpu.contract_precision<fp32>} : vector<16x16xf32>, vector<16x32xf32>, vector<16x32xf32> -> vector<16x32xf32>
    %167 = arith.subf %165, %166 : vector<16x32xf32>
    %168 = arith.mulf %167, %167 : vector<16x32xf32>
    %cst_62 = arith.constant dense<0.000000e+00> : vector<16x32xf32>
    %169 = tpu.matmul %16, %168, %cst_62 {dimension_numbers = #tpu.dot_dimension_numbers<[1], [0], [0], [1], [0, 0, 1, 1], [], []>, precision = #tpu.contract_precision<fp32>} : vector<16x16xf32>, vector<16x32xf32>, vector<16x32xf32> -> vector<16x32xf32>
    %cst_63 = arith.constant 9.99999974E-6 : f32
    %170 = vector.broadcast %cst_63 : f32 to vector<16x32xf32>
    %171 = arith.addf %169, %170 : vector<16x32xf32>
    %172 = math.rsqrt %171 : vector<16x32xf32>
    %173 = arith.mulf %167, %172 : vector<16x32xf32>
    %174 = vector.broadcast %144 : vector<16x1xf32> to vector<16x32xf32>
    %175 = arith.mulf %173, %174 : vector<16x32xf32>
    %176 = vector.broadcast %145 : vector<16x1xf32> to vector<16x32xf32>
    %177 = arith.addf %175, %176 : vector<16x32xf32>
    %c0_64 = arith.constant 0 : index
    %c0_65 = arith.constant 0 : index
    %178 = vector.load %arg5[%c0_64, %c0_65] : memref<16x32xf32, #tpu.memory_space<vmem>>, vector<16x32xf32>
    tpu.vector_store %arg5[%c0_64, %c0_65], %177 {strides = array<i32>} : memref<16x32xf32, #tpu.memory_space<vmem>>, vector<16x32xf32>,
    return
  }
  func.func @transform_0(%arg0: i32) -> (i32, i32) {
    %c0_i32 = arith.constant 0 : i32
    %c0_i32_0 = arith.constant 0 : i32
    %c0_i32_1 = arith.constant 0 : i32
    return %c0_i32, %c0_i32_0 : i32, i32
  }
  func.func @transform_1(%arg0: i32) -> (i32, i32) {
    %c0_i32 = arith.constant 0 : i32
    %c0_i32_0 = arith.constant 0 : i32
    %c0_i32_1 = arith.constant 0 : i32
    return %c0_i32, %c0_i32_0 : i32, i32
  }
  func.func @transform_2(%arg0: i32) -> (i32, i32) {
    %c0_i32 = arith.constant 0 : i32
    %c0_i32_0 = arith.constant 0 : i32
    %c0_i32_1 = arith.constant 0 : i32
    return %c0_i32, %c0_i32_0 : i32, i32
  }
  func.func @transform_3(%arg0: i32) -> (i32, i32) {
    %c0_i32 = arith.constant 0 : i32
    %c0_i32_0 = arith.constant 0 : i32
    %c0_i32_1 = arith.constant 0 : i32
    return %c0_i32, %c0_i32_0 : i32, i32
  }
  func.func @transform_4(%arg0: i32) -> (i32, i32) {
    %c0_i32 = arith.constant 0 : i32
    %c0_i32_0 = arith.constant 0 : i32
    %c0_i32_1 = arith.constant 0 : i32
    return %c0_i32, %c0_i32_0 : i32, i32
  }
}

</mosaic_0001>

<llo_original>
// kernel: forward.1
$region0: #{forward.1}
  #allocation0 [shape = 'u32[]', space=smem, size = 0x4, offset = 0x4, fixed_abs, tag = 'smem constant byte address 0x4 - core index']
  #allocation1 [shape = 'u32[144,128]{1,0:T(1,128)}', space=vmem, size = 0x12000, scoped, tag = 'internal scratch']
  %s0 = inlined_call_operand.vmem [shape: f32[16,8], index: 0, kind: input, shape index: {}]
  %s1 = inlined_call_operand.vmem [shape: f32[48,256], index: 1, kind: input, shape index: {}]
  %s2 = inlined_call_operand.vmem [shape: f32[88,256], index: 2, kind: input, shape index: {}]
  %s3 = inlined_call_operand.hbm [shape: f32[256,32], index: 3, kind: input, shape index: {}]
  %s4 = inlined_call_operand.vmem [shape: f32[16,32], index: 4, kind: output, shape index: {}]
  %s5 = sld [smem:[#allocation0]]
  $region30: #{forward.1} parent=0
    _
  %s7 = ssub.s32 1, %s5
  %s8 = scalar_select 0, %s7, %s5
  $region1: #{forward.1} parent=0
    #allocation2 [shape = 'u8[131072]{0}', space=vmem, size = 0x20000, scoped, tag = 'input window, operand 3, single buffered']
    #allocation3 [shape = 's32[1]{0}', space=sflag, size = 0x4, scoped, tag = 'scoped memory for forward.1']
    %9 = vsyncpa [#allocation3], 0
    // Predicated region
    $region2: #{forward.1} parent=1 // pred_check
      _
    $region3: #{forward.1} parent=1 // pred_check_branch
      %11 = sbr.rel (0) target = $region5
    $region4: #{forward.1} parent=1 // pred_region
      _
    $region5: #{forward.1} parent=1 // pred_fallthru
      _
    // Predicated region
    $region6: #{forward.1} parent=1 // pred_check
      _
    $region7: #{forward.1} parent=1 // pred_check_branch
      %13 = sbr.rel (0) target = $region9
    $region8: #{forward.1} parent=1 // pred_region
      _
    $region9: #{forward.1} parent=1 // pred_fallthru
      _
    // Predicated region
    $region10: #{forward.1} parent=1 // pred_check
      _
    $region11: #{forward.1} parent=1 // pred_check_branch
      %15 = sbr.rel (0) target = $region13
    $region12: #{forward.1} parent=1 // pred_region
      _
    $region13: #{forward.1} parent=1 // pred_fallthru
      _
    // Predicated region
    $region14: #{forward.1} parent=1 // pred_check
      _
    $region15: #{forward.1} parent=1 // pred_check_branch
      %17 = sbr.rel (0) target = $region17
    $region16: #{forward.1} parent=1 // pred_region
      %s19 = ssub.s32 4096, 4096
      %20 = vsyncadd [#allocation3], %s19
      %s21 = sshll.u32 [#allocation2], 4
      %s22 = int_to_ptr.vmem [resolvable:$true] %s21
      %27 = dma.hbm_to_vmem [thread:$0]  %s3, 4096, %s22, [#allocation3], 128, 128, 8
    $region17: #{forward.1} parent=1 // pred_fallthru
      _
    // Predicated region
    $region18: #{forward.1} parent=1 // pred_check
      _
    $region19: #{forward.1} parent=1 // pred_check_branch
      %29 = sbr.rel (0) target = $region21
    $region20: #{forward.1} parent=1 // pred_region
      %30 = dma.done [#allocation3], 4096
    $region21: #{forward.1} parent=1 // pred_fallthru
      _
    %v31 = vlaneseq
    %v32 = vshrl.u32 %v31, 7
    %v33 = vadd.s32 %v32, 8
    %v34 = vcvt.s32.f32 %v32
    %v35 = vcvt.s32.f32 %v33
    %v36 = vlaneseq
    %v37 = vand.u32 %v36, 127
    %v38 = vcvt.s32.f32 %v37
    %v39 = vrcp.pop 8.0
    %v40 = vmul.f32 %v34, %v39
    %v41 = vmul.f32 %v35, %v39
    %v42 = vfloor.f32 %v40
    %v43 = vfloor.f32 %v41
    %v44 = vmul.f32 %v38, %v39
    %v45 = vfloor.f32 %v44
    %vm46 = vcmp.eq.f32.partialorder %v42, %v45
    %vm47 = vcmp.eq.f32.partialorder %v43, %v45
    %v48 = vsel %vm46, 0.0, -1e+30
    %v49 = vsel %vm47, 0.0, -1e+30
    %v50 = vsel %vm46, 0.125, 0.0
    %v51 = vsel %vm47, 0.125, 0.0
    %v52 = vadd.s32 %v37, 128
    %v53 = vcvt.s32.f32 %v52
    %v54 = vrcp.pop 16.0
    %v55 = vmul.f32 %v38, %v54
    %v56 = vmul.f32 %v53, %v54
    %v57 = vfloor.f32 %v55
    %v58 = vfloor.f32 %v56
    %vm59 = vcmp.eq.f32.partialorder %v57, %v34
    %vm60 = vcmp.eq.f32.partialorder %v58, %v34
    %vm61 = vcmp.eq.f32.partialorder %v57, %v35
    %vm62 = vcmp.eq.f32.partialorder %v58, %v35
    %v63 = vsel %vm59, 1.0, 0.0
    %v64 = vsel %vm60, 1.0, 0.0
    %v65 = vsel %vm61, 1.0, 0.0
    %v66 = vsel %vm62, 1.0, 0.0
    %v67 = vadd.s32 %v32, 16
    %v68 = vadd.s32 %v32, 24
    %v69 = vadd.s32 %v32, 32
    %v70 = vadd.s32 %v32, 40
    %v71 = vadd.s32 %v32, 48
    %v72 = vadd.s32 %v32, 56
    %v73 = vadd.s32 %v32, 64
    %v74 = vadd.s32 %v32, 72
    %v75 = vadd.s32 %v32, 80
    %v76 = vadd.s32 %v32, 88
    %v77 = vadd.s32 %v32, 96
    %v78 = vadd.s32 %v32, 104
    %v79 = vadd.s32 %v32, 112
    %v80 = vadd.s32 %v32, 120
    %v81 = vadd.s32 %v32, 128
    %v82 = vadd.s32 %v32, 136
    %v83 = vadd.s32 %v32, 144
    %v84 = vadd.s32 %v32, 152
    %v85 = vadd.s32 %v32, 160
    %v86 = vadd.s32 %v32, 168
    %v87 = vadd.s32 %v32, 176
    %v88 = vadd.s32 %v32, 184
    %v89 = vadd.s32 %v32, 192
    %v90 = vadd.s32 %v32, 200
    %v91 = vadd.s32 %v32, 208
    %v92 = vadd.s32 %v32, 216
    %v93 = vadd.s32 %v32, 224
    %v94 = vadd.s32 %v32, 232
    %v95 = vadd.s32 %v32, 240
    %v96 = vadd.s32 %v32, 248
    %v97 = vcvt.s32.f32 %v67
    %v98 = vcvt.s32.f32 %v68
    %v99 = vcvt.s32.f32 %v69
    %v100 = vcvt.s32.f32 %v70
    %v101 = vcvt.s32.f32 %v71
    %v102 = vcvt.s32.f32 %v72
    %v103 = vcvt.s32.f32 %v73
    %v104 = vcvt.s32.f32 %v74
    %v105 = vcvt.s32.f32 %v75
    %v106 = vcvt.s32.f32 %v76
    %v107 = vcvt.s32.f32 %v77
    %v108 = vcvt.s32.f32 %v78
    %v109 = vcvt.s32.f32 %v79
    %v110 = vcvt.s32.f32 %v80
    %v111 = vcvt.s32.f32 %v81
    %v112 = vcvt.s32.f32 %v82
    %v113 = vcvt.s32.f32 %v83
    %v114 = vcvt.s32.f32 %v84
    %v115 = vcvt.s32.f32 %v85
    %v116 = vcvt.s32.f32 %v86
    %v117 = vcvt.s32.f32 %v87
    %v118 = vcvt.s32.f32 %v88
    %v119 = vcvt.s32.f32 %v89
    %v120 = vcvt.s32.f32 %v90
    %v121 = vcvt.s32.f32 %v91
    %v122 = vcvt.s32.f32 %v92
    %v123 = vcvt.s32.f32 %v93
    %v124 = vcvt.s32.f32 %v94
    %v125 = vcvt.s32.f32 %v95
    %v126 = vcvt.s32.f32 %v96
    %v127 = vmul.f32 %v34, %v54
    %v128 = vmul.f32 %v35, %v54
    %v129 = vmul.f32 %v97, %v54
    %v130 = vmul.f32 %v98, %v54
    %v131 = vmul.f32 %v99, %v54
    %v132 = vmul.f32 %v100, %v54
    %v133 = vmul.f32 %v101, %v54
    %v134 = vmul.f32 %v102, %v54
    %v135 = vmul.f32 %v103, %v54
    %v136 = vmul.f32 %v104, %v54
    %v137 = vmul.f32 %v105, %v54
    %v138 = vmul.f32 %v106, %v54
    %v139 = vmul.f32 %v107, %v54
    %v140 = vmul.f32 %v108, %v54
    %v141 = vmul.f32 %v109, %v54
    %v142 = vmul.f32 %v110, %v54
    %v143 = vmul.f32 %v111, %v54
    %v144 = vmul.f32 %v112, %v54
    %v145 = vmul.f32 %v113, %v54
    %v146 = vmul.f32 %v114, %v54
    %v147 = vmul.f32 %v115, %v54
    %v148 = vmul.f32 %v116, %v54
    %v149 = vmul.f32 %v117, %v54
    %v150 = vmul.f32 %v118, %v54
    %v151 = vmul.f32 %v119, %v54
    %v152 = vmul.f32 %v120, %v54
    %v153 = vmul.f32 %v121, %v54
    %v154 = vmul.f32 %v122, %v54
    %v155 = vmul.f32 %v123, %v54
    %v156 = vmul.f32 %v124, %v54
    %v157 = vmul.f32 %v125, %v54
    %v158 = vmul.f32 %v126, %v54
    %v159 = vfloor.f32 %v127
    %v160 = vfloor.f32 %v128
    %v161 = vfloor.f32 %v129
    %v162 = vfloor.f32 %v130
    %v163 = vfloor.f32 %v131
    %v164 = vfloor.f32 %v132
    %v165 = vfloor.f32 %v133
    %v166 = vfloor.f32 %v134
    %v167 = vfloor.f32 %v135
    %v168 = vfloor.f32 %v136
    %v169 = vfloor.f32 %v137
    %v170 = vfloor.f32 %v138
    %v171 = vfloor.f32 %v139
    %v172 = vfloor.f32 %v140
    %v173 = vfloor.f32 %v141
    %v174 = vfloor.f32 %v142
    %v175 = vfloor.f32 %v143
    %v176 = vfloor.f32 %v144
    %v177 = vfloor.f32 %v145
    %v178 = vfloor.f32 %v146
    %v179 = vfloor.f32 %v147
    %v180 = vfloor.f32 %v148
    %v181 = vfloor.f32 %v149
    %v182 = vfloor.f32 %v150
    %v183 = vfloor.f32 %v151
    %v184 = vfloor.f32 %v152
    %v185 = vfloor.f32 %v153
    %v186 = vfloor.f32 %v154
    %v187 = vfloor.f32 %v155
    %v188 = vfloor.f32 %v156
    %v189 = vfloor.f32 %v157
    %v190 = vfloor.f32 %v158
    %v191 = vmul.f32 %v159, 16.0
    %v192 = vmul.f32 %v160, 16.0
    %v193 = vmul.f32 %v161, 16.0
    %v194 = vmul.f32 %v162, 16.0
    %v195 = vmul.f32 %v163, 16.0
    %v196 = vmul.f32 %v164, 16.0
    %v197 = vmul.f32 %v165, 16.0
    %v198 = vmul.f32 %v166, 16.0
    %v199 = vmul.f32 %v167, 16.0
    %v200 = vmul.f32 %v168, 16.0
    %v201 = vmul.f32 %v169, 16.0
    %v202 = vmul.f32 %v170, 16.0
    %v203 = vmul.f32 %v171, 16.0
    %v204 = vmul.f32 %v172, 16.0
    %v205 = vmul.f32 %v173, 16.0
    %v206 = vmul.f32 %v174, 16.0
    %v207 = vmul.f32 %v175, 16.0
    %v208 = vmul.f32 %v176, 16.0
    %v209 = vmul.f32 %v177, 16.0
    %v210 = vmul.f32 %v178, 16.0
    %v211 = vmul.f32 %v179, 16.0
    %v212 = vmul.f32 %v180, 16.0
    %v213 = vmul.f32 %v181, 16.0
    %v214 = vmul.f32 %v182, 16.0
    %v215 = vmul.f32 %v183, 16.0
    %v216 = vmul.f32 %v184, 16.0
    %v217 = vmul.f32 %v185, 16.0
    %v218 = vmul.f32 %v186, 16.0
    %v219 = vmul.f32 %v187, 16.0
    %v220 = vmul.f32 %v188, 16.0
    %v221 = vmul.f32 %v189, 16.0
    %v222 = vmul.f32 %v190, 16.0
    %v223 = vsub.f32 %v34, %v191
    %v224 = vsub.f32 %v35, %v192
    %v225 = vsub.f32 %v97, %v193
    %v226 = vsub.f32 %v98, %v194
    %v227 = vsub.f32 %v99, %v195
    %v228 = vsub.f32 %v100, %v196
    %v229 = vsub.f32 %v101, %v197
    %v230 = vsub.f32 %v102, %v198
    %v231 = vsub.f32 %v103, %v199
    %v232 = vsub.f32 %v104, %v200
    %v233 = vsub.f32 %v105, %v201
    %v234 = vsub.f32 %v106, %v202
    %v235 = vsub.f32 %v107, %v203
    %v236 = vsub.f32 %v108, %v204
    %v237 = vsub.f32 %v109, %v205
    %v238 = vsub.f32 %v110, %v206
    %v239 = vsub.f32 %v111, %v207
    %v240 = vsub.f32 %v112, %v208
    %v241 = vsub.f32 %v113, %v209
    %v242 = vsub.f32 %v114, %v210
    %v243 = vsub.f32 %v115, %v211
    %v244 = vsub.f32 %v116, %v212
    %v245 = vsub.f32 %v117, %v213
    %v246 = vsub.f32 %v118, %v214
    %v247 = vsub.f32 %v119, %v215
    %v248 = vsub.f32 %v120, %v216
    %v249 = vsub.f32 %v121, %v217
    %v250 = vsub.f32 %v122, %v218
    %v251 = vsub.f32 %v123, %v219
    %v252 = vsub.f32 %v124, %v220
    %v253 = vsub.f32 %v125, %v221
    %v254 = vsub.f32 %v126, %v222
    %vm255 = vcmp.eq.f32.partialorder %v223, %v38
    %vm256 = vcmp.eq.f32.partialorder %v224, %v38
    %vm257 = vcmp.eq.f32.partialorder %v225, %v38
    %vm258 = vcmp.eq.f32.partialorder %v226, %v38
    %vm259 = vcmp.eq.f32.partialorder %v227, %v38
    %vm260 = vcmp.eq.f32.partialorder %v228, %v38
    %vm261 = vcmp.eq.f32.partialorder %v229, %v38
    %vm262 = vcmp.eq.f32.partialorder %v230, %v38
    %vm263 = vcmp.eq.f32.partialorder %v231, %v38
    %vm264 = vcmp.eq.f32.partialorder %v232, %v38
    %vm265 = vcmp.eq.f32.partialorder %v233, %v38
    %vm266 = vcmp.eq.f32.partialorder %v234, %v38
    %vm267 = vcmp.eq.f32.partialorder %v235, %v38
    %vm268 = vcmp.eq.f32.partialorder %v236, %v38
    %vm269 = vcmp.eq.f32.partialorder %v237, %v38
    %vm270 = vcmp.eq.f32.partialorder %v238, %v38
    %vm271 = vcmp.eq.f32.partialorder %v239, %v38
    %vm272 = vcmp.eq.f32.partialorder %v240, %v38
    %vm273 = vcmp.eq.f32.partialorder %v241, %v38
    %vm274 = vcmp.eq.f32.partialorder %v242, %v38
    %vm275 = vcmp.eq.f32.partialorder %v243, %v38
    %vm276 = vcmp.eq.f32.partialorder %v244, %v38
    %vm277 = vcmp.eq.f32.partialorder %v245, %v38
    %vm278 = vcmp.eq.f32.partialorder %v246, %v38
    %vm279 = vcmp.eq.f32.partialorder %v247, %v38
    %vm280 = vcmp.eq.f32.partialorder %v248, %v38
    %vm281 = vcmp.eq.f32.partialorder %v249, %v38
    %vm282 = vcmp.eq.f32.partialorder %v250, %v38
    %vm283 = vcmp.eq.f32.partialorder %v251, %v38
    %vm284 = vcmp.eq.f32.partialorder %v252, %v38
    %vm285 = vcmp.eq.f32.partialorder %v253, %v38
    %vm286 = vcmp.eq.f32.partialorder %v254, %v38
    %v287 = vsel %vm255, 1.0, 0.0
    %v288 = vsel %vm256, 1.0, 0.0
    %v289 = vsel %vm257, 1.0, 0.0
    %v290 = vsel %vm258, 1.0, 0.0
    %v291 = vsel %vm259, 1.0, 0.0
    %v292 = vsel %vm260, 1.0, 0.0
    %v293 = vsel %vm261, 1.0, 0.0
    %v294 = vsel %vm262, 1.0, 0.0
    %v295 = vsel %vm263, 1.0, 0.0
    %v296 = vsel %vm264, 1.0, 0.0
    %v297 = vsel %vm265, 1.0, 0.0
    %v298 = vsel %vm266, 1.0, 0.0
    %v299 = vsel %vm267, 1.0, 0.0
    %v300 = vsel %vm268, 1.0, 0.0
    %v301 = vsel %vm269, 1.0, 0.0
    %v302 = vsel %vm270, 1.0, 0.0
    %v303 = vsel %vm271, 1.0, 0.0
    %v304 = vsel %vm272, 1.0, 0.0
    %v305 = vsel %vm273, 1.0, 0.0
    %v306 = vsel %vm274, 1.0, 0.0
    %v307 = vsel %vm275, 1.0, 0.0
    %v308 = vsel %vm276, 1.0, 0.0
    %v309 = vsel %vm277, 1.0, 0.0
    %v310 = vsel %vm278, 1.0, 0.0
    %v311 = vsel %vm279, 1.0, 0.0
    %v312 = vsel %vm280, 1.0, 0.0
    %v313 = vsel %vm281, 1.0, 0.0
    %v314 = vsel %vm282, 1.0, 0.0
    %v315 = vsel %vm283, 1.0, 0.0
    %v316 = vsel %vm284, 1.0, 0.0
    %v317 = vsel %vm285, 1.0, 0.0
    %v318 = vsel %vm286, 1.0, 0.0
    %v319 = vld [vmem:[%s0] sm:$0xff]
    %v320 = vld [vmem:[%s0 + $0x8] sm:$0xff]
    %v321 = vld [vmem:[%s2 + $0x20] sm:$0xff]
    %v322 = vld [vmem:[%s2 + $0x30] sm:$0xff]
    %v323 = vadd.f32 %v319, %v321
    %v324 = vadd.f32 %v320, %v322
    %v325 = vld [vmem:[%s2 + $0x70] ss:$0 sm:$0xff]
    %v326 = vld [vmem:[%s2 + $0x71] ss:$0 sm:$0xff]
    %vm327 = vcmask 64512
    %v328 = vsel %vm327, %v323, 0.0
    %329 = vadd.xlane.f32.xlu0 %v328
    %v330 = vpop.xlane.xlu0 %329
    %v331 = vsel %vm327, %v324, 0.0
    %332 = vadd.xlane.f32.xlu0 %v331
    %v333 = vpop.xlane.xlu0 %332
    %v334 = vmul.f32 %v330, %v39
    %v335 = vmul.f32 %v333, %v39
    %v336 = vsub.f32 %v323, %v334
    %v337 = vsub.f32 %v324, %v335
    %v338 = vmul.f32 %v336, %v336
    %v339 = vmul.f32 %v337, %v337
    %v340 = vsel %vm327, %v338, 0.0
    %341 = vadd.xlane.f32.xlu0 %v340
    %v342 = vpop.xlane.xlu0 %341
    %v343 = vsel %vm327, %v339, 0.0
    %344 = vadd.xlane.f32.xlu0 %v343
    %v345 = vpop.xlane.xlu0 %344
    %v346 = vmul.f32 %v342, %v39
    %v347 = vmul.f32 %v345, %v39
    %v348 = vadd.f32 %v346, 1e-05
    %v349 = vadd.f32 %v347, 1e-05
    %v350 = vrsqrt.pop %v348
    %v351 = vrsqrt.pop %v349
    %v352 = vmul.f32 %v336, %v350
    %v353 = vmul.f32 %v337, %v351
    %v354 = vmul.f32 %v352, %v325
    %v355 = vmul.f32 %v353, %v325
    %v356 = vadd.f32 %v354, %v326
    %v357 = vadd.f32 %v355, %v326
    %v358 = vld [vmem:[%s2 + $0x40] sm:$0xff]
    %v359 = vld [vmem:[%s2 + $0x72] ss:$0 sm:$0xff]
    %v361 = vsel %vm327, %v356, 0
    %v364 = vsel %vm327, %v357, 0
    %366 = vmatprep.subr.mxu0 0.0
    %v367 = vand.u32 %v358, 4294901760
    %368 = vmatpush1.msra.mxu0 %v367
    %369 = vmatprep.subr.mxu0 0.0
    %370 = vmatpush1.msra.mxu0 0.0
    %371 = vmatprep.subr.mxu0 0.0
    %372 = vmatpush1.msra.mxu0 0.0
    %373 = vmatprep.subr.mxu0 0.0
    %374 = vmatpush1.msra.mxu0 0.0
    %375 = vmatprep.subr.mxu0 0.0
    %376 = vmatpush1.msra.mxu0 0.0
    %377 = vmatprep.subr.mxu0 0.0
    %378 = vmatpush1.msra.mxu0 0.0
    %379 = vmatprep.subr.mxu0 0.0
    %380 = vmatpush1.msra.mxu0 0.0
    %381 = vmatprep.subr.mxu0 0.0
    %382 = vmatpush1.msra.mxu0 0.0
    %383 = vmatprep.subr.mxu0 0.0
    %384 = vmatpush1.msra.mxu0 0.0
    %385 = vmatprep.subr.mxu0 0.0
    %386 = vmatpush1.msra.mxu0 0.0
    %387 = vmatprep.subr.mxu0 0.0
    %388 = vmatpush1.msra.mxu0 0.0
    %389 = vmatprep.subr.mxu0 0.0
    %390 = vmatpush1.msra.mxu0 0.0
    %391 = vmatprep.subr.mxu0 0.0
    %392 = vmatpush1.msra.mxu0 0.0
    %393 = vmatprep.subr.mxu0 0.0
    %394 = vmatpush1.msra.mxu0 0.0
    %395 = vmatprep.subr.mxu0 0.0
    %396 = vmatpush1.msra.mxu0 0.0
    %397 = vmatprep.subr.mxu0 0.0
    %398 = vmatpush1.msra.mxu0 0.0
    %399 = vmatprep.subr.mxu0 0.0
    %400 = vmatpush1.msra.mxu0 0.0
    %401 = vmatprep.subr.mxu0 0.0
    %402 = vmatpush1.msra.mxu0 0.0
    %403 = vmatprep.subr.mxu0 0.0
    %404 = vmatpush1.msra.mxu0 0.0
    %405 = vmatprep.subr.mxu0 0.0
    %406 = vmatpush1.msra.mxu0 0.0
    %407 = vmatprep.subr.mxu0 0.0
    %408 = vmatpush1.msra.mxu0 0.0
    %409 = vmatprep.subr.mxu0 0.0
    %410 = vmatpush1.msra.mxu0 0.0
    %411 = vmatprep.subr.mxu0 0.0
    %412 = vmatpush1.msra.mxu0 0.0
    %413 = vmatprep.subr.mxu0 0.0
    %414 = vmatpush1.msra.mxu0 0.0
    %415 = vmatprep.subr.mxu0 0.0
    %416 = vmatpush1.msra.mxu0 0.0
    %417 = vmatprep.subr.mxu0 0.0
    %418 = vmatpush1.msra.mxu0 0.0
    %419 = vmatprep.subr.mxu0 0.0
    %420 = vmatpush1.msra.mxu0 0.0
    %421 = vmatprep.subr.mxu0 0.0
    %422 = vmatpush1.msra.mxu0 0.0
    %423 = vmatprep.subr.mxu0 0.0
    %424 = vmatpush1.msra.mxu0 0.0
    %425 = vmatprep.subr.mxu0 0.0
    %426 = vmatpush1.msra.mxu0 0.0
    %427 = vmatprep.subr.mxu0 0.0
    %428 = vmatpush1.msra.mxu0 0.0
    %429 = vmatprep.subr.mxu0 0.0
    %430 = vmatpush1.msra.mxu0 0.0
    %431 = vmatprep.mubr.f32.mxu0 0.0
    %v432 = vand.u32 %v361, 4294901760
    %v433 = vsub.f32 %v361, %v432
    %v434 = vand.u32 %v433, 4294901760
    %v435 = vsub.f32 %v433, %v434
    %v436 = vand.u32 %v435, 4294901760
    %437 = vmatmul.mubr.f32.gmra.mrb[0].mxu0 %v436
    %v438 = vpop.f32.mrb[0].mxu0
    %v439 = vadd.f32 %v359, %v438
    %v440 = vpop.f32.mrb[0].mxu0
    %441 = vmatprep.mubr.f32.mxu0 0.0
    %v442 = vand.u32 %v364, 4294901760
    %v443 = vsub.f32 %v364, %v442
    %v444 = vand.u32 %v443, 4294901760
    %v445 = vsub.f32 %v443, %v444
    %v446 = vand.u32 %v445, 4294901760
    %447 = vmatmul.mubr.f32.gmra.mrb[0].mxu0 %v446
    %v448 = vpop.f32.mrb[0].mxu0
    %v449 = vadd.f32 %v359, %v448
    %v450 = vpop.f32.mrb[0].mxu0
    %451 = vdwg.mxu0
    %452 = vmatprep.subr.mxu0 0.0
    %v453 = vand.u32 %v358, 4294901760
    %v454 = vsub.f32 %v358, %v453
    %v455 = vand.u32 %v454, 4294901760
    %v456 = vsub.f32 %v454, %v455
    %v457 = vand.u32 %v456, 4294901760
    %458 = vmatpush1.msra.mxu0 %v457
    %459 = vmatprep.subr.mxu0 0.0
    %460 = vmatpush1.msra.mxu0 0.0
    %461 = vmatprep.subr.mxu0 0.0
    %462 = vmatpush1.msra.mxu0 0.0
    %463 = vmatprep.subr.mxu0 0.0
    %464 = vmatpush1.msra.mxu0 0.0
    %465 = vmatprep.subr.mxu0 0.0
    %466 = vmatpush1.msra.mxu0 0.0
    %467 = vmatprep.subr.mxu0 0.0
    %468 = vmatpush1.msra.mxu0 0.0
    %469 = vmatprep.subr.mxu0 0.0
    %470 = vmatpush1.msra.mxu0 0.0
    %471 = vmatprep.subr.mxu0 0.0
    %472 = vmatpush1.msra.mxu0 0.0
    %473 = vmatprep.subr.mxu0 0.0
    %474 = vmatpush1.msra.mxu0 0.0
    %475 = vmatprep.subr.mxu0 0.0
    %476 = vmatpush1.msra.mxu0 0.0
    %477 = vmatprep.subr.mxu0 0.0
    %478 = vmatpush1.msra.mxu0 0.0
    %479 = vmatprep.subr.mxu0 0.0
    %480 = vmatpush1.msra.mxu0 0.0
    %481 = vmatprep.subr.mxu0 0.0
    %482 = vmatpush1.msra.mxu0 0.0
    %483 = vmatprep.subr.mxu0 0.0
    %484 = vmatpush1.msra.mxu0 0.0
    %485 = vmatprep.subr.mxu0 0.0
    %486 = vmatpush1.msra.mxu0 0.0
    %487 = vmatprep.subr.mxu0 0.0
    %488 = vmatpush1.msra.mxu0 0.0
    %489 = vmatprep.subr.mxu0 0.0
    %490 = vmatpush1.msra.mxu0 0.0
    %491 = vmatprep.subr.mxu0 0.0
    %492 = vmatpush1.msra.mxu0 0.0
    %493 = vmatprep.subr.mxu0 0.0
    %494 = vmatpush1.msra.mxu0 0.0
    %495 = vmatprep.subr.mxu0 0.0
    %496 = vmatpush1.msra.mxu0 0.0
    %497 = vmatprep.subr.mxu0 0.0
    %498 = vmatpush1.msra.mxu0 0.0
    %499 = vmatprep.subr.mxu0 0.0
    %500 = vmatpush1.msra.mxu0 0.0
    %501 = vmatprep.subr.mxu0 0.0
    %502 = vmatpush1.msra.mxu0 0.0
    %503 = vmatprep.subr.mxu0 0.0
    %504 = vmatpush1.msra.mxu0 0.0
    %505 = vmatprep.subr.mxu0 0.0
    %506 = vmatpush1.msra.mxu0 0.0
    %507 = vmatprep.subr.mxu0 0.0
    %508 = vmatpush1.msra.mxu0 0.0
    %509 = vmatprep.subr.mxu0 0.0
    %510 = vmatpush1.msra.mxu0 0.0
    %511 = vmatprep.subr.mxu0 0.0
    %512 = vmatpush1.msra.mxu0 0.0
    %513 = vmatprep.subr.mxu0 0.0
    %514 = vmatpush1.msra.mxu0 0.0
    %515 = vmatprep.subr.mxu0 0.0
    %516 = vmatpush1.msra.mxu0 0.0
    %517 = vmatprep.subr.mxu0 0.0
    %518 = vmatpush1.msra.mxu0 0.0
    %519 = vmatprep.subr.mxu0 0.0
    %520 = vmatpush1.msra.mxu0 0.0
    %521 = vmatprep.mubr.f32.mxu0 0.0
    %v522 = vand.u32 %v361, 4294901760
    %523 = vmatmul.mubr.f32.gmra.mrb[0].mxu0 %v522
    %v524 = vpop.f32.mrb[0].mxu0
    %v525 = vadd.f32 %v439, %v524
    %v526 = vpop.f32.mrb[0].mxu0
    %527 = vmatprep.mubr.f32.mxu0 0.0
    %v528 = vand.u32 %v364, 4294901760
    %529 = vmatmul.mubr.f32.gmra.mrb[0].mxu0 %v528
    %v530 = vpop.f32.mrb[0].mxu0
    %v531 = vadd.f32 %v449, %v530
    %v532 = vpop.f32.mrb[0].mxu0
    %533 = vdwg.mxu0
    %534 = vmatprep.subr.mxu0 0.0
    %v535 = vand.u32 %v358, 4294901760
    %v536 = vsub.f32 %v358, %v535
    %537 = vmatpush1.msra.mxu0 %v536
    %538 = vmatprep.subr.mxu0 0.0
    %539 = vmatpush1.msra.mxu0 0.0
    %540 = vmatprep.subr.mxu0 0.0
    %541 = vmatpush1.msra.mxu0 0.0
    %542 = vmatprep.subr.mxu0 0.0
    %543 = vmatpush1.msra.mxu0 0.0
    %544 = vmatprep.subr.mxu0 0.0
    %545 = vmatpush1.msra.mxu0 0.0
    %546 = vmatprep.subr.mxu0 0.0
    %547 = vmatpush1.msra.mxu0 0.0
    %548 = vmatprep.subr.mxu0 0.0
    %549 = vmatpush1.msra.mxu0 0.0
    %550 = vmatprep.subr.mxu0 0.0
    %551 = vmatpush1.msra.mxu0 0.0
    %552 = vmatprep.subr.mxu0 0.0
    %553 = vmatpush1.msra.mxu0 0.0
    %554 = vmatprep.subr.mxu0 0.0
    %555 = vmatpush1.msra.mxu0 0.0
    %556 = vmatprep.subr.mxu0 0.0
    %557 = vmatpush1.msra.mxu0 0.0
    %558 = vmatprep.subr.mxu0 0.0
    %559 = vmatpush1.msra.mxu0 0.0
    %560 = vmatprep.subr.mxu0 0.0
    %561 = vmatpush1.msra.mxu0 0.0
    %562 = vmatprep.subr.mxu0 0.0
    %563 = vmatpush1.msra.mxu0 0.0
    %564 = vmatprep.subr.mxu0 0.0
    %565 = vmatpush1.msra.mxu0 0.0
    %566 = vmatprep.subr.mxu0 0.0
    %567 = vmatpush1.msra.mxu0 0.0
    %568 = vmatprep.subr.mxu0 0.0
    %569 = vmatpush1.msra.mxu0 0.0
    %570 = vmatprep.subr.mxu0 0.0
    %571 = vmatpush1.msra.mxu0 0.0
    %572 = vmatprep.subr.mxu0 0.0
    %573 = vmatpush1.msra.mxu0 0.0
    %574 = vmatprep.subr.mxu0 0.0
    %575 = vmatpush1.msra.mxu0 0.0
    %576 = vmatprep.subr.mxu0 0.0
    %577 = vmatpush1.msra.mxu0 0.0
    %578 = vmatprep.subr.mxu0 0.0
    %579 = vmatpush1.msra.mxu0 0.0
    %580 = vmatprep.subr.mxu0 0.0
    %581 = vmatpush1.msra.mxu0 0.0
    %582 = vmatprep.subr.mxu0 0.0
    %583 = vmatpush1.msra.mxu0 0.0
    %584 = vmatprep.subr.mxu0 0.0
    %585 = vmatpush1.msra.mxu0 0.0
    %586 = vmatprep.subr.mxu0 0.0
    %587 = vmatpush1.msra.mxu0 0.0
    %588 = vmatprep.subr.mxu0 0.0
    %589 = vmatpush1.msra.mxu0 0.0
    %590 = vmatprep.subr.mxu0 0.0
    %591 = vmatpush1.msra.mxu0 0.0
    %592 = vmatprep.subr.mxu0 0.0
    %593 = vmatpush1.msra.mxu0 0.0
    %594 = vmatprep.subr.mxu0 0.0
    %595 = vmatpush1.msra.mxu0 0.0
    %596 = vmatprep.subr.mxu0 0.0
    %597 = vmatpush1.msra.mxu0 0.0
    %598 = vmatprep.subr.mxu0 0.0
    %599 = vmatpush1.msra.mxu0 0.0
    %600 = vmatprep.mubr.f32.mxu0 0.0
    %v601 = vand.u32 %v361, 4294901760
    %v602 = vsub.f32 %v361, %v601
    %603 = vmatmul.mubr.f32.gmra.mrb[0].mxu0 %v602
    %v604 = vpop.f32.mrb[0].mxu0
    %v605 = vadd.f32 %v525, %v604
    %v606 = vpop.f32.mrb[0].mxu0
    %607 = vmatprep.mubr.f32.mxu0 0.0
    %v608 = vand.u32 %v364, 4294901760
    %v609 = vsub.f32 %v364, %v608
    %610 = vmatmul.mubr.f32.gmra.mrb[0].mxu0 %v609
    %v611 = vpop.f32.mrb[0].mxu0
    %v612 = vadd.f32 %v531, %v611
    %v613 = vpop.f32.mrb[0].mxu0
    %614 = vdwg.mxu0
    %615 = vmatprep.subr.mxu0 0.0
    %v616 = vand.u32 %v358, 4294901760
    %617 = vmatpush1.msra.mxu0 %v616
    %618 = vmatprep.subr.mxu0 0.0
    %619 = vmatpush1.msra.mxu0 0.0
    %620 = vmatprep.subr.mxu0 0.0
    %621 = vmatpush1.msra.mxu0 0.0
    %622 = vmatprep.subr.mxu0 0.0
    %623 = vmatpush1.msra.mxu0 0.0
    %624 = vmatprep.subr.mxu0 0.0
    %625 = vmatpush1.msra.mxu0 0.0
    %626 = vmatprep.subr.mxu0 0.0
    %627 = vmatpush1.msra.mxu0 0.0
    %628 = vmatprep.subr.mxu0 0.0
    %629 = vmatpush1.msra.mxu0 0.0
    %630 = vmatprep.subr.mxu0 0.0
    %631 = vmatpush1.msra.mxu0 0.0
    %632 = vmatprep.subr.mxu0 0.0
    %633 = vmatpush1.msra.mxu0 0.0
    %634 = vmatprep.subr.mxu0 0.0
    %635 = vmatpush1.msra.mxu0 0.0
    %636 = vmatprep.subr.mxu0 0.0
    %637 = vmatpush1.msra.mxu0 0.0
    %638 = vmatprep.subr.mxu0 0.0
    %639 = vmatpush1.msra.mxu0 0.0
    %640 = vmatprep.subr.mxu0 0.0
    %641 = vmatpush1.msra.mxu0 0.0
    %642 = vmatprep.subr.mxu0 0.0
    %643 = vmatpush1.msra.mxu0 0.0
    %644 = vmatprep.subr.mxu0 0.0
    %645 = vmatpush1.msra.mxu0 0.0
    %646 = vmatprep.subr.mxu0 0.0
    %647 = vmatpush1.msra.mxu0 0.0
    %648 = vmatprep.subr.mxu0 0.0
    %649 = vmatpush1.msra.mxu0 0.0
    %650 = vmatprep.subr.mxu0 0.0
    %651 = vmatpush1.msra.mxu0 0.0
    %652 = vmatprep.subr.mxu0 0.0
    %653 = vmatpush1.msra.mxu0 0.0
    %654 = vmatprep.subr.mxu0 0.0
    %655 = vmatpush1.msra.mxu0 0.0
    %656 = vmatprep.subr.mxu0 0.0
    %657 = vmatpush1.msra.mxu0 0.0
    %658 = vmatprep.subr.mxu0 0.0
    %659 = vmatpush1.msra.mxu0 0.0
    %660 = vmatprep.subr.mxu0 0.0
    %661 = vmatpush1.msra.mxu0 0.0
    %662 = vmatprep.subr.mxu0 0.0
    %663 = vmatpush1.msra.mxu0 0.0
    %664 = vmatprep.subr.mxu0 0.0
    %665 = vmatpush1.msra.mxu0 0.0
    %666 = vmatprep.subr.mxu0 0.0
    %667 = vmatpush1.msra.mxu0 0.0
    %668 = vmatprep.subr.mxu0 0.0
    %669 = vmatpush1.msra.mxu0 0.0
    %670 = vmatprep.subr.mxu0 0.0
    %671 = vmatpush1.msra.mxu0 0.0
    %672 = vmatprep.subr.mxu0 0.0
    %673 = vmatpush1.msra.mxu0 0.0
    %674 = vmatprep.subr.mxu0 0.0
    %675 = vmatpush1.msra.mxu0 0.0
    %676 = vmatprep.subr.mxu0 0.0
    %677 = vmatpush1.msra.mxu0 0.0
    %678 = vmatprep.subr.mxu0 0.0
    %679 = vmatpush1.msra.mxu0 0.0
    %680 = vmatprep.mubr.f32.mxu0 0.0
    %v681 = vand.u32 %v361, 4294901760
    %v682 = vsub.f32 %v361, %v681
    %v683 = vand.u32 %v682, 4294901760
    %684 = vmatmul.mubr.f32.gmra.mrb[0].mxu0 %v683
    %v685 = vpop.f32.mrb[0].mxu0
    %v686 = vadd.f32 %v605, %v685
    %v687 = vpop.f32.mrb[0].mxu0
    %688 = vmatprep.mubr.f32.mxu0 0.0
    %v689 = vand.u32 %v364, 4294901760
    %v690 = vsub.f32 %v364, %v689
    %v691 = vand.u32 %v690, 4294901760
    %692 = vmatmul.mubr.f32.gmra.mrb[0].mxu0 %v691
    %v693 = vpop.f32.mrb[0].mxu0
    %v694 = vadd.f32 %v612, %v693
    %v695 = vpop.f32.mrb[0].mxu0
    %696 = vdwg.mxu0
    %697 = vmatprep.subr.mxu0 0.0
    %v698 = vand.u32 %v358, 4294901760
    %v699 = vsub.f32 %v358, %v698
    %v700 = vand.u32 %v699, 4294901760
    %701 = vmatpush1.msra.mxu0 %v700
    %702 = vmatprep.subr.mxu0 0.0
    %703 = vmatpush1.msra.mxu0 0.0
    %704 = vmatprep.subr.mxu0 0.0
    %705 = vmatpush1.msra.mxu0 0.0
    %706 = vmatprep.subr.mxu0 0.0
    %707 = vmatpush1.msra.mxu0 0.0
    %708 = vmatprep.subr.mxu0 0.0
    %709 = vmatpush1.msra.mxu0 0.0
    %710 = vmatprep.subr.mxu0 0.0
    %711 = vmatpush1.msra.mxu0 0.0
    %712 = vmatprep.subr.mxu0 0.0
    %713 = vmatpush1.msra.mxu0 0.0
    %714 = vmatprep.subr.mxu0 0.0
    %715 = vmatpush1.msra.mxu0 0.0
    %716 = vmatprep.subr.mxu0 0.0
    %717 = vmatpush1.msra.mxu0 0.0
    %718 = vmatprep.subr.mxu0 0.0
    %719 = vmatpush1.msra.mxu0 0.0
    %720 = vmatprep.subr.mxu0 0.0
    %721 = vmatpush1.msra.mxu0 0.0
    %722 = vmatprep.subr.mxu0 0.0
    %723 = vmatpush1.msra.mxu0 0.0
    %724 = vmatprep.subr.mxu0 0.0
    %725 = vmatpush1.msra.mxu0 0.0
    %726 = vmatprep.subr.mxu0 0.0
    %727 = vmatpush1.msra.mxu0 0.0
    %728 = vmatprep.subr.mxu0 0.0
    %729 = vmatpush1.msra.mxu0 0.0
    %730 = vmatprep.subr.mxu0 0.0
    %731 = vmatpush1.msra.mxu0 0.0
    %732 = vmatprep.subr.mxu0 0.0
    %733 = vmatpush1.msra.mxu0 0.0
    %734 = vmatprep.subr.mxu0 0.0
    %735 = vmatpush1.msra.mxu0 0.0
    %736 = vmatprep.subr.mxu0 0.0
    %737 = vmatpush1.msra.mxu0 0.0
    %738 = vmatprep.subr.mxu0 0.0
    %739 = vmatpush1.msra.mxu0 0.0
    %740 = vmatprep.subr.mxu0 0.0
    %741 = vmatpush1.msra.mxu0 0.0
    %742 = vmatprep.subr.mxu0 0.0
    %743 = vmatpush1.msra.mxu0 0.0
    %744 = vmatprep.subr.mxu0 0.0
    %745 = vmatpush1.msra.mxu0 0.0
    %746 = vmatprep.subr.mxu0 0.0
    %747 = vmatpush1.msra.mxu0 0.0
    %748 = vmatprep.subr.mxu0 0.0
    %749 = vmatpush1.msra.mxu0 0.0
    %750 = vmatprep.subr.mxu0 0.0
    %751 = vmatpush1.msra.mxu0 0.0
    %752 = vmatprep.subr.mxu0 0.0
    %753 = vmatpush1.msra.mxu0 0.0
    %754 = vmatprep.subr.mxu0 0.0
    %755 = vmatpush1.msra.mxu0 0.0
    %756 = vmatprep.subr.mxu0 0.0
    %757 = vmatpush1.msra.mxu0 0.0
    %758 = vmatprep.subr.mxu0 0.0
    %759 = vmatpush1.msra.mxu0 0.0
    %760 = vmatprep.subr.mxu0 0.0
    %761 = vmatpush1.msra.mxu0 0.0
    %762 = vmatprep.subr.mxu0 0.0
    %763 = vmatpush1.msra.mxu0 0.0
    %764 = vmatprep.mubr.f32.mxu0 0.0
    %v765 = vand.u32 %v361, 4294901760
    %766 = vmatmul.mubr.f32.gmra.mrb[0].mxu0 %v765
    %v767 = vpop.f32.mrb[0].mxu0
    %v768 = vadd.f32 %v686, %v767
    %v769 = vpop.f32.mrb[0].mxu0
    %770 = vmatprep.mubr.f32.mxu0 0.0
    %v771 = vand.u32 %v364, 4294901760
    %772 = vmatmul.mubr.f32.gmra.mrb[0].mxu0 %v771
    %v773 = vpop.f32.mrb[0].mxu0
    %v774 = vadd.f32 %v694, %v773
    %v775 = vpop.f32.mrb[0].mxu0
    %776 = vdwg.mxu0
    %777 = vmatprep.subr.mxu0 0.0
    %v778 = vand.u32 %v358, 4294901760
    %779 = vmatpush1.msra.mxu0 %v778
    %780 = vmatprep.subr.mxu0 0.0
    %781 = vmatpush1.msra.mxu0 0.0
    %782 = vmatprep.subr.mxu0 0.0
    %783 = vmatpush1.msra.mxu0 0.0
    %784 = vmatprep.subr.mxu0 0.0
    %785 = vmatpush1.msra.mxu0 0.0
    %786 = vmatprep.subr.mxu0 0.0
    %787 = vmatpush1.msra.mxu0 0.0
    %788 = vmatprep.subr.mxu0 0.0
    %789 = vmatpush1.msra.mxu0 0.0
    %790 = vmatprep.subr.mxu0 0.0
    %791 = vmatpush1.msra.mxu0 0.0
    %792 = vmatprep.subr.mxu0 0.0
    %793 = vmatpush1.msra.mxu0 0.0
    %794 = vmatprep.subr.mxu0 0.0
    %795 = vmatpush1.msra.mxu0 0.0
    %796 = vmatprep.subr.mxu0 0.0
    %797 = vmatpush1.msra.mxu0 0.0
    %798 = vmatprep.subr.mxu0 0.0
    %799 = vmatpush1.msra.mxu0 0.0
    %800 = vmatprep.subr.mxu0 0.0
    %801 = vmatpush1.msra.mxu0 0.0
    %802 = vmatprep.subr.mxu0 0.0
    %803 = vmatpush1.msra.mxu0 0.0
    %804 = vmatprep.subr.mxu0 0.0
    %805 = vmatpush1.msra.mxu0 0.0
    %806 = vmatprep.subr.mxu0 0.0
    %807 = vmatpush1.msra.mxu0 0.0
    %808 = vmatprep.subr.mxu0 0.0
    %809 = vmatpush1.msra.mxu0 0.0
    %810 = vmatprep.subr.mxu0 0.0
    %811 = vmatpush1.msra.mxu0 0.0
    %812 = vmatprep.subr.mxu0 0.0
    %813 = vmatpush1.msra.mxu0 0.0
    %814 = vmatprep.subr.mxu0 0.0
    %815 = vmatpush1.msra.mxu0 0.0
    %816 = vmatprep.subr.mxu0 0.0
    %817 = vmatpush1.msra.mxu0 0.0
    %818 = vmatprep.subr.mxu0 0.0
    %819 = vmatpush1.msra.mxu0 0.0
    %820 = vmatprep.subr.mxu0 0.0
    %821 = vmatpush1.msra.mxu0 0.0
    %822 = vmatprep.subr.mxu0 0.0
    %823 = vmatpush1.msra.mxu0 0.0
    %824 = vmatprep.subr.mxu0 0.0
    %825 = vmatpush1.msra.mxu0 0.0
    %826 = vmatprep.subr.mxu0 0.0
    %827 = vmatpush1.msra.mxu0 0.0
    %828 = vmatprep.subr.mxu0 0.0
    %829 = vmatpush1.msra.mxu0 0.0
    %830 = vmatprep.subr.mxu0 0.0
    %831 = vmatpush1.msra.mxu0 0.0
    %832 = vmatprep.subr.mxu0 0.0
    %833 = vmatpush1.msra.mxu0 0.0
    %834 = vmatprep.subr.mxu0 0.0
    %835 = vmatpush1.msra.mxu0 0.0
    %836 = vmatprep.subr.mxu0 0.0
    %837 = vmatpush1.msra.mxu0 0.0
    %838 = vmatprep.subr.mxu0 0.0
    %839 = vmatpush1.msra.mxu0 0.0
    %840 = vmatprep.subr.mxu0 0.0
    %841 = vmatpush1.msra.mxu0 0.0
    %842 = vmatprep.mubr.f32.mxu0 0.0
    %v843 = vand.u32 %v361, 4294901760
    %844 = vmatmul.mubr.f32.gmra.mrb[0].mxu0 %v843
    %v845 = vpop.f32.mrb[0].mxu0
    %v846 = vadd.f32 %v768, %v845
    %v847 = vpop.f32.mrb[0].mxu0
    %848 = vmatprep.mubr.f32.mxu0 0.0
    %v849 = vand.u32 %v364, 4294901760
    %850 = vmatmul.mubr.f32.gmra.mrb[0].mxu0 %v849
    %v851 = vpop.f32.mrb[0].mxu0
    %v852 = vadd.f32 %v774, %v851
    %v853 = vpop.f32.mrb[0].mxu0
    %854 = vdwg.mxu0
    %vm855 = vcmask 130048
    %v857 = vsel %vm855, %v846, 0
    %v860 = vsel %vm855, %v852, 0
    %862 = vmatprep.subr.mxu0 %v64
    %863 = vmatpush1.msra.mxu0 %v63
    %864 = vmatprep.subr.mxu0 %v66
    %865 = vmatpush1.msra.mxu0 %v65
    %866 = vmatprep.subr.mxu0 0.0
    %867 = vmatpush1.msra.mxu0 0.0
    %868 = vmatprep.subr.mxu0 0.0
    %869 = vmatpush1.msra.mxu0 0.0
    %870 = vmatprep.subr.mxu0 0.0
    %871 = vmatpush1.msra.mxu0 0.0
    %872 = vmatprep.subr.mxu0 0.0
    %873 = vmatpush1.msra.mxu0 0.0
    %874 = vmatprep.subr.mxu0 0.0
    %875 = vmatpush1.msra.mxu0 0.0
    %876 = vmatprep.subr.mxu0 0.0
    %877 = vmatpush1.msra.mxu0 0.0
    %878 = vmatprep.subr.mxu0 0.0
    %879 = vmatpush1.msra.mxu0 0.0
    %880 = vmatprep.subr.mxu0 0.0
    %881 = vmatpush1.msra.mxu0 0.0
    %882 = vmatprep.subr.mxu0 0.0
    %883 = vmatpush1.msra.mxu0 0.0
    %884 = vmatprep.subr.mxu0 0.0
    %885 = vmatpush1.msra.mxu0 0.0
    %886 = vmatprep.subr.mxu0 0.0
    %887 = vmatpush1.msra.mxu0 0.0
    %888 = vmatprep.subr.mxu0 0.0
    %889 = vmatpush1.msra.mxu0 0.0
    %890 = vmatprep.subr.mxu0 0.0
    %891 = vmatpush1.msra.mxu0 0.0
    %892 = vmatprep.subr.mxu0 0.0
    %893 = vmatpush1.msra.mxu0 0.0
    %894 = vmatprep.subr.mxu0 0.0
    %895 = vmatpush1.msra.mxu0 0.0
    %896 = vmatprep.subr.mxu0 0.0
    %897 = vmatpush1.msra.mxu0 0.0
    %898 = vmatprep.subr.mxu0 0.0
    %899 = vmatpush1.msra.mxu0 0.0
    %900 = vmatprep.subr.mxu0 0.0
    %901 = vmatpush1.msra.mxu0 0.0
    %902 = vmatprep.subr.mxu0 0.0
    %903 = vmatpush1.msra.mxu0 0.0
    %904 = vmatprep.subr.mxu0 0.0
    %905 = vmatpush1.msra.mxu0 0.0
    %906 = vmatprep.subr.mxu0 0.0
    %907 = vmatpush1.msra.mxu0 0.0
    %908 = vmatprep.subr.mxu0 0.0
    %909 = vmatpush1.msra.mxu0 0.0
    %910 = vmatprep.subr.mxu0 0.0
    %911 = vmatpush1.msra.mxu0 0.0
    %912 = vmatprep.subr.mxu0 0.0
    %913 = vmatpush1.msra.mxu0 0.0
    %914 = vmatprep.subr.mxu0 0.0
    %915 = vmatpush1.msra.mxu0 0.0
    %916 = vmatprep.subr.mxu0 0.0
    %917 = vmatpush1.msra.mxu0 0.0
    %918 = vmatprep.subr.mxu0 0.0
    %919 = vmatpush1.msra.mxu0 0.0
    %920 = vmatprep.subr.mxu0 0.0
    %921 = vmatpush1.msra.mxu0 0.0
    %922 = vmatprep.subr.mxu0 0.0
    %923 = vmatpush1.msra.mxu0 0.0
    %924 = vmatprep.subr.mxu0 0.0
    %925 = vmatpush1.msra.mxu0 0.0
    %926 = vmatprep.mubr.f32.mxu0 0.0
    %v927 = vand.u32 %v857, 4294901760
    %v928 = vsub.f32 %v857, %v927
    %v929 = vand.u32 %v928, 4294901760
    %v930 = vsub.f32 %v928, %v929
    %v931 = vand.u32 %v930, 4294901760
    %932 = vmatmul.mubr.f32.gmra.mrb[0].mxu0 %v931
    %v933 = vpop.f32.mrb[0].mxu0
    %v934 = vadd.f32 0.0, %v933
    %v935 = vpop.f32.mrb[0].mxu0
    %v936 = vadd.f32 0.0, %v935
    %937 = vmatprep.mubr.f32.mxu0 0.0
    %v938 = vand.u32 %v860, 4294901760
    %v939 = vsub.f32 %v860, %v938
    %v940 = vand.u32 %v939, 4294901760
    %v941 = vsub.f32 %v939, %v940
    %v942 = vand.u32 %v941, 4294901760
    %943 = vmatmul.mubr.f32.gmra.mrb[0].mxu0 %v942
    %v944 = vpop.f32.mrb[0].mxu0
    %v945 = vadd.f32 0.0, %v944
    %v946 = vpop.f32.mrb[0].mxu0
    %v947 = vadd.f32 0.0, %v946
    %948 = vmatprep.mubr.f32.mxu0 0.0
    %v949 = vand.u32 %v857, 4294901760
    %v950 = vsub.f32 %v857, %v949
    %v951 = vand.u32 %v950, 4294901760
    %v952 = vsub.f32 %v950, %v951
    %v953 = vand.u32 %v952, 4294901760
    %954 = vmatmul.mubr.f32.gmra.mrb[0].mxu0 %v953
    %v955 = vpop.f32.mrb[0].mxu0
    %v956 = vadd.f32 0.0, %v955
    %v957 = vpop.f32.mrb[0].mxu0
    %v958 = vadd.f32 0.0, %v957
    %959 = vmatprep.mubr.f32.mxu0 0.0
    %v960 = vand.u32 %v860, 4294901760
    %v961 = vsub.f32 %v860, %v960
    %v962 = vand.u32 %v961, 4294901760
    %v963 = vsub.f32 %v961, %v962
    %v964 = vand.u32 %v963, 4294901760
    %965 = vmatmul.mubr.f32.gmra.mrb[0].mxu0 %v964
    %v966 = vpop.f32.mrb[0].mxu0
    %v967 = vadd.f32 0.0, %v966
    %v968 = vpop.f32.mrb[0].mxu0
    %v969 = vadd.f32 0.0, %v968
    %970 = vmatprep.mubr.f32.mxu0 0.0
    %v971 = vand.u32 %v857, 4294901760
    %v972 = vsub.f32 %v857, %v971
    %v973 = vand.u32 %v972, 4294901760
    %v974 = vsub.f32 %v972, %v973
    %v975 = vand.u32 %v974, 4294901760
    %976 = vmatmul.mubr.f32.gmra.mrb[0].mxu0 %v975
    %v977 = vpop.f32.mrb[0].mxu0
    %v978 = vadd.f32 0.0, %v977
    %v979 = vpop.f32.mrb[0].mxu0
    %v980 = vadd.f32 0.0, %v979
    %981 = vmatprep.mubr.f32.mxu0 0.0
    %v982 = vand.u32 %v860, 4294901760
    %v983 = vsub.f32 %v860, %v982
    %v984 = vand.u32 %v983, 4294901760
    %v985 = vsub.f32 %v983, %v984
    %v986 = vand.u32 %v985, 4294901760
    %987 = vmatmul.mubr.f32.gmra.mrb[0].mxu0 %v986
    %v988 = vpop.f32.mrb[0].mxu0
    %v989 = vadd.f32 0.0, %v988
    %v990 = vpop.f32.mrb[0].mxu0
    %v991 = vadd.f32 0.0, %v990
    %992 = vdwg.mxu0
    %v993 = vsub.f32 %v64, %v64
    %v994 = vand.u32 %v993, 4294901760
    %v995 = vsub.f32 %v993, %v994
    %v996 = vand.u32 %v995, 4294901760
    %997 = vmatprep.subr.mxu0 %v996
    %v998 = vsub.f32 %v63, %v63
    %v999 = vand.u32 %v998, 4294901760
    %v1000 = vsub.f32 %v998, %v999
    %v1001 = vand.u32 %v1000, 4294901760
    %1002 = vmatpush1.msra.mxu0 %v1001
    %v1003 = vsub.f32 %v66, %v66
    %v1004 = vand.u32 %v1003, 4294901760
    %v1005 = vsub.f32 %v1003, %v1004
    %v1006 = vand.u32 %v1005, 4294901760
    %1007 = vmatprep.subr.mxu0 %v1006
    %v1008 = vsub.f32 %v65, %v65
    %v1009 = vand.u32 %v1008, 4294901760
    %v1010 = vsub.f32 %v1008, %v1009
    %v1011 = vand.u32 %v1010, 4294901760
    %1012 = vmatpush1.msra.mxu0 %v1011
    %1013 = vmatprep.subr.mxu0 0.0
    %1014 = vmatpush1.msra.mxu0 0.0
    %1015 = vmatprep.subr.mxu0 0.0
    %1016 = vmatpush1.msra.mxu0 0.0
    %1017 = vmatprep.subr.mxu0 0.0
    %1018 = vmatpush1.msra.mxu0 0.0
    %1019 = vmatprep.subr.mxu0 0.0
    %1020 = vmatpush1.msra.mxu0 0.0
    %1021 = vmatprep.subr.mxu0 0.0
    %1022 = vmatpush1.msra.mxu0 0.0
    %1023 = vmatprep.subr.mxu0 0.0
    %1024 = vmatpush1.msra.mxu0 0.0
    %1025 = vmatprep.subr.mxu0 0.0
    %1026 = vmatpush1.msra.mxu0 0.0
    %1027 = vmatprep.subr.mxu0 0.0
    %1028 = vmatpush1.msra.mxu0 0.0
    %1029 = vmatprep.subr.mxu0 0.0
    %1030 = vmatpush1.msra.mxu0 0.0
    %1031 = vmatprep.subr.mxu0 0.0
    %1032 = vmatpush1.msra.mxu0 0.0
    %1033 = vmatprep.subr.mxu0 0.0
    %1034 = vmatpush1.msra.mxu0 0.0
    %1035 = vmatprep.subr.mxu0 0.0
    %1036 = vmatpush1.msra.mxu0 0.0
    %1037 = vmatprep.subr.mxu0 0.0
    %1038 = vmatpush1.msra.mxu0 0.0
    %1039 = vmatprep.subr.mxu0 0.0
    %1040 = vmatpush1.msra.mxu0 0.0
    %1041 = vmatprep.subr.mxu0 0.0
    %1042 = vmatpush1.msra.mxu0 0.0
    %1043 = vmatprep.subr.mxu0 0.0
    %1044 = vmatpush1.msra.mxu0 0.0
    %1045 = vmatprep.subr.mxu0 0.0
    %1046 = vmatpush1.msra.mxu0 0.0
    %1047 = vmatprep.subr.mxu0 0.0
    %1048 = vmatpush1.msra.mxu0 0.0
    %1049 = vmatprep.subr.mxu0 0.0
    %1050 = vmatpush1.msra.mxu0 0.0
    %1051 = vmatprep.subr.mxu0 0.0
    %1052 = vmatpush1.msra.mxu0 0.0
    %1053 = vmatprep.subr.mxu0 0.0
    %1054 = vmatpush1.msra.mxu0 0.0
    %1055 = vmatprep.subr.mxu0 0.0
    %1056 = vmatpush1.msra.mxu0 0.0
    %1057 = vmatprep.subr.mxu0 0.0
    %1058 = vmatpush1.msra.mxu0 0.0
    %1059 = vmatprep.subr.mxu0 0.0
    %1060 = vmatpush1.msra.mxu0 0.0
    %1061 = vmatprep.subr.mxu0 0.0
    %1062 = vmatpush1.msra.mxu0 0.0
    %1063 = vmatprep.subr.mxu0 0.0
    %1064 = vmatpush1.msra.mxu0 0.0
    %1065 = vmatprep.subr.mxu0 0.0
    %1066 = vmatpush1.msra.mxu0 0.0
    %1067 = vmatprep.subr.mxu0 0.0
    %1068 = vmatpush1.msra.mxu0 0.0
    %1069 = vmatprep.subr.mxu0 0.0
    %1070 = vmatpush1.msra.mxu0 0.0
    %1071 = vmatprep.subr.mxu0 0.0
    %1072 = vmatpush1.msra.mxu0 0.0
    %1073 = vmatprep.mubr.f32.mxu0 0.0
    %v1074 = vand.u32 %v857, 4294901760
    %1075 = vmatmul.mubr.f32.gmra.mrb[0].mxu0 %v1074
    %v1076 = vpop.f32.mrb[0].mxu0
    %v1077 = vadd.f32 %v934, %v1076
    %v1078 = vpop.f32.mrb[0].mxu0
    %v1079 = vadd.f32 %v936, %v1078
    %1080 = vmatprep.mubr.f32.mxu0 0.0
    %v1081 = vand.u32 %v860, 4294901760
    %1082 = vmatmul.mubr.f32.gmra.mrb[0].mxu0 %v1081
    %v1083 = vpop.f32.mrb[0].mxu0
    %v1084 = vadd.f32 %v945, %v1083
    %v1085 = vpop.f32.mrb[0].mxu0
    %v1086 = vadd.f32 %v947, %v1085
    %1087 = vmatprep.mubr.f32.mxu0 0.0
    %v1088 = vand.u32 %v857, 4294901760
    %1089 = vmatmul.mubr.f32.gmra.mrb[0].mxu0 %v1088
    %v1090 = vpop.f32.mrb[0].mxu0
    %v1091 = vadd.f32 %v956, %v1090
    %v1092 = vpop.f32.mrb[0].mxu0
    %v1093 = vadd.f32 %v958, %v1092
    %1094 = vmatprep.mubr.f32.mxu0 0.0
    %v1095 = vand.u32 %v860, 4294901760
    %1096 = vmatmul.mubr.f32.gmra.mrb[0].mxu0 %v1095
    %v1097 = vpop.f32.mrb[0].mxu0
    %v1098 = vadd.f32 %v967, %v1097
    %v1099 = vpop.f32.mrb[0].mxu0
    %v1100 = vadd.f32 %v969, %v1099
    %1101 = vmatprep.mubr.f32.mxu0 0.0
    %v1102 = vand.u32 %v857, 4294901760
    %1103 = vmatmul.mubr.f32.gmra.mrb[0].mxu0 %v1102
    %v1104 = vpop.f32.mrb[0].mxu0
    %v1105 = vadd.f32 %v978, %v1104
    %v1106 = vpop.f32.mrb[0].mxu0
    %v1107 = vadd.f32 %v980, %v1106
    %1108 = vmatprep.mubr.f32.mxu0 0.0
    %v1109 = vand.u32 %v860, 4294901760
    %1110 = vmatmul.mubr.f32.gmra.mrb[0].mxu0 %v1109
    %v1111 = vpop.f32.mrb[0].mxu0
    %v1112 = vadd.f32 %v989, %v1111
    %v1113 = vpop.f32.mrb[0].mxu0
    %v1114 = vadd.f32 %v991, %v1113
    %1115 = vdwg.mxu0
    %v1116 = vsub.f32 %v64, %v64
    %1117 = vmatprep.subr.mxu0 %v1116
    %v1118 = vsub.f32 %v63, %v63
    %1119 = vmatpush1.msra.mxu0 %v1118
    %v1120 = vsub.f32 %v66, %v66
    %1121 = vmatprep.subr.mxu0 %v1120
    %v1122 = vsub.f32 %v65, %v65
    %1123 = vmatpush1.msra.mxu0 %v1122
    %1124 = vmatprep.subr.mxu0 0.0
    %1125 = vmatpush1.msra.mxu0 0.0
    %1126 = vmatprep.subr.mxu0 0.0
    %1127 = vmatpush1.msra.mxu0 0.0
    %1128 = vmatprep.subr.mxu0 0.0
    %1129 = vmatpush1.msra.mxu0 0.0
    %1130 = vmatprep.subr.mxu0 0.0
    %1131 = vmatpush1.msra.mxu0 0.0
    %1132 = vmatprep.subr.mxu0 0.0
    %1133 = vmatpush1.msra.mxu0 0.0
    %1134 = vmatprep.subr.mxu0 0.0
    %1135 = vmatpush1.msra.mxu0 0.0
    %1136 = vmatprep.subr.mxu0 0.0
    %1137 = vmatpush1.msra.mxu0 0.0
    %1138 = vmatprep.subr.mxu0 0.0
    %1139 = vmatpush1.msra.mxu0 0.0
    %1140 = vmatprep.subr.mxu0 0.0
    %1141 = vmatpush1.msra.mxu0 0.0
    %1142 = vmatprep.subr.mxu0 0.0
    %1143 = vmatpush1.msra.mxu0 0.0
    %1144 = vmatprep.subr.mxu0 0.0
    %1145 = vmatpush1.msra.mxu0 0.0
    %1146 = vmatprep.subr.mxu0 0.0
    %1147 = vmatpush1.msra.mxu0 0.0
    %1148 = vmatprep.subr.mxu0 0.0
    %1149 = vmatpush1.msra.mxu0 0.0
    %1150 = vmatprep.subr.mxu0 0.0
    %1151 = vmatpush1.msra.mxu0 0.0
    %1152 = vmatprep.subr.mxu0 0.0
    %1153 = vmatpush1.msra.mxu0 0.0
    %1154 = vmatprep.subr.mxu0 0.0
    %1155 = vmatpush1.msra.mxu0 0.0
    %1156 = vmatprep.subr.mxu0 0.0
    %1157 = vmatpush1.msra.mxu0 0.0
    %1158 = vmatprep.subr.mxu0 0.0
    %1159 = vmatpush1.msra.mxu0 0.0
    %1160 = vmatprep.subr.mxu0 0.0
    %1161 = vmatpush1.msra.mxu0 0.0
    %1162 = vmatprep.subr.mxu0 0.0
    %1163 = vmatpush1.msra.mxu0 0.0
    %1164 = vmatprep.subr.mxu0 0.0
    %1165 = vmatpush1.msra.mxu0 0.0
    %1166 = vmatprep.subr.mxu0 0.0
    %1167 = vmatpush1.msra.mxu0 0.0
    %1168 = vmatprep.subr.mxu0 0.0
    %1169 = vmatpush1.msra.mxu0 0.0
    %1170 = vmatprep.subr.mxu0 0.0
    %1171 = vmatpush1.msra.mxu0 0.0
    %1172 = vmatprep.subr.mxu0 0.0
    %1173 = vmatpush1.msra.mxu0 0.0
    %1174 = vmatprep.subr.mxu0 0.0
    %1175 = vmatpush1.msra.mxu0 0.0
    %1176 = vmatprep.subr.mxu0 0.0
    %1177 = vmatpush1.msra.mxu0 0.0
    %1178 = vmatprep.subr.mxu0 0.0
    %1179 = vmatpush1.msra.mxu0 0.0
    %1180 = vmatprep.subr.mxu0 0.0
    %1181 = vmatpush1.msra.mxu0 0.0
    %1182 = vmatprep.subr.mxu0 0.0
    %1183 = vmatpush1.msra.mxu0 0.0
    %1184 = vmatprep.mubr.f32.mxu0 0.0
    %v1185 = vand.u32 %v857, 4294901760
    %v1186 = vsub.f32 %v857, %v1185
    %1187 = vmatmul.mubr.f32.gmra.mrb[0].mxu0 %v1186
    %v1188 = vpop.f32.mrb[0].mxu0
    %v1189 = vadd.f32 %v1077, %v1188
    %v1190 = vpop.f32.mrb[0].mxu0
    %v1191 = vadd.f32 %v1079, %v1190
    %1192 = vmatprep.mubr.f32.mxu0 0.0
    %v1193 = vand.u32 %v860, 4294901760
    %v1194 = vsub.f32 %v860, %v1193
    %1195 = vmatmul.mubr.f32.gmra.mrb[0].mxu0 %v1194
    %v1196 = vpop.f32.mrb[0].mxu0
    %v1197 = vadd.f32 %v1084, %v1196
    %v1198 = vpop.f32.mrb[0].mxu0
    %v1199 = vadd.f32 %v1086, %v1198
    %1200 = vmatprep.mubr.f32.mxu0 0.0
    %v1201 = vand.u32 %v857, 4294901760
    %v1202 = vsub.f32 %v857, %v1201
    %1203 = vmatmul.mubr.f32.gmra.mrb[0].mxu0 %v1202
    %v1204 = vpop.f32.mrb[0].mxu0
    %v1205 = vadd.f32 %v1091, %v1204
    %v1206 = vpop.f32.mrb[0].mxu0
    %v1207 = vadd.f32 %v1093, %v1206
    %1208 = vmatprep.mubr.f32.mxu0 0.0
    %v1209 = vand.u32 %v860, 4294901760
    %v1210 = vsub.f32 %v860, %v1209
    %1211 = vmatmul.mubr.f32.gmra.mrb[0].mxu0 %v1210
    %v1212 = vpop.f32.mrb[0].mxu0
    %v1213 = vadd.f32 %v1098, %v1212
    %v1214 = vpop.f32.mrb[0].mxu0
    %v1215 = vadd.f32 %v1100, %v1214
    %1216 = vmatprep.mubr.f32.mxu0 0.0
    %v1217 = vand.u32 %v857, 4294901760
    %v1218 = vsub.f32 %v857, %v1217
    %1219 = vmatmul.mubr.f32.gmra.mrb[0].mxu0 %v1218
    %v1220 = vpop.f32.mrb[0].mxu0
    %v1221 = vadd.f32 %v1105, %v1220
    %v1222 = vpop.f32.mrb[0].mxu0
    %v1223 = vadd.f32 %v1107, %v1222
    %1224 = vmatprep.mubr.f32.mxu0 0.0
    %v1225 = vand.u32 %v860, 4294901760
    %v1226 = vsub.f32 %v860, %v1225
    %1227 = vmatmul.mubr.f32.gmra.mrb[0].mxu0 %v1226
    %v1228 = vpop.f32.mrb[0].mxu0
    %v1229 = vadd.f32 %v1112, %v1228
    %v1230 = vpop.f32.mrb[0].mxu0
    %v1231 = vadd.f32 %v1114, %v1230
    %1232 = vdwg.mxu0
    %1233 = vmatprep.subr.mxu0 %v64
    %1234 = vmatpush1.msra.mxu0 %v63
    %1235 = vmatprep.subr.mxu0 %v66
    %1236 = vmatpush1.msra.mxu0 %v65
    %1237 = vmatprep.subr.mxu0 0.0
    %1238 = vmatpush1.msra.mxu0 0.0
    %1239 = vmatprep.subr.mxu0 0.0
    %1240 = vmatpush1.msra.mxu0 0.0
    %1241 = vmatprep.subr.mxu0 0.0
    %1242 = vmatpush1.msra.mxu0 0.0
    %1243 = vmatprep.subr.mxu0 0.0
    %1244 = vmatpush1.msra.mxu0 0.0
    %1245 = vmatprep.subr.mxu0 0.0
    %1246 = vmatpush1.msra.mxu0 0.0
    %1247 = vmatprep.subr.mxu0 0.0
    %1248 = vmatpush1.msra.mxu0 0.0
    %1249 = vmatprep.subr.mxu0 0.0
    %1250 = vmatpush1.msra.mxu0 0.0
    %1251 = vmatprep.subr.mxu0 0.0
    %1252 = vmatpush1.msra.mxu0 0.0
    %1253 = vmatprep.subr.mxu0 0.0
    %1254 = vmatpush1.msra.mxu0 0.0
    %1255 = vmatprep.subr.mxu0 0.0
    %1256 = vmatpush1.msra.mxu0 0.0
    %1257 = vmatprep.subr.mxu0 0.0
    %1258 = vmatpush1.msra.mxu0 0.0
    %1259 = vmatprep.subr.mxu0 0.0
    %1260 = vmatpush1.msra.mxu0 0.0
    %1261 = vmatprep.subr.mxu0 0.0
    %1262 = vmatpush1.msra.mxu0 0.0
    %1263 = vmatprep.subr.mxu0 0.0
    %1264 = vmatpush1.msra.mxu0 0.0
    %1265 = vmatprep.subr.mxu0 0.0
    %1266 = vmatpush1.msra.mxu0 0.0
    %1267 = vmatprep.subr.mxu0 0.0
    %1268 = vmatpush1.msra.mxu0 0.0
    %1269 = vmatprep.subr.mxu0 0.0
    %1270 = vmatpush1.msra.mxu0 0.0
    %1271 = vmatprep.subr.mxu0 0.0
    %1272 = vmatpush1.msra.mxu0 0.0
    %1273 = vmatprep.subr.mxu0 0.0
    %1274 = vmatpush1.msra.mxu0 0.0
    %1275 = vmatprep.subr.mxu0 0.0
    %1276 = vmatpush1.msra.mxu0 0.0
    %1277 = vmatprep.subr.mxu0 0.0
    %1278 = vmatpush1.msra.mxu0 0.0
    %1279 = vmatprep.subr.mxu0 0.0
    %1280 = vmatpush1.msra.mxu0 0.0
    %1281 = vmatprep.subr.mxu0 0.0
    %1282 = vmatpush1.msra.mxu0 0.0
    %1283 = vmatprep.subr.mxu0 0.0
    %1284 = vmatpush1.msra.mxu0 0.0
    %1285 = vmatprep.subr.mxu0 0.0
    %1286 = vmatpush1.msra.mxu0 0.0
    %1287 = vmatprep.subr.mxu0 0.0
    %1288 = vmatpush1.msra.mxu0 0.0
    %1289 = vmatprep.subr.mxu0 0.0
    %1290 = vmatpush1.msra.mxu0 0.0
    %1291 = vmatprep.subr.mxu0 0.0
    %1292 = vmatpush1.msra.mxu0 0.0
    %1293 = vmatprep.subr.mxu0 0.0
    %1294 = vmatpush1.msra.mxu0 0.0
    %1295 = vmatprep.subr.mxu0 0.0
    %1296 = vmatpush1.msra.mxu0 0.0
    %1297 = vmatprep.mubr.f32.mxu0 0.0
    %v1298 = vand.u32 %v857, 4294901760
    %v1299 = vsub.f32 %v857, %v1298
    %v1300 = vand.u32 %v1299, 4294901760
    %1301 = vmatmul.mubr.f32.gmra.mrb[0].mxu0 %v1300
    %v1302 = vpop.f32.mrb[0].mxu0
    %v1303 = vadd.f32 %v1189, %v1302
    %v1304 = vpop.f32.mrb[0].mxu0
    %v1305 = vadd.f32 %v1191, %v1304
    %1306 = vmatprep.mubr.f32.mxu0 0.0
    %v1307 = vand.u32 %v860, 4294901760
    %v1308 = vsub.f32 %v860, %v1307
    %v1309 = vand.u32 %v1308, 4294901760
    %1310 = vmatmul.mubr.f32.gmra.mrb[0].mxu0 %v1309
    %v1311 = vpop.f32.mrb[0].mxu0
    %v1312 = vadd.f32 %v1197, %v1311
    %v1313 = vpop.f32.mrb[0].mxu0
    %v1314 = vadd.f32 %v1199, %v1313
    %1315 = vmatprep.mubr.f32.mxu0 0.0
    %v1316 = vand.u32 %v857, 4294901760
    %v1317 = vsub.f32 %v857, %v1316
    %v1318 = vand.u32 %v1317, 4294901760
    %1319 = vmatmul.mubr.f32.gmra.mrb[0].mxu0 %v1318
    %v1320 = vpop.f32.mrb[0].mxu0
    %v1321 = vadd.f32 %v1205, %v1320
    %v1322 = vpop.f32.mrb[0].mxu0
    %v1323 = vadd.f32 %v1207, %v1322
    %1324 = vmatprep.mubr.f32.mxu0 0.0
    %v1325 = vand.u32 %v860, 4294901760
    %v1326 = vsub.f32 %v860, %v1325
    %v1327 = vand.u32 %v1326, 4294901760
    %1328 = vmatmul.mubr.f32.gmra.mrb[0].mxu0 %v1327
    %v1329 = vpop.f32.mrb[0].mxu0
    %v1330 = vadd.f32 %v1213, %v1329
    %v1331 = vpop.f32.mrb[0].mxu0
    %v1332 = vadd.f32 %v1215, %v1331
    %1333 = vmatprep.mubr.f32.mxu0 0.0
    %v1334 = vand.u32 %v857, 4294901760
    %v1335 = vsub.f32 %v857, %v1334
    %v1336 = vand.u32 %v1335, 4294901760
    %1337 = vmatmul.mubr.f32.gmra.mrb[0].mxu0 %v1336
    %v1338 = vpop.f32.mrb[0].mxu0
    %v1339 = vadd.f32 %v1221, %v1338
    %v1340 = vpop.f32.mrb[0].mxu0
    %v1341 = vadd.f32 %v1223, %v1340
    %1342 = vmatprep.mubr.f32.mxu0 0.0
    %v1343 = vand.u32 %v860, 4294901760
    %v1344 = vsub.f32 %v860, %v1343
    %v1345 = vand.u32 %v1344, 4294901760
    %1346 = vmatmul.mubr.f32.gmra.mrb[0].mxu0 %v1345
    %v1347 = vpop.f32.mrb[0].mxu0
    %v1348 = vadd.f32 %v1229, %v1347
    %v1349 = vpop.f32.mrb[0].mxu0
    %v1350 = vadd.f32 %v1231, %v1349
    %1351 = vdwg.mxu0
    %v1352 = vsub.f32 %v64, %v64
    %v1353 = vand.u32 %v1352, 4294901760
    %1354 = vmatprep.subr.mxu0 %v1353
    %v1355 = vsub.f32 %v63, %v63
    %v1356 = vand.u32 %v1355, 4294901760
    %1357 = vmatpush1.msra.mxu0 %v1356
    %v1358 = vsub.f32 %v66, %v66
    %v1359 = vand.u32 %v1358, 4294901760
    %1360 = vmatprep.subr.mxu0 %v1359
    %v1361 = vsub.f32 %v65, %v65
    %v1362 = vand.u32 %v1361, 4294901760
    %1363 = vmatpush1.msra.mxu0 %v1362
    %1364 = vmatprep.subr.mxu0 0.0
    %1365 = vmatpush1.msra.mxu0 0.0
    %1366 = vmatprep.subr.mxu0 0.0
    %1367 = vmatpush1.msra.mxu0 0.0
    %1368 = vmatprep.subr.mxu0 0.0
    %1369 = vmatpush1.msra.mxu0 0.0
    %1370 = vmatprep.subr.mxu0 0.0
    %1371 = vmatpush1.msra.mxu0 0.0
    %1372 = vmatprep.subr.mxu0 0.0
    %1373 = vmatpush1.msra.mxu0 0.0
    %1374 = vmatprep.subr.mxu0 0.0
    %1375 = vmatpush1.msra.mxu0 0.0
    %1376 = vmatprep.subr.mxu0 0.0
    %1377 = vmatpush1.msra.mxu0 0.0
    %1378 = vmatprep.subr.mxu0 0.0
    %1379 = vmatpush1.msra.mxu0 0.0
    %1380 = vmatprep.subr.mxu0 0.0
    %1381 = vmatpush1.msra.mxu0 0.0
    %1382 = vmatprep.subr.mxu0 0.0
    %1383 = vmatpush1.msra.mxu0 0.0
    %1384 = vmatprep.subr.mxu0 0.0
    %1385 = vmatpush1.msra.mxu0 0.0
    %1386 = vmatprep.subr.mxu0 0.0
    %1387 = vmatpush1.msra.mxu0 0.0
    %1388 = vmatprep.subr.mxu0 0.0
    %1389 = vmatpush1.msra.mxu0 0.0
    %1390 = vmatprep.subr.mxu0 0.0
    %1391 = vmatpush1.msra.mxu0 0.0
    %1392 = vmatprep.subr.mxu0 0.0
    %1393 = vmatpush1.msra.mxu0 0.0
    %1394 = vmatprep.subr.mxu0 0.0
    %1395 = vmatpush1.msra.mxu0 0.0
    %1396 = vmatprep.subr.mxu0 0.0
    %1397 = vmatpush1.msra.mxu0 0.0
    %1398 = vmatprep.subr.mxu0 0.0
    %1399 = vmatpush1.msra.mxu0 0.0
    %1400 = vmatprep.subr.mxu0 0.0
    %1401 = vmatpush1.msra.mxu0 0.0
    %1402 = vmatprep.subr.mxu0 0.0
    %1403 = vmatpush1.msra.mxu0 0.0
    %1404 = vmatprep.subr.mxu0 0.0
    %1405 = vmatpush1.msra.mxu0 0.0
    %1406 = vmatprep.subr.mxu0 0.0
    %1407 = vmatpush1.msra.mxu0 0.0
    %1408 = vmatprep.subr.mxu0 0.0
    %1409 = vmatpush1.msra.mxu0 0.0
    %1410 = vmatprep.subr.mxu0 0.0
    %1411 = vmatpush1.msra.mxu0 0.0
    %1412 = vmatprep.subr.mxu0 0.0
    %1413 = vmatpush1.msra.mxu0 0.0
    %1414 = vmatprep.subr.mxu0 0.0
    %1415 = vmatpush1.msra.mxu0 0.0
    %1416 = vmatprep.subr.mxu0 0.0
    %1417 = vmatpush1.msra.mxu0 0.0
    %1418 = vmatprep.subr.mxu0 0.0
    %1419 = vmatpush1.msra.mxu0 0.0
    %1420 = vmatprep.subr.mxu0 0.0
    %1421 = vmatpush1.msra.mxu0 0.0
    %1422 = vmatprep.subr.mxu0 0.0
    %1423 = vmatpush1.msra.mxu0 0.0
    %1424 = vmatprep.mubr.f32.mxu0 0.0
    %v1425 = vand.u32 %v857, 4294901760
    %1426 = vmatmul.mubr.f32.gmra.mrb[0].mxu0 %v1425
    %v1427 = vpop.f32.mrb[0].mxu0
    %v1428 = vadd.f32 %v1303, %v1427
    %v1429 = vpop.f32.mrb[0].mxu0
    %v1430 = vadd.f32 %v1305, %v1429
    %1431 = vmatprep.mubr.f32.mxu0 0.0
    %v1432 = vand.u32 %v860, 4294901760
    %1433 = vmatmul.mubr.f32.gmra.mrb[0].mxu0 %v1432
    %v1434 = vpop.f32.mrb[0].mxu0
    %v1435 = vadd.f32 %v1312, %v1434
    %v1436 = vpop.f32.mrb[0].mxu0
    %v1437 = vadd.f32 %v1314, %v1436
    %1438 = vmatprep.mubr.f32.mxu0 0.0
    %v1439 = vand.u32 %v857, 4294901760
    %1440 = vmatmul.mubr.f32.gmra.mrb[0].mxu0 %v1439
    %v1441 = vpop.f32.mrb[0].mxu0
    %v1442 = vadd.f32 %v1321, %v1441
    %v1443 = vpop.f32.mrb[0].mxu0
    %v1444 = vadd.f32 %v1323, %v1443
    %1445 = vmatprep.mubr.f32.mxu0 0.0
    %v1446 = vand.u32 %v860, 4294901760
    %1447 = vmatmul.mubr.f32.gmra.mrb[0].mxu0 %v1446
    %v1448 = vpop.f32.mrb[0].mxu0
    %v1449 = vadd.f32 %v1330, %v1448
    %v1450 = vpop.f32.mrb[0].mxu0
    %v1451 = vadd.f32 %v1332, %v1450
    %1452 = vmatprep.mubr.f32.mxu0 0.0
    %v1453 = vand.u32 %v857, 4294901760
    %1454 = vmatmul.mubr.f32.gmra.mrb[0].mxu0 %v1453
    %v1455 = vpop.f32.mrb[0].mxu0
    %v1456 = vadd.f32 %v1339, %v1455
    %v1457 = vpop.f32.mrb[0].mxu0
    %v1458 = vadd.f32 %v1341, %v1457
    %1459 = vmatprep.mubr.f32.mxu0 0.0
    %v1460 = vand.u32 %v860, 4294901760
    %1461 = vmatmul.mubr.f32.gmra.mrb[0].mxu0 %v1460
    %v1462 = vpop.f32.mrb[0].mxu0
    %v1463 = vadd.f32 %v1348, %v1462
    %v1464 = vpop.f32.mrb[0].mxu0
    %v1465 = vadd.f32 %v1350, %v1464
    %1466 = vdwg.mxu0
    %1467 = vmatprep.subr.mxu0 %v64
    %1468 = vmatpush1.msra.mxu0 %v63
    %1469 = vmatprep.subr.mxu0 %v66
    %1470 = vmatpush1.msra.mxu0 %v65
    %1471 = vmatprep.subr.mxu0 0.0
    %1472 = vmatpush1.msra.mxu0 0.0
    %1473 = vmatprep.subr.mxu0 0.0
    %1474 = vmatpush1.msra.mxu0 0.0
    %1475 = vmatprep.subr.mxu0 0.0
    %1476 = vmatpush1.msra.mxu0 0.0
    %1477 = vmatprep.subr.mxu0 0.0
    %1478 = vmatpush1.msra.mxu0 0.0
    %1479 = vmatprep.subr.mxu0 0.0
    %1480 = vmatpush1.msra.mxu0 0.0
    %1481 = vmatprep.subr.mxu0 0.0
    %1482 = vmatpush1.msra.mxu0 0.0
    %1483 = vmatprep.subr.mxu0 0.0
    %1484 = vmatpush1.msra.mxu0 0.0
    %1485 = vmatprep.subr.mxu0 0.0
    %1486 = vmatpush1.msra.mxu0 0.0
    %1487 = vmatprep.subr.mxu0 0.0
    %1488 = vmatpush1.msra.mxu0 0.0
    %1489 = vmatprep.subr.mxu0 0.0
    %1490 = vmatpush1.msra.mxu0 0.0
    %1491 = vmatprep.subr.mxu0 0.0
    %1492 = vmatpush1.msra.mxu0 0.0
    %1493 = vmatprep.subr.mxu0 0.0
    %1494 = vmatpush1.msra.mxu0 0.0
    %1495 = vmatprep.subr.mxu0 0.0
    %1496 = vmatpush1.msra.mxu0 0.0
    %1497 = vmatprep.subr.mxu0 0.0
    %1498 = vmatpush1.msra.mxu0 0.0
    %1499 = vmatprep.subr.mxu0 0.0
    %1500 = vmatpush1.msra.mxu0 0.0
    %1501 = vmatprep.subr.mxu0 0.0
    %1502 = vmatpush1.msra.mxu0 0.0
    %1503 = vmatprep.subr.mxu0 0.0
    %1504 = vmatpush1.msra.mxu0 0.0
    %1505 = vmatprep.subr.mxu0 0.0
    %1506 = vmatpush1.msra.mxu0 0.0
    %1507 = vmatprep.subr.mxu0 0.0
    %1508 = vmatpush1.msra.mxu0 0.0
    %1509 = vmatprep.subr.mxu0 0.0
    %1510 = vmatpush1.msra.mxu0 0.0
    %1511 = vmatprep.subr.mxu0 0.0
    %1512 = vmatpush1.msra.mxu0 0.0
    %1513 = vmatprep.subr.mxu0 0.0
    %1514 = vmatpush1.msra.mxu0 0.0
    %1515 = vmatprep.subr.mxu0 0.0
    %1516 = vmatpush1.msra.mxu0 0.0
    %1517 = vmatprep.subr.mxu0 0.0
    %1518 = vmatpush1.msra.mxu0 0.0
    %1519 = vmatprep.subr.mxu0 0.0
    %1520 = vmatpush1.msra.mxu0 0.0
    %1521 = vmatprep.subr.mxu0 0.0
    %1522 = vmatpush1.msra.mxu0 0.0
    %1523 = vmatprep.subr.mxu0 0.0
    %1524 = vmatpush1.msra.mxu0 0.0
    %1525 = vmatprep.subr.mxu0 0.0
    %1526 = vmatpush1.msra.mxu0 0.0
    %1527 = vmatprep.subr.mxu0 0.0
    %1528 = vmatpush1.msra.mxu0 0.0
    %1529 = vmatprep.subr.mxu0 0.0
    %1530 = vmatpush1.msra.mxu0 0.0
    %1531 = vmatprep.mubr.f32.mxu0 0.0
    %v1532 = vand.u32 %v857, 4294901760
    %1533 = vmatmul.mubr.f32.gmra.mrb[0].mxu0 %v1532
    %v1534 = vpop.f32.mrb[0].mxu0
    %v1535 = vadd.f32 %v1428, %v1534
    %v1536 = vpop.f32.mrb[0].mxu0
    %v1537 = vadd.f32 %v1430, %v1536
    %1538 = vmatprep.mubr.f32.mxu0 0.0
    %v1539 = vand.u32 %v860, 4294901760
    %1540 = vmatmul.mubr.f32.gmra.mrb[0].mxu0 %v1539
    %v1541 = vpop.f32.mrb[0].mxu0
    %v1542 = vadd.f32 %v1435, %v1541
    %v1543 = vpop.f32.mrb[0].mxu0
    %v1544 = vadd.f32 %v1437, %v1543
    %1545 = vmatprep.mubr.f32.mxu0 0.0
    %v1546 = vand.u32 %v857, 4294901760
    %1547 = vmatmul.mubr.f32.gmra.mrb[0].mxu0 %v1546
    %v1548 = vpop.f32.mrb[0].mxu0
    %v1549 = vadd.f32 %v1442, %v1548
    %v1550 = vpop.f32.mrb[0].mxu0
    %v1551 = vadd.f32 %v1444, %v1550
    %1552 = vmatprep.mubr.f32.mxu0 0.0
    %v1553 = vand.u32 %v860, 4294901760
    %1554 = vmatmul.mubr.f32.gmra.mrb[0].mxu0 %v1553
    %v1555 = vpop.f32.mrb[0].mxu0
    %v1556 = vadd.f32 %v1449, %v1555
    %v1557 = vpop.f32.mrb[0].mxu0
    %v1558 = vadd.f32 %v1451, %v1557
    %1559 = vmatprep.mubr.f32.mxu0 0.0
    %v1560 = vand.u32 %v857, 4294901760
    %1561 = vmatmul.mubr.f32.gmra.mrb[0].mxu0 %v1560
    %v1562 = vpop.f32.mrb[0].mxu0
    %v1563 = vadd.f32 %v1456, %v1562
    %v1564 = vpop.f32.mrb[0].mxu0
    %v1565 = vadd.f32 %v1458, %v1564
    %1566 = vmatprep.mubr.f32.mxu0 0.0
    %v1567 = vand.u32 %v860, 4294901760
    %1568 = vmatmul.mubr.f32.gmra.mrb[0].mxu0 %v1567
    %v1569 = vpop.f32.mrb[0].mxu0
    %v1570 = vadd.f32 %v1463, %v1569
    %v1571 = vpop.f32.mrb[0].mxu0
    %v1572 = vadd.f32 %v1465, %v1571
    %1573 = vdwg.mxu0
    %v1574 = vld [vmem:[%s1] sm:$0xff]
    %v1575 = vld [vmem:[%s1 + $0x8] sm:$0xff]
    %v1576 = vld [vmem:[%s1 + $0x10] sm:$0xff]
    %v1577 = vld [vmem:[%s1 + $0x18] sm:$0xff]
    %v1578 = vld [vmem:[%s1 + $0x20] sm:$0xff]
    %v1579 = vld [vmem:[%s1 + $0x28] sm:$0xff]
    %v1580 = vld [vmem:[%s1 + $0x30] sm:$0xff]
    %v1581 = vld [vmem:[%s1 + $0x38] sm:$0xff]
    %v1582 = vld [vmem:[%s1 + $0x40] sm:$0xff]
    %v1583 = vld [vmem:[%s1 + $0x48] sm:$0xff]
    %v1584 = vld [vmem:[%s1 + $0x50] sm:$0xff]
    %v1585 = vld [vmem:[%s1 + $0x58] sm:$0xff]
    %v1586 = vmul.f32 %v1535, %v1574
    %v1587 = vmul.f32 %v1537, %v1575
    %v1588 = vmul.f32 %v1542, %v1576
    %v1589 = vmul.f32 %v1544, %v1577
    %v1590 = vmul.f32 %v1549, %v1578
    %v1591 = vmul.f32 %v1551, %v1579
    %v1592 = vmul.f32 %v1556, %v1580
    %v1593 = vmul.f32 %v1558, %v1581
    %v1594 = vmul.f32 %v1563, %v1582
    %v1595 = vmul.f32 %v1565, %v1583
    %v1596 = vmul.f32 %v1570, %v1584
    %v1597 = vmul.f32 %v1572, %v1585
    %1598 = vmatprep.subr.mxu0 0.0
    %1599 = vmatpush1.msra.mxu0 %v287
    %1600 = vmatprep.subr.mxu0 0.0
    %1601 = vmatpush1.msra.mxu0 %v288
    %1602 = vmatprep.subr.mxu0 0.0
    %1603 = vmatpush1.msra.mxu0 %v289
    %1604 = vmatprep.subr.mxu0 0.0
    %1605 = vmatpush1.msra.mxu0 %v290
    %1606 = vmatprep.subr.mxu0 0.0
    %1607 = vmatpush1.msra.mxu0 %v291
    %1608 = vmatprep.subr.mxu0 0.0
    %1609 = vmatpush1.msra.mxu0 %v292
    %1610 = vmatprep.subr.mxu0 0.0
    %1611 = vmatpush1.msra.mxu0 %v293
    %1612 = vmatprep.subr.mxu0 0.0
    %1613 = vmatpush1.msra.mxu0 %v294
    %1614 = vmatprep.subr.mxu0 0.0
    %1615 = vmatpush1.msra.mxu0 %v295
    %1616 = vmatprep.subr.mxu0 0.0
    %1617 = vmatpush1.msra.mxu0 %v296
    %1618 = vmatprep.subr.mxu0 0.0
    %1619 = vmatpush1.msra.mxu0 %v297
    %1620 = vmatprep.subr.mxu0 0.0
    %1621 = vmatpush1.msra.mxu0 %v298
    %1622 = vmatprep.subr.mxu0 0.0
    %1623 = vmatpush1.msra.mxu0 %v299
    %1624 = vmatprep.subr.mxu0 0.0
    %1625 = vmatpush1.msra.mxu0 %v300
    %1626 = vmatprep.subr.mxu0 0.0
    %1627 = vmatpush1.msra.mxu0 %v301
    %1628 = vmatprep.subr.mxu0 0.0
    %1629 = vmatpush1.msra.mxu0 %v302
    %1630 = vmatprep.subr.mxu0 0.0
    %1631 = vmatpush1.msra.mxu0 %v303
    %1632 = vmatprep.subr.mxu0 0.0
    %1633 = vmatpush1.msra.mxu0 %v304
    %1634 = vmatprep.subr.mxu0 0.0
    %1635 = vmatpush1.msra.mxu0 %v305
    %1636 = vmatprep.subr.mxu0 0.0
    %1637 = vmatpush1.msra.mxu0 %v306
    %1638 = vmatprep.subr.mxu0 0.0
    %1639 = vmatpush1.msra.mxu0 %v307
    %1640 = vmatprep.subr.mxu0 0.0
    %1641 = vmatpush1.msra.mxu0 %v308
    %1642 = vmatprep.subr.mxu0 0.0
    %1643 = vmatpush1.msra.mxu0 %v309
    %1644 = vmatprep.subr.mxu0 0.0
    %1645 = vmatpush1.msra.mxu0 %v310
    %1646 = vmatprep.subr.mxu0 0.0
    %1647 = vmatpush1.msra.mxu0 %v311
    %1648 = vmatprep.subr.mxu0 0.0
    %1649 = vmatpush1.msra.mxu0 %v312
    %1650 = vmatprep.subr.mxu0 0.0
    %1651 = vmatpush1.msra.mxu0 %v313
    %1652 = vmatprep.subr.mxu0 0.0
    %1653 = vmatpush1.msra.mxu0 %v314
    %1654 = vmatprep.subr.mxu0 0.0
    %1655 = vmatpush1.msra.mxu0 %v315
    %1656 = vmatprep.subr.mxu0 0.0
    %1657 = vmatpush1.msra.mxu0 %v316
    %1658 = vmatprep.subr.mxu0 0.0
    %1659 = vmatpush1.msra.mxu0 %v317
    %1660 = vmatprep.subr.mxu0 0.0
    %1661 = vmatpush1.msra.mxu0 %v318
    %v1662 = vand.u32 %v1587, 4294901760
    %v1663 = vsub.f32 %v1587, %v1662
    %v1664 = vand.u32 %v1663, 4294901760
    %v1665 = vsub.f32 %v1663, %v1664
    %v1666 = vand.u32 %v1665, 4294901760
    %1667 = vmatprep.mubr.f32.mxu0 %v1666
    %v1668 = vand.u32 %v1586, 4294901760
    %v1669 = vsub.f32 %v1586, %v1668
    %v1670 = vand.u32 %v1669, 4294901760
    %v1671 = vsub.f32 %v1669, %v1670
    %v1672 = vand.u32 %v1671, 4294901760
    %1673 = vmatmul.mubr.f32.gmra.mrb[0].mxu0 %v1672
    %v1674 = vpop.f32.mrb[0].mxu0
    %v1675 = vadd.f32 0.0, %v1674
    %v1676 = vpop.f32.mrb[0].mxu0
    %v1677 = vand.u32 %v1589, 4294901760
    %v1678 = vsub.f32 %v1589, %v1677
    %v1679 = vand.u32 %v1678, 4294901760
    %v1680 = vsub.f32 %v1678, %v1679
    %v1681 = vand.u32 %v1680, 4294901760
    %1682 = vmatprep.mubr.f32.mxu0 %v1681
    %v1683 = vand.u32 %v1588, 4294901760
    %v1684 = vsub.f32 %v1588, %v1683
    %v1685 = vand.u32 %v1684, 4294901760
    %v1686 = vsub.f32 %v1684, %v1685
    %v1687 = vand.u32 %v1686, 4294901760
    %1688 = vmatmul.mubr.f32.gmra.mrb[0].mxu0 %v1687
    %v1689 = vpop.f32.mrb[0].mxu0
    %v1690 = vadd.f32 0.0, %v1689
    %v1691 = vpop.f32.mrb[0].mxu0
    %v1692 = vand.u32 %v1591, 4294901760
    %v1693 = vsub.f32 %v1591, %v1692
    %v1694 = vand.u32 %v1693, 4294901760
    %v1695 = vsub.f32 %v1693, %v1694
    %v1696 = vand.u32 %v1695, 4294901760
    %1697 = vmatprep.mubr.f32.mxu0 %v1696
    %v1698 = vand.u32 %v1590, 4294901760
    %v1699 = vsub.f32 %v1590, %v1698
    %v1700 = vand.u32 %v1699, 4294901760
    %v1701 = vsub.f32 %v1699, %v1700
    %v1702 = vand.u32 %v1701, 4294901760
    %1703 = vmatmul.mubr.f32.gmra.mrb[0].mxu0 %v1702
    %v1704 = vpop.f32.mrb[0].mxu0
    %v1705 = vadd.f32 0.0, %v1704
    %v1706 = vpop.f32.mrb[0].mxu0
    %v1707 = vand.u32 %v1593, 4294901760
    %v1708 = vsub.f32 %v1593, %v1707
    %v1709 = vand.u32 %v1708, 4294901760
    %v1710 = vsub.f32 %v1708, %v1709
    %v1711 = vand.u32 %v1710, 4294901760
    %1712 = vmatprep.mubr.f32.mxu0 %v1711
    %v1713 = vand.u32 %v1592, 4294901760
    %v1714 = vsub.f32 %v1592, %v1713
    %v1715 = vand.u32 %v1714, 4294901760
    %v1716 = vsub.f32 %v1714, %v1715
    %v1717 = vand.u32 %v1716, 4294901760
    %1718 = vmatmul.mubr.f32.gmra.mrb[0].mxu0 %v1717
    %v1719 = vpop.f32.mrb[0].mxu0
    %v1720 = vadd.f32 0.0, %v1719
    %v1721 = vpop.f32.mrb[0].mxu0
    %v1722 = vand.u32 %v1595, 4294901760
    %v1723 = vsub.f32 %v1595, %v1722
    %v1724 = vand.u32 %v1723, 4294901760
    %v1725 = vsub.f32 %v1723, %v1724
    %v1726 = vand.u32 %v1725, 4294901760
    %1727 = vmatprep.mubr.f32.mxu0 %v1726
    %v1728 = vand.u32 %v1594, 4294901760
    %v1729 = vsub.f32 %v1594, %v1728
    %v1730 = vand.u32 %v1729, 4294901760
    %v1731 = vsub.f32 %v1729, %v1730
    %v1732 = vand.u32 %v1731, 4294901760
    %1733 = vmatmul.mubr.f32.gmra.mrb[0].mxu0 %v1732
    %v1734 = vpop.f32.mrb[0].mxu0
    %v1735 = vadd.f32 0.0, %v1734
    %v1736 = vpop.f32.mrb[0].mxu0
    %v1737 = vand.u32 %v1597, 4294901760
    %v1738 = vsub.f32 %v1597, %v1737
    %v1739 = vand.u32 %v1738, 4294901760
    %v1740 = vsub.f32 %v1738, %v1739
    %v1741 = vand.u32 %v1740, 4294901760
    %1742 = vmatprep.mubr.f32.mxu0 %v1741
    %v1743 = vand.u32 %v1596, 4294901760
    %v1744 = vsub.f32 %v1596, %v1743
    %v1745 = vand.u32 %v1744, 4294901760
    %v1746 = vsub.f32 %v1744, %v1745
    %v1747 = vand.u32 %v1746, 4294901760
    %1748 = vmatmul.mubr.f32.gmra.mrb[0].mxu0 %v1747
    %v1749 = vpop.f32.mrb[0].mxu0
    %v1750 = vadd.f32 0.0, %v1749
    %v1751 = vpop.f32.mrb[0].mxu0
    %1752 = vdwg.mxu0
    %1753 = vmatprep.subr.mxu0 0.0
    %v1754 = vsub.f32 %v287, %v287
    %v1755 = vand.u32 %v1754, 4294901760
    %v1756 = vsub.f32 %v1754, %v1755
    %v1757 = vand.u32 %v1756, 4294901760
    %1758 = vmatpush1.msra.mxu0 %v1757
    %1759 = vmatprep.subr.mxu0 0.0
    %v1760 = vsub.f32 %v288, %v288
    %v1761 = vand.u32 %v1760, 4294901760
    %v1762 = vsub.f32 %v1760, %v1761
    %v1763 = vand.u32 %v1762, 4294901760
    %1764 = vmatpush1.msra.mxu0 %v1763
    %1765 = vmatprep.subr.mxu0 0.0
    %v1766 = vsub.f32 %v289, %v289
    %v1767 = vand.u32 %v1766, 4294901760
    %v1768 = vsub.f32 %v1766, %v1767
    %v1769 = vand.u32 %v1768, 4294901760
    %1770 = vmatpush1.msra.mxu0 %v1769
    %1771 = vmatprep.subr.mxu0 0.0
    %v1772 = vsub.f32 %v290, %v290
    %v1773 = vand.u32 %v1772, 4294901760
    %v1774 = vsub.f32 %v1772, %v1773
    %v1775 = vand.u32 %v1774, 4294901760
    %1776 = vmatpush1.msra.mxu0 %v1775
    %1777 = vmatprep.subr.mxu0 0.0
    %v1778 = vsub.f32 %v291, %v291
    %v1779 = vand.u32 %v1778, 4294901760
    %v1780 = vsub.f32 %v1778, %v1779
    %v1781 = vand.u32 %v1780, 4294901760
    %1782 = vmatpush1.msra.mxu0 %v1781
    %1783 = vmatprep.subr.mxu0 0.0
    %v1784 = vsub.f32 %v292, %v292
    %v1785 = vand.u32 %v1784, 4294901760
    %v1786 = vsub.f32 %v1784, %v1785
    %v1787 = vand.u32 %v1786, 4294901760
    %1788 = vmatpush1.msra.mxu0 %v1787
    %1789 = vmatprep.subr.mxu0 0.0
    %v1790 = vsub.f32 %v293, %v293
    %v1791 = vand.u32 %v1790, 4294901760
    %v1792 = vsub.f32 %v1790, %v1791
    %v1793 = vand.u32 %v1792, 4294901760
    %1794 = vmatpush1.msra.mxu0 %v1793
    %1795 = vmatprep.subr.mxu0 0.0
    %v1796 = vsub.f32 %v294, %v294
    %v1797 = vand.u32 %v1796, 4294901760
    %v1798 = vsub.f32 %v1796, %v1797
    %v1799 = vand.u32 %v1798, 4294901760
    %1800 = vmatpush1.msra.mxu0 %v1799
    %1801 = vmatprep.subr.mxu0 0.0
    %v1802 = vsub.f32 %v295, %v295
    %v1803 = vand.u32 %v1802, 4294901760
    %v1804 = vsub.f32 %v1802, %v1803
    %v1805 = vand.u32 %v1804, 4294901760
    %1806 = vmatpush1.msra.mxu0 %v1805
    %1807 = vmatprep.subr.mxu0 0.0
    %v1808 = vsub.f32 %v296, %v296
    %v1809 = vand.u32 %v1808, 4294901760
    %v1810 = vsub.f32 %v1808, %v1809
    %v1811 = vand.u32 %v1810, 4294901760
    %1812 = vmatpush1.msra.mxu0 %v1811
    %1813 = vmatprep.subr.mxu0 0.0
    %v1814 = vsub.f32 %v297, %v297
    %v1815 = vand.u32 %v1814, 4294901760
    %v1816 = vsub.f32 %v1814, %v1815
    %v1817 = vand.u32 %v1816, 4294901760
    %1818 = vmatpush1.msra.mxu0 %v1817
    %1819 = vmatprep.subr.mxu0 0.0
    %v1820 = vsub.f32 %v298, %v298
    %v1821 = vand.u32 %v1820, 4294901760
    %v1822 = vsub.f32 %v1820, %v1821
    %v1823 = vand.u32 %v1822, 4294901760
    %1824 = vmatpush1.msra.mxu0 %v1823
    %1825 = vmatprep.subr.mxu0 0.0
    %v1826 = vsub.f32 %v299, %v299
    %v1827 = vand.u32 %v1826, 4294901760
    %v1828 = vsub.f32 %v1826, %v1827
    %v1829 = vand.u32 %v1828, 4294901760
    %1830 = vmatpush1.msra.mxu0 %v1829
    %1831 = vmatprep.subr.mxu0 0.0
    %v1832 = vsub.f32 %v300, %v300
    %v1833 = vand.u32 %v1832, 4294901760
    %v1834 = vsub.f32 %v1832, %v1833
    %v1835 = vand.u32 %v1834, 4294901760
    %1836 = vmatpush1.msra.mxu0 %v1835
    %1837 = vmatprep.subr.mxu0 0.0
    %v1838 = vsub.f32 %v301, %v301
    %v1839 = vand.u32 %v1838, 4294901760
    %v1840 = vsub.f32 %v1838, %v1839
    %v1841 = vand.u32 %v1840, 4294901760
    %1842 = vmatpush1.msra.mxu0 %v1841
    %1843 = vmatprep.subr.mxu0 0.0
    %v1844 = vsub.f32 %v302, %v302
    %v1845 = vand.u32 %v1844, 4294901760
    %v1846 = vsub.f32 %v1844, %v1845
    %v1847 = vand.u32 %v1846, 4294901760
    %1848 = vmatpush1.msra.mxu0 %v1847
    %1849 = vmatprep.subr.mxu0 0.0
    %v1850 = vsub.f32 %v303, %v303
    %v1851 = vand.u32 %v1850, 4294901760
    %v1852 = vsub.f32 %v1850, %v1851
    %v1853 = vand.u32 %v1852, 4294901760
    %1854 = vmatpush1.msra.mxu0 %v1853
    %1855 = vmatprep.subr.mxu0 0.0
    %v1856 = vsub.f32 %v304, %v304
    %v1857 = vand.u32 %v1856, 4294901760
    %v1858 = vsub.f32 %v1856, %v1857
    %v1859 = vand.u32 %v1858, 4294901760
    %1860 = vmatpush1.msra.mxu0 %v1859
    %1861 = vmatprep.subr.mxu0 0.0
    %v1862 = vsub.f32 %v305, %v305
    %v1863 = vand.u32 %v1862, 4294901760
    %v1864 = vsub.f32 %v1862, %v1863
    %v1865 = vand.u32 %v1864, 4294901760
    %1866 = vmatpush1.msra.mxu0 %v1865
    %1867 = vmatprep.subr.mxu0 0.0
    %v1868 = vsub.f32 %v306, %v306
    %v1869 = vand.u32 %v1868, 4294901760
    %v1870 = vsub.f32 %v1868, %v1869
    %v1871 = vand.u32 %v1870, 4294901760
    %1872 = vmatpush1.msra.mxu0 %v1871
    %1873 = vmatprep.subr.mxu0 0.0
    %v1874 = vsub.f32 %v307, %v307
    %v1875 = vand.u32 %v1874, 4294901760
    %v1876 = vsub.f32 %v1874, %v1875
    %v1877 = vand.u32 %v1876, 4294901760
    %1878 = vmatpush1.msra.mxu0 %v1877
    %1879 = vmatprep.subr.mxu0 0.0
    %v1880 = vsub.f32 %v308, %v308
    %v1881 = vand.u32 %v1880, 4294901760
    %v1882 = vsub.f32 %v1880, %v1881
    %v1883 = vand.u32 %v1882, 4294901760
    %1884 = vmatpush1.msra.mxu0 %v1883
    %1885 = vmatprep.subr.mxu0 0.0
    %v1886 = vsub.f32 %v309, %v309
    %v1887 = vand.u32 %v1886, 4294901760
    %v1888 = vsub.f32 %v1886, %v1887
    %v1889 = vand.u32 %v1888, 4294901760
    %1890 = vmatpush1.msra.mxu0 %v1889
    %1891 = vmatprep.subr.mxu0 0.0
    %v1892 = vsub.f32 %v310, %v310
    %v1893 = vand.u32 %v1892, 4294901760
    %v1894 = vsub.f32 %v1892, %v1893
    %v1895 = vand.u32 %v1894, 4294901760
    %1896 = vmatpush1.msra.mxu0 %v1895
    %1897 = vmatprep.subr.mxu0 0.0
    %v1898 = vsub.f32 %v311, %v311
    %v1899 = vand.u32 %v1898, 4294901760
    %v1900 = vsub.f32 %v1898, %v1899
    %v1901 = vand.u32 %v1900, 4294901760
    %1902 = vmatpush1.msra.mxu0 %v1901
    %1903 = vmatprep.subr.mxu0 0.0
    %v1904 = vsub.f32 %v312, %v312
    %v1905 = vand.u32 %v1904, 4294901760
    %v1906 = vsub.f32 %v1904, %v1905
    %v1907 = vand.u32 %v1906, 4294901760
    %1908 = vmatpush1.msra.mxu0 %v1907
    %1909 = vmatprep.subr.mxu0 0.0
    %v1910 = vsub.f32 %v313, %v313
    %v1911 = vand.u32 %v1910, 4294901760
    %v1912 = vsub.f32 %v1910, %v1911
    %v1913 = vand.u32 %v1912, 4294901760
    %1914 = vmatpush1.msra.mxu0 %v1913
    %1915 = vmatprep.subr.mxu0 0.0
    %v1916 = vsub.f32 %v314, %v314
    %v1917 = vand.u32 %v1916, 4294901760
    %v1918 = vsub.f32 %v1916, %v1917
    %v1919 = vand.u32 %v1918, 4294901760
    %1920 = vmatpush1.msra.mxu0 %v1919
    %1921 = vmatprep.subr.mxu0 0.0
    %v1922 = vsub.f32 %v315, %v315
    %v1923 = vand.u32 %v1922, 4294901760
    %v1924 = vsub.f32 %v1922, %v1923
    %v1925 = vand.u32 %v1924, 4294901760
    %1926 = vmatpush1.msra.mxu0 %v1925
    %1927 = vmatprep.subr.mxu0 0.0
    %v1928 = vsub.f32 %v316, %v316
    %v1929 = vand.u32 %v1928, 4294901760
    %v1930 = vsub.f32 %v1928, %v1929
    %v1931 = vand.u32 %v1930, 4294901760
    %1932 = vmatpush1.msra.mxu0 %v1931
    %1933 = vmatprep.subr.mxu0 0.0
    %v1934 = vsub.f32 %v317, %v317
    %v1935 = vand.u32 %v1934, 4294901760
    %v1936 = vsub.f32 %v1934, %v1935
    %v1937 = vand.u32 %v1936, 4294901760
    %1938 = vmatpush1.msra.mxu0 %v1937
    %1939 = vmatprep.subr.mxu0 0.0
    %v1940 = vsub.f32 %v318, %v318
    %v1941 = vand.u32 %v1940, 4294901760
    %v1942 = vsub.f32 %v1940, %v1941
    %v1943 = vand.u32 %v1942, 4294901760
    %1944 = vmatpush1.msra.mxu0 %v1943
    %v1945 = vand.u32 %v1587, 4294901760
    %1946 = vmatprep.mubr.f32.mxu0 %v1945
    %v1947 = vand.u32 %v1586, 4294901760
    %1948 = vmatmul.mubr.f32.gmra.mrb[0].mxu0 %v1947
    %v1949 = vpop.f32.mrb[0].mxu0
    %v1950 = vadd.f32 %v1675, %v1949
    %v1951 = vpop.f32.mrb[0].mxu0
    %v1952 = vand.u32 %v1589, 4294901760
    %1953 = vmatprep.mubr.f32.mxu0 %v1952
    %v1954 = vand.u32 %v1588, 4294901760
    %1955 = vmatmul.mubr.f32.gmra.mrb[0].mxu0 %v1954
    %v1956 = vpop.f32.mrb[0].mxu0
    %v1957 = vadd.f32 %v1690, %v1956
    %v1958 = vpop.f32.mrb[0].mxu0
    %v1959 = vand.u32 %v1591, 4294901760
    %1960 = vmatprep.mubr.f32.mxu0 %v1959
    %v1961 = vand.u32 %v1590, 4294901760
    %1962 = vmatmul.mubr.f32.gmra.mrb[0].mxu0 %v1961
    %v1963 = vpop.f32.mrb[0].mxu0
    %v1964 = vadd.f32 %v1705, %v1963
    %v1965 = vpop.f32.mrb[0].mxu0
    %v1966 = vand.u32 %v1593, 4294901760
    %1967 = vmatprep.mubr.f32.mxu0 %v1966
    %v1968 = vand.u32 %v1592, 4294901760
    %1969 = vmatmul.mubr.f32.gmra.mrb[0].mxu0 %v1968
    %v1970 = vpop.f32.mrb[0].mxu0
    %v1971 = vadd.f32 %v1720, %v1970
    %v1972 = vpop.f32.mrb[0].mxu0
    %v1973 = vand.u32 %v1595, 4294901760
    %1974 = vmatprep.mubr.f32.mxu0 %v1973
    %v1975 = vand.u32 %v1594, 4294901760
    %1976 = vmatmul.mubr.f32.gmra.mrb[0].mxu0 %v1975
    %v1977 = vpop.f32.mrb[0].mxu0
    %v1978 = vadd.f32 %v1735, %v1977
    %v1979 = vpop.f32.mrb[0].mxu0
    %v1980 = vand.u32 %v1597, 4294901760
    %1981 = vmatprep.mubr.f32.mxu0 %v1980
    %v1982 = vand.u32 %v1596, 4294901760
    %1983 = vmatmul.mubr.f32.gmra.mrb[0].mxu0 %v1982
    %v1984 = vpop.f32.mrb[0].mxu0
    %v1985 = vadd.f32 %v1750, %v1984
    %v1986 = vpop.f32.mrb[0].mxu0
    %1987 = vdwg.mxu0
    %1988 = vmatprep.subr.mxu0 0.0
    %v1989 = vsub.f32 %v287, %v287
    %1990 = vmatpush1.msra.mxu0 %v1989
    %1991 = vmatprep.subr.mxu0 0.0
    %v1992 = vsub.f32 %v288, %v288
    %1993 = vmatpush1.msra.mxu0 %v1992
    %1994 = vmatprep.subr.mxu0 0.0
    %v1995 = vsub.f32 %v289, %v289
    %1996 = vmatpush1.msra.mxu0 %v1995
    %1997 = vmatprep.subr.mxu0 0.0
    %v1998 = vsub.f32 %v290, %v290
    %1999 = vmatpush1.msra.mxu0 %v1998
    %2000 = vmatprep.subr.mxu0 0.0
    %v2001 = vsub.f32 %v291, %v291
    %2002 = vmatpush1.msra.mxu0 %v2001
    %2003 = vmatprep.subr.mxu0 0.0
    %v2004 = vsub.f32 %v292, %v292
    %2005 = vmatpush1.msra.mxu0 %v2004
    %2006 = vmatprep.subr.mxu0 0.0
    %v2007 = vsub.f32 %v293, %v293
    %2008 = vmatpush1.msra.mxu0 %v2007
    %2009 = vmatprep.subr.mxu0 0.0
    %v2010 = vsub.f32 %v294, %v294
    %2011 = vmatpush1.msra.mxu0 %v2010
    %2012 = vmatprep.subr.mxu0 0.0
    %v2013 = vsub.f32 %v295, %v295
    %2014 = vmatpush1.msra.mxu0 %v2013
    %2015 = vmatprep.subr.mxu0 0.0
    %v2016 = vsub.f32 %v296, %v296
    %2017 = vmatpush1.msra.mxu0 %v2016
    %2018 = vmatprep.subr.mxu0 0.0
    %v2019 = vsub.f32 %v297, %v297
    %2020 = vmatpush1.msra.mxu0 %v2019
    %2021 = vmatprep.subr.mxu0 0.0
    %v2022 = vsub.f32 %v298, %v298
    %2023 = vmatpush1.msra.mxu0 %v2022
    %2024 = vmatprep.subr.mxu0 0.0
    %v2025 = vsub.f32 %v299, %v299
    %2026 = vmatpush1.msra.mxu0 %v2025
    %2027 = vmatprep.subr.mxu0 0.0
    %v2028 = vsub.f32 %v300, %v300
    %2029 = vmatpush1.msra.mxu0 %v2028
    %2030 = vmatprep.subr.mxu0 0.0
    %v2031 = vsub.f32 %v301, %v301
    %2032 = vmatpush1.msra.mxu0 %v2031
    %2033 = vmatprep.subr.mxu0 0.0
    %v2034 = vsub.f32 %v302, %v302
    %2035 = vmatpush1.msra.mxu0 %v2034
    %2036 = vmatprep.subr.mxu0 0.0
    %v2037 = vsub.f32 %v303, %v303
    %2038 = vmatpush1.msra.mxu0 %v2037
    %2039 = vmatprep.subr.mxu0 0.0
    %v2040 = vsub.f32 %v304, %v304
    %2041 = vmatpush1.msra.mxu0 %v2040
    %2042 = vmatprep.subr.mxu0 0.0
    %v2043 = vsub.f32 %v305, %v305
    %2044 = vmatpush1.msra.mxu0 %v2043
    %2045 = vmatprep.subr.mxu0 0.0
    %v2046 = vsub.f32 %v306, %v306
    %2047 = vmatpush1.msra.mxu0 %v2046
    %2048 = vmatprep.subr.mxu0 0.0
    %v2049 = vsub.f32 %v307, %v307
    %2050 = vmatpush1.msra.mxu0 %v2049
    %2051 = vmatprep.subr.mxu0 0.0
    %v2052 = vsub.f32 %v308, %v308
    %2053 = vmatpush1.msra.mxu0 %v2052
    %2054 = vmatprep.subr.mxu0 0.0
    %v2055 = vsub.f32 %v309, %v309
    %2056 = vmatpush1.msra.mxu0 %v2055
    %2057 = vmatprep.subr.mxu0 0.0
    %v2058 = vsub.f32 %v310, %v310
    %2059 = vmatpush1.msra.mxu0 %v2058
    %2060 = vmatprep.subr.mxu0 0.0
    %v2061 = vsub.f32 %v311, %v311
    %2062 = vmatpush1.msra.mxu0 %v2061
    %2063 = vmatprep.subr.mxu0 0.0
    %v2064 = vsub.f32 %v312, %v312
    %2065 = vmatpush1.msra.mxu0 %v2064
    %2066 = vmatprep.subr.mxu0 0.0
    %v2067 = vsub.f32 %v313, %v313
    %2068 = vmatpush1.msra.mxu0 %v2067
    %2069 = vmatprep.subr.mxu0 0.0
    %v2070 = vsub.f32 %v314, %v314
    %2071 = vmatpush1.msra.mxu0 %v2070
    %2072 = vmatprep.subr.mxu0 0.0
    %v2073 = vsub.f32 %v315, %v315
    %2074 = vmatpush1.msra.mxu0 %v2073
    %2075 = vmatprep.subr.mxu0 0.0
    %v2076 = vsub.f32 %v316, %v316
    %2077 = vmatpush1.msra.mxu0 %v2076
    %2078 = vmatprep.subr.mxu0 0.0
    %v2079 = vsub.f32 %v317, %v317
    %2080 = vmatpush1.msra.mxu0 %v2079
    %2081 = vmatprep.subr.mxu0 0.0
    %v2082 = vsub.f32 %v318, %v318
    %2083 = vmatpush1.msra.mxu0 %v2082
    %v2084 = vand.u32 %v1587, 4294901760
    %v2085 = vsub.f32 %v1587, %v2084
    %2086 = vmatprep.mubr.f32.mxu0 %v2085
    %v2087 = vand.u32 %v1586, 4294901760
    %v2088 = vsub.f32 %v1586, %v2087
    %2089 = vmatmul.mubr.f32.gmra.mrb[0].mxu0 %v2088
    %v2090 = vpop.f32.mrb[0].mxu0
    %v2091 = vadd.f32 %v1950, %v2090
    %v2092 = vpop.f32.mrb[0].mxu0
    %v2093 = vand.u32 %v1589, 4294901760
    %v2094 = vsub.f32 %v1589, %v2093
    %2095 = vmatprep.mubr.f32.mxu0 %v2094
    %v2096 = vand.u32 %v1588, 4294901760
    %v2097 = vsub.f32 %v1588, %v2096
    %2098 = vmatmul.mubr.f32.gmra.mrb[0].mxu0 %v2097
    %v2099 = vpop.f32.mrb[0].mxu0
    %v2100 = vadd.f32 %v1957, %v2099
    %v2101 = vpop.f32.mrb[0].mxu0
    %v2102 = vand.u32 %v1591, 4294901760
    %v2103 = vsub.f32 %v1591, %v2102
    %2104 = vmatprep.mubr.f32.mxu0 %v2103
    %v2105 = vand.u32 %v1590, 4294901760
    %v2106 = vsub.f32 %v1590, %v2105
    %2107 = vmatmul.mubr.f32.gmra.mrb[0].mxu0 %v2106
    %v2108 = vpop.f32.mrb[0].mxu0
    %v2109 = vadd.f32 %v1964, %v2108
    %v2110 = vpop.f32.mrb[0].mxu0
    %v2111 = vand.u32 %v1593, 4294901760
    %v2112 = vsub.f32 %v1593, %v2111
    %2113 = vmatprep.mubr.f32.mxu0 %v2112
    %v2114 = vand.u32 %v1592, 4294901760
    %v2115 = vsub.f32 %v1592, %v2114
    %2116 = vmatmul.mubr.f32.gmra.mrb[0].mxu0 %v2115
    %v2117 = vpop.f32.mrb[0].mxu0
    %v2118 = vadd.f32 %v1971, %v2117
    %v2119 = vpop.f32.mrb[0].mxu0
    %v2120 = vand.u32 %v1595, 4294901760
    %v2121 = vsub.f32 %v1595, %v2120
    %2122 = vmatprep.mubr.f32.mxu0 %v2121
    %v2123 = vand.u32 %v1594, 4294901760
    %v2124 = vsub.f32 %v1594, %v2123
    %2125 = vmatmul.mubr.f32.gmra.mrb[0].mxu0 %v2124
    %v2126 = vpop.f32.mrb[0].mxu0
    %v2127 = vadd.f32 %v1978, %v2126
    %v2128 = vpop.f32.mrb[0].mxu0
    %v2129 = vand.u32 %v1597, 4294901760
    %v2130 = vsub.f32 %v1597, %v2129
    %2131 = vmatprep.mubr.f32.mxu0 %v2130
    %v2132 = vand.u32 %v1596, 4294901760
    %v2133 = vsub.f32 %v1596, %v2132
    %2134 = vmatmul.mubr.f32.gmra.mrb[0].mxu0 %v2133
    %v2135 = vpop.f32.mrb[0].mxu0
    %v2136 = vadd.f32 %v1985, %v2135
    %v2137 = vpop.f32.mrb[0].mxu0
    %2138 = vdwg.mxu0
    %2139 = vmatprep.subr.mxu0 0.0
    %2140 = vmatpush1.msra.mxu0 %v287
    %2141 = vmatprep.subr.mxu0 0.0
    %2142 = vmatpush1.msra.mxu0 %v288
    %2143 = vmatprep.subr.mxu0 0.0
    %2144 = vmatpush1.msra.mxu0 %v289
    %2145 = vmatprep.subr.mxu0 0.0
    %2146 = vmatpush1.msra.mxu0 %v290
    %2147 = vmatprep.subr.mxu0 0.0
    %2148 = vmatpush1.msra.mxu0 %v291
    %2149 = vmatprep.subr.mxu0 0.0
    %2150 = vmatpush1.msra.mxu0 %v292
    %2151 = vmatprep.subr.mxu0 0.0
    %2152 = vmatpush1.msra.mxu0 %v293
    %2153 = vmatprep.subr.mxu0 0.0
    %2154 = vmatpush1.msra.mxu0 %v294
    %2155 = vmatprep.subr.mxu0 0.0
    %2156 = vmatpush1.msra.mxu0 %v295
    %2157 = vmatprep.subr.mxu0 0.0
    %2158 = vmatpush1.msra.mxu0 %v296
    %2159 = vmatprep.subr.mxu0 0.0
    %2160 = vmatpush1.msra.mxu0 %v297
    %2161 = vmatprep.subr.mxu0 0.0
    %2162 = vmatpush1.msra.mxu0 %v298
    %2163 = vmatprep.subr.mxu0 0.0
    %2164 = vmatpush1.msra.mxu0 %v299
    %2165 = vmatprep.subr.mxu0 0.0
    %2166 = vmatpush1.msra.mxu0 %v300
    %2167 = vmatprep.subr.mxu0 0.0
    %2168 = vmatpush1.msra.mxu0 %v301
    %2169 = vmatprep.subr.mxu0 0.0
    %2170 = vmatpush1.msra.mxu0 %v302
    %2171 = vmatprep.subr.mxu0 0.0
    %2172 = vmatpush1.msra.mxu0 %v303
    %2173 = vmatprep.subr.mxu0 0.0
    %2174 = vmatpush1.msra.mxu0 %v304
    %2175 = vmatprep.subr.mxu0 0.0
    %2176 = vmatpush1.msra.mxu0 %v305
    %2177 = vmatprep.subr.mxu0 0.0
    %2178 = vmatpush1.msra.mxu0 %v306
    %2179 = vmatprep.subr.mxu0 0.0
    %2180 = vmatpush1.msra.mxu0 %v307
    %2181 = vmatprep.subr.mxu0 0.0
    %2182 = vmatpush1.msra.mxu0 %v308
    %2183 = vmatprep.subr.mxu0 0.0
    %2184 = vmatpush1.msra.mxu0 %v309
    %2185 = vmatprep.subr.mxu0 0.0
    %2186 = vmatpush1.msra.mxu0 %v310
    %2187 = vmatprep.subr.mxu0 0.0
    %2188 = vmatpush1.msra.mxu0 %v311
    %2189 = vmatprep.subr.mxu0 0.0
    %2190 = vmatpush1.msra.mxu0 %v312
    %2191 = vmatprep.subr.mxu0 0.0
    %2192 = vmatpush1.msra.mxu0 %v313
    %2193 = vmatprep.subr.mxu0 0.0
    %2194 = vmatpush1.msra.mxu0 %v314
    %2195 = vmatprep.subr.mxu0 0.0
    %2196 = vmatpush1.msra.mxu0 %v315
    %2197 = vmatprep.subr.mxu0 0.0
    %2198 = vmatpush1.msra.mxu0 %v316
    %2199 = vmatprep.subr.mxu0 0.0
    %2200 = vmatpush1.msra.mxu0 %v317
    %2201 = vmatprep.subr.mxu0 0.0
    %2202 = vmatpush1.msra.mxu0 %v318
    %v2203 = vand.u32 %v1587, 4294901760
    %v2204 = vsub.f32 %v1587, %v2203
    %v2205 = vand.u32 %v2204, 4294901760
    %2206 = vmatprep.mubr.f32.mxu0 %v2205
    %v2207 = vand.u32 %v1586, 4294901760
    %v2208 = vsub.f32 %v1586, %v2207
    %v2209 = vand.u32 %v2208, 4294901760
    %2210 = vmatmul.mubr.f32.gmra.mrb[0].mxu0 %v2209
    %v2211 = vpop.f32.mrb[0].mxu0
    %v2212 = vadd.f32 %v2091, %v2211
    %v2213 = vpop.f32.mrb[0].mxu0
    %v2214 = vand.u32 %v1589, 4294901760
    %v2215 = vsub.f32 %v1589, %v2214
    %v2216 = vand.u32 %v2215, 4294901760
    %2217 = vmatprep.mubr.f32.mxu0 %v2216
    %v2218 = vand.u32 %v1588, 4294901760
    %v2219 = vsub.f32 %v1588, %v2218
    %v2220 = vand.u32 %v2219, 4294901760
    %2221 = vmatmul.mubr.f32.gmra.mrb[0].mxu0 %v2220
    %v2222 = vpop.f32.mrb[0].mxu0
    %v2223 = vadd.f32 %v2100, %v2222
    %v2224 = vpop.f32.mrb[0].mxu0
    %v2225 = vand.u32 %v1591, 4294901760
    %v2226 = vsub.f32 %v1591, %v2225
    %v2227 = vand.u32 %v2226, 4294901760
    %2228 = vmatprep.mubr.f32.mxu0 %v2227
    %v2229 = vand.u32 %v1590, 4294901760
    %v2230 = vsub.f32 %v1590, %v2229
    %v2231 = vand.u32 %v2230, 4294901760
    %2232 = vmatmul.mubr.f32.gmra.mrb[0].mxu0 %v2231
    %v2233 = vpop.f32.mrb[0].mxu0
    %v2234 = vadd.f32 %v2109, %v2233
    %v2235 = vpop.f32.mrb[0].mxu0
    %v2236 = vand.u32 %v1593, 4294901760
    %v2237 = vsub.f32 %v1593, %v2236
    %v2238 = vand.u32 %v2237, 4294901760
    %2239 = vmatprep.mubr.f32.mxu0 %v2238
    %v2240 = vand.u32 %v1592, 4294901760
    %v2241 = vsub.f32 %v1592, %v2240
    %v2242 = vand.u32 %v2241, 4294901760
    %2243 = vmatmul.mubr.f32.gmra.mrb[0].mxu0 %v2242
    %v2244 = vpop.f32.mrb[0].mxu0
    %v2245 = vadd.f32 %v2118, %v2244
    %v2246 = vpop.f32.mrb[0].mxu0
    %v2247 = vand.u32 %v1595, 4294901760
    %v2248 = vsub.f32 %v1595, %v2247
    %v2249 = vand.u32 %v2248, 4294901760
    %2250 = vmatprep.mubr.f32.mxu0 %v2249
    %v2251 = vand.u32 %v1594, 4294901760
    %v2252 = vsub.f32 %v1594, %v2251
    %v2253 = vand.u32 %v2252, 4294901760
    %2254 = vmatmul.mubr.f32.gmra.mrb[0].mxu0 %v2253
    %v2255 = vpop.f32.mrb[0].mxu0
    %v2256 = vadd.f32 %v2127, %v2255
    %v2257 = vpop.f32.mrb[0].mxu0
    %v2258 = vand.u32 %v1597, 4294901760
    %v2259 = vsub.f32 %v1597, %v2258
    %v2260 = vand.u32 %v2259, 4294901760
    %2261 = vmatprep.mubr.f32.mxu0 %v2260
    %v2262 = vand.u32 %v1596, 4294901760
    %v2263 = vsub.f32 %v1596, %v2262
    %v2264 = vand.u32 %v2263, 4294901760
    %2265 = vmatmul.mubr.f32.gmra.mrb[0].mxu0 %v2264
    %v2266 = vpop.f32.mrb[0].mxu0
    %v2267 = vadd.f32 %v2136, %v2266
    %v2268 = vpop.f32.mrb[0].mxu0
    %2269 = vdwg.mxu0
    %2270 = vmatprep.subr.mxu0 0.0
    %v2271 = vsub.f32 %v287, %v287
    %v2272 = vand.u32 %v2271, 4294901760
    %2273 = vmatpush1.msra.mxu0 %v2272
    %2274 = vmatprep.subr.mxu0 0.0
    %v2275 = vsub.f32 %v288, %v288
    %v2276 = vand.u32 %v2275, 4294901760
    %2277 = vmatpush1.msra.mxu0 %v2276
    %2278 = vmatprep.subr.mxu0 0.0
    %v2279 = vsub.f32 %v289, %v289
    %v2280 = vand.u32 %v2279, 4294901760
    %2281 = vmatpush1.msra.mxu0 %v2280
    %2282 = vmatprep.subr.mxu0 0.0
    %v2283 = vsub.f32 %v290, %v290
    %v2284 = vand.u32 %v2283, 4294901760
    %2285 = vmatpush1.msra.mxu0 %v2284
    %2286 = vmatprep.subr.mxu0 0.0
    %v2287 = vsub.f32 %v291, %v291
    %v2288 = vand.u32 %v2287, 4294901760
    %2289 = vmatpush1.msra.mxu0 %v2288
    %2290 = vmatprep.subr.mxu0 0.0
    %v2291 = vsub.f32 %v292, %v292
    %v2292 = vand.u32 %v2291, 4294901760
    %2293 = vmatpush1.msra.mxu0 %v2292
    %2294 = vmatprep.subr.mxu0 0.0
    %v2295 = vsub.f32 %v293, %v293
    %v2296 = vand.u32 %v2295, 4294901760
    %2297 = vmatpush1.msra.mxu0 %v2296
    %2298 = vmatprep.subr.mxu0 0.0
    %v2299 = vsub.f32 %v294, %v294
    %v2300 = vand.u32 %v2299, 4294901760
    %2301 = vmatpush1.msra.mxu0 %v2300
    %2302 = vmatprep.subr.mxu0 0.0
    %v2303 = vsub.f32 %v295, %v295
    %v2304 = vand.u32 %v2303, 4294901760
    %2305 = vmatpush1.msra.mxu0 %v2304
    %2306 = vmatprep.subr.mxu0 0.0
    %v2307 = vsub.f32 %v296, %v296
    %v2308 = vand.u32 %v2307, 4294901760
    %2309 = vmatpush1.msra.mxu0 %v2308
    %2310 = vmatprep.subr.mxu0 0.0
    %v2311 = vsub.f32 %v297, %v297
    %v2312 = vand.u32 %v2311, 4294901760
    %2313 = vmatpush1.msra.mxu0 %v2312
    %2314 = vmatprep.subr.mxu0 0.0
    %v2315 = vsub.f32 %v298, %v298
    %v2316 = vand.u32 %v2315, 4294901760
    %2317 = vmatpush1.msra.mxu0 %v2316
    %2318 = vmatprep.subr.mxu0 0.0
    %v2319 = vsub.f32 %v299, %v299
    %v2320 = vand.u32 %v2319, 4294901760
    %2321 = vmatpush1.msra.mxu0 %v2320
    %2322 = vmatprep.subr.mxu0 0.0
    %v2323 = vsub.f32 %v300, %v300
    %v2324 = vand.u32 %v2323, 4294901760
    %2325 = vmatpush1.msra.mxu0 %v2324
    %2326 = vmatprep.subr.mxu0 0.0
    %v2327 = vsub.f32 %v301, %v301
    %v2328 = vand.u32 %v2327, 4294901760
    %2329 = vmatpush1.msra.mxu0 %v2328
    %2330 = vmatprep.subr.mxu0 0.0
    %v2331 = vsub.f32 %v302, %v302
    %v2332 = vand.u32 %v2331, 4294901760
    %2333 = vmatpush1.msra.mxu0 %v2332
    %2334 = vmatprep.subr.mxu0 0.0
    %v2335 = vsub.f32 %v303, %v303
    %v2336 = vand.u32 %v2335, 4294901760
    %2337 = vmatpush1.msra.mxu0 %v2336
    %2338 = vmatprep.subr.mxu0 0.0
    %v2339 = vsub.f32 %v304, %v304
    %v2340 = vand.u32 %v2339, 4294901760
    %2341 = vmatpush1.msra.mxu0 %v2340
    %2342 = vmatprep.subr.mxu0 0.0
    %v2343 = vsub.f32 %v305, %v305
    %v2344 = vand.u32 %v2343, 4294901760
    %2345 = vmatpush1.msra.mxu0 %v2344
    %2346 = vmatprep.subr.mxu0 0.0
    %v2347 = vsub.f32 %v306, %v306
    %v2348 = vand.u32 %v2347, 4294901760
    %2349 = vmatpush1.msra.mxu0 %v2348
    %2350 = vmatprep.subr.mxu0 0.0
    %v2351 = vsub.f32 %v307, %v307
    %v2352 = vand.u32 %v2351, 4294901760
    %2353 = vmatpush1.msra.mxu0 %v2352
    %2354 = vmatprep.subr.mxu0 0.0
    %v2355 = vsub.f32 %v308, %v308
    %v2356 = vand.u32 %v2355, 4294901760
    %2357 = vmatpush1.msra.mxu0 %v2356
    %2358 = vmatprep.subr.mxu0 0.0
    %v2359 = vsub.f32 %v309, %v309
    %v2360 = vand.u32 %v2359, 4294901760
    %2361 = vmatpush1.msra.mxu0 %v2360
    %2362 = vmatprep.subr.mxu0 0.0
    %v2363 = vsub.f32 %v310, %v310
    %v2364 = vand.u32 %v2363, 4294901760
    %2365 = vmatpush1.msra.mxu0 %v2364
    %2366 = vmatprep.subr.mxu0 0.0
    %v2367 = vsub.f32 %v311, %v311
    %v2368 = vand.u32 %v2367, 4294901760
    %2369 = vmatpush1.msra.mxu0 %v2368
    %2370 = vmatprep.subr.mxu0 0.0
    %v2371 = vsub.f32 %v312, %v312
    %v2372 = vand.u32 %v2371, 4294901760
    %2373 = vmatpush1.msra.mxu0 %v2372
    %2374 = vmatprep.subr.mxu0 0.0
    %v2375 = vsub.f32 %v313, %v313
    %v2376 = vand.u32 %v2375, 4294901760
    %2377 = vmatpush1.msra.mxu0 %v2376
    %2378 = vmatprep.subr.mxu0 0.0
    %v2379 = vsub.f32 %v314, %v314
    %v2380 = vand.u32 %v2379, 4294901760
    %2381 = vmatpush1.msra.mxu0 %v2380
    %2382 = vmatprep.subr.mxu0 0.0
    %v2383 = vsub.f32 %v315, %v315
    %v2384 = vand.u32 %v2383, 4294901760
    %2385 = vmatpush1.msra.mxu0 %v2384
    %2386 = vmatprep.subr.mxu0 0.0
    %v2387 = vsub.f32 %v316, %v316
    %v2388 = vand.u32 %v2387, 4294901760
    %2389 = vmatpush1.msra.mxu0 %v2388
    %2390 = vmatprep.subr.mxu0 0.0
    %v2391 = vsub.f32 %v317, %v317
    %v2392 = vand.u32 %v2391, 4294901760
    %2393 = vmatpush1.msra.mxu0 %v2392
    %2394 = vmatprep.subr.mxu0 0.0
    %v2395 = vsub.f32 %v318, %v318
    %v2396 = vand.u32 %v2395, 4294901760
    %2397 = vmatpush1.msra.mxu0 %v2396
    %v2398 = vand.u32 %v1587, 4294901760
    %2399 = vmatprep.mubr.f32.mxu0 %v2398
    %v2400 = vand.u32 %v1586, 4294901760
    %2401 = vmatmul.mubr.f32.gmra.mrb[0].mxu0 %v2400
    %v2402 = vpop.f32.mrb[0].mxu0
    %v2403 = vadd.f32 %v2212, %v2402
    %v2404 = vpop.f32.mrb[0].mxu0
    %v2405 = vand.u32 %v1589, 4294901760
    %2406 = vmatprep.mubr.f32.mxu0 %v2405
    %v2407 = vand.u32 %v1588, 4294901760
    %2408 = vmatmul.mubr.f32.gmra.mrb[0].mxu0 %v2407
    %v2409 = vpop.f32.mrb[0].mxu0
    %v2410 = vadd.f32 %v2223, %v2409
    %v2411 = vpop.f32.mrb[0].mxu0
    %v2412 = vand.u32 %v1591, 4294901760
    %2413 = vmatprep.mubr.f32.mxu0 %v2412
    %v2414 = vand.u32 %v1590, 4294901760
    %2415 = vmatmul.mubr.f32.gmra.mrb[0].mxu0 %v2414
    %v2416 = vpop.f32.mrb[0].mxu0
    %v2417 = vadd.f32 %v2234, %v2416
    %v2418 = vpop.f32.mrb[0].mxu0
    %v2419 = vand.u32 %v1593, 4294901760
    %2420 = vmatprep.mubr.f32.mxu0 %v2419
    %v2421 = vand.u32 %v1592, 4294901760
    %2422 = vmatmul.mubr.f32.gmra.mrb[0].mxu0 %v2421
    %v2423 = vpop.f32.mrb[0].mxu0
    %v2424 = vadd.f32 %v2245, %v2423
    %v2425 = vpop.f32.mrb[0].mxu0
    %v2426 = vand.u32 %v1595, 4294901760
    %2427 = vmatprep.mubr.f32.mxu0 %v2426
    %v2428 = vand.u32 %v1594, 4294901760
    %2429 = vmatmul.mubr.f32.gmra.mrb[0].mxu0 %v2428
    %v2430 = vpop.f32.mrb[0].mxu0
    %v2431 = vadd.f32 %v2256, %v2430
    %v2432 = vpop.f32.mrb[0].mxu0
    %v2433 = vand.u32 %v1597, 4294901760
    %2434 = vmatprep.mubr.f32.mxu0 %v2433
    %v2435 = vand.u32 %v1596, 4294901760
    %2436 = vmatmul.mubr.f32.gmra.mrb[0].mxu0 %v2435
    %v2437 = vpop.f32.mrb[0].mxu0
    %v2438 = vadd.f32 %v2267, %v2437
    %v2439 = vpop.f32.mrb[0].mxu0
    %2440 = vdwg.mxu0
    %2441 = vmatprep.subr.mxu0 0.0
    %2442 = vmatpush1.msra.mxu0 %v287
    %2443 = vmatprep.subr.mxu0 0.0
    %2444 = vmatpush1.msra.mxu0 %v288
    %2445 = vmatprep.subr.mxu0 0.0
    %2446 = vmatpush1.msra.mxu0 %v289
    %2447 = vmatprep.subr.mxu0 0.0
    %2448 = vmatpush1.msra.mxu0 %v290
    %2449 = vmatprep.subr.mxu0 0.0
    %2450 = vmatpush1.msra.mxu0 %v291
    %2451 = vmatprep.subr.mxu0 0.0
    %2452 = vmatpush1.msra.mxu0 %v292
    %2453 = vmatprep.subr.mxu0 0.0
    %2454 = vmatpush1.msra.mxu0 %v293
    %2455 = vmatprep.subr.mxu0 0.0
    %2456 = vmatpush1.msra.mxu0 %v294
    %2457 = vmatprep.subr.mxu0 0.0
    %2458 = vmatpush1.msra.mxu0 %v295
    %2459 = vmatprep.subr.mxu0 0.0
    %2460 = vmatpush1.msra.mxu0 %v296
    %2461 = vmatprep.subr.mxu0 0.0
    %2462 = vmatpush1.msra.mxu0 %v297
    %2463 = vmatprep.subr.mxu0 0.0
    %2464 = vmatpush1.msra.mxu0 %v298
    %2465 = vmatprep.subr.mxu0 0.0
    %2466 = vmatpush1.msra.mxu0 %v299
    %2467 = vmatprep.subr.mxu0 0.0
    %2468 = vmatpush1.msra.mxu0 %v300
    %2469 = vmatprep.subr.mxu0 0.0
    %2470 = vmatpush1.msra.mxu0 %v301
    %2471 = vmatprep.subr.mxu0 0.0
    %2472 = vmatpush1.msra.mxu0 %v302
    %2473 = vmatprep.subr.mxu0 0.0
    %2474 = vmatpush1.msra.mxu0 %v303
    %2475 = vmatprep.subr.mxu0 0.0
    %2476 = vmatpush1.msra.mxu0 %v304
    %2477 = vmatprep.subr.mxu0 0.0
    %2478 = vmatpush1.msra.mxu0 %v305
    %2479 = vmatprep.subr.mxu0 0.0
    %2480 = vmatpush1.msra.mxu0 %v306
    %2481 = vmatprep.subr.mxu0 0.0
    %2482 = vmatpush1.msra.mxu0 %v307
    %2483 = vmatprep.subr.mxu0 0.0
    %2484 = vmatpush1.msra.mxu0 %v308
    %2485 = vmatprep.subr.mxu0 0.0
    %2486 = vmatpush1.msra.mxu0 %v309
    %2487 = vmatprep.subr.mxu0 0.0
    %2488 = vmatpush1.msra.mxu0 %v310
    %2489 = vmatprep.subr.mxu0 0.0
    %2490 = vmatpush1.msra.mxu0 %v311
    %2491 = vmatprep.subr.mxu0 0.0
    %2492 = vmatpush1.msra.mxu0 %v312
    %2493 = vmatprep.subr.mxu0 0.0
    %2494 = vmatpush1.msra.mxu0 %v313
    %2495 = vmatprep.subr.mxu0 0.0
    %2496 = vmatpush1.msra.mxu0 %v314
    %2497 = vmatprep.subr.mxu0 0.0
    %2498 = vmatpush1.msra.mxu0 %v315
    %2499 = vmatprep.subr.mxu0 0.0
    %2500 = vmatpush1.msra.mxu0 %v316
    %2501 = vmatprep.subr.mxu0 0.0
    %2502 = vmatpush1.msra.mxu0 %v317
    %2503 = vmatprep.subr.mxu0 0.0
    %2504 = vmatpush1.msra.mxu0 %v318
    %v2505 = vand.u32 %v1587, 4294901760
    %2506 = vmatprep.mubr.f32.mxu0 %v2505
    %v2507 = vand.u32 %v1586, 4294901760
    %2508 = vmatmul.mubr.f32.gmra.mrb[0].mxu0 %v2507
    %v2509 = vpop.f32.mrb[0].mxu0
    %v2510 = vadd.f32 %v2403, %v2509
    %v2511 = vpop.f32.mrb[0].mxu0
    %v2512 = vand.u32 %v1589, 4294901760
    %2513 = vmatprep.mubr.f32.mxu0 %v2512
    %v2514 = vand.u32 %v1588, 4294901760
    %2515 = vmatmul.mubr.f32.gmra.mrb[0].mxu0 %v2514
    %v2516 = vpop.f32.mrb[0].mxu0
    %v2517 = vadd.f32 %v2410, %v2516
    %v2518 = vpop.f32.mrb[0].mxu0
    %v2519 = vand.u32 %v1591, 4294901760
    %2520 = vmatprep.mubr.f32.mxu0 %v2519
    %v2521 = vand.u32 %v1590, 4294901760
    %2522 = vmatmul.mubr.f32.gmra.mrb[0].mxu0 %v2521
    %v2523 = vpop.f32.mrb[0].mxu0
    %v2524 = vadd.f32 %v2417, %v2523
    %v2525 = vpop.f32.mrb[0].mxu0
    %v2526 = vand.u32 %v1593, 4294901760
    %2527 = vmatprep.mubr.f32.mxu0 %v2526
    %v2528 = vand.u32 %v1592, 4294901760
    %2529 = vmatmul.mubr.f32.gmra.mrb[0].mxu0 %v2528
    %v2530 = vpop.f32.mrb[0].mxu0
    %v2531 = vadd.f32 %v2424, %v2530
    %v2532 = vpop.f32.mrb[0].mxu0
    %v2533 = vand.u32 %v1595, 4294901760
    %2534 = vmatprep.mubr.f32.mxu0 %v2533
    %v2535 = vand.u32 %v1594, 4294901760
    %2536 = vmatmul.mubr.f32.gmra.mrb[0].mxu0 %v2535
    %v2537 = vpop.f32.mrb[0].mxu0
    %v2538 = vadd.f32 %v2431, %v2537
    %v2539 = vpop.f32.mrb[0].mxu0
    %v2540 = vand.u32 %v1597, 4294901760
    %2541 = vmatprep.mubr.f32.mxu0 %v2540
    %v2542 = vand.u32 %v1596, 4294901760
    %2543 = vmatmul.mubr.f32.gmra.mrb[0].mxu0 %v2542
    %v2544 = vpop.f32.mrb[0].mxu0
    %v2545 = vadd.f32 %v2438, %v2544
    %v2546 = vpop.f32.mrb[0].mxu0
    %2547 = vdwg.mxu0
    %v2548 = vmul.f32 %v2510, 0.5
    %v2549 = vmul.f32 %v2517, 0.5
    %v2550 = vmul.f32 %v2524, 0.5
    %v2551 = vmul.f32 %v2531, 0.5
    %v2552 = vmul.f32 %v2538, 0.5
    %v2553 = vmul.f32 %v2545, 0.5
    %v2554 = vtanh.pop %v2548
    %v2555 = vtanh.pop %v2549
    %v2556 = vtanh.pop %v2550
    %v2557 = vtanh.pop %v2551
    %v2558 = vtanh.pop %v2552
    %v2559 = vtanh.pop %v2553
    %v2560 = vadd.f32 %v2554, 1.0
    %v2561 = vadd.f32 %v2555, 1.0
    %v2562 = vadd.f32 %v2556, 1.0
    %v2563 = vadd.f32 %v2557, 1.0
    %v2564 = vadd.f32 %v2558, 1.0
    %v2565 = vadd.f32 %v2559, 1.0
    %v2566 = vmul.f32 %v2560, 0.5
    %v2567 = vmul.f32 %v2561, 0.5
    %v2568 = vmul.f32 %v2562, 0.5
    %v2569 = vmul.f32 %v2563, 0.5
    %v2570 = vmul.f32 %v2564, 0.5
    %v2571 = vmul.f32 %v2565, 0.5
    %v2572 = vmul.f32 %v2510, %v2566
    %v2573 = vmul.f32 %v2517, %v2567
    %v2574 = vmul.f32 %v2524, %v2568
    %v2575 = vmul.f32 %v2531, %v2569
    %v2576 = vmul.f32 %v2538, %v2570
    %v2577 = vmul.f32 %v2545, %v2571
    %v2578 = vld [vmem:[%s2 + $0x73] ss:$0 sm:$0xff]
    %v2579 = vmul.f32 %v2576, %v2578
    %v2580 = vmul.f32 %v2577, %v2578
    %v2581 = vld [vmem:[%s2 + $0x75] ss:$0 sm:$0xff]
    %v2582 = vadd.f32 %v2579, %v2581
    %v2583 = vadd.f32 %v2580, %v2581
    %v2584 = vld [vmem:[%s2 + $0x74] ss:$0 sm:$0xff]
    %v2585 = vmul.f32 %v2576, %v2584
    %v2586 = vmul.f32 %v2577, %v2584
    %v2587 = vld [vmem:[%s2 + $0x76] ss:$0 sm:$0xff]
    %v2588 = vadd.f32 %v2585, %v2587
    %v2589 = vadd.f32 %v2586, %v2587
    %v2591 = vsel %vm855, %v2582, 0
    %v2594 = vsel %vm855, %v2583, 0
    %v2597 = vsel %vm855, %v2588, 0
    %v2600 = vsel %vm855, %v2589, 0
    %2602 = vmatprep.subr.mxu0 0.0
    %v2603 = vand.u32 %v2597, 4294901760
    %2604 = vmatpush1.xpose.msra.mxu0 %v2603
    %2605 = vmatprep.subr.mxu0 0.0
    %v2606 = vand.u32 %v2600, 4294901760
    %2607 = vmatpush1.xpose.msra.mxu0 %v2606
    %2608 = vmatprep.subr.mxu0 0.0
    %2609 = vmatpush1.xpose.msra.mxu0 0.0
    %2610 = vmatprep.subr.mxu0 0.0
    %2611 = vmatpush1.xpose.msra.mxu0 0.0
    %2612 = vmatprep.subr.mxu0 0.0
    %2613 = vmatpush1.xpose.msra.mxu0 0.0
    %2614 = vmatprep.subr.mxu0 0.0
    %2615 = vmatpush1.xpose.msra.mxu0 0.0
    %2616 = vmatprep.subr.mxu0 0.0
    %2617 = vmatpush1.xpose.msra.mxu0 0.0
    %2618 = vmatprep.subr.mxu0 0.0
    %2619 = vmatpush1.xpose.msra.mxu0 0.0
    %2620 = vmatprep.subr.mxu0 0.0
    %2621 = vmatpush1.xpose.msra.mxu0 0.0
    %2622 = vmatprep.subr.mxu0 0.0
    %2623 = vmatpush1.xpose.msra.mxu0 0.0
    %2624 = vmatprep.subr.mxu0 0.0
    %2625 = vmatpush1.xpose.msra.mxu0 0.0
    %2626 = vmatprep.subr.mxu0 0.0
    %2627 = vmatpush1.xpose.msra.mxu0 0.0
    %2628 = vmatprep.subr.mxu0 0.0
    %2629 = vmatpush1.xpose.msra.mxu0 0.0
    %2630 = vmatprep.subr.mxu0 0.0
    %2631 = vmatpush1.xpose.msra.mxu0 0.0
    %2632 = vmatprep.subr.mxu0 0.0
    %2633 = vmatpush1.xpose.msra.mxu0 0.0
    %2634 = vmatprep.subr.mxu0 0.0
    %2635 = vmatpush1.xpose.msra.mxu0 0.0
    %2636 = vmatprep.subr.mxu0 0.0
    %2637 = vmatpush1.xpose.msra.mxu0 0.0
    %2638 = vmatprep.subr.mxu0 0.0
    %2639 = vmatpush1.xpose.msra.mxu0 0.0
    %2640 = vmatprep.subr.mxu0 0.0
    %2641 = vmatpush1.xpose.msra.mxu0 0.0
    %2642 = vmatprep.subr.mxu0 0.0
    %2643 = vmatpush1.xpose.msra.mxu0 0.0
    %2644 = vmatprep.subr.mxu0 0.0
    %2645 = vmatpush1.xpose.msra.mxu0 0.0
    %2646 = vmatprep.subr.mxu0 0.0
    %2647 = vmatpush1.xpose.msra.mxu0 0.0
    %2648 = vmatprep.subr.mxu0 0.0
    %2649 = vmatpush1.xpose.msra.mxu0 0.0
    %2650 = vmatprep.subr.mxu0 0.0
    %2651 = vmatpush1.xpose.msra.mxu0 0.0
    %2652 = vmatprep.subr.mxu0 0.0
    %2653 = vmatpush1.xpose.msra.mxu0 0.0
    %2654 = vmatprep.subr.mxu0 0.0
    %2655 = vmatpush1.xpose.msra.mxu0 0.0
    %2656 = vmatprep.subr.mxu0 0.0
    %2657 = vmatpush1.xpose.msra.mxu0 0.0
    %2658 = vmatprep.subr.mxu0 0.0
    %2659 = vmatpush1.xpose.msra.mxu0 0.0
    %2660 = vmatprep.subr.mxu0 0.0
    %2661 = vmatpush1.xpose.msra.mxu0 0.0
    %2662 = vmatprep.subr.mxu0 0.0
    %2663 = vmatpush1.xpose.msra.mxu0 0.0
    %2664 = vmatprep.subr.mxu0 0.0
    %2665 = vmatpush1.xpose.msra.mxu0 0.0
    %2666 = vmatprep.subr.mxu0 0.0
    %2667 = vmatpush1.xpose.msra.mxu0 0.0
    %2668 = vmatprep.mubr.f32.mxu0 0.0
    %v2669 = vand.u32 %v2591, 4294901760
    %v2670 = vsub.f32 %v2591, %v2669
    %v2671 = vand.u32 %v2670, 4294901760
    %v2672 = vsub.f32 %v2670, %v2671
    %v2673 = vand.u32 %v2672, 4294901760
    %2674 = vmatmul.mubr.f32.gmra.mrb[0].mxu0 %v2673
    %v2675 = vpop.f32.mrb[0].mxu0
    %v2676 = vadd.f32 0.0, %v2675
    %v2677 = vpop.f32.mrb[0].mxu0
    %2678 = vmatprep.mubr.f32.mxu0 0.0
    %v2679 = vand.u32 %v2594, 4294901760
    %v2680 = vsub.f32 %v2594, %v2679
    %v2681 = vand.u32 %v2680, 4294901760
    %v2682 = vsub.f32 %v2680, %v2681
    %v2683 = vand.u32 %v2682, 4294901760
    %2684 = vmatmul.mubr.f32.gmra.mrb[0].mxu0 %v2683
    %v2685 = vpop.f32.mrb[0].mxu0
    %v2686 = vadd.f32 0.0, %v2685
    %v2687 = vpop.f32.mrb[0].mxu0
    %2688 = vdwg.mxu0
    %2689 = vmatprep.subr.mxu0 0.0
    %v2690 = vand.u32 %v2597, 4294901760
    %v2691 = vsub.f32 %v2597, %v2690
    %v2692 = vand.u32 %v2691, 4294901760
    %v2693 = vsub.f32 %v2691, %v2692
    %v2694 = vand.u32 %v2693, 4294901760
    %2695 = vmatpush1.xpose.msra.mxu0 %v2694
    %2696 = vmatprep.subr.mxu0 0.0
    %v2697 = vand.u32 %v2600, 4294901760
    %v2698 = vsub.f32 %v2600, %v2697
    %v2699 = vand.u32 %v2698, 4294901760
    %v2700 = vsub.f32 %v2698, %v2699
    %v2701 = vand.u32 %v2700, 4294901760
    %2702 = vmatpush1.xpose.msra.mxu0 %v2701
    %2703 = vmatprep.subr.mxu0 0.0
    %2704 = vmatpush1.xpose.msra.mxu0 0.0
    %2705 = vmatprep.subr.mxu0 0.0
    %2706 = vmatpush1.xpose.msra.mxu0 0.0
    %2707 = vmatprep.subr.mxu0 0.0
    %2708 = vmatpush1.xpose.msra.mxu0 0.0
    %2709 = vmatprep.subr.mxu0 0.0
    %2710 = vmatpush1.xpose.msra.mxu0 0.0
    %2711 = vmatprep.subr.mxu0 0.0
    %2712 = vmatpush1.xpose.msra.mxu0 0.0
    %2713 = vmatprep.subr.mxu0 0.0
    %2714 = vmatpush1.xpose.msra.mxu0 0.0
    %2715 = vmatprep.subr.mxu0 0.0
    %2716 = vmatpush1.xpose.msra.mxu0 0.0
    %2717 = vmatprep.subr.mxu0 0.0
    %2718 = vmatpush1.xpose.msra.mxu0 0.0
    %2719 = vmatprep.subr.mxu0 0.0
    %2720 = vmatpush1.xpose.msra.mxu0 0.0
    %2721 = vmatprep.subr.mxu0 0.0
    %2722 = vmatpush1.xpose.msra.mxu0 0.0
    %2723 = vmatprep.subr.mxu0 0.0
    %2724 = vmatpush1.xpose.msra.mxu0 0.0
    %2725 = vmatprep.subr.mxu0 0.0
    %2726 = vmatpush1.xpose.msra.mxu0 0.0
    %2727 = vmatprep.subr.mxu0 0.0
    %2728 = vmatpush1.xpose.msra.mxu0 0.0
    %2729 = vmatprep.subr.mxu0 0.0
    %2730 = vmatpush1.xpose.msra.mxu0 0.0
    %2731 = vmatprep.subr.mxu0 0.0
    %2732 = vmatpush1.xpose.msra.mxu0 0.0
    %2733 = vmatprep.subr.mxu0 0.0
    %2734 = vmatpush1.xpose.msra.mxu0 0.0
    %2735 = vmatprep.subr.mxu0 0.0
    %2736 = vmatpush1.xpose.msra.mxu0 0.0
    %2737 = vmatprep.subr.mxu0 0.0
    %2738 = vmatpush1.xpose.msra.mxu0 0.0
    %2739 = vmatprep.subr.mxu0 0.0
    %2740 = vmatpush1.xpose.msra.mxu0 0.0
    %2741 = vmatprep.subr.mxu0 0.0
    %2742 = vmatpush1.xpose.msra.mxu0 0.0
    %2743 = vmatprep.subr.mxu0 0.0
    %2744 = vmatpush1.xpose.msra.mxu0 0.0
    %2745 = vmatprep.subr.mxu0 0.0
    %2746 = vmatpush1.xpose.msra.mxu0 0.0
    %2747 = vmatprep.subr.mxu0 0.0
    %2748 = vmatpush1.xpose.msra.mxu0 0.0
    %2749 = vmatprep.subr.mxu0 0.0
    %2750 = vmatpush1.xpose.msra.mxu0 0.0
    %2751 = vmatprep.subr.mxu0 0.0
    %2752 = vmatpush1.xpose.msra.mxu0 0.0
    %2753 = vmatprep.subr.mxu0 0.0
    %2754 = vmatpush1.xpose.msra.mxu0 0.0
    %2755 = vmatprep.subr.mxu0 0.0
    %2756 = vmatpush1.xpose.msra.mxu0 0.0
    %2757 = vmatprep.subr.mxu0 0.0
    %2758 = vmatpush1.xpose.msra.mxu0 0.0
    %2759 = vmatprep.subr.mxu0 0.0
    %2760 = vmatpush1.xpose.msra.mxu0 0.0
    %2761 = vmatprep.subr.mxu0 0.0
    %2762 = vmatpush1.xpose.msra.mxu0 0.0
    %2763 = vmatprep.mubr.f32.mxu0 0.0
    %v2764 = vand.u32 %v2591, 4294901760
    %2765 = vmatmul.mubr.f32.gmra.mrb[0].mxu0 %v2764
    %v2766 = vpop.f32.mrb[0].mxu0
    %v2767 = vadd.f32 %v2676, %v2766
    %v2768 = vpop.f32.mrb[0].mxu0
    %2769 = vmatprep.mubr.f32.mxu0 0.0
    %v2770 = vand.u32 %v2594, 4294901760
    %2771 = vmatmul.mubr.f32.gmra.mrb[0].mxu0 %v2770
    %v2772 = vpop.f32.mrb[0].mxu0
    %v2773 = vadd.f32 %v2686, %v2772
    %v2774 = vpop.f32.mrb[0].mxu0
    %2775 = vdwg.mxu0
    %2776 = vmatprep.subr.mxu0 0.0
    %v2777 = vand.u32 %v2597, 4294901760
    %v2778 = vsub.f32 %v2597, %v2777
    %2779 = vmatpush1.xpose.msra.mxu0 %v2778
    %2780 = vmatprep.subr.mxu0 0.0
    %v2781 = vand.u32 %v2600, 4294901760
    %v2782 = vsub.f32 %v2600, %v2781
    %2783 = vmatpush1.xpose.msra.mxu0 %v2782
    %2784 = vmatprep.subr.mxu0 0.0
    %2785 = vmatpush1.xpose.msra.mxu0 0.0
    %2786 = vmatprep.subr.mxu0 0.0
    %2787 = vmatpush1.xpose.msra.mxu0 0.0
    %2788 = vmatprep.subr.mxu0 0.0
    %2789 = vmatpush1.xpose.msra.mxu0 0.0
    %2790 = vmatprep.subr.mxu0 0.0
    %2791 = vmatpush1.xpose.msra.mxu0 0.0
    %2792 = vmatprep.subr.mxu0 0.0
    %2793 = vmatpush1.xpose.msra.mxu0 0.0
    %2794 = vmatprep.subr.mxu0 0.0
    %2795 = vmatpush1.xpose.msra.mxu0 0.0
    %2796 = vmatprep.subr.mxu0 0.0
    %2797 = vmatpush1.xpose.msra.mxu0 0.0
    %2798 = vmatprep.subr.mxu0 0.0
    %2799 = vmatpush1.xpose.msra.mxu0 0.0
    %2800 = vmatprep.subr.mxu0 0.0
    %2801 = vmatpush1.xpose.msra.mxu0 0.0
    %2802 = vmatprep.subr.mxu0 0.0
    %2803 = vmatpush1.xpose.msra.mxu0 0.0
    %2804 = vmatprep.subr.mxu0 0.0
    %2805 = vmatpush1.xpose.msra.mxu0 0.0
    %2806 = vmatprep.subr.mxu0 0.0
    %2807 = vmatpush1.xpose.msra.mxu0 0.0
    %2808 = vmatprep.subr.mxu0 0.0
    %2809 = vmatpush1.xpose.msra.mxu0 0.0
    %2810 = vmatprep.subr.mxu0 0.0
    %2811 = vmatpush1.xpose.msra.mxu0 0.0
    %2812 = vmatprep.subr.mxu0 0.0
    %2813 = vmatpush1.xpose.msra.mxu0 0.0
    %2814 = vmatprep.subr.mxu0 0.0
    %2815 = vmatpush1.xpose.msra.mxu0 0.0
    %2816 = vmatprep.subr.mxu0 0.0
    %2817 = vmatpush1.xpose.msra.mxu0 0.0
    %2818 = vmatprep.subr.mxu0 0.0
    %2819 = vmatpush1.xpose.msra.mxu0 0.0
    %2820 = vmatprep.subr.mxu0 0.0
    %2821 = vmatpush1.xpose.msra.mxu0 0.0
    %2822 = vmatprep.subr.mxu0 0.0
    %2823 = vmatpush1.xpose.msra.mxu0 0.0
    %2824 = vmatprep.subr.mxu0 0.0
    %2825 = vmatpush1.xpose.msra.mxu0 0.0
    %2826 = vmatprep.subr.mxu0 0.0
    %2827 = vmatpush1.xpose.msra.mxu0 0.0
    %2828 = vmatprep.subr.mxu0 0.0
    %2829 = vmatpush1.xpose.msra.mxu0 0.0
    %2830 = vmatprep.subr.mxu0 0.0
    %2831 = vmatpush1.xpose.msra.mxu0 0.0
    %2832 = vmatprep.subr.mxu0 0.0
    %2833 = vmatpush1.xpose.msra.mxu0 0.0
    %2834 = vmatprep.subr.mxu0 0.0
    %2835 = vmatpush1.xpose.msra.mxu0 0.0
    %2836 = vmatprep.subr.mxu0 0.0
    %2837 = vmatpush1.xpose.msra.mxu0 0.0
    %2838 = vmatprep.subr.mxu0 0.0
    %2839 = vmatpush1.xpose.msra.mxu0 0.0
    %2840 = vmatprep.subr.mxu0 0.0
    %2841 = vmatpush1.xpose.msra.mxu0 0.0
    %2842 = vmatprep.subr.mxu0 0.0
    %2843 = vmatpush1.xpose.msra.mxu0 0.0
    %2844 = vmatprep.mubr.f32.mxu0 0.0
    %v2845 = vand.u32 %v2591, 4294901760
    %v2846 = vsub.f32 %v2591, %v2845
    %2847 = vmatmul.mubr.f32.gmra.mrb[0].mxu0 %v2846
    %v2848 = vpop.f32.mrb[0].mxu0
    %v2849 = vadd.f32 %v2767, %v2848
    %v2850 = vpop.f32.mrb[0].mxu0
    %2851 = vmatprep.mubr.f32.mxu0 0.0
    %v2852 = vand.u32 %v2594, 4294901760
    %v2853 = vsub.f32 %v2594, %v2852
    %2854 = vmatmul.mubr.f32.gmra.mrb[0].mxu0 %v2853
    %v2855 = vpop.f32.mrb[0].mxu0
    %v2856 = vadd.f32 %v2773, %v2855
    %v2857 = vpop.f32.mrb[0].mxu0
    %2858 = vdwg.mxu0
    %2859 = vmatprep.subr.mxu0 0.0
    %v2860 = vand.u32 %v2597, 4294901760
    %2861 = vmatpush1.xpose.msra.mxu0 %v2860
    %2862 = vmatprep.subr.mxu0 0.0
    %v2863 = vand.u32 %v2600, 4294901760
    %2864 = vmatpush1.xpose.msra.mxu0 %v2863
    %2865 = vmatprep.subr.mxu0 0.0
    %2866 = vmatpush1.xpose.msra.mxu0 0.0
    %2867 = vmatprep.subr.mxu0 0.0
    %2868 = vmatpush1.xpose.msra.mxu0 0.0
    %2869 = vmatprep.subr.mxu0 0.0
    %2870 = vmatpush1.xpose.msra.mxu0 0.0
    %2871 = vmatprep.subr.mxu0 0.0
    %2872 = vmatpush1.xpose.msra.mxu0 0.0
    %2873 = vmatprep.subr.mxu0 0.0
    %2874 = vmatpush1.xpose.msra.mxu0 0.0
    %2875 = vmatprep.subr.mxu0 0.0
    %2876 = vmatpush1.xpose.msra.mxu0 0.0
    %2877 = vmatprep.subr.mxu0 0.0
    %2878 = vmatpush1.xpose.msra.mxu0 0.0
    %2879 = vmatprep.subr.mxu0 0.0
    %2880 = vmatpush1.xpose.msra.mxu0 0.0
    %2881 = vmatprep.subr.mxu0 0.0
    %2882 = vmatpush1.xpose.msra.mxu0 0.0
    %2883 = vmatprep.subr.mxu0 0.0
    %2884 = vmatpush1.xpose.msra.mxu0 0.0
    %2885 = vmatprep.subr.mxu0 0.0
    %2886 = vmatpush1.xpose.msra.mxu0 0.0
    %2887 = vmatprep.subr.mxu0 0.0
    %2888 = vmatpush1.xpose.msra.mxu0 0.0
    %2889 = vmatprep.subr.mxu0 0.0
    %2890 = vmatpush1.xpose.msra.mxu0 0.0
    %2891 = vmatprep.subr.mxu0 0.0
    %2892 = vmatpush1.xpose.msra.mxu0 0.0
    %2893 = vmatprep.subr.mxu0 0.0
    %2894 = vmatpush1.xpose.msra.mxu0 0.0
    %2895 = vmatprep.subr.mxu0 0.0
    %2896 = vmatpush1.xpose.msra.mxu0 0.0
    %2897 = vmatprep.subr.mxu0 0.0
    %2898 = vmatpush1.xpose.msra.mxu0 0.0
    %2899 = vmatprep.subr.mxu0 0.0
    %2900 = vmatpush1.xpose.msra.mxu0 0.0
    %2901 = vmatprep.subr.mxu0 0.0
    %2902 = vmatpush1.xpose.msra.mxu0 0.0
    %2903 = vmatprep.subr.mxu0 0.0
    %2904 = vmatpush1.xpose.msra.mxu0 0.0
    %2905 = vmatprep.subr.mxu0 0.0
    %2906 = vmatpush1.xpose.msra.mxu0 0.0
    %2907 = vmatprep.subr.mxu0 0.0
    %2908 = vmatpush1.xpose.msra.mxu0 0.0
    %2909 = vmatprep.subr.mxu0 0.0
    %2910 = vmatpush1.xpose.msra.mxu0 0.0
    %2911 = vmatprep.subr.mxu0 0.0
    %2912 = vmatpush1.xpose.msra.mxu0 0.0
    %2913 = vmatprep.subr.mxu0 0.0
    %2914 = vmatpush1.xpose.msra.mxu0 0.0
    %2915 = vmatprep.subr.mxu0 0.0
    %2916 = vmatpush1.xpose.msra.mxu0 0.0
    %2917 = vmatprep.subr.mxu0 0.0
    %2918 = vmatpush1.xpose.msra.mxu0 0.0
    %2919 = vmatprep.subr.mxu0 0.0
    %2920 = vmatpush1.xpose.msra.mxu0 0.0
    %2921 = vmatprep.subr.mxu0 0.0
    %2922 = vmatpush1.xpose.msra.mxu0 0.0
    %2923 = vmatprep.subr.mxu0 0.0
    %2924 = vmatpush1.xpose.msra.mxu0 0.0
    %2925 = vmatprep.mubr.f32.mxu0 0.0
    %v2926 = vand.u32 %v2591, 4294901760
    %v2927 = vsub.f32 %v2591, %v2926
    %v2928 = vand.u32 %v2927, 4294901760
    %2929 = vmatmul.mubr.f32.gmra.mrb[0].mxu0 %v2928
    %v2930 = vpop.f32.mrb[0].mxu0
    %v2931 = vadd.f32 %v2849, %v2930
    %v2932 = vpop.f32.mrb[0].mxu0
    %2933 = vmatprep.mubr.f32.mxu0 0.0
    %v2934 = vand.u32 %v2594, 4294901760
    %v2935 = vsub.f32 %v2594, %v2934
    %v2936 = vand.u32 %v2935, 4294901760
    %2937 = vmatmul.mubr.f32.gmra.mrb[0].mxu0 %v2936
    %v2938 = vpop.f32.mrb[0].mxu0
    %v2939 = vadd.f32 %v2856, %v2938
    %v2940 = vpop.f32.mrb[0].mxu0
    %2941 = vdwg.mxu0
    %2942 = vmatprep.subr.mxu0 0.0
    %v2943 = vand.u32 %v2597, 4294901760
    %v2944 = vsub.f32 %v2597, %v2943
    %v2945 = vand.u32 %v2944, 4294901760
    %2946 = vmatpush1.xpose.msra.mxu0 %v2945
    %2947 = vmatprep.subr.mxu0 0.0
    %v2948 = vand.u32 %v2600, 4294901760
    %v2949 = vsub.f32 %v2600, %v2948
    %v2950 = vand.u32 %v2949, 4294901760
    %2951 = vmatpush1.xpose.msra.mxu0 %v2950
    %2952 = vmatprep.subr.mxu0 0.0
    %2953 = vmatpush1.xpose.msra.mxu0 0.0
    %2954 = vmatprep.subr.mxu0 0.0
    %2955 = vmatpush1.xpose.msra.mxu0 0.0
    %2956 = vmatprep.subr.mxu0 0.0
    %2957 = vmatpush1.xpose.msra.mxu0 0.0
    %2958 = vmatprep.subr.mxu0 0.0
    %2959 = vmatpush1.xpose.msra.mxu0 0.0
    %2960 = vmatprep.subr.mxu0 0.0
    %2961 = vmatpush1.xpose.msra.mxu0 0.0
    %2962 = vmatprep.subr.mxu0 0.0
    %2963 = vmatpush1.xpose.msra.mxu0 0.0
    %2964 = vmatprep.subr.mxu0 0.0
    %2965 = vmatpush1.xpose.msra.mxu0 0.0
    %2966 = vmatprep.subr.mxu0 0.0
    %2967 = vmatpush1.xpose.msra.mxu0 0.0
    %2968 = vmatprep.subr.mxu0 0.0
    %2969 = vmatpush1.xpose.msra.mxu0 0.0
    %2970 = vmatprep.subr.mxu0 0.0
    %2971 = vmatpush1.xpose.msra.mxu0 0.0
    %2972 = vmatprep.subr.mxu0 0.0
    %2973 = vmatpush1.xpose.msra.mxu0 0.0
    %2974 = vmatprep.subr.mxu0 0.0
    %2975 = vmatpush1.xpose.msra.mxu0 0.0
    %2976 = vmatprep.subr.mxu0 0.0
    %2977 = vmatpush1.xpose.msra.mxu0 0.0
    %2978 = vmatprep.subr.mxu0 0.0
    %2979 = vmatpush1.xpose.msra.mxu0 0.0
    %2980 = vmatprep.subr.mxu0 0.0
    %2981 = vmatpush1.xpose.msra.mxu0 0.0
    %2982 = vmatprep.subr.mxu0 0.0
    %2983 = vmatpush1.xpose.msra.mxu0 0.0
    %2984 = vmatprep.subr.mxu0 0.0
    %2985 = vmatpush1.xpose.msra.mxu0 0.0
    %2986 = vmatprep.subr.mxu0 0.0
    %2987 = vmatpush1.xpose.msra.mxu0 0.0
    %2988 = vmatprep.subr.mxu0 0.0
    %2989 = vmatpush1.xpose.msra.mxu0 0.0
    %2990 = vmatprep.subr.mxu0 0.0
    %2991 = vmatpush1.xpose.msra.mxu0 0.0
    %2992 = vmatprep.subr.mxu0 0.0
    %2993 = vmatpush1.xpose.msra.mxu0 0.0
    %2994 = vmatprep.subr.mxu0 0.0
    %2995 = vmatpush1.xpose.msra.mxu0 0.0
    %2996 = vmatprep.subr.mxu0 0.0
    %2997 = vmatpush1.xpose.msra.mxu0 0.0
    %2998 = vmatprep.subr.mxu0 0.0
    %2999 = vmatpush1.xpose.msra.mxu0 0.0
    %3000 = vmatprep.subr.mxu0 0.0
    %3001 = vmatpush1.xpose.msra.mxu0 0.0
    %3002 = vmatprep.subr.mxu0 0.0
    %3003 = vmatpush1.xpose.msra.mxu0 0.0
    %3004 = vmatprep.subr.mxu0 0.0
    %3005 = vmatpush1.xpose.msra.mxu0 0.0
    %3006 = vmatprep.subr.mxu0 0.0
    %3007 = vmatpush1.xpose.msra.mxu0 0.0
    %3008 = vmatprep.subr.mxu0 0.0
    %3009 = vmatpush1.xpose.msra.mxu0 0.0
    %3010 = vmatprep.subr.mxu0 0.0
    %3011 = vmatpush1.xpose.msra.mxu0 0.0
    %3012 = vmatprep.mubr.f32.mxu0 0.0
    %v3013 = vand.u32 %v2591, 4294901760
    %3014 = vmatmul.mubr.f32.gmra.mrb[0].mxu0 %v3013
    %v3015 = vpop.f32.mrb[0].mxu0
    %v3016 = vadd.f32 %v2931, %v3015
    %v3017 = vpop.f32.mrb[0].mxu0
    %3018 = vmatprep.mubr.f32.mxu0 0.0
    %v3019 = vand.u32 %v2594, 4294901760
    %3020 = vmatmul.mubr.f32.gmra.mrb[0].mxu0 %v3019
    %v3021 = vpop.f32.mrb[0].mxu0
    %v3022 = vadd.f32 %v2939, %v3021
    %v3023 = vpop.f32.mrb[0].mxu0
    %3024 = vdwg.mxu0
    %3025 = vmatprep.subr.mxu0 0.0
    %v3026 = vand.u32 %v2597, 4294901760
    %3027 = vmatpush1.xpose.msra.mxu0 %v3026
    %3028 = vmatprep.subr.mxu0 0.0
    %v3029 = vand.u32 %v2600, 4294901760
    %3030 = vmatpush1.xpose.msra.mxu0 %v3029
    %3031 = vmatprep.subr.mxu0 0.0
    %3032 = vmatpush1.xpose.msra.mxu0 0.0
    %3033 = vmatprep.subr.mxu0 0.0
    %3034 = vmatpush1.xpose.msra.mxu0 0.0
    %3035 = vmatprep.subr.mxu0 0.0
    %3036 = vmatpush1.xpose.msra.mxu0 0.0
    %3037 = vmatprep.subr.mxu0 0.0
    %3038 = vmatpush1.xpose.msra.mxu0 0.0
    %3039 = vmatprep.subr.mxu0 0.0
    %3040 = vmatpush1.xpose.msra.mxu0 0.0
    %3041 = vmatprep.subr.mxu0 0.0
    %3042 = vmatpush1.xpose.msra.mxu0 0.0
    %3043 = vmatprep.subr.mxu0 0.0
    %3044 = vmatpush1.xpose.msra.mxu0 0.0
    %3045 = vmatprep.subr.mxu0 0.0
    %3046 = vmatpush1.xpose.msra.mxu0 0.0
    %3047 = vmatprep.subr.mxu0 0.0
    %3048 = vmatpush1.xpose.msra.mxu0 0.0
    %3049 = vmatprep.subr.mxu0 0.0
    %3050 = vmatpush1.xpose.msra.mxu0 0.0
    %3051 = vmatprep.subr.mxu0 0.0
    %3052 = vmatpush1.xpose.msra.mxu0 0.0
    %3053 = vmatprep.subr.mxu0 0.0
    %3054 = vmatpush1.xpose.msra.mxu0 0.0
    %3055 = vmatprep.subr.mxu0 0.0
    %3056 = vmatpush1.xpose.msra.mxu0 0.0
    %3057 = vmatprep.subr.mxu0 0.0
    %3058 = vmatpush1.xpose.msra.mxu0 0.0
    %3059 = vmatprep.subr.mxu0 0.0
    %3060 = vmatpush1.xpose.msra.mxu0 0.0
    %3061 = vmatprep.subr.mxu0 0.0
    %3062 = vmatpush1.xpose.msra.mxu0 0.0
    %3063 = vmatprep.subr.mxu0 0.0
    %3064 = vmatpush1.xpose.msra.mxu0 0.0
    %3065 = vmatprep.subr.mxu0 0.0
    %3066 = vmatpush1.xpose.msra.mxu0 0.0
    %3067 = vmatprep.subr.mxu0 0.0
    %3068 = vmatpush1.xpose.msra.mxu0 0.0
    %3069 = vmatprep.subr.mxu0 0.0
    %3070 = vmatpush1.xpose.msra.mxu0 0.0
    %3071 = vmatprep.subr.mxu0 0.0
    %3072 = vmatpush1.xpose.msra.mxu0 0.0
    %3073 = vmatprep.subr.mxu0 0.0
    %3074 = vmatpush1.xpose.msra.mxu0 0.0
    %3075 = vmatprep.subr.mxu0 0.0
    %3076 = vmatpush1.xpose.msra.mxu0 0.0
    %3077 = vmatprep.subr.mxu0 0.0
    %3078 = vmatpush1.xpose.msra.mxu0 0.0
    %3079 = vmatprep.subr.mxu0 0.0
    %3080 = vmatpush1.xpose.msra.mxu0 0.0
    %3081 = vmatprep.subr.mxu0 0.0
    %3082 = vmatpush1.xpose.msra.mxu0 0.0
    %3083 = vmatprep.subr.mxu0 0.0
    %3084 = vmatpush1.xpose.msra.mxu0 0.0
    %3085 = vmatprep.subr.mxu0 0.0
    %3086 = vmatpush1.xpose.msra.mxu0 0.0
    %3087 = vmatprep.subr.mxu0 0.0
    %3088 = vmatpush1.xpose.msra.mxu0 0.0
    %3089 = vmatprep.subr.mxu0 0.0
    %3090 = vmatpush1.xpose.msra.mxu0 0.0
    %3091 = vmatprep.mubr.f32.mxu0 0.0
    %v3092 = vand.u32 %v2591, 4294901760
    %3093 = vmatmul.mubr.f32.gmra.mrb[0].mxu0 %v3092
    %v3094 = vpop.f32.mrb[0].mxu0
    %v3095 = vadd.f32 %v3016, %v3094
    %v3096 = vpop.f32.mrb[0].mxu0
    %3097 = vmatprep.mubr.f32.mxu0 0.0
    %v3098 = vand.u32 %v2594, 4294901760
    %3099 = vmatmul.mubr.f32.gmra.mrb[0].mxu0 %v3098
    %v3100 = vpop.f32.mrb[0].mxu0
    %v3101 = vadd.f32 %v3022, %v3100
    %v3102 = vpop.f32.mrb[0].mxu0
    %3103 = vdwg.mxu0
    %v3104 = vmul.f32 %v3095, 0.25
    %v3105 = vmul.f32 %v3101, 0.25
    %v3106 = vadd.f32 %v3104, %v48
    %v3107 = vadd.f32 %v3105, %v49
    %v3108 = vsel %vm855, %v3106, -inf
    %3109 = vmax.xlane.f32.xlu0 %v3108
    %v3110 = vpop.xlane.xlu0 %3109
    %v3111 = vsel %vm855, %v3107, -inf
    %3112 = vmax.xlane.f32.xlu0 %v3111
    %v3113 = vpop.xlane.xlu0 %3112
    %v3114 = vsub.f32 %v3106, %v3110
    %v3115 = vsub.f32 %v3107, %v3113
    %v3116 = vmul.f32 %v3114, 1.442695
    %v3117 = vpow.pop %v3116
    %v3118 = vmul.f32 %v3115, 1.442695
    %v3119 = vpow.pop %v3118
    %v3120 = vsel %vm855, %v3117, 0.0
    %3121 = vadd.xlane.f32.xlu0 %v3120
    %v3122 = vpop.xlane.xlu0 %3121
    %v3123 = vsel %vm855, %v3119, 0.0
    %3124 = vadd.xlane.f32.xlu0 %v3123
    %v3125 = vpop.xlane.xlu0 %3124
    %v3126 = vmul.f32 %v2582, %v2588
    %v3127 = vmul.f32 %v2583, %v2589
    %v3128 = vsel %vm855, %v3126, 0.0
    %3129 = vadd.xlane.f32.xlu0 %v3128
    %v3130 = vpop.xlane.xlu0 %3129
    %v3131 = vsel %vm855, %v3127, 0.0
    %3132 = vadd.xlane.f32.xlu0 %v3131
    %v3133 = vpop.xlane.xlu0 %3132
    %v3134 = vmul.f32 %v3130, 0.25
    %v3135 = vmul.f32 %v3133, 0.25
    %v3136 = vsub.f32 %v3134, %v3110
    %v3137 = vsub.f32 %v3135, %v3113
    %v3138 = vmul.f32 %v3136, 1.442695
    %v3139 = vpow.pop %v3138
    %v3140 = vmul.f32 %v3137, 1.442695
    %v3141 = vpow.pop %v3140
    %v3142 = vrcp.pop %v3122
    %v3143 = vmul.f32 %v3139, %v3142
    %v3144 = vrcp.pop %v3125
    %v3145 = vmul.f32 %v3141, %v3144
    %v3146 = vmul.f32 %v3143, %v2574
    %v3147 = vmul.f32 %v3145, %v2575
    %v3148 = vmul.f32 %v3146, %v2572
    %v3149 = vmul.f32 %v3147, %v2573
    %v3150 = vld [vmem:[%s2 + $0x50] sm:$0xff]
    %v3151 = vld [vmem:[%s2 + $0x60] sm:$0xff]
    %v3152 = vld [vmem:[%s2 + $0x77] ss:$0 sm:$0xff]
    %v3154 = vsel %vm855, %v3148, 0
    %v3157 = vsel %vm855, %v3149, 0
    %3159 = vmatprep.subr.mxu0 0.0
    %v3160 = vand.u32 %v3150, 4294901760
    %3161 = vmatpush1.msra.mxu0 %v3160
    %3162 = vmatprep.subr.mxu0 0.0
    %v3163 = vand.u32 %v3151, 4294901760
    %3164 = vmatpush1.msra.mxu0 %v3163
    %3165 = vmatprep.subr.mxu0 0.0
    %3166 = vmatpush1.msra.mxu0 0.0
    %3167 = vmatprep.subr.mxu0 0.0
    %3168 = vmatpush1.msra.mxu0 0.0
    %3169 = vmatprep.subr.mxu0 0.0
    %3170 = vmatpush1.msra.mxu0 0.0
    %3171 = vmatprep.subr.mxu0 0.0
    %3172 = vmatpush1.msra.mxu0 0.0
    %3173 = vmatprep.subr.mxu0 0.0
    %3174 = vmatpush1.msra.mxu0 0.0
    %3175 = vmatprep.subr.mxu0 0.0
    %3176 = vmatpush1.msra.mxu0 0.0
    %3177 = vmatprep.subr.mxu0 0.0
    %3178 = vmatpush1.msra.mxu0 0.0
    %3179 = vmatprep.subr.mxu0 0.0
    %3180 = vmatpush1.msra.mxu0 0.0
    %3181 = vmatprep.subr.mxu0 0.0
    %3182 = vmatpush1.msra.mxu0 0.0
    %3183 = vmatprep.subr.mxu0 0.0
    %3184 = vmatpush1.msra.mxu0 0.0
    %3185 = vmatprep.subr.mxu0 0.0
    %3186 = vmatpush1.msra.mxu0 0.0
    %3187 = vmatprep.subr.mxu0 0.0
    %3188 = vmatpush1.msra.mxu0 0.0
    %3189 = vmatprep.subr.mxu0 0.0
    %3190 = vmatpush1.msra.mxu0 0.0
    %3191 = vmatprep.subr.mxu0 0.0
    %3192 = vmatpush1.msra.mxu0 0.0
    %3193 = vmatprep.subr.mxu0 0.0
    %3194 = vmatpush1.msra.mxu0 0.0
    %3195 = vmatprep.subr.mxu0 0.0
    %3196 = vmatpush1.msra.mxu0 0.0
    %3197 = vmatprep.subr.mxu0 0.0
    %3198 = vmatpush1.msra.mxu0 0.0
    %3199 = vmatprep.subr.mxu0 0.0
    %3200 = vmatpush1.msra.mxu0 0.0
    %3201 = vmatprep.subr.mxu0 0.0
    %3202 = vmatpush1.msra.mxu0 0.0
    %3203 = vmatprep.subr.mxu0 0.0
    %3204 = vmatpush1.msra.mxu0 0.0
    %3205 = vmatprep.subr.mxu0 0.0
    %3206 = vmatpush1.msra.mxu0 0.0
    %3207 = vmatprep.subr.mxu0 0.0
    %3208 = vmatpush1.msra.mxu0 0.0
    %3209 = vmatprep.subr.mxu0 0.0
    %3210 = vmatpush1.msra.mxu0 0.0
    %3211 = vmatprep.subr.mxu0 0.0
    %3212 = vmatpush1.msra.mxu0 0.0
    %3213 = vmatprep.subr.mxu0 0.0
    %3214 = vmatpush1.msra.mxu0 0.0
    %3215 = vmatprep.subr.mxu0 0.0
    %3216 = vmatpush1.msra.mxu0 0.0
    %3217 = vmatprep.subr.mxu0 0.0
    %3218 = vmatpush1.msra.mxu0 0.0
    %3219 = vmatprep.subr.mxu0 0.0
    %3220 = vmatpush1.msra.mxu0 0.0
    %3221 = vmatprep.subr.mxu0 0.0
    %3222 = vmatpush1.msra.mxu0 0.0
    %3223 = vmatprep.subr.mxu0 0.0
    %3224 = vmatpush1.msra.mxu0 0.0
    %3225 = vmatprep.mubr.f32.mxu0 0.0
    %v3226 = vand.u32 %v3154, 4294901760
    %v3227 = vsub.f32 %v3154, %v3226
    %v3228 = vand.u32 %v3227, 4294901760
    %v3229 = vsub.f32 %v3227, %v3228
    %v3230 = vand.u32 %v3229, 4294901760
    %3231 = vmatmul.mubr.f32.gmra.mrb[0].mxu0 %v3230
    %v3232 = vpop.f32.mrb[0].mxu0
    %v3233 = vadd.f32 %v3152, %v3232
    %v3234 = vpop.f32.mrb[0].mxu0
    %3235 = vmatprep.mubr.f32.mxu0 0.0
    %v3236 = vand.u32 %v3157, 4294901760
    %v3237 = vsub.f32 %v3157, %v3236
    %v3238 = vand.u32 %v3237, 4294901760
    %v3239 = vsub.f32 %v3237, %v3238
    %v3240 = vand.u32 %v3239, 4294901760
    %3241 = vmatmul.mubr.f32.gmra.mrb[0].mxu0 %v3240
    %v3242 = vpop.f32.mrb[0].mxu0
    %v3243 = vadd.f32 %v3152, %v3242
    %v3244 = vpop.f32.mrb[0].mxu0
    %3245 = vdwg.mxu0
    %3246 = vmatprep.subr.mxu0 0.0
    %v3247 = vand.u32 %v3150, 4294901760
    %v3248 = vsub.f32 %v3150, %v3247
    %v3249 = vand.u32 %v3248, 4294901760
    %v3250 = vsub.f32 %v3248, %v3249
    %v3251 = vand.u32 %v3250, 4294901760
    %3252 = vmatpush1.msra.mxu0 %v3251
    %3253 = vmatprep.subr.mxu0 0.0
    %v3254 = vand.u32 %v3151, 4294901760
    %v3255 = vsub.f32 %v3151, %v3254
    %v3256 = vand.u32 %v3255, 4294901760
    %v3257 = vsub.f32 %v3255, %v3256
    %v3258 = vand.u32 %v3257, 4294901760
    %3259 = vmatpush1.msra.mxu0 %v3258
    %3260 = vmatprep.subr.mxu0 0.0
    %3261 = vmatpush1.msra.mxu0 0.0
    %3262 = vmatprep.subr.mxu0 0.0
    %3263 = vmatpush1.msra.mxu0 0.0
    %3264 = vmatprep.subr.mxu0 0.0
    %3265 = vmatpush1.msra.mxu0 0.0
    %3266 = vmatprep.subr.mxu0 0.0
    %3267 = vmatpush1.msra.mxu0 0.0
    %3268 = vmatprep.subr.mxu0 0.0
    %3269 = vmatpush1.msra.mxu0 0.0
    %3270 = vmatprep.subr.mxu0 0.0
    %3271 = vmatpush1.msra.mxu0 0.0
    %3272 = vmatprep.subr.mxu0 0.0
    %3273 = vmatpush1.msra.mxu0 0.0
    %3274 = vmatprep.subr.mxu0 0.0
    %3275 = vmatpush1.msra.mxu0 0.0
    %3276 = vmatprep.subr.mxu0 0.0
    %3277 = vmatpush1.msra.mxu0 0.0
    %3278 = vmatprep.subr.mxu0 0.0
    %3279 = vmatpush1.msra.mxu0 0.0
    %3280 = vmatprep.subr.mxu0 0.0
    %3281 = vmatpush1.msra.mxu0 0.0
    %3282 = vmatprep.subr.mxu0 0.0
    %3283 = vmatpush1.msra.mxu0 0.0
    %3284 = vmatprep.subr.mxu0 0.0
    %3285 = vmatpush1.msra.mxu0 0.0
    %3286 = vmatprep.subr.mxu0 0.0
    %3287 = vmatpush1.msra.mxu0 0.0
    %3288 = vmatprep.subr.mxu0 0.0
    %3289 = vmatpush1.msra.mxu0 0.0
    %3290 = vmatprep.subr.mxu0 0.0
    %3291 = vmatpush1.msra.mxu0 0.0
    %3292 = vmatprep.subr.mxu0 0.0
    %3293 = vmatpush1.msra.mxu0 0.0
    %3294 = vmatprep.subr.mxu0 0.0
    %3295 = vmatpush1.msra.mxu0 0.0
    %3296 = vmatprep.subr.mxu0 0.0
    %3297 = vmatpush1.msra.mxu0 0.0
    %3298 = vmatprep.subr.mxu0 0.0
    %3299 = vmatpush1.msra.mxu0 0.0
    %3300 = vmatprep.subr.mxu0 0.0
    %3301 = vmatpush1.msra.mxu0 0.0
    %3302 = vmatprep.subr.mxu0 0.0
    %3303 = vmatpush1.msra.mxu0 0.0
    %3304 = vmatprep.subr.mxu0 0.0
    %3305 = vmatpush1.msra.mxu0 0.0
    %3306 = vmatprep.subr.mxu0 0.0
    %3307 = vmatpush1.msra.mxu0 0.0
    %3308 = vmatprep.subr.mxu0 0.0
    %3309 = vmatpush1.msra.mxu0 0.0
    %3310 = vmatprep.subr.mxu0 0.0
    %3311 = vmatpush1.msra.mxu0 0.0
    %3312 = vmatprep.subr.mxu0 0.0
    %3313 = vmatpush1.msra.mxu0 0.0
    %3314 = vmatprep.subr.mxu0 0.0
    %3315 = vmatpush1.msra.mxu0 0.0
    %3316 = vmatprep.subr.mxu0 0.0
    %3317 = vmatpush1.msra.mxu0 0.0
    %3318 = vmatprep.subr.mxu0 0.0
    %3319 = vmatpush1.msra.mxu0 0.0
    %3320 = vmatprep.mubr.f32.mxu0 0.0
    %v3321 = vand.u32 %v3154, 4294901760
    %3322 = vmatmul.mubr.f32.gmra.mrb[0].mxu0 %v3321
    %v3323 = vpop.f32.mrb[0].mxu0
    %v3324 = vadd.f32 %v3233, %v3323
    %v3325 = vpop.f32.mrb[0].mxu0
    %3326 = vmatprep.mubr.f32.mxu0 0.0
    %v3327 = vand.u32 %v3157, 4294901760
    %3328 = vmatmul.mubr.f32.gmra.mrb[0].mxu0 %v3327
    %v3329 = vpop.f32.mrb[0].mxu0
    %v3330 = vadd.f32 %v3243, %v3329
    %v3331 = vpop.f32.mrb[0].mxu0
    %3332 = vdwg.mxu0
    %3333 = vmatprep.subr.mxu0 0.0
    %v3334 = vand.u32 %v3150, 4294901760
    %v3335 = vsub.f32 %v3150, %v3334
    %3336 = vmatpush1.msra.mxu0 %v3335
    %3337 = vmatprep.subr.mxu0 0.0
    %v3338 = vand.u32 %v3151, 4294901760
    %v3339 = vsub.f32 %v3151, %v3338
    %3340 = vmatpush1.msra.mxu0 %v3339
    %3341 = vmatprep.subr.mxu0 0.0
    %3342 = vmatpush1.msra.mxu0 0.0
    %3343 = vmatprep.subr.mxu0 0.0
    %3344 = vmatpush1.msra.mxu0 0.0
    %3345 = vmatprep.subr.mxu0 0.0
    %3346 = vmatpush1.msra.mxu0 0.0
    %3347 = vmatprep.subr.mxu0 0.0
    %3348 = vmatpush1.msra.mxu0 0.0
    %3349 = vmatprep.subr.mxu0 0.0
    %3350 = vmatpush1.msra.mxu0 0.0
    %3351 = vmatprep.subr.mxu0 0.0
    %3352 = vmatpush1.msra.mxu0 0.0
    %3353 = vmatprep.subr.mxu0 0.0
    %3354 = vmatpush1.msra.mxu0 0.0
    %3355 = vmatprep.subr.mxu0 0.0
    %3356 = vmatpush1.msra.mxu0 0.0
    %3357 = vmatprep.subr.mxu0 0.0
    %3358 = vmatpush1.msra.mxu0 0.0
    %3359 = vmatprep.subr.mxu0 0.0
    %3360 = vmatpush1.msra.mxu0 0.0
    %3361 = vmatprep.subr.mxu0 0.0
    %3362 = vmatpush1.msra.mxu0 0.0
    %3363 = vmatprep.subr.mxu0 0.0
    %3364 = vmatpush1.msra.mxu0 0.0
    %3365 = vmatprep.subr.mxu0 0.0
    %3366 = vmatpush1.msra.mxu0 0.0
    %3367 = vmatprep.subr.mxu0 0.0
    %3368 = vmatpush1.msra.mxu0 0.0
    %3369 = vmatprep.subr.mxu0 0.0
    %3370 = vmatpush1.msra.mxu0 0.0
    %3371 = vmatprep.subr.mxu0 0.0
    %3372 = vmatpush1.msra.mxu0 0.0
    %3373 = vmatprep.subr.mxu0 0.0
    %3374 = vmatpush1.msra.mxu0 0.0
    %3375 = vmatprep.subr.mxu0 0.0
    %3376 = vmatpush1.msra.mxu0 0.0
    %3377 = vmatprep.subr.mxu0 0.0
    %3378 = vmatpush1.msra.mxu0 0.0
    %3379 = vmatprep.subr.mxu0 0.0
    %3380 = vmatpush1.msra.mxu0 0.0
    %3381 = vmatprep.subr.mxu0 0.0
    %3382 = vmatpush1.msra.mxu0 0.0
    %3383 = vmatprep.subr.mxu0 0.0
    %3384 = vmatpush1.msra.mxu0 0.0
    %3385 = vmatprep.subr.mxu0 0.0
    %3386 = vmatpush1.msra.mxu0 0.0
    %3387 = vmatprep.subr.mxu0 0.0
    %3388 = vmatpush1.msra.mxu0 0.0
    %3389 = vmatprep.subr.mxu0 0.0
    %3390 = vmatpush1.msra.mxu0 0.0
    %3391 = vmatprep.subr.mxu0 0.0
    %3392 = vmatpush1.msra.mxu0 0.0
    %3393 = vmatprep.subr.mxu0 0.0
    %3394 = vmatpush1.msra.mxu0 0.0
    %3395 = vmatprep.subr.mxu0 0.0
    %3396 = vmatpush1.msra.mxu0 0.0
    %3397 = vmatprep.subr.mxu0 0.0
    %3398 = vmatpush1.msra.mxu0 0.0
    %3399 = vmatprep.subr.mxu0 0.0
    %3400 = vmatpush1.msra.mxu0 0.0
    %3401 = vmatprep.mubr.f32.mxu0 0.0
    %v3402 = vand.u32 %v3154, 4294901760
    %v3403 = vsub.f32 %v3154, %v3402
    %3404 = vmatmul.mubr.f32.gmra.mrb[0].mxu0 %v3403
    %v3405 = vpop.f32.mrb[0].mxu0
    %v3406 = vadd.f32 %v3324, %v3405
    %v3407 = vpop.f32.mrb[0].mxu0
    %3408 = vmatprep.mubr.f32.mxu0 0.0
    %v3409 = vand.u32 %v3157, 4294901760
    %v3410 = vsub.f32 %v3157, %v3409
    %3411 = vmatmul.mubr.f32.gmra.mrb[0].mxu0 %v3410
    %v3412 = vpop.f32.mrb[0].mxu0
    %v3413 = vadd.f32 %v3330, %v3412
    %v3414 = vpop.f32.mrb[0].mxu0
    %3415 = vdwg.mxu0
    %3416 = vmatprep.subr.mxu0 0.0
    %v3417 = vand.u32 %v3150, 4294901760
    %3418 = vmatpush1.msra.mxu0 %v3417
    %3419 = vmatprep.subr.mxu0 0.0
    %v3420 = vand.u32 %v3151, 4294901760
    %3421 = vmatpush1.msra.mxu0 %v3420
    %3422 = vmatprep.subr.mxu0 0.0
    %3423 = vmatpush1.msra.mxu0 0.0
    %3424 = vmatprep.subr.mxu0 0.0
    %3425 = vmatpush1.msra.mxu0 0.0
    %3426 = vmatprep.subr.mxu0 0.0
    %3427 = vmatpush1.msra.mxu0 0.0
    %3428 = vmatprep.subr.mxu0 0.0
    %3429 = vmatpush1.msra.mxu0 0.0
    %3430 = vmatprep.subr.mxu0 0.0
    %3431 = vmatpush1.msra.mxu0 0.0
    %3432 = vmatprep.subr.mxu0 0.0
    %3433 = vmatpush1.msra.mxu0 0.0
    %3434 = vmatprep.subr.mxu0 0.0
    %3435 = vmatpush1.msra.mxu0 0.0
    %3436 = vmatprep.subr.mxu0 0.0
    %3437 = vmatpush1.msra.mxu0 0.0
    %3438 = vmatprep.subr.mxu0 0.0
    %3439 = vmatpush1.msra.mxu0 0.0
    %3440 = vmatprep.subr.mxu0 0.0
    %3441 = vmatpush1.msra.mxu0 0.0
    %3442 = vmatprep.subr.mxu0 0.0
    %3443 = vmatpush1.msra.mxu0 0.0
    %3444 = vmatprep.subr.mxu0 0.0
    %3445 = vmatpush1.msra.mxu0 0.0
    %3446 = vmatprep.subr.mxu0 0.0
    %3447 = vmatpush1.msra.mxu0 0.0
    %3448 = vmatprep.subr.mxu0 0.0
    %3449 = vmatpush1.msra.mxu0 0.0
    %3450 = vmatprep.subr.mxu0 0.0
    %3451 = vmatpush1.msra.mxu0 0.0
    %3452 = vmatprep.subr.mxu0 0.0
    %3453 = vmatpush1.msra.mxu0 0.0
    %3454 = vmatprep.subr.mxu0 0.0
    %3455 = vmatpush1.msra.mxu0 0.0
    %3456 = vmatprep.subr.mxu0 0.0
    %3457 = vmatpush1.msra.mxu0 0.0
    %3458 = vmatprep.subr.mxu0 0.0
    %3459 = vmatpush1.msra.mxu0 0.0
    %3460 = vmatprep.subr.mxu0 0.0
    %3461 = vmatpush1.msra.mxu0 0.0
    %3462 = vmatprep.subr.mxu0 0.0
    %3463 = vmatpush1.msra.mxu0 0.0
    %3464 = vmatprep.subr.mxu0 0.0
    %3465 = vmatpush1.msra.mxu0 0.0
    %3466 = vmatprep.subr.mxu0 0.0
    %3467 = vmatpush1.msra.mxu0 0.0
    %3468 = vmatprep.subr.mxu0 0.0
    %3469 = vmatpush1.msra.mxu0 0.0
    %3470 = vmatprep.subr.mxu0 0.0
    %3471 = vmatpush1.msra.mxu0 0.0
    %3472 = vmatprep.subr.mxu0 0.0
    %3473 = vmatpush1.msra.mxu0 0.0
    %3474 = vmatprep.subr.mxu0 0.0
    %3475 = vmatpush1.msra.mxu0 0.0
    %3476 = vmatprep.subr.mxu0 0.0
    %3477 = vmatpush1.msra.mxu0 0.0
    %3478 = vmatprep.subr.mxu0 0.0
    %3479 = vmatpush1.msra.mxu0 0.0
    %3480 = vmatprep.subr.mxu0 0.0
    %3481 = vmatpush1.msra.mxu0 0.0
    %3482 = vmatprep.mubr.f32.mxu0 0.0
    %v3483 = vand.u32 %v3154, 4294901760
    %v3484 = vsub.f32 %v3154, %v3483
    %v3485 = vand.u32 %v3484, 4294901760
    %3486 = vmatmul.mubr.f32.gmra.mrb[0].mxu0 %v3485
    %v3487 = vpop.f32.mrb[0].mxu0
    %v3488 = vadd.f32 %v3406, %v3487
    %v3489 = vpop.f32.mrb[0].mxu0
    %3490 = vmatprep.mubr.f32.mxu0 0.0
    %v3491 = vand.u32 %v3157, 4294901760
    %v3492 = vsub.f32 %v3157, %v3491
    %v3493 = vand.u32 %v3492, 4294901760
    %3494 = vmatmul.mubr.f32.gmra.mrb[0].mxu0 %v3493
    %v3495 = vpop.f32.mrb[0].mxu0
    %v3496 = vadd.f32 %v3413, %v3495
    %v3497 = vpop.f32.mrb[0].mxu0
    %3498 = vdwg.mxu0
    %3499 = vmatprep.subr.mxu0 0.0
    %v3500 = vand.u32 %v3150, 4294901760
    %v3501 = vsub.f32 %v3150, %v3500
    %v3502 = vand.u32 %v3501, 4294901760
    %3503 = vmatpush1.msra.mxu0 %v3502
    %3504 = vmatprep.subr.mxu0 0.0
    %v3505 = vand.u32 %v3151, 4294901760
    %v3506 = vsub.f32 %v3151, %v3505
    %v3507 = vand.u32 %v3506, 4294901760
    %3508 = vmatpush1.msra.mxu0 %v3507
    %3509 = vmatprep.subr.mxu0 0.0
    %3510 = vmatpush1.msra.mxu0 0.0
    %3511 = vmatprep.subr.mxu0 0.0
    %3512 = vmatpush1.msra.mxu0 0.0
    %3513 = vmatprep.subr.mxu0 0.0
    %3514 = vmatpush1.msra.mxu0 0.0
    %3515 = vmatprep.subr.mxu0 0.0
    %3516 = vmatpush1.msra.mxu0 0.0
    %3517 = vmatprep.subr.mxu0 0.0
    %3518 = vmatpush1.msra.mxu0 0.0
    %3519 = vmatprep.subr.mxu0 0.0
    %3520 = vmatpush1.msra.mxu0 0.0
    %3521 = vmatprep.subr.mxu0 0.0
    %3522 = vmatpush1.msra.mxu0 0.0
    %3523 = vmatprep.subr.mxu0 0.0
    %3524 = vmatpush1.msra.mxu0 0.0
    %3525 = vmatprep.subr.mxu0 0.0
    %3526 = vmatpush1.msra.mxu0 0.0
    %3527 = vmatprep.subr.mxu0 0.0
    %3528 = vmatpush1.msra.mxu0 0.0
    %3529 = vmatprep.subr.mxu0 0.0
    %3530 = vmatpush1.msra.mxu0 0.0
    %3531 = vmatprep.subr.mxu0 0.0
    %3532 = vmatpush1.msra.mxu0 0.0
    %3533 = vmatprep.subr.mxu0 0.0
    %3534 = vmatpush1.msra.mxu0 0.0
    %3535 = vmatprep.subr.mxu0 0.0
    %3536 = vmatpush1.msra.mxu0 0.0
    %3537 = vmatprep.subr.mxu0 0.0
    %3538 = vmatpush1.msra.mxu0 0.0
    %3539 = vmatprep.subr.mxu0 0.0
    %3540 = vmatpush1.msra.mxu0 0.0
    %3541 = vmatprep.subr.mxu0 0.0
    %3542 = vmatpush1.msra.mxu0 0.0
    %3543 = vmatprep.subr.mxu0 0.0
    %3544 = vmatpush1.msra.mxu0 0.0
    %3545 = vmatprep.subr.mxu0 0.0
    %3546 = vmatpush1.msra.mxu0 0.0
    %3547 = vmatprep.subr.mxu0 0.0
    %3548 = vmatpush1.msra.mxu0 0.0
    %3549 = vmatprep.subr.mxu0 0.0
    %3550 = vmatpush1.msra.mxu0 0.0
    %3551 = vmatprep.subr.mxu0 0.0
    %3552 = vmatpush1.msra.mxu0 0.0
    %3553 = vmatprep.subr.mxu0 0.0
    %3554 = vmatpush1.msra.mxu0 0.0
    %3555 = vmatprep.subr.mxu0 0.0
    %3556 = vmatpush1.msra.mxu0 0.0
    %3557 = vmatprep.subr.mxu0 0.0
    %3558 = vmatpush1.msra.mxu0 0.0
    %3559 = vmatprep.subr.mxu0 0.0
    %3560 = vmatpush1.msra.mxu0 0.0
    %3561 = vmatprep.subr.mxu0 0.0
    %3562 = vmatpush1.msra.mxu0 0.0
    %3563 = vmatprep.subr.mxu0 0.0
    %3564 = vmatpush1.msra.mxu0 0.0
    %3565 = vmatprep.subr.mxu0 0.0
    %3566 = vmatpush1.msra.mxu0 0.0
    %3567 = vmatprep.subr.mxu0 0.0
    %3568 = vmatpush1.msra.mxu0 0.0
    %3569 = vmatprep.mubr.f32.mxu0 0.0
    %v3570 = vand.u32 %v3154, 4294901760
    %3571 = vmatmul.mubr.f32.gmra.mrb[0].mxu0 %v3570
    %v3572 = vpop.f32.mrb[0].mxu0
    %v3573 = vadd.f32 %v3488, %v3572
    %v3574 = vpop.f32.mrb[0].mxu0
    %3575 = vmatprep.mubr.f32.mxu0 0.0
    %v3576 = vand.u32 %v3157, 4294901760
    %3577 = vmatmul.mubr.f32.gmra.mrb[0].mxu0 %v3576
    %v3578 = vpop.f32.mrb[0].mxu0
    %v3579 = vadd.f32 %v3496, %v3578
    %v3580 = vpop.f32.mrb[0].mxu0
    %3581 = vdwg.mxu0
    %3582 = vmatprep.subr.mxu0 0.0
    %v3583 = vand.u32 %v3150, 4294901760
    %3584 = vmatpush1.msra.mxu0 %v3583
    %3585 = vmatprep.subr.mxu0 0.0
    %v3586 = vand.u32 %v3151, 4294901760
    %3587 = vmatpush1.msra.mxu0 %v3586
    %3588 = vmatprep.subr.mxu0 0.0
    %3589 = vmatpush1.msra.mxu0 0.0
    %3590 = vmatprep.subr.mxu0 0.0
    %3591 = vmatpush1.msra.mxu0 0.0
    %3592 = vmatprep.subr.mxu0 0.0
    %3593 = vmatpush1.msra.mxu0 0.0
    %3594 = vmatprep.subr.mxu0 0.0
    %3595 = vmatpush1.msra.mxu0 0.0
    %3596 = vmatprep.subr.mxu0 0.0
    %3597 = vmatpush1.msra.mxu0 0.0
    %3598 = vmatprep.subr.mxu0 0.0
    %3599 = vmatpush1.msra.mxu0 0.0
    %3600 = vmatprep.subr.mxu0 0.0
    %3601 = vmatpush1.msra.mxu0 0.0
    %3602 = vmatprep.subr.mxu0 0.0
    %3603 = vmatpush1.msra.mxu0 0.0
    %3604 = vmatprep.subr.mxu0 0.0
    %3605 = vmatpush1.msra.mxu0 0.0
    %3606 = vmatprep.subr.mxu0 0.0
    %3607 = vmatpush1.msra.mxu0 0.0
    %3608 = vmatprep.subr.mxu0 0.0
    %3609 = vmatpush1.msra.mxu0 0.0
    %3610 = vmatprep.subr.mxu0 0.0
    %3611 = vmatpush1.msra.mxu0 0.0
    %3612 = vmatprep.subr.mxu0 0.0
    %3613 = vmatpush1.msra.mxu0 0.0
    %3614 = vmatprep.subr.mxu0 0.0
    %3615 = vmatpush1.msra.mxu0 0.0
    %3616 = vmatprep.subr.mxu0 0.0
    %3617 = vmatpush1.msra.mxu0 0.0
    %3618 = vmatprep.subr.mxu0 0.0
    %3619 = vmatpush1.msra.mxu0 0.0
    %3620 = vmatprep.subr.mxu0 0.0
    %3621 = vmatpush1.msra.mxu0 0.0
    %3622 = vmatprep.subr.mxu0 0.0
    %3623 = vmatpush1.msra.mxu0 0.0
    %3624 = vmatprep.subr.mxu0 0.0
    %3625 = vmatpush1.msra.mxu0 0.0
    %3626 = vmatprep.subr.mxu0 0.0
    %3627 = vmatpush1.msra.mxu0 0.0
    %3628 = vmatprep.subr.mxu0 0.0
    %3629 = vmatpush1.msra.mxu0 0.0
    %3630 = vmatprep.subr.mxu0 0.0
    %3631 = vmatpush1.msra.mxu0 0.0
    %3632 = vmatprep.subr.mxu0 0.0
    %3633 = vmatpush1.msra.mxu0 0.0
    %3634 = vmatprep.subr.mxu0 0.0
    %3635 = vmatpush1.msra.mxu0 0.0
    %3636 = vmatprep.subr.mxu0 0.0
    %3637 = vmatpush1.msra.mxu0 0.0
    %3638 = vmatprep.subr.mxu0 0.0
    %3639 = vmatpush1.msra.mxu0 0.0
    %3640 = vmatprep.subr.mxu0 0.0
    %3641 = vmatpush1.msra.mxu0 0.0
    %3642 = vmatprep.subr.mxu0 0.0
    %3643 = vmatpush1.msra.mxu0 0.0
    %3644 = vmatprep.subr.mxu0 0.0
    %3645 = vmatpush1.msra.mxu0 0.0
    %3646 = vmatprep.subr.mxu0 0.0
    %3647 = vmatpush1.msra.mxu0 0.0
    %3648 = vmatprep.mubr.f32.mxu0 0.0
    %v3649 = vand.u32 %v3154, 4294901760
    %3650 = vmatmul.mubr.f32.gmra.mrb[0].mxu0 %v3649
    %v3651 = vpop.f32.mrb[0].mxu0
    %v3652 = vadd.f32 %v3573, %v3651
    %v3653 = vpop.f32.mrb[0].mxu0
    %3654 = vmatprep.mubr.f32.mxu0 0.0
    %v3655 = vand.u32 %v3157, 4294901760
    %3656 = vmatmul.mubr.f32.gmra.mrb[0].mxu0 %v3655
    %v3657 = vpop.f32.mrb[0].mxu0
    %v3658 = vadd.f32 %v3579, %v3657
    %v3659 = vpop.f32.mrb[0].mxu0
    %3660 = vdwg.mxu0
    %v3661 = vld [vmem:[%s2] sm:$0xff]
    %v3662 = vld [vmem:[%s2 + $0x8] sm:$0xff]
    %s3663 = scalar_lea.vmem %s2, 128
    %v3664 = vld [vmem:[%s3663] ss:$8 sm:$0x3]
    %v3666 = vlaneseq
    %v3667 = vshrl.u32 %v3666, 7
    %v3668 = vsub.s32 0, %v3667
    %v3669 = vrot.slane %v3664, %v3668
    %v3670 = vlaneseq
    %v3671 = vshrl.u32 %v3670, 7
    %v3672 = vsub.s32 1, %v3671
    %v3673 = vrot.slane %v3664, %v3672
    %v3677 = vsel %vm327, %v3652, 0
    %v3680 = vsel %vm327, %v3658, 0
    %v3682 = vand.u32 %v3662, 4294901760
    %3683 = vmatprep.subr.mxu0 %v3682
    %v3684 = vand.u32 %v3661, 4294901760
    %3685 = vmatpush1.msra.mxu0 %v3684
    %3686 = vmatprep.subr.mxu0 0.0
    %3687 = vmatpush1.msra.mxu0 0.0
    %3688 = vmatprep.subr.mxu0 0.0
    %3689 = vmatpush1.msra.mxu0 0.0
    %3690 = vmatprep.subr.mxu0 0.0
    %3691 = vmatpush1.msra.mxu0 0.0
    %3692 = vmatprep.subr.mxu0 0.0
    %3693 = vmatpush1.msra.mxu0 0.0
    %3694 = vmatprep.subr.mxu0 0.0
    %3695 = vmatpush1.msra.mxu0 0.0
    %3696 = vmatprep.subr.mxu0 0.0
    %3697 = vmatpush1.msra.mxu0 0.0
    %3698 = vmatprep.subr.mxu0 0.0
    %3699 = vmatpush1.msra.mxu0 0.0
    %3700 = vmatprep.subr.mxu0 0.0
    %3701 = vmatpush1.msra.mxu0 0.0
    %3702 = vmatprep.subr.mxu0 0.0
    %3703 = vmatpush1.msra.mxu0 0.0
    %3704 = vmatprep.subr.mxu0 0.0
    %3705 = vmatpush1.msra.mxu0 0.0
    %3706 = vmatprep.subr.mxu0 0.0
    %3707 = vmatpush1.msra.mxu0 0.0
    %3708 = vmatprep.subr.mxu0 0.0
    %3709 = vmatpush1.msra.mxu0 0.0
    %3710 = vmatprep.subr.mxu0 0.0
    %3711 = vmatpush1.msra.mxu0 0.0
    %3712 = vmatprep.subr.mxu0 0.0
    %3713 = vmatpush1.msra.mxu0 0.0
    %3714 = vmatprep.subr.mxu0 0.0
    %3715 = vmatpush1.msra.mxu0 0.0
    %3716 = vmatprep.subr.mxu0 0.0
    %3717 = vmatpush1.msra.mxu0 0.0
    %3718 = vmatprep.subr.mxu0 0.0
    %3719 = vmatpush1.msra.mxu0 0.0
    %3720 = vmatprep.subr.mxu0 0.0
    %3721 = vmatpush1.msra.mxu0 0.0
    %3722 = vmatprep.subr.mxu0 0.0
    %3723 = vmatpush1.msra.mxu0 0.0
    %3724 = vmatprep.subr.mxu0 0.0
    %3725 = vmatpush1.msra.mxu0 0.0
    %3726 = vmatprep.subr.mxu0 0.0
    %3727 = vmatpush1.msra.mxu0 0.0
    %3728 = vmatprep.subr.mxu0 0.0
    %3729 = vmatpush1.msra.mxu0 0.0
    %3730 = vmatprep.subr.mxu0 0.0
    %3731 = vmatpush1.msra.mxu0 0.0
    %3732 = vmatprep.subr.mxu0 0.0
    %3733 = vmatpush1.msra.mxu0 0.0
    %3734 = vmatprep.subr.mxu0 0.0
    %3735 = vmatpush1.msra.mxu0 0.0
    %3736 = vmatprep.subr.mxu0 0.0
    %3737 = vmatpush1.msra.mxu0 0.0
    %3738 = vmatprep.subr.mxu0 0.0
    %3739 = vmatpush1.msra.mxu0 0.0
    %3740 = vmatprep.subr.mxu0 0.0
    %3741 = vmatpush1.msra.mxu0 0.0
    %3742 = vmatprep.subr.mxu0 0.0
    %3743 = vmatpush1.msra.mxu0 0.0
    %3744 = vmatprep.subr.mxu0 0.0
    %3745 = vmatpush1.msra.mxu0 0.0
    %3746 = vmatprep.subr.mxu0 0.0
    %3747 = vmatpush1.msra.mxu0 0.0
    %3748 = vmatprep.mubr.f32.mxu0 0.0
    %v3749 = vand.u32 %v3677, 4294901760
    %v3750 = vsub.f32 %v3677, %v3749
    %v3751 = vand.u32 %v3750, 4294901760
    %v3752 = vsub.f32 %v3750, %v3751
    %v3753 = vand.u32 %v3752, 4294901760
    %3754 = vmatmul.mubr.f32.gmra.mrb[0].mxu0 %v3753
    %v3755 = vpop.f32.mrb[0].mxu0
    %v3756 = vadd.f32 %v3669, %v3755
    %v3757 = vpop.f32.mrb[0].mxu0
    %v3758 = vadd.f32 %v3673, %v3757
    %3759 = vmatprep.mubr.f32.mxu0 0.0
    %v3760 = vand.u32 %v3680, 4294901760
    %v3761 = vsub.f32 %v3680, %v3760
    %v3762 = vand.u32 %v3761, 4294901760
    %v3763 = vsub.f32 %v3761, %v3762
    %v3764 = vand.u32 %v3763, 4294901760
    %3765 = vmatmul.mubr.f32.gmra.mrb[0].mxu0 %v3764
    %v3766 = vpop.f32.mrb[0].mxu0
    %v3767 = vadd.f32 %v3669, %v3766
    %v3768 = vpop.f32.mrb[0].mxu0
    %v3769 = vadd.f32 %v3673, %v3768
    %3770 = vdwg.mxu0
    %v3771 = vand.u32 %v3662, 4294901760
    %v3772 = vsub.f32 %v3662, %v3771
    %v3773 = vand.u32 %v3772, 4294901760
    %v3774 = vsub.f32 %v3772, %v3773
    %v3775 = vand.u32 %v3774, 4294901760
    %3776 = vmatprep.subr.mxu0 %v3775
    %v3777 = vand.u32 %v3661, 4294901760
    %v3778 = vsub.f32 %v3661, %v3777
    %v3779 = vand.u32 %v3778, 4294901760
    %v3780 = vsub.f32 %v3778, %v3779
    %v3781 = vand.u32 %v3780, 4294901760
    %3782 = vmatpush1.msra.mxu0 %v3781
    %3783 = vmatprep.subr.mxu0 0.0
    %3784 = vmatpush1.msra.mxu0 0.0
    %3785 = vmatprep.subr.mxu0 0.0
    %3786 = vmatpush1.msra.mxu0 0.0
    %3787 = vmatprep.subr.mxu0 0.0
    %3788 = vmatpush1.msra.mxu0 0.0
    %3789 = vmatprep.subr.mxu0 0.0
    %3790 = vmatpush1.msra.mxu0 0.0
    %3791 = vmatprep.subr.mxu0 0.0
    %3792 = vmatpush1.msra.mxu0 0.0
    %3793 = vmatprep.subr.mxu0 0.0
    %3794 = vmatpush1.msra.mxu0 0.0
    %3795 = vmatprep.subr.mxu0 0.0
    %3796 = vmatpush1.msra.mxu0 0.0
    %3797 = vmatprep.subr.mxu0 0.0
    %3798 = vmatpush1.msra.mxu0 0.0
    %3799 = vmatprep.subr.mxu0 0.0
    %3800 = vmatpush1.msra.mxu0 0.0
    %3801 = vmatprep.subr.mxu0 0.0
    %3802 = vmatpush1.msra.mxu0 0.0
    %3803 = vmatprep.subr.mxu0 0.0
    %3804 = vmatpush1.msra.mxu0 0.0
    %3805 = vmatprep.subr.mxu0 0.0
    %3806 = vmatpush1.msra.mxu0 0.0
    %3807 = vmatprep.subr.mxu0 0.0
    %3808 = vmatpush1.msra.mxu0 0.0
    %3809 = vmatprep.subr.mxu0 0.0
    %3810 = vmatpush1.msra.mxu0 0.0
    %3811 = vmatprep.subr.mxu0 0.0
    %3812 = vmatpush1.msra.mxu0 0.0
    %3813 = vmatprep.subr.mxu0 0.0
    %3814 = vmatpush1.msra.mxu0 0.0
    %3815 = vmatprep.subr.mxu0 0.0
    %3816 = vmatpush1.msra.mxu0 0.0
    %3817 = vmatprep.subr.mxu0 0.0
    %3818 = vmatpush1.msra.mxu0 0.0
    %3819 = vmatprep.subr.mxu0 0.0
    %3820 = vmatpush1.msra.mxu0 0.0
    %3821 = vmatprep.subr.mxu0 0.0
    %3822 = vmatpush1.msra.mxu0 0.0
    %3823 = vmatprep.subr.mxu0 0.0
    %3824 = vmatpush1.msra.mxu0 0.0
    %3825 = vmatprep.subr.mxu0 0.0
    %3826 = vmatpush1.msra.mxu0 0.0
    %3827 = vmatprep.subr.mxu0 0.0
    %3828 = vmatpush1.msra.mxu0 0.0
    %3829 = vmatprep.subr.mxu0 0.0
    %3830 = vmatpush1.msra.mxu0 0.0
    %3831 = vmatprep.subr.mxu0 0.0
    %3832 = vmatpush1.msra.mxu0 0.0
    %3833 = vmatprep.subr.mxu0 0.0
    %3834 = vmatpush1.msra.mxu0 0.0
    %3835 = vmatprep.subr.mxu0 0.0
    %3836 = vmatpush1.msra.mxu0 0.0
    %3837 = vmatprep.subr.mxu0 0.0
    %3838 = vmatpush1.msra.mxu0 0.0
    %3839 = vmatprep.subr.mxu0 0.0
    %3840 = vmatpush1.msra.mxu0 0.0
    %3841 = vmatprep.subr.mxu0 0.0
    %3842 = vmatpush1.msra.mxu0 0.0
    %3843 = vmatprep.subr.mxu0 0.0
    %3844 = vmatpush1.msra.mxu0 0.0
    %3845 = vmatprep.mubr.f32.mxu0 0.0
    %v3846 = vand.u32 %v3677, 4294901760
    %3847 = vmatmul.mubr.f32.gmra.mrb[0].mxu0 %v3846
    %v3848 = vpop.f32.mrb[0].mxu0
    %v3849 = vadd.f32 %v3756, %v3848
    %v3850 = vpop.f32.mrb[0].mxu0
    %v3851 = vadd.f32 %v3758, %v3850
    %3852 = vmatprep.mubr.f32.mxu0 0.0
    %v3853 = vand.u32 %v3680, 4294901760
    %3854 = vmatmul.mubr.f32.gmra.mrb[0].mxu0 %v3853
    %v3855 = vpop.f32.mrb[0].mxu0
    %v3856 = vadd.f32 %v3767, %v3855
    %v3857 = vpop.f32.mrb[0].mxu0
    %v3858 = vadd.f32 %v3769, %v3857
    %3859 = vdwg.mxu0
    %v3860 = vand.u32 %v3662, 4294901760
    %v3861 = vsub.f32 %v3662, %v3860
    %3862 = vmatprep.subr.mxu0 %v3861
    %v3863 = vand.u32 %v3661, 4294901760
    %v3864 = vsub.f32 %v3661, %v3863
    %3865 = vmatpush1.msra.mxu0 %v3864
    %3866 = vmatprep.subr.mxu0 0.0
    %3867 = vmatpush1.msra.mxu0 0.0
    %3868 = vmatprep.subr.mxu0 0.0
    %3869 = vmatpush1.msra.mxu0 0.0
    %3870 = vmatprep.subr.mxu0 0.0
    %3871 = vmatpush1.msra.mxu0 0.0
    %3872 = vmatprep.subr.mxu0 0.0
    %3873 = vmatpush1.msra.mxu0 0.0
    %3874 = vmatprep.subr.mxu0 0.0
    %3875 = vmatpush1.msra.mxu0 0.0
    %3876 = vmatprep.subr.mxu0 0.0
    %3877 = vmatpush1.msra.mxu0 0.0
    %3878 = vmatprep.subr.mxu0 0.0
    %3879 = vmatpush1.msra.mxu0 0.0
    %3880 = vmatprep.subr.mxu0 0.0
    %3881 = vmatpush1.msra.mxu0 0.0
    %3882 = vmatprep.subr.mxu0 0.0
    %3883 = vmatpush1.msra.mxu0 0.0
    %3884 = vmatprep.subr.mxu0 0.0
    %3885 = vmatpush1.msra.mxu0 0.0
    %3886 = vmatprep.subr.mxu0 0.0
    %3887 = vmatpush1.msra.mxu0 0.0
    %3888 = vmatprep.subr.mxu0 0.0
    %3889 = vmatpush1.msra.mxu0 0.0
    %3890 = vmatprep.subr.mxu0 0.0
    %3891 = vmatpush1.msra.mxu0 0.0
    %3892 = vmatprep.subr.mxu0 0.0
    %3893 = vmatpush1.msra.mxu0 0.0
    %3894 = vmatprep.subr.mxu0 0.0
    %3895 = vmatpush1.msra.mxu0 0.0
    %3896 = vmatprep.subr.mxu0 0.0
    %3897 = vmatpush1.msra.mxu0 0.0
    %3898 = vmatprep.subr.mxu0 0.0
    %3899 = vmatpush1.msra.mxu0 0.0
    %3900 = vmatprep.subr.mxu0 0.0
    %3901 = vmatpush1.msra.mxu0 0.0
    %3902 = vmatprep.subr.mxu0 0.0
    %3903 = vmatpush1.msra.mxu0 0.0
    %3904 = vmatprep.subr.mxu0 0.0
    %3905 = vmatpush1.msra.mxu0 0.0
    %3906 = vmatprep.subr.mxu0 0.0
    %3907 = vmatpush1.msra.mxu0 0.0
    %3908 = vmatprep.subr.mxu0 0.0
    %3909 = vmatpush1.msra.mxu0 0.0
    %3910 = vmatprep.subr.mxu0 0.0
    %3911 = vmatpush1.msra.mxu0 0.0
    %3912 = vmatprep.subr.mxu0 0.0
    %3913 = vmatpush1.msra.mxu0 0.0
    %3914 = vmatprep.subr.mxu0 0.0
    %3915 = vmatpush1.msra.mxu0 0.0
    %3916 = vmatprep.subr.mxu0 0.0
    %3917 = vmatpush1.msra.mxu0 0.0
    %3918 = vmatprep.subr.mxu0 0.0
    %3919 = vmatpush1.msra.mxu0 0.0
    %3920 = vmatprep.subr.mxu0 0.0
    %3921 = vmatpush1.msra.mxu0 0.0
    %3922 = vmatprep.subr.mxu0 0.0
    %3923 = vmatpush1.msra.mxu0 0.0
    %3924 = vmatprep.subr.mxu0 0.0
    %3925 = vmatpush1.msra.mxu0 0.0
    %3926 = vmatprep.subr.mxu0 0.0
    %3927 = vmatpush1.msra.mxu0 0.0
    %3928 = vmatprep.mubr.f32.mxu0 0.0
    %v3929 = vand.u32 %v3677, 4294901760
    %v3930 = vsub.f32 %v3677, %v3929
    %3931 = vmatmul.mubr.f32.gmra.mrb[0].mxu0 %v3930
    %v3932 = vpop.f32.mrb[0].mxu0
    %v3933 = vadd.f32 %v3849, %v3932
    %v3934 = vpop.f32.mrb[0].mxu0
    %v3935 = vadd.f32 %v3851, %v3934
    %3936 = vmatprep.mubr.f32.mxu0 0.0
    %v3937 = vand.u32 %v3680, 4294901760
    %v3938 = vsub.f32 %v3680, %v3937
    %3939 = vmatmul.mubr.f32.gmra.mrb[0].mxu0 %v3938
    %v3940 = vpop.f32.mrb[0].mxu0
    %v3941 = vadd.f32 %v3856, %v3940
    %v3942 = vpop.f32.mrb[0].mxu0
    %v3943 = vadd.f32 %v3858, %v3942
    %3944 = vdwg.mxu0
    %v3945 = vand.u32 %v3662, 4294901760
    %3946 = vmatprep.subr.mxu0 %v3945
    %v3947 = vand.u32 %v3661, 4294901760
    %3948 = vmatpush1.msra.mxu0 %v3947
    %3949 = vmatprep.subr.mxu0 0.0
    %3950 = vmatpush1.msra.mxu0 0.0
    %3951 = vmatprep.subr.mxu0 0.0
    %3952 = vmatpush1.msra.mxu0 0.0
    %3953 = vmatprep.subr.mxu0 0.0
    %3954 = vmatpush1.msra.mxu0 0.0
    %3955 = vmatprep.subr.mxu0 0.0
    %3956 = vmatpush1.msra.mxu0 0.0
    %3957 = vmatprep.subr.mxu0 0.0
    %3958 = vmatpush1.msra.mxu0 0.0
    %3959 = vmatprep.subr.mxu0 0.0
    %3960 = vmatpush1.msra.mxu0 0.0
    %3961 = vmatprep.subr.mxu0 0.0
    %3962 = vmatpush1.msra.mxu0 0.0
    %3963 = vmatprep.subr.mxu0 0.0
    %3964 = vmatpush1.msra.mxu0 0.0
    %3965 = vmatprep.subr.mxu0 0.0
    %3966 = vmatpush1.msra.mxu0 0.0
    %3967 = vmatprep.subr.mxu0 0.0
    %3968 = vmatpush1.msra.mxu0 0.0
    %3969 = vmatprep.subr.mxu0 0.0
    %3970 = vmatpush1.msra.mxu0 0.0
    %3971 = vmatprep.subr.mxu0 0.0
    %3972 = vmatpush1.msra.mxu0 0.0
    %3973 = vmatprep.subr.mxu0 0.0
    %3974 = vmatpush1.msra.mxu0 0.0
    %3975 = vmatprep.subr.mxu0 0.0
    %3976 = vmatpush1.msra.mxu0 0.0
    %3977 = vmatprep.subr.mxu0 0.0
    %3978 = vmatpush1.msra.mxu0 0.0
    %3979 = vmatprep.subr.mxu0 0.0
    %3980 = vmatpush1.msra.mxu0 0.0
    %3981 = vmatprep.subr.mxu0 0.0
    %3982 = vmatpush1.msra.mxu0 0.0
    %3983 = vmatprep.subr.mxu0 0.0
    %3984 = vmatpush1.msra.mxu0 0.0
    %3985 = vmatprep.subr.mxu0 0.0
    %3986 = vmatpush1.msra.mxu0 0.0
    %3987 = vmatprep.subr.mxu0 0.0
    %3988 = vmatpush1.msra.mxu0 0.0
    %3989 = vmatprep.subr.mxu0 0.0
    %3990 = vmatpush1.msra.mxu0 0.0
    %3991 = vmatprep.subr.mxu0 0.0
    %3992 = vmatpush1.msra.mxu0 0.0
    %3993 = vmatprep.subr.mxu0 0.0
    %3994 = vmatpush1.msra.mxu0 0.0
    %3995 = vmatprep.subr.mxu0 0.0
    %3996 = vmatpush1.msra.mxu0 0.0
    %3997 = vmatprep.subr.mxu0 0.0
    %3998 = vmatpush1.msra.mxu0 0.0
    %3999 = vmatprep.subr.mxu0 0.0
    %4000 = vmatpush1.msra.mxu0 0.0
    %4001 = vmatprep.subr.mxu0 0.0
    %4002 = vmatpush1.msra.mxu0 0.0
    %4003 = vmatprep.subr.mxu0 0.0
    %4004 = vmatpush1.msra.mxu0 0.0
    %4005 = vmatprep.subr.mxu0 0.0
    %4006 = vmatpush1.msra.mxu0 0.0
    %4007 = vmatprep.subr.mxu0 0.0
    %4008 = vmatpush1.msra.mxu0 0.0
    %4009 = vmatprep.subr.mxu0 0.0
    %4010 = vmatpush1.msra.mxu0 0.0
    %4011 = vmatprep.mubr.f32.mxu0 0.0
    %v4012 = vand.u32 %v3677, 4294901760
    %v4013 = vsub.f32 %v3677, %v4012
    %v4014 = vand.u32 %v4013, 4294901760
    %4015 = vmatmul.mubr.f32.gmra.mrb[0].mxu0 %v4014
    %v4016 = vpop.f32.mrb[0].mxu0
    %v4017 = vadd.f32 %v3933, %v4016
    %v4018 = vpop.f32.mrb[0].mxu0
    %v4019 = vadd.f32 %v3935, %v4018
    %4020 = vmatprep.mubr.f32.mxu0 0.0
    %v4021 = vand.u32 %v3680, 4294901760
    %v4022 = vsub.f32 %v3680, %v4021
    %v4023 = vand.u32 %v4022, 4294901760
    %4024 = vmatmul.mubr.f32.gmra.mrb[0].mxu0 %v4023
    %v4025 = vpop.f32.mrb[0].mxu0
    %v4026 = vadd.f32 %v3941, %v4025
    %v4027 = vpop.f32.mrb[0].mxu0
    %v4028 = vadd.f32 %v3943, %v4027
    %4029 = vdwg.mxu0
    %v4030 = vand.u32 %v3662, 4294901760
    %v4031 = vsub.f32 %v3662, %v4030
    %v4032 = vand.u32 %v4031, 4294901760
    %4033 = vmatprep.subr.mxu0 %v4032
    %v4034 = vand.u32 %v3661, 4294901760
    %v4035 = vsub.f32 %v3661, %v4034
    %v4036 = vand.u32 %v4035, 4294901760
    %4037 = vmatpush1.msra.mxu0 %v4036
    %4038 = vmatprep.subr.mxu0 0.0
    %4039 = vmatpush1.msra.mxu0 0.0
    %4040 = vmatprep.subr.mxu0 0.0
    %4041 = vmatpush1.msra.mxu0 0.0
    %4042 = vmatprep.subr.mxu0 0.0
    %4043 = vmatpush1.msra.mxu0 0.0
    %4044 = vmatprep.subr.mxu0 0.0
    %4045 = vmatpush1.msra.mxu0 0.0
    %4046 = vmatprep.subr.mxu0 0.0
    %4047 = vmatpush1.msra.mxu0 0.0
    %4048 = vmatprep.subr.mxu0 0.0
    %4049 = vmatpush1.msra.mxu0 0.0
    %4050 = vmatprep.subr.mxu0 0.0
    %4051 = vmatpush1.msra.mxu0 0.0
    %4052 = vmatprep.subr.mxu0 0.0
    %4053 = vmatpush1.msra.mxu0 0.0
    %4054 = vmatprep.subr.mxu0 0.0
    %4055 = vmatpush1.msra.mxu0 0.0
    %4056 = vmatprep.subr.mxu0 0.0
    %4057 = vmatpush1.msra.mxu0 0.0
    %4058 = vmatprep.subr.mxu0 0.0
    %4059 = vmatpush1.msra.mxu0 0.0
    %4060 = vmatprep.subr.mxu0 0.0
    %4061 = vmatpush1.msra.mxu0 0.0
    %4062 = vmatprep.subr.mxu0 0.0
    %4063 = vmatpush1.msra.mxu0 0.0
    %4064 = vmatprep.subr.mxu0 0.0
    %4065 = vmatpush1.msra.mxu0 0.0
    %4066 = vmatprep.subr.mxu0 0.0
    %4067 = vmatpush1.msra.mxu0 0.0
    %4068 = vmatprep.subr.mxu0 0.0
    %4069 = vmatpush1.msra.mxu0 0.0
    %4070 = vmatprep.subr.mxu0 0.0
    %4071 = vmatpush1.msra.mxu0 0.0
    %4072 = vmatprep.subr.mxu0 0.0
    %4073 = vmatpush1.msra.mxu0 0.0
    %4074 = vmatprep.subr.mxu0 0.0
    %4075 = vmatpush1.msra.mxu0 0.0
    %4076 = vmatprep.subr.mxu0 0.0
    %4077 = vmatpush1.msra.mxu0 0.0
    %4078 = vmatprep.subr.mxu0 0.0
    %4079 = vmatpush1.msra.mxu0 0.0
    %4080 = vmatprep.subr.mxu0 0.0
    %4081 = vmatpush1.msra.mxu0 0.0
    %4082 = vmatprep.subr.mxu0 0.0
    %4083 = vmatpush1.msra.mxu0 0.0
    %4084 = vmatprep.subr.mxu0 0.0
    %4085 = vmatpush1.msra.mxu0 0.0
    %4086 = vmatprep.subr.mxu0 0.0
    %4087 = vmatpush1.msra.mxu0 0.0
    %4088 = vmatprep.subr.mxu0 0.0
    %4089 = vmatpush1.msra.mxu0 0.0
    %4090 = vmatprep.subr.mxu0 0.0
    %4091 = vmatpush1.msra.mxu0 0.0
    %4092 = vmatprep.subr.mxu0 0.0
    %4093 = vmatpush1.msra.mxu0 0.0
    %4094 = vmatprep.subr.mxu0 0.0
    %4095 = vmatpush1.msra.mxu0 0.0
    %4096 = vmatprep.subr.mxu0 0.0
    %4097 = vmatpush1.msra.mxu0 0.0
    %4098 = vmatprep.subr.mxu0 0.0
    %4099 = vmatpush1.msra.mxu0 0.0
    %4100 = vmatprep.mubr.f32.mxu0 0.0
    %v4101 = vand.u32 %v3677, 4294901760
    %4102 = vmatmul.mubr.f32.gmra.mrb[0].mxu0 %v4101
    %v4103 = vpop.f32.mrb[0].mxu0
    %v4104 = vadd.f32 %v4017, %v4103
    %v4105 = vpop.f32.mrb[0].mxu0
    %v4106 = vadd.f32 %v4019, %v4105
    %4107 = vmatprep.mubr.f32.mxu0 0.0
    %v4108 = vand.u32 %v3680, 4294901760
    %4109 = vmatmul.mubr.f32.gmra.mrb[0].mxu0 %v4108
    %v4110 = vpop.f32.mrb[0].mxu0
    %v4111 = vadd.f32 %v4026, %v4110
    %v4112 = vpop.f32.mrb[0].mxu0
    %v4113 = vadd.f32 %v4028, %v4112
    %4114 = vdwg.mxu0
    %v4115 = vand.u32 %v3662, 4294901760
    %4116 = vmatprep.subr.mxu0 %v4115
    %v4117 = vand.u32 %v3661, 4294901760
    %4118 = vmatpush1.msra.mxu0 %v4117
    %4119 = vmatprep.subr.mxu0 0.0
    %4120 = vmatpush1.msra.mxu0 0.0
    %4121 = vmatprep.subr.mxu0 0.0
    %4122 = vmatpush1.msra.mxu0 0.0
    %4123 = vmatprep.subr.mxu0 0.0
    %4124 = vmatpush1.msra.mxu0 0.0
    %4125 = vmatprep.subr.mxu0 0.0
    %4126 = vmatpush1.msra.mxu0 0.0
    %4127 = vmatprep.subr.mxu0 0.0
    %4128 = vmatpush1.msra.mxu0 0.0
    %4129 = vmatprep.subr.mxu0 0.0
    %4130 = vmatpush1.msra.mxu0 0.0
    %4131 = vmatprep.subr.mxu0 0.0
    %4132 = vmatpush1.msra.mxu0 0.0
    %4133 = vmatprep.subr.mxu0 0.0
    %4134 = vmatpush1.msra.mxu0 0.0
    %4135 = vmatprep.subr.mxu0 0.0
    %4136 = vmatpush1.msra.mxu0 0.0
    %4137 = vmatprep.subr.mxu0 0.0
    %4138 = vmatpush1.msra.mxu0 0.0
    %4139 = vmatprep.subr.mxu0 0.0
    %4140 = vmatpush1.msra.mxu0 0.0
    %4141 = vmatprep.subr.mxu0 0.0
    %4142 = vmatpush1.msra.mxu0 0.0
    %4143 = vmatprep.subr.mxu0 0.0
    %4144 = vmatpush1.msra.mxu0 0.0
    %4145 = vmatprep.subr.mxu0 0.0
    %4146 = vmatpush1.msra.mxu0 0.0
    %4147 = vmatprep.subr.mxu0 0.0
    %4148 = vmatpush1.msra.mxu0 0.0
    %4149 = vmatprep.subr.mxu0 0.0
    %4150 = vmatpush1.msra.mxu0 0.0
    %4151 = vmatprep.subr.mxu0 0.0
    %4152 = vmatpush1.msra.mxu0 0.0
    %4153 = vmatprep.subr.mxu0 0.0
    %4154 = vmatpush1.msra.mxu0 0.0
    %4155 = vmatprep.subr.mxu0 0.0
    %4156 = vmatpush1.msra.mxu0 0.0
    %4157 = vmatprep.subr.mxu0 0.0
    %4158 = vmatpush1.msra.mxu0 0.0
    %4159 = vmatprep.subr.mxu0 0.0
    %4160 = vmatpush1.msra.mxu0 0.0
    %4161 = vmatprep.subr.mxu0 0.0
    %4162 = vmatpush1.msra.mxu0 0.0
    %4163 = vmatprep.subr.mxu0 0.0
    %4164 = vmatpush1.msra.mxu0 0.0
    %4165 = vmatprep.subr.mxu0 0.0
    %4166 = vmatpush1.msra.mxu0 0.0
    %4167 = vmatprep.subr.mxu0 0.0
    %4168 = vmatpush1.msra.mxu0 0.0
    %4169 = vmatprep.subr.mxu0 0.0
    %4170 = vmatpush1.msra.mxu0 0.0
    %4171 = vmatprep.subr.mxu0 0.0
    %4172 = vmatpush1.msra.mxu0 0.0
    %4173 = vmatprep.subr.mxu0 0.0
    %4174 = vmatpush1.msra.mxu0 0.0
    %4175 = vmatprep.subr.mxu0 0.0
    %4176 = vmatpush1.msra.mxu0 0.0
    %4177 = vmatprep.subr.mxu0 0.0
    %4178 = vmatpush1.msra.mxu0 0.0
    %4179 = vmatprep.subr.mxu0 0.0
    %4180 = vmatpush1.msra.mxu0 0.0
    %4181 = vmatprep.mubr.f32.mxu0 0.0
    %v4182 = vand.u32 %v3677, 4294901760
    %4183 = vmatmul.mubr.f32.gmra.mrb[0].mxu0 %v4182
    %v4184 = vpop.f32.mrb[0].mxu0
    %v4185 = vadd.f32 %v4104, %v4184
    %v4186 = vpop.f32.mrb[0].mxu0
    %v4187 = vadd.f32 %v4106, %v4186
    %4188 = vmatprep.mubr.f32.mxu0 0.0
    %v4189 = vand.u32 %v3680, 4294901760
    %4190 = vmatmul.mubr.f32.gmra.mrb[0].mxu0 %v4189
    %v4191 = vpop.f32.mrb[0].mxu0
    %v4192 = vadd.f32 %v4111, %v4191
    %v4193 = vpop.f32.mrb[0].mxu0
    %v4194 = vadd.f32 %v4113, %v4193
    %4195 = vdwg.mxu0
    %v4196 = vmax.f32 %v4185, 0.0
    %v4197 = vmax.f32 %v4187, 0.0
    %v4198 = vmax.f32 %v4192, 0.0
    %v4199 = vmax.f32 %v4194, 0.0
    %v4200 = vld [vmem:[#allocation2] sm:$0xff]
    %v4201 = vld [vmem:[#allocation2 + $0x8] sm:$0xff]
    %v4202 = vld [vmem:[#allocation2 + $0x10] sm:$0xff]
    %v4203 = vld [vmem:[#allocation2 + $0x18] sm:$0xff]
    %v4204 = vld [vmem:[#allocation2 + $0x20] sm:$0xff]
    %v4205 = vld [vmem:[#allocation2 + $0x28] sm:$0xff]
    %v4206 = vld [vmem:[#allocation2 + $0x30] sm:$0xff]
    %v4207 = vld [vmem:[#allocation2 + $0x38] sm:$0xff]
    %v4208 = vld [vmem:[#allocation2 + $0x40] sm:$0xff]
    %v4209 = vld [vmem:[#allocation2 + $0x48] sm:$0xff]
    %v4210 = vld [vmem:[#allocation2 + $0x50] sm:$0xff]
    %v4211 = vld [vmem:[#allocation2 + $0x58] sm:$0xff]
    %v4212 = vld [vmem:[#allocation2 + $0x60] sm:$0xff]
    %v4213 = vld [vmem:[#allocation2 + $0x68] sm:$0xff]
    %v4214 = vld [vmem:[#allocation2 + $0x70] sm:$0xff]
    %v4215 = vld [vmem:[#allocation2 + $0x78] sm:$0xff]
    %v4216 = vld [vmem:[#allocation2 + $0x80] sm:$0xff]
    %v4217 = vld [vmem:[#allocation2 + $0x88] sm:$0xff]
    %v4218 = vld [vmem:[#allocation2 + $0x90] sm:$0xff]
    %v4219 = vld [vmem:[#allocation2 + $0x98] sm:$0xff]
    %v4220 = vld [vmem:[#allocation2 + $0xa0] sm:$0xff]
    %v4221 = vld [vmem:[#allocation2 + $0xa8] sm:$0xff]
    %v4222 = vld [vmem:[#allocation2 + $0xb0] sm:$0xff]
    %v4223 = vld [vmem:[#allocation2 + $0xb8] sm:$0xff]
    %v4224 = vld [vmem:[#allocation2 + $0xc0] sm:$0xff]
    %v4225 = vld [vmem:[#allocation2 + $0xc8] sm:$0xff]
    %v4226 = vld [vmem:[#allocation2 + $0xd0] sm:$0xff]
    %v4227 = vld [vmem:[#allocation2 + $0xd8] sm:$0xff]
    %v4228 = vld [vmem:[#allocation2 + $0xe0] sm:$0xff]
    %v4229 = vld [vmem:[#allocation2 + $0xe8] sm:$0xff]
    %v4230 = vld [vmem:[#allocation2 + $0xf0] sm:$0xff]
    %v4231 = vld [vmem:[#allocation2 + $0xf8] sm:$0xff]
    %v4232 = vld [vmem:[%s2 + $0x81] ss:$0 sm:$0xff]
    %4233 = vmatprep.subr.mxu0 0.0
    %v4234 = vand.u32 %v4200, 4294901760
    %4235 = vmatpush1.msra.mxu0 %v4234
    %4236 = vmatprep.subr.mxu0 0.0
    %v4237 = vand.u32 %v4201, 4294901760
    %4238 = vmatpush1.msra.mxu0 %v4237
    %4239 = vmatprep.subr.mxu0 0.0
    %v4240 = vand.u32 %v4202, 4294901760
    %4241 = vmatpush1.msra.mxu0 %v4240
    %4242 = vmatprep.subr.mxu0 0.0
    %v4243 = vand.u32 %v4203, 4294901760
    %4244 = vmatpush1.msra.mxu0 %v4243
    %4245 = vmatprep.subr.mxu0 0.0
    %v4246 = vand.u32 %v4204, 4294901760
    %4247 = vmatpush1.msra.mxu0 %v4246
    %4248 = vmatprep.subr.mxu0 0.0
    %v4249 = vand.u32 %v4205, 4294901760
    %4250 = vmatpush1.msra.mxu0 %v4249
    %4251 = vmatprep.subr.mxu0 0.0
    %v4252 = vand.u32 %v4206, 4294901760
    %4253 = vmatpush1.msra.mxu0 %v4252
    %4254 = vmatprep.subr.mxu0 0.0
    %v4255 = vand.u32 %v4207, 4294901760
    %4256 = vmatpush1.msra.mxu0 %v4255
    %4257 = vmatprep.subr.mxu0 0.0
    %v4258 = vand.u32 %v4208, 4294901760
    %4259 = vmatpush1.msra.mxu0 %v4258
    %4260 = vmatprep.subr.mxu0 0.0
    %v4261 = vand.u32 %v4209, 4294901760
    %4262 = vmatpush1.msra.mxu0 %v4261
    %4263 = vmatprep.subr.mxu0 0.0
    %v4264 = vand.u32 %v4210, 4294901760
    %4265 = vmatpush1.msra.mxu0 %v4264
    %4266 = vmatprep.subr.mxu0 0.0
    %v4267 = vand.u32 %v4211, 4294901760
    %4268 = vmatpush1.msra.mxu0 %v4267
    %4269 = vmatprep.subr.mxu0 0.0
    %v4270 = vand.u32 %v4212, 4294901760
    %4271 = vmatpush1.msra.mxu0 %v4270
    %4272 = vmatprep.subr.mxu0 0.0
    %v4273 = vand.u32 %v4213, 4294901760
    %4274 = vmatpush1.msra.mxu0 %v4273
    %4275 = vmatprep.subr.mxu0 0.0
    %v4276 = vand.u32 %v4214, 4294901760
    %4277 = vmatpush1.msra.mxu0 %v4276
    %4278 = vmatprep.subr.mxu0 0.0
    %v4279 = vand.u32 %v4215, 4294901760
    %4280 = vmatpush1.msra.mxu0 %v4279
    %4281 = vmatprep.subr.mxu0 0.0
    %v4282 = vand.u32 %v4216, 4294901760
    %4283 = vmatpush1.msra.mxu0 %v4282
    %4284 = vmatprep.subr.mxu0 0.0
    %v4285 = vand.u32 %v4217, 4294901760
    %4286 = vmatpush1.msra.mxu0 %v4285
    %4287 = vmatprep.subr.mxu0 0.0
    %v4288 = vand.u32 %v4218, 4294901760
    %4289 = vmatpush1.msra.mxu0 %v4288
    %4290 = vmatprep.subr.mxu0 0.0
    %v4291 = vand.u32 %v4219, 4294901760
    %4292 = vmatpush1.msra.mxu0 %v4291
    %4293 = vmatprep.subr.mxu0 0.0
    %v4294 = vand.u32 %v4220, 4294901760
    %4295 = vmatpush1.msra.mxu0 %v4294
    %4296 = vmatprep.subr.mxu0 0.0
    %v4297 = vand.u32 %v4221, 4294901760
    %4298 = vmatpush1.msra.mxu0 %v4297
    %4299 = vmatprep.subr.mxu0 0.0
    %v4300 = vand.u32 %v4222, 4294901760
    %4301 = vmatpush1.msra.mxu0 %v4300
    %4302 = vmatprep.subr.mxu0 0.0
    %v4303 = vand.u32 %v4223, 4294901760
    %4304 = vmatpush1.msra.mxu0 %v4303
    %4305 = vmatprep.subr.mxu0 0.0
    %v4306 = vand.u32 %v4224, 4294901760
    %4307 = vmatpush1.msra.mxu0 %v4306
    %4308 = vmatprep.subr.mxu0 0.0
    %v4309 = vand.u32 %v4225, 4294901760
    %4310 = vmatpush1.msra.mxu0 %v4309
    %4311 = vmatprep.subr.mxu0 0.0
    %v4312 = vand.u32 %v4226, 4294901760
    %4313 = vmatpush1.msra.mxu0 %v4312
    %4314 = vmatprep.subr.mxu0 0.0
    %v4315 = vand.u32 %v4227, 4294901760
    %4316 = vmatpush1.msra.mxu0 %v4315
    %4317 = vmatprep.subr.mxu0 0.0
    %v4318 = vand.u32 %v4228, 4294901760
    %4319 = vmatpush1.msra.mxu0 %v4318
    %4320 = vmatprep.subr.mxu0 0.0
    %v4321 = vand.u32 %v4229, 4294901760
    %4322 = vmatpush1.msra.mxu0 %v4321
    %4323 = vmatprep.subr.mxu0 0.0
    %v4324 = vand.u32 %v4230, 4294901760
    %4325 = vmatpush1.msra.mxu0 %v4324
    %4326 = vmatprep.subr.mxu0 0.0
    %v4327 = vand.u32 %v4231, 4294901760
    %4328 = vmatpush1.msra.mxu0 %v4327
    %v4329 = vand.u32 %v4197, 4294901760
    %v4330 = vsub.f32 %v4197, %v4329
    %v4331 = vand.u32 %v4330, 4294901760
    %v4332 = vsub.f32 %v4330, %v4331
    %v4333 = vand.u32 %v4332, 4294901760
    %4334 = vmatprep.mubr.f32.mxu0 %v4333
    %v4335 = vand.u32 %v4196, 4294901760
    %v4336 = vsub.f32 %v4196, %v4335
    %v4337 = vand.u32 %v4336, 4294901760
    %v4338 = vsub.f32 %v4336, %v4337
    %v4339 = vand.u32 %v4338, 4294901760
    %4340 = vmatmul.mubr.f32.gmra.mrb[0].mxu0 %v4339
    %v4341 = vpop.f32.mrb[0].mxu0
    %v4342 = vadd.f32 %v4232, %v4341
    %v4343 = vpop.f32.mrb[0].mxu0
    %v4344 = vand.u32 %v4199, 4294901760
    %v4345 = vsub.f32 %v4199, %v4344
    %v4346 = vand.u32 %v4345, 4294901760
    %v4347 = vsub.f32 %v4345, %v4346
    %v4348 = vand.u32 %v4347, 4294901760
    %4349 = vmatprep.mubr.f32.mxu0 %v4348
    %v4350 = vand.u32 %v4198, 4294901760
    %v4351 = vsub.f32 %v4198, %v4350
    %v4352 = vand.u32 %v4351, 4294901760
    %v4353 = vsub.f32 %v4351, %v4352
    %v4354 = vand.u32 %v4353, 4294901760
    %4355 = vmatmul.mubr.f32.gmra.mrb[0].mxu0 %v4354
    %v4356 = vpop.f32.mrb[0].mxu0
    %v4357 = vadd.f32 %v4232, %v4356
    %v4358 = vpop.f32.mrb[0].mxu0
    %4359 = vdwg.mxu0
    %4360 = vmatprep.subr.mxu0 0.0
    %v4361 = vand.u32 %v4200, 4294901760
    %v4362 = vsub.f32 %v4200, %v4361
    %v4363 = vand.u32 %v4362, 4294901760
    %v4364 = vsub.f32 %v4362, %v4363
    %v4365 = vand.u32 %v4364, 4294901760
    %4366 = vmatpush1.msra.mxu0 %v4365
    %4367 = vmatprep.subr.mxu0 0.0
    %v4368 = vand.u32 %v4201, 4294901760
    %v4369 = vsub.f32 %v4201, %v4368
    %v4370 = vand.u32 %v4369, 4294901760
    %v4371 = vsub.f32 %v4369, %v4370
    %v4372 = vand.u32 %v4371, 4294901760
    %4373 = vmatpush1.msra.mxu0 %v4372
    %4374 = vmatprep.subr.mxu0 0.0
    %v4375 = vand.u32 %v4202, 4294901760
    %v4376 = vsub.f32 %v4202, %v4375
    %v4377 = vand.u32 %v4376, 4294901760
    %v4378 = vsub.f32 %v4376, %v4377
    %v4379 = vand.u32 %v4378, 4294901760
    %4380 = vmatpush1.msra.mxu0 %v4379
    %4381 = vmatprep.subr.mxu0 0.0
    %v4382 = vand.u32 %v4203, 4294901760
    %v4383 = vsub.f32 %v4203, %v4382
    %v4384 = vand.u32 %v4383, 4294901760
    %v4385 = vsub.f32 %v4383, %v4384
    %v4386 = vand.u32 %v4385, 4294901760
    %4387 = vmatpush1.msra.mxu0 %v4386
    %4388 = vmatprep.subr.mxu0 0.0
    %v4389 = vand.u32 %v4204, 4294901760
    %v4390 = vsub.f32 %v4204, %v4389
    %v4391 = vand.u32 %v4390, 4294901760
    %v4392 = vsub.f32 %v4390, %v4391
    %v4393 = vand.u32 %v4392, 4294901760
    %4394 = vmatpush1.msra.mxu0 %v4393
    %4395 = vmatprep.subr.mxu0 0.0
    %v4396 = vand.u32 %v4205, 4294901760
    %v4397 = vsub.f32 %v4205, %v4396
    %v4398 = vand.u32 %v4397, 4294901760
    %v4399 = vsub.f32 %v4397, %v4398
    %v4400 = vand.u32 %v4399, 4294901760
    %4401 = vmatpush1.msra.mxu0 %v4400
    %4402 = vmatprep.subr.mxu0 0.0
    %v4403 = vand.u32 %v4206, 4294901760
    %v4404 = vsub.f32 %v4206, %v4403
    %v4405 = vand.u32 %v4404, 4294901760
    %v4406 = vsub.f32 %v4404, %v4405
    %v4407 = vand.u32 %v4406, 4294901760
    %4408 = vmatpush1.msra.mxu0 %v4407
    %4409 = vmatprep.subr.mxu0 0.0
    %v4410 = vand.u32 %v4207, 4294901760
    %v4411 = vsub.f32 %v4207, %v4410
    %v4412 = vand.u32 %v4411, 4294901760
    %v4413 = vsub.f32 %v4411, %v4412
    %v4414 = vand.u32 %v4413, 4294901760
    %4415 = vmatpush1.msra.mxu0 %v4414
    %4416 = vmatprep.subr.mxu0 0.0
    %v4417 = vand.u32 %v4208, 4294901760
    %v4418 = vsub.f32 %v4208, %v4417
    %v4419 = vand.u32 %v4418, 4294901760
    %v4420 = vsub.f32 %v4418, %v4419
    %v4421 = vand.u32 %v4420, 4294901760
    %4422 = vmatpush1.msra.mxu0 %v4421
    %4423 = vmatprep.subr.mxu0 0.0
    %v4424 = vand.u32 %v4209, 4294901760
    %v4425 = vsub.f32 %v4209, %v4424
    %v4426 = vand.u32 %v4425, 4294901760
    %v4427 = vsub.f32 %v4425, %v4426
    %v4428 = vand.u32 %v4427, 4294901760
    %4429 = vmatpush1.msra.mxu0 %v4428
    %4430 = vmatprep.subr.mxu0 0.0
    %v4431 = vand.u32 %v4210, 4294901760
    %v4432 = vsub.f32 %v4210, %v4431
    %v4433 = vand.u32 %v4432, 4294901760
    %v4434 = vsub.f32 %v4432, %v4433
    %v4435 = vand.u32 %v4434, 4294901760
    %4436 = vmatpush1.msra.mxu0 %v4435
    %4437 = vmatprep.subr.mxu0 0.0
    %v4438 = vand.u32 %v4211, 4294901760
    %v4439 = vsub.f32 %v4211, %v4438
    %v4440 = vand.u32 %v4439, 4294901760
    %v4441 = vsub.f32 %v4439, %v4440
    %v4442 = vand.u32 %v4441, 4294901760
    %4443 = vmatpush1.msra.mxu0 %v4442
    %4444 = vmatprep.subr.mxu0 0.0
    %v4445 = vand.u32 %v4212, 4294901760
    %v4446 = vsub.f32 %v4212, %v4445
    %v4447 = vand.u32 %v4446, 4294901760
    %v4448 = vsub.f32 %v4446, %v4447
    %v4449 = vand.u32 %v4448, 4294901760
    %4450 = vmatpush1.msra.mxu0 %v4449
    %4451 = vmatprep.subr.mxu0 0.0
    %v4452 = vand.u32 %v4213, 4294901760
    %v4453 = vsub.f32 %v4213, %v4452
    %v4454 = vand.u32 %v4453, 4294901760
    %v4455 = vsub.f32 %v4453, %v4454
    %v4456 = vand.u32 %v4455, 4294901760
    %4457 = vmatpush1.msra.mxu0 %v4456
    %4458 = vmatprep.subr.mxu0 0.0
    %v4459 = vand.u32 %v4214, 4294901760
    %v4460 = vsub.f32 %v4214, %v4459
    %v4461 = vand.u32 %v4460, 4294901760
    %v4462 = vsub.f32 %v4460, %v4461
    %v4463 = vand.u32 %v4462, 4294901760
    %4464 = vmatpush1.msra.mxu0 %v4463
    %4465 = vmatprep.subr.mxu0 0.0
    %v4466 = vand.u32 %v4215, 4294901760
    %v4467 = vsub.f32 %v4215, %v4466
    %v4468 = vand.u32 %v4467, 4294901760
    %v4469 = vsub.f32 %v4467, %v4468
    %v4470 = vand.u32 %v4469, 4294901760
    %4471 = vmatpush1.msra.mxu0 %v4470
    %4472 = vmatprep.subr.mxu0 0.0
    %v4473 = vand.u32 %v4216, 4294901760
    %v4474 = vsub.f32 %v4216, %v4473
    %v4475 = vand.u32 %v4474, 4294901760
    %v4476 = vsub.f32 %v4474, %v4475
    %v4477 = vand.u32 %v4476, 4294901760
    %4478 = vmatpush1.msra.mxu0 %v4477
    %4479 = vmatprep.subr.mxu0 0.0
    %v4480 = vand.u32 %v4217, 4294901760
    %v4481 = vsub.f32 %v4217, %v4480
    %v4482 = vand.u32 %v4481, 4294901760
    %v4483 = vsub.f32 %v4481, %v4482
    %v4484 = vand.u32 %v4483, 4294901760
    %4485 = vmatpush1.msra.mxu0 %v4484
    %4486 = vmatprep.subr.mxu0 0.0
    %v4487 = vand.u32 %v4218, 4294901760
    %v4488 = vsub.f32 %v4218, %v4487
    %v4489 = vand.u32 %v4488, 4294901760
    %v4490 = vsub.f32 %v4488, %v4489
    %v4491 = vand.u32 %v4490, 4294901760
    %4492 = vmatpush1.msra.mxu0 %v4491
    %4493 = vmatprep.subr.mxu0 0.0
    %v4494 = vand.u32 %v4219, 4294901760
    %v4495 = vsub.f32 %v4219, %v4494
    %v4496 = vand.u32 %v4495, 4294901760
    %v4497 = vsub.f32 %v4495, %v4496
    %v4498 = vand.u32 %v4497, 4294901760
    %4499 = vmatpush1.msra.mxu0 %v4498
    %4500 = vmatprep.subr.mxu0 0.0
    %v4501 = vand.u32 %v4220, 4294901760
    %v4502 = vsub.f32 %v4220, %v4501
    %v4503 = vand.u32 %v4502, 4294901760
    %v4504 = vsub.f32 %v4502, %v4503
    %v4505 = vand.u32 %v4504, 4294901760
    %4506 = vmatpush1.msra.mxu0 %v4505
    %4507 = vmatprep.subr.mxu0 0.0
    %v4508 = vand.u32 %v4221, 4294901760
    %v4509 = vsub.f32 %v4221, %v4508
    %v4510 = vand.u32 %v4509, 4294901760
    %v4511 = vsub.f32 %v4509, %v4510
    %v4512 = vand.u32 %v4511, 4294901760
    %4513 = vmatpush1.msra.mxu0 %v4512
    %4514 = vmatprep.subr.mxu0 0.0
    %v4515 = vand.u32 %v4222, 4294901760
    %v4516 = vsub.f32 %v4222, %v4515
    %v4517 = vand.u32 %v4516, 4294901760
    %v4518 = vsub.f32 %v4516, %v4517
    %v4519 = vand.u32 %v4518, 4294901760
    %4520 = vmatpush1.msra.mxu0 %v4519
    %4521 = vmatprep.subr.mxu0 0.0
    %v4522 = vand.u32 %v4223, 4294901760
    %v4523 = vsub.f32 %v4223, %v4522
    %v4524 = vand.u32 %v4523, 4294901760
    %v4525 = vsub.f32 %v4523, %v4524
    %v4526 = vand.u32 %v4525, 4294901760
    %4527 = vmatpush1.msra.mxu0 %v4526
    %4528 = vmatprep.subr.mxu0 0.0
    %v4529 = vand.u32 %v4224, 4294901760
    %v4530 = vsub.f32 %v4224, %v4529
    %v4531 = vand.u32 %v4530, 4294901760
    %v4532 = vsub.f32 %v4530, %v4531
    %v4533 = vand.u32 %v4532, 4294901760
    %4534 = vmatpush1.msra.mxu0 %v4533
    %4535 = vmatprep.subr.mxu0 0.0
    %v4536 = vand.u32 %v4225, 4294901760
    %v4537 = vsub.f32 %v4225, %v4536
    %v4538 = vand.u32 %v4537, 4294901760
    %v4539 = vsub.f32 %v4537, %v4538
    %v4540 = vand.u32 %v4539, 4294901760
    %4541 = vmatpush1.msra.mxu0 %v4540
    %4542 = vmatprep.subr.mxu0 0.0
    %v4543 = vand.u32 %v4226, 4294901760
    %v4544 = vsub.f32 %v4226, %v4543
    %v4545 = vand.u32 %v4544, 4294901760
    %v4546 = vsub.f32 %v4544, %v4545
    %v4547 = vand.u32 %v4546, 4294901760
    %4548 = vmatpush1.msra.mxu0 %v4547
    %4549 = vmatprep.subr.mxu0 0.0
    %v4550 = vand.u32 %v4227, 4294901760
    %v4551 = vsub.f32 %v4227, %v4550
    %v4552 = vand.u32 %v4551, 4294901760
    %v4553 = vsub.f32 %v4551, %v4552
    %v4554 = vand.u32 %v4553, 4294901760
    %4555 = vmatpush1.msra.mxu0 %v4554
    %4556 = vmatprep.subr.mxu0 0.0
    %v4557 = vand.u32 %v4228, 4294901760
    %v4558 = vsub.f32 %v4228, %v4557
    %v4559 = vand.u32 %v4558, 4294901760
    %v4560 = vsub.f32 %v4558, %v4559
    %v4561 = vand.u32 %v4560, 4294901760
    %4562 = vmatpush1.msra.mxu0 %v4561
    %4563 = vmatprep.subr.mxu0 0.0
    %v4564 = vand.u32 %v4229, 4294901760
    %v4565 = vsub.f32 %v4229, %v4564
    %v4566 = vand.u32 %v4565, 4294901760
    %v4567 = vsub.f32 %v4565, %v4566
    %v4568 = vand.u32 %v4567, 4294901760
    %4569 = vmatpush1.msra.mxu0 %v4568
    %4570 = vmatprep.subr.mxu0 0.0
    %v4571 = vand.u32 %v4230, 4294901760
    %v4572 = vsub.f32 %v4230, %v4571
    %v4573 = vand.u32 %v4572, 4294901760
    %v4574 = vsub.f32 %v4572, %v4573
    %v4575 = vand.u32 %v4574, 4294901760
    %4576 = vmatpush1.msra.mxu0 %v4575
    %4577 = vmatprep.subr.mxu0 0.0
    %v4578 = vand.u32 %v4231, 4294901760
    %v4579 = vsub.f32 %v4231, %v4578
    %v4580 = vand.u32 %v4579, 4294901760
    %v4581 = vsub.f32 %v4579, %v4580
    %v4582 = vand.u32 %v4581, 4294901760
    %4583 = vmatpush1.msra.mxu0 %v4582
    %v4584 = vand.u32 %v4197, 4294901760
    %4585 = vmatprep.mubr.f32.mxu0 %v4584
    %v4586 = vand.u32 %v4196, 4294901760
    %4587 = vmatmul.mubr.f32.gmra.mrb[0].mxu0 %v4586
    %v4588 = vpop.f32.mrb[0].mxu0
    %v4589 = vadd.f32 %v4342, %v4588
    %v4590 = vpop.f32.mrb[0].mxu0
    %v4591 = vand.u32 %v4199, 4294901760
    %4592 = vmatprep.mubr.f32.mxu0 %v4591
    %v4593 = vand.u32 %v4198, 4294901760
    %4594 = vmatmul.mubr.f32.gmra.mrb[0].mxu0 %v4593
    %v4595 = vpop.f32.mrb[0].mxu0
    %v4596 = vadd.f32 %v4357, %v4595
    %v4597 = vpop.f32.mrb[0].mxu0
    %4598 = vdwg.mxu0
    %4599 = vmatprep.subr.mxu0 0.0
    %v4600 = vand.u32 %v4200, 4294901760
    %v4601 = vsub.f32 %v4200, %v4600
    %4602 = vmatpush1.msra.mxu0 %v4601
    %4603 = vmatprep.subr.mxu0 0.0
    %v4604 = vand.u32 %v4201, 4294901760
    %v4605 = vsub.f32 %v4201, %v4604
    %4606 = vmatpush1.msra.mxu0 %v4605
    %4607 = vmatprep.subr.mxu0 0.0
    %v4608 = vand.u32 %v4202, 4294901760
    %v4609 = vsub.f32 %v4202, %v4608
    %4610 = vmatpush1.msra.mxu0 %v4609
    %4611 = vmatprep.subr.mxu0 0.0
    %v4612 = vand.u32 %v4203, 4294901760
    %v4613 = vsub.f32 %v4203, %v4612
    %4614 = vmatpush1.msra.mxu0 %v4613
    %4615 = vmatprep.subr.mxu0 0.0
    %v4616 = vand.u32 %v4204, 4294901760
    %v4617 = vsub.f32 %v4204, %v4616
    %4618 = vmatpush1.msra.mxu0 %v4617
    %4619 = vmatprep.subr.mxu0 0.0
    %v4620 = vand.u32 %v4205, 4294901760
    %v4621 = vsub.f32 %v4205, %v4620
    %4622 = vmatpush1.msra.mxu0 %v4621
    %4623 = vmatprep.subr.mxu0 0.0
    %v4624 = vand.u32 %v4206, 4294901760
    %v4625 = vsub.f32 %v4206, %v4624
    %4626 = vmatpush1.msra.mxu0 %v4625
    %4627 = vmatprep.subr.mxu0 0.0
    %v4628 = vand.u32 %v4207, 4294901760
    %v4629 = vsub.f32 %v4207, %v4628
    %4630 = vmatpush1.msra.mxu0 %v4629
    %4631 = vmatprep.subr.mxu0 0.0
    %v4632 = vand.u32 %v4208, 4294901760
    %v4633 = vsub.f32 %v4208, %v4632
    %4634 = vmatpush1.msra.mxu0 %v4633
    %4635 = vmatprep.subr.mxu0 0.0
    %v4636 = vand.u32 %v4209, 4294901760
    %v4637 = vsub.f32 %v4209, %v4636
    %4638 = vmatpush1.msra.mxu0 %v4637
    %4639 = vmatprep.subr.mxu0 0.0
    %v4640 = vand.u32 %v4210, 4294901760
    %v4641 = vsub.f32 %v4210, %v4640
    %4642 = vmatpush1.msra.mxu0 %v4641
    %4643 = vmatprep.subr.mxu0 0.0
    %v4644 = vand.u32 %v4211, 4294901760
    %v4645 = vsub.f32 %v4211, %v4644
    %4646 = vmatpush1.msra.mxu0 %v4645
    %4647 = vmatprep.subr.mxu0 0.0
    %v4648 = vand.u32 %v4212, 4294901760
    %v4649 = vsub.f32 %v4212, %v4648
    %4650 = vmatpush1.msra.mxu0 %v4649
    %4651 = vmatprep.subr.mxu0 0.0
    %v4652 = vand.u32 %v4213, 4294901760
    %v4653 = vsub.f32 %v4213, %v4652
    %4654 = vmatpush1.msra.mxu0 %v4653
    %4655 = vmatprep.subr.mxu0 0.0
    %v4656 = vand.u32 %v4214, 4294901760
    %v4657 = vsub.f32 %v4214, %v4656
    %4658 = vmatpush1.msra.mxu0 %v4657
    %4659 = vmatprep.subr.mxu0 0.0
    %v4660 = vand.u32 %v4215, 4294901760
    %v4661 = vsub.f32 %v4215, %v4660
    %4662 = vmatpush1.msra.mxu0 %v4661
    %4663 = vmatprep.subr.mxu0 0.0
    %v4664 = vand.u32 %v4216, 4294901760
    %v4665 = vsub.f32 %v4216, %v4664
    %4666 = vmatpush1.msra.mxu0 %v4665
    %4667 = vmatprep.subr.mxu0 0.0
    %v4668 = vand.u32 %v4217, 4294901760
    %v4669 = vsub.f32 %v4217, %v4668
    %4670 = vmatpush1.msra.mxu0 %v4669
    %4671 = vmatprep.subr.mxu0 0.0
    %v4672 = vand.u32 %v4218, 4294901760
    %v4673 = vsub.f32 %v4218, %v4672
    %4674 = vmatpush1.msra.mxu0 %v4673
    %4675 = vmatprep.subr.mxu0 0.0
    %v4676 = vand.u32 %v4219, 4294901760
    %v4677 = vsub.f32 %v4219, %v4676
    %4678 = vmatpush1.msra.mxu0 %v4677
    %4679 = vmatprep.subr.mxu0 0.0
    %v4680 = vand.u32 %v4220, 4294901760
    %v4681 = vsub.f32 %v4220, %v4680
    %4682 = vmatpush1.msra.mxu0 %v4681
    %4683 = vmatprep.subr.mxu0 0.0
    %v4684 = vand.u32 %v4221, 4294901760
    %v4685 = vsub.f32 %v4221, %v4684
    %4686 = vmatpush1.msra.mxu0 %v4685
    %4687 = vmatprep.subr.mxu0 0.0
    %v4688 = vand.u32 %v4222, 4294901760
    %v4689 = vsub.f32 %v4222, %v4688
    %4690 = vmatpush1.msra.mxu0 %v4689
    %4691 = vmatprep.subr.mxu0 0.0
    %v4692 = vand.u32 %v4223, 4294901760
    %v4693 = vsub.f32 %v4223, %v4692
    %4694 = vmatpush1.msra.mxu0 %v4693
    %4695 = vmatprep.subr.mxu0 0.0
    %v4696 = vand.u32 %v4224, 4294901760
    %v4697 = vsub.f32 %v4224, %v4696
    %4698 = vmatpush1.msra.mxu0 %v4697
    %4699 = vmatprep.subr.mxu0 0.0
    %v4700 = vand.u32 %v4225, 4294901760
    %v4701 = vsub.f32 %v4225, %v4700
    %4702 = vmatpush1.msra.mxu0 %v4701
    %4703 = vmatprep.subr.mxu0 0.0
    %v4704 = vand.u32 %v4226, 4294901760
    %v4705 = vsub.f32 %v4226, %v4704
    %4706 = vmatpush1.msra.mxu0 %v4705
    %4707 = vmatprep.subr.mxu0 0.0
    %v4708 = vand.u32 %v4227, 4294901760
    %v4709 = vsub.f32 %v4227, %v4708
    %4710 = vmatpush1.msra.mxu0 %v4709
    %4711 = vmatprep.subr.mxu0 0.0
    %v4712 = vand.u32 %v4228, 4294901760
    %v4713 = vsub.f32 %v4228, %v4712
    %4714 = vmatpush1.msra.mxu0 %v4713
    %4715 = vmatprep.subr.mxu0 0.0
    %v4716 = vand.u32 %v4229, 4294901760
    %v4717 = vsub.f32 %v4229, %v4716
    %4718 = vmatpush1.msra.mxu0 %v4717
    %4719 = vmatprep.subr.mxu0 0.0
    %v4720 = vand.u32 %v4230, 4294901760
    %v4721 = vsub.f32 %v4230, %v4720
    %4722 = vmatpush1.msra.mxu0 %v4721
    %4723 = vmatprep.subr.mxu0 0.0
    %v4724 = vand.u32 %v4231, 4294901760
    %v4725 = vsub.f32 %v4231, %v4724
    %4726 = vmatpush1.msra.mxu0 %v4725
    %v4727 = vand.u32 %v4197, 4294901760
    %v4728 = vsub.f32 %v4197, %v4727
    %4729 = vmatprep.mubr.f32.mxu0 %v4728
    %v4730 = vand.u32 %v4196, 4294901760
    %v4731 = vsub.f32 %v4196, %v4730
    %4732 = vmatmul.mubr.f32.gmra.mrb[0].mxu0 %v4731
    %v4733 = vpop.f32.mrb[0].mxu0
    %v4734 = vadd.f32 %v4589, %v4733
    %v4735 = vpop.f32.mrb[0].mxu0
    %v4736 = vand.u32 %v4199, 4294901760
    %v4737 = vsub.f32 %v4199, %v4736
    %4738 = vmatprep.mubr.f32.mxu0 %v4737
    %v4739 = vand.u32 %v4198, 4294901760
    %v4740 = vsub.f32 %v4198, %v4739
    %4741 = vmatmul.mubr.f32.gmra.mrb[0].mxu0 %v4740
    %v4742 = vpop.f32.mrb[0].mxu0
    %v4743 = vadd.f32 %v4596, %v4742
    %v4744 = vpop.f32.mrb[0].mxu0
    %4745 = vdwg.mxu0
    %4746 = vmatprep.subr.mxu0 0.0
    %v4747 = vand.u32 %v4200, 4294901760
    %4748 = vmatpush1.msra.mxu0 %v4747
    %4749 = vmatprep.subr.mxu0 0.0
    %v4750 = vand.u32 %v4201, 4294901760
    %4751 = vmatpush1.msra.mxu0 %v4750
    %4752 = vmatprep.subr.mxu0 0.0
    %v4753 = vand.u32 %v4202, 4294901760
    %4754 = vmatpush1.msra.mxu0 %v4753
    %4755 = vmatprep.subr.mxu0 0.0
    %v4756 = vand.u32 %v4203, 4294901760
    %4757 = vmatpush1.msra.mxu0 %v4756
    %4758 = vmatprep.subr.mxu0 0.0
    %v4759 = vand.u32 %v4204, 4294901760
    %4760 = vmatpush1.msra.mxu0 %v4759
    %4761 = vmatprep.subr.mxu0 0.0
    %v4762 = vand.u32 %v4205, 4294901760
    %4763 = vmatpush1.msra.mxu0 %v4762
    %4764 = vmatprep.subr.mxu0 0.0
    %v4765 = vand.u32 %v4206, 4294901760
    %4766 = vmatpush1.msra.mxu0 %v4765
    %4767 = vmatprep.subr.mxu0 0.0
    %v4768 = vand.u32 %v4207, 4294901760
    %4769 = vmatpush1.msra.mxu0 %v4768
    %4770 = vmatprep.subr.mxu0 0.0
    %v4771 = vand.u32 %v4208, 4294901760
    %4772 = vmatpush1.msra.mxu0 %v4771
    %4773 = vmatprep.subr.mxu0 0.0
    %v4774 = vand.u32 %v4209, 4294901760
    %4775 = vmatpush1.msra.mxu0 %v4774
    %4776 = vmatprep.subr.mxu0 0.0
    %v4777 = vand.u32 %v4210, 4294901760
    %4778 = vmatpush1.msra.mxu0 %v4777
    %4779 = vmatprep.subr.mxu0 0.0
    %v4780 = vand.u32 %v4211, 4294901760
    %4781 = vmatpush1.msra.mxu0 %v4780
    %4782 = vmatprep.subr.mxu0 0.0
    %v4783 = vand.u32 %v4212, 4294901760
    %4784 = vmatpush1.msra.mxu0 %v4783
    %4785 = vmatprep.subr.mxu0 0.0
    %v4786 = vand.u32 %v4213, 4294901760
    %4787 = vmatpush1.msra.mxu0 %v4786
    %4788 = vmatprep.subr.mxu0 0.0
    %v4789 = vand.u32 %v4214, 4294901760
    %4790 = vmatpush1.msra.mxu0 %v4789
    %4791 = vmatprep.subr.mxu0 0.0
    %v4792 = vand.u32 %v4215, 4294901760
    %4793 = vmatpush1.msra.mxu0 %v4792
    %4794 = vmatprep.subr.mxu0 0.0
    %v4795 = vand.u32 %v4216, 4294901760
    %4796 = vmatpush1.msra.mxu0 %v4795
    %4797 = vmatprep.subr.mxu0 0.0
    %v4798 = vand.u32 %v4217, 4294901760
    %4799 = vmatpush1.msra.mxu0 %v4798
    %4800 = vmatprep.subr.mxu0 0.0
    %v4801 = vand.u32 %v4218, 4294901760
    %4802 = vmatpush1.msra.mxu0 %v4801
    %4803 = vmatprep.subr.mxu0 0.0
    %v4804 = vand.u32 %v4219, 4294901760
    %4805 = vmatpush1.msra.mxu0 %v4804
    %4806 = vmatprep.subr.mxu0 0.0
    %v4807 = vand.u32 %v4220, 4294901760
    %4808 = vmatpush1.msra.mxu0 %v4807
    %4809 = vmatprep.subr.mxu0 0.0
    %v4810 = vand.u32 %v4221, 4294901760
    %4811 = vmatpush1.msra.mxu0 %v4810
    %4812 = vmatprep.subr.mxu0 0.0
    %v4813 = vand.u32 %v4222, 4294901760
    %4814 = vmatpush1.msra.mxu0 %v4813
    %4815 = vmatprep.subr.mxu0 0.0
    %v4816 = vand.u32 %v4223, 4294901760
    %4817 = vmatpush1.msra.mxu0 %v4816
    %4818 = vmatprep.subr.mxu0 0.0
    %v4819 = vand.u32 %v4224, 4294901760
    %4820 = vmatpush1.msra.mxu0 %v4819
    %4821 = vmatprep.subr.mxu0 0.0
    %v4822 = vand.u32 %v4225, 4294901760
    %4823 = vmatpush1.msra.mxu0 %v4822
    %4824 = vmatprep.subr.mxu0 0.0
    %v4825 = vand.u32 %v4226, 4294901760
    %4826 = vmatpush1.msra.mxu0 %v4825
    %4827 = vmatprep.subr.mxu0 0.0
    %v4828 = vand.u32 %v4227, 4294901760
    %4829 = vmatpush1.msra.mxu0 %v4828
    %4830 = vmatprep.subr.mxu0 0.0
    %v4831 = vand.u32 %v4228, 4294901760
    %4832 = vmatpush1.msra.mxu0 %v4831
    %4833 = vmatprep.subr.mxu0 0.0
    %v4834 = vand.u32 %v4229, 4294901760
    %4835 = vmatpush1.msra.mxu0 %v4834
    %4836 = vmatprep.subr.mxu0 0.0
    %v4837 = vand.u32 %v4230, 4294901760
    %4838 = vmatpush1.msra.mxu0 %v4837
    %4839 = vmatprep.subr.mxu0 0.0
    %v4840 = vand.u32 %v4231, 4294901760
    %4841 = vmatpush1.msra.mxu0 %v4840
    %v4842 = vand.u32 %v4197, 4294901760
    %v4843 = vsub.f32 %v4197, %v4842
    %v4844 = vand.u32 %v4843, 4294901760
    %4845 = vmatprep.mubr.f32.mxu0 %v4844
    %v4846 = vand.u32 %v4196, 4294901760
    %v4847 = vsub.f32 %v4196, %v4846
    %v4848 = vand.u32 %v4847, 4294901760
    %4849 = vmatmul.mubr.f32.gmra.mrb[0].mxu0 %v4848
    %v4850 = vpop.f32.mrb[0].mxu0
    %v4851 = vadd.f32 %v4734, %v4850
    %v4852 = vpop.f32.mrb[0].mxu0
    %v4853 = vand.u32 %v4199, 4294901760
    %v4854 = vsub.f32 %v4199, %v4853
    %v4855 = vand.u32 %v4854, 4294901760
    %4856 = vmatprep.mubr.f32.mxu0 %v4855
    %v4857 = vand.u32 %v4198, 4294901760
    %v4858 = vsub.f32 %v4198, %v4857
    %v4859 = vand.u32 %v4858, 4294901760
    %4860 = vmatmul.mubr.f32.gmra.mrb[0].mxu0 %v4859
    %v4861 = vpop.f32.mrb[0].mxu0
    %v4862 = vadd.f32 %v4743, %v4861
    %v4863 = vpop.f32.mrb[0].mxu0
    %4864 = vdwg.mxu0
    %4865 = vmatprep.subr.mxu0 0.0
    %v4866 = vand.u32 %v4200, 4294901760
    %v4867 = vsub.f32 %v4200, %v4866
    %v4868 = vand.u32 %v4867, 4294901760
    %4869 = vmatpush1.msra.mxu0 %v4868
    %4870 = vmatprep.subr.mxu0 0.0
    %v4871 = vand.u32 %v4201, 4294901760
    %v4872 = vsub.f32 %v4201, %v4871
    %v4873 = vand.u32 %v4872, 4294901760
    %4874 = vmatpush1.msra.mxu0 %v4873
    %4875 = vmatprep.subr.mxu0 0.0
    %v4876 = vand.u32 %v4202, 4294901760
    %v4877 = vsub.f32 %v4202, %v4876
    %v4878 = vand.u32 %v4877, 4294901760
    %4879 = vmatpush1.msra.mxu0 %v4878
    %4880 = vmatprep.subr.mxu0 0.0
    %v4881 = vand.u32 %v4203, 4294901760
    %v4882 = vsub.f32 %v4203, %v4881
    %v4883 = vand.u32 %v4882, 4294901760
    %4884 = vmatpush1.msra.mxu0 %v4883
    %4885 = vmatprep.subr.mxu0 0.0
    %v4886 = vand.u32 %v4204, 4294901760
    %v4887 = vsub.f32 %v4204, %v4886
    %v4888 = vand.u32 %v4887, 4294901760
    %4889 = vmatpush1.msra.mxu0 %v4888
    %4890 = vmatprep.subr.mxu0 0.0
    %v4891 = vand.u32 %v4205, 4294901760
    %v4892 = vsub.f32 %v4205, %v4891
    %v4893 = vand.u32 %v4892, 4294901760
    %4894 = vmatpush1.msra.mxu0 %v4893
    %4895 = vmatprep.subr.mxu0 0.0
    %v4896 = vand.u32 %v4206, 4294901760
    %v4897 = vsub.f32 %v4206, %v4896
    %v4898 = vand.u32 %v4897, 4294901760
    %4899 = vmatpush1.msra.mxu0 %v4898
    %4900 = vmatprep.subr.mxu0 0.0
    %v4901 = vand.u32 %v4207, 4294901760
    %v4902 = vsub.f32 %v4207, %v4901
    %v4903 = vand.u32 %v4902, 4294901760
    %4904 = vmatpush1.msra.mxu0 %v4903
    %4905 = vmatprep.subr.mxu0 0.0
    %v4906 = vand.u32 %v4208, 4294901760
    %v4907 = vsub.f32 %v4208, %v4906
    %v4908 = vand.u32 %v4907, 4294901760
    %4909 = vmatpush1.msra.mxu0 %v4908
    %4910 = vmatprep.subr.mxu0 0.0
    %v4911 = vand.u32 %v4209, 4294901760
    %v4912 = vsub.f32 %v4209, %v4911
    %v4913 = vand.u32 %v4912, 4294901760
    %4914 = vmatpush1.msra.mxu0 %v4913
    %4915 = vmatprep.subr.mxu0 0.0
    %v4916 = vand.u32 %v4210, 4294901760
    %v4917 = vsub.f32 %v4210, %v4916
    %v4918 = vand.u32 %v4917, 4294901760
    %4919 = vmatpush1.msra.mxu0 %v4918
    %4920 = vmatprep.subr.mxu0 0.0
    %v4921 = vand.u32 %v4211, 4294901760
    %v4922 = vsub.f32 %v4211, %v4921
    %v4923 = vand.u32 %v4922, 4294901760
    %4924 = vmatpush1.msra.mxu0 %v4923
    %4925 = vmatprep.subr.mxu0 0.0
    %v4926 = vand.u32 %v4212, 4294901760
    %v4927 = vsub.f32 %v4212, %v4926
    %v4928 = vand.u32 %v4927, 4294901760
    %4929 = vmatpush1.msra.mxu0 %v4928
    %4930 = vmatprep.subr.mxu0 0.0
    %v4931 = vand.u32 %v4213, 4294901760
    %v4932 = vsub.f32 %v4213, %v4931
    %v4933 = vand.u32 %v4932, 4294901760
    %4934 = vmatpush1.msra.mxu0 %v4933
    %4935 = vmatprep.subr.mxu0 0.0
    %v4936 = vand.u32 %v4214, 4294901760
    %v4937 = vsub.f32 %v4214, %v4936
    %v4938 = vand.u32 %v4937, 4294901760
    %4939 = vmatpush1.msra.mxu0 %v4938
    %4940 = vmatprep.subr.mxu0 0.0
    %v4941 = vand.u32 %v4215, 4294901760
    %v4942 = vsub.f32 %v4215, %v4941
    %v4943 = vand.u32 %v4942, 4294901760
    %4944 = vmatpush1.msra.mxu0 %v4943
    %4945 = vmatprep.subr.mxu0 0.0
    %v4946 = vand.u32 %v4216, 4294901760
    %v4947 = vsub.f32 %v4216, %v4946
    %v4948 = vand.u32 %v4947, 4294901760
    %4949 = vmatpush1.msra.mxu0 %v4948
    %4950 = vmatprep.subr.mxu0 0.0
    %v4951 = vand.u32 %v4217, 4294901760
    %v4952 = vsub.f32 %v4217, %v4951
    %v4953 = vand.u32 %v4952, 4294901760
    %4954 = vmatpush1.msra.mxu0 %v4953
    %4955 = vmatprep.subr.mxu0 0.0
    %v4956 = vand.u32 %v4218, 4294901760
    %v4957 = vsub.f32 %v4218, %v4956
    %v4958 = vand.u32 %v4957, 4294901760
    %4959 = vmatpush1.msra.mxu0 %v4958
    %4960 = vmatprep.subr.mxu0 0.0
    %v4961 = vand.u32 %v4219, 4294901760
    %v4962 = vsub.f32 %v4219, %v4961
    %v4963 = vand.u32 %v4962, 4294901760
    %4964 = vmatpush1.msra.mxu0 %v4963
    %4965 = vmatprep.subr.mxu0 0.0
    %v4966 = vand.u32 %v4220, 4294901760
    %v4967 = vsub.f32 %v4220, %v4966
    %v4968 = vand.u32 %v4967, 4294901760
    %4969 = vmatpush1.msra.mxu0 %v4968
    %4970 = vmatprep.subr.mxu0 0.0
    %v4971 = vand.u32 %v4221, 4294901760
    %v4972 = vsub.f32 %v4221, %v4971
    %v4973 = vand.u32 %v4972, 4294901760
    %4974 = vmatpush1.msra.mxu0 %v4973
    %4975 = vmatprep.subr.mxu0 0.0
    %v4976 = vand.u32 %v4222, 4294901760
    %v4977 = vsub.f32 %v4222, %v4976
    %v4978 = vand.u32 %v4977, 4294901760
    %4979 = vmatpush1.msra.mxu0 %v4978
    %4980 = vmatprep.subr.mxu0 0.0
    %v4981 = vand.u32 %v4223, 4294901760
    %v4982 = vsub.f32 %v4223, %v4981
    %v4983 = vand.u32 %v4982, 4294901760
    %4984 = vmatpush1.msra.mxu0 %v4983
    %4985 = vmatprep.subr.mxu0 0.0
    %v4986 = vand.u32 %v4224, 4294901760
    %v4987 = vsub.f32 %v4224, %v4986
    %v4988 = vand.u32 %v4987, 4294901760
    %4989 = vmatpush1.msra.mxu0 %v4988
    %4990 = vmatprep.subr.mxu0 0.0
    %v4991 = vand.u32 %v4225, 4294901760
    %v4992 = vsub.f32 %v4225, %v4991
    %v4993 = vand.u32 %v4992, 4294901760
    %4994 = vmatpush1.msra.mxu0 %v4993
    %4995 = vmatprep.subr.mxu0 0.0
    %v4996 = vand.u32 %v4226, 4294901760
    %v4997 = vsub.f32 %v4226, %v4996
    %v4998 = vand.u32 %v4997, 4294901760
    %4999 = vmatpush1.msra.mxu0 %v4998
    %5000 = vmatprep.subr.mxu0 0.0
    %v5001 = vand.u32 %v4227, 4294901760
    %v5002 = vsub.f32 %v4227, %v5001
    %v5003 = vand.u32 %v5002, 4294901760
    %5004 = vmatpush1.msra.mxu0 %v5003
    %5005 = vmatprep.subr.mxu0 0.0
    %v5006 = vand.u32 %v4228, 4294901760
    %v5007 = vsub.f32 %v4228, %v5006
    %v5008 = vand.u32 %v5007, 4294901760
    %5009 = vmatpush1.msra.mxu0 %v5008
    %5010 = vmatprep.subr.mxu0 0.0
    %v5011 = vand.u32 %v4229, 4294901760
    %v5012 = vsub.f32 %v4229, %v5011
    %v5013 = vand.u32 %v5012, 4294901760
    %5014 = vmatpush1.msra.mxu0 %v5013
    %5015 = vmatprep.subr.mxu0 0.0
    %v5016 = vand.u32 %v4230, 4294901760
    %v5017 = vsub.f32 %v4230, %v5016
    %v5018 = vand.u32 %v5017, 4294901760
    %5019 = vmatpush1.msra.mxu0 %v5018
    %5020 = vmatprep.subr.mxu0 0.0
    %v5021 = vand.u32 %v4231, 4294901760
    %v5022 = vsub.f32 %v4231, %v5021
    %v5023 = vand.u32 %v5022, 4294901760
    %5024 = vmatpush1.msra.mxu0 %v5023
    %v5025 = vand.u32 %v4197, 4294901760
    %5026 = vmatprep.mubr.f32.mxu0 %v5025
    %v5027 = vand.u32 %v4196, 4294901760
    %5028 = vmatmul.mubr.f32.gmra.mrb[0].mxu0 %v5027
    %v5029 = vpop.f32.mrb[0].mxu0
    %v5030 = vadd.f32 %v4851, %v5029
    %v5031 = vpop.f32.mrb[0].mxu0
    %v5032 = vand.u32 %v4199, 4294901760
    %5033 = vmatprep.mubr.f32.mxu0 %v5032
    %v5034 = vand.u32 %v4198, 4294901760
    %5035 = vmatmul.mubr.f32.gmra.mrb[0].mxu0 %v5034
    %v5036 = vpop.f32.mrb[0].mxu0
    %v5037 = vadd.f32 %v4862, %v5036
    %v5038 = vpop.f32.mrb[0].mxu0
    %5039 = vdwg.mxu0
    %5040 = vmatprep.subr.mxu0 0.0
    %v5041 = vand.u32 %v4200, 4294901760
    %5042 = vmatpush1.msra.mxu0 %v5041
    %5043 = vmatprep.subr.mxu0 0.0
    %v5044 = vand.u32 %v4201, 4294901760
    %5045 = vmatpush1.msra.mxu0 %v5044
    %5046 = vmatprep.subr.mxu0 0.0
    %v5047 = vand.u32 %v4202, 4294901760
    %5048 = vmatpush1.msra.mxu0 %v5047
    %5049 = vmatprep.subr.mxu0 0.0
    %v5050 = vand.u32 %v4203, 4294901760
    %5051 = vmatpush1.msra.mxu0 %v5050
    %5052 = vmatprep.subr.mxu0 0.0
    %v5053 = vand.u32 %v4204, 4294901760
    %5054 = vmatpush1.msra.mxu0 %v5053
    %5055 = vmatprep.subr.mxu0 0.0
    %v5056 = vand.u32 %v4205, 4294901760
    %5057 = vmatpush1.msra.mxu0 %v5056
    %5058 = vmatprep.subr.mxu0 0.0
    %v5059 = vand.u32 %v4206, 4294901760
    %5060 = vmatpush1.msra.mxu0 %v5059
    %5061 = vmatprep.subr.mxu0 0.0
    %v5062 = vand.u32 %v4207, 4294901760
    %5063 = vmatpush1.msra.mxu0 %v5062
    %5064 = vmatprep.subr.mxu0 0.0
    %v5065 = vand.u32 %v4208, 4294901760
    %5066 = vmatpush1.msra.mxu0 %v5065
    %5067 = vmatprep.subr.mxu0 0.0
    %v5068 = vand.u32 %v4209, 4294901760
    %5069 = vmatpush1.msra.mxu0 %v5068
    %5070 = vmatprep.subr.mxu0 0.0
    %v5071 = vand.u32 %v4210, 4294901760
    %5072 = vmatpush1.msra.mxu0 %v5071
    %5073 = vmatprep.subr.mxu0 0.0
    %v5074 = vand.u32 %v4211, 4294901760
    %5075 = vmatpush1.msra.mxu0 %v5074
    %5076 = vmatprep.subr.mxu0 0.0
    %v5077 = vand.u32 %v4212, 4294901760
    %5078 = vmatpush1.msra.mxu0 %v5077
    %5079 = vmatprep.subr.mxu0 0.0
    %v5080 = vand.u32 %v4213, 4294901760
    %5081 = vmatpush1.msra.mxu0 %v5080
    %5082 = vmatprep.subr.mxu0 0.0
    %v5083 = vand.u32 %v4214, 4294901760
    %5084 = vmatpush1.msra.mxu0 %v5083
    %5085 = vmatprep.subr.mxu0 0.0
    %v5086 = vand.u32 %v4215, 4294901760
    %5087 = vmatpush1.msra.mxu0 %v5086
    %5088 = vmatprep.subr.mxu0 0.0
    %v5089 = vand.u32 %v4216, 4294901760
    %5090 = vmatpush1.msra.mxu0 %v5089
    %5091 = vmatprep.subr.mxu0 0.0
    %v5092 = vand.u32 %v4217, 4294901760
    %5093 = vmatpush1.msra.mxu0 %v5092
    %5094 = vmatprep.subr.mxu0 0.0
    %v5095 = vand.u32 %v4218, 4294901760
    %5096 = vmatpush1.msra.mxu0 %v5095
    %5097 = vmatprep.subr.mxu0 0.0
    %v5098 = vand.u32 %v4219, 4294901760
    %5099 = vmatpush1.msra.mxu0 %v5098
    %5100 = vmatprep.subr.mxu0 0.0
    %v5101 = vand.u32 %v4220, 4294901760
    %5102 = vmatpush1.msra.mxu0 %v5101
    %5103 = vmatprep.subr.mxu0 0.0
    %v5104 = vand.u32 %v4221, 4294901760
    %5105 = vmatpush1.msra.mxu0 %v5104
    %5106 = vmatprep.subr.mxu0 0.0
    %v5107 = vand.u32 %v4222, 4294901760
    %5108 = vmatpush1.msra.mxu0 %v5107
    %5109 = vmatprep.subr.mxu0 0.0
    %v5110 = vand.u32 %v4223, 4294901760
    %5111 = vmatpush1.msra.mxu0 %v5110
    %5112 = vmatprep.subr.mxu0 0.0
    %v5113 = vand.u32 %v4224, 4294901760
    %5114 = vmatpush1.msra.mxu0 %v5113
    %5115 = vmatprep.subr.mxu0 0.0
    %v5116 = vand.u32 %v4225, 4294901760
    %5117 = vmatpush1.msra.mxu0 %v5116
    %5118 = vmatprep.subr.mxu0 0.0
    %v5119 = vand.u32 %v4226, 4294901760
    %5120 = vmatpush1.msra.mxu0 %v5119
    %5121 = vmatprep.subr.mxu0 0.0
    %v5122 = vand.u32 %v4227, 4294901760
    %5123 = vmatpush1.msra.mxu0 %v5122
    %5124 = vmatprep.subr.mxu0 0.0
    %v5125 = vand.u32 %v4228, 4294901760
    %5126 = vmatpush1.msra.mxu0 %v5125
    %5127 = vmatprep.subr.mxu0 0.0
    %v5128 = vand.u32 %v4229, 4294901760
    %5129 = vmatpush1.msra.mxu0 %v5128
    %5130 = vmatprep.subr.mxu0 0.0
    %v5131 = vand.u32 %v4230, 4294901760
    %5132 = vmatpush1.msra.mxu0 %v5131
    %5133 = vmatprep.subr.mxu0 0.0
    %v5134 = vand.u32 %v4231, 4294901760
    %5135 = vmatpush1.msra.mxu0 %v5134
    %v5136 = vand.u32 %v4197, 4294901760
    %5137 = vmatprep.mubr.f32.mxu0 %v5136
    %v5138 = vand.u32 %v4196, 4294901760
    %5139 = vmatmul.mubr.f32.gmra.mrb[0].mxu0 %v5138
    %v5140 = vpop.f32.mrb[0].mxu0
    %v5141 = vadd.f32 %v5030, %v5140
    %v5142 = vpop.f32.mrb[0].mxu0
    %v5143 = vand.u32 %v4199, 4294901760
    %5144 = vmatprep.mubr.f32.mxu0 %v5143
    %v5145 = vand.u32 %v4198, 4294901760
    %5146 = vmatmul.mubr.f32.gmra.mrb[0].mxu0 %v5145
    %v5147 = vpop.f32.mrb[0].mxu0
    %v5148 = vadd.f32 %v5037, %v5147
    %v5149 = vpop.f32.mrb[0].mxu0
    %5150 = vdwg.mxu0
    %v5151 = vld [vmem:[%s2 + $0x80] sm:$0xf8]
    %v5152 = vld [vmem:[%s2 + $0x90] sm:$0xff]
    %v5153 = vld [vmem:[%s2 + $0xa0] sm:$0x7]
    %v5155 = vsel %vm855, %v50, 0
    %v5158 = vsel %vm855, %v51, 0
    %5160 = vmatprep.subr.mxu0 0.0
    %v5161 = vand.u32 %v5141, 4294901760
    %5162 = vmatpush1.msra.mxu0 %v5161
    %5163 = vmatprep.subr.mxu0 0.0
    %v5164 = vand.u32 %v5148, 4294901760
    %5165 = vmatpush1.msra.mxu0 %v5164
    %5166 = vmatprep.subr.mxu0 0.0
    %5167 = vmatpush1.msra.mxu0 0.0
    %5168 = vmatprep.subr.mxu0 0.0
    %5169 = vmatpush1.msra.mxu0 0.0
    %5170 = vmatprep.subr.mxu0 0.0
    %5171 = vmatpush1.msra.mxu0 0.0
    %5172 = vmatprep.subr.mxu0 0.0
    %5173 = vmatpush1.msra.mxu0 0.0
    %5174 = vmatprep.subr.mxu0 0.0
    %5175 = vmatpush1.msra.mxu0 0.0
    %5176 = vmatprep.subr.mxu0 0.0
    %5177 = vmatpush1.msra.mxu0 0.0
    %5178 = vmatprep.subr.mxu0 0.0
    %5179 = vmatpush1.msra.mxu0 0.0
    %5180 = vmatprep.subr.mxu0 0.0
    %5181 = vmatpush1.msra.mxu0 0.0
    %5182 = vmatprep.subr.mxu0 0.0
    %5183 = vmatpush1.msra.mxu0 0.0
    %5184 = vmatprep.subr.mxu0 0.0
    %5185 = vmatpush1.msra.mxu0 0.0
    %5186 = vmatprep.subr.mxu0 0.0
    %5187 = vmatpush1.msra.mxu0 0.0
    %5188 = vmatprep.subr.mxu0 0.0
    %5189 = vmatpush1.msra.mxu0 0.0
    %5190 = vmatprep.subr.mxu0 0.0
    %5191 = vmatpush1.msra.mxu0 0.0
    %5192 = vmatprep.subr.mxu0 0.0
    %5193 = vmatpush1.msra.mxu0 0.0
    %5194 = vmatprep.subr.mxu0 0.0
    %5195 = vmatpush1.msra.mxu0 0.0
    %5196 = vmatprep.subr.mxu0 0.0
    %5197 = vmatpush1.msra.mxu0 0.0
    %5198 = vmatprep.subr.mxu0 0.0
    %5199 = vmatpush1.msra.mxu0 0.0
    %5200 = vmatprep.subr.mxu0 0.0
    %5201 = vmatpush1.msra.mxu0 0.0
    %5202 = vmatprep.subr.mxu0 0.0
    %5203 = vmatpush1.msra.mxu0 0.0
    %5204 = vmatprep.subr.mxu0 0.0
    %5205 = vmatpush1.msra.mxu0 0.0
    %5206 = vmatprep.subr.mxu0 0.0
    %5207 = vmatpush1.msra.mxu0 0.0
    %5208 = vmatprep.subr.mxu0 0.0
    %5209 = vmatpush1.msra.mxu0 0.0
    %5210 = vmatprep.subr.mxu0 0.0
    %5211 = vmatpush1.msra.mxu0 0.0
    %5212 = vmatprep.subr.mxu0 0.0
    %5213 = vmatpush1.msra.mxu0 0.0
    %5214 = vmatprep.subr.mxu0 0.0
    %5215 = vmatpush1.msra.mxu0 0.0
    %5216 = vmatprep.subr.mxu0 0.0
    %5217 = vmatpush1.msra.mxu0 0.0
    %5218 = vmatprep.subr.mxu0 0.0
    %5219 = vmatpush1.msra.mxu0 0.0
    %5220 = vmatprep.subr.mxu0 0.0
    %5221 = vmatpush1.msra.mxu0 0.0
    %5222 = vmatprep.subr.mxu0 0.0
    %5223 = vmatpush1.msra.mxu0 0.0
    %5224 = vmatprep.subr.mxu0 0.0
    %5225 = vmatpush1.msra.mxu0 0.0
    %5226 = vmatprep.mubr.f32.mxu0 0.0
    %v5227 = vand.u32 %v5155, 4294901760
    %v5228 = vsub.f32 %v5155, %v5227
    %v5229 = vand.u32 %v5228, 4294901760
    %v5230 = vsub.f32 %v5228, %v5229
    %v5231 = vand.u32 %v5230, 4294901760
    %5232 = vmatmul.mubr.f32.gmra.mrb[0].mxu0 %v5231
    %v5233 = vpop.f32.mrb[0].mxu0
    %v5234 = vadd.f32 0.0, %v5233
    %v5235 = vpop.f32.mrb[0].mxu0
    %5236 = vmatprep.mubr.f32.mxu0 0.0
    %v5237 = vand.u32 %v5158, 4294901760
    %v5238 = vsub.f32 %v5158, %v5237
    %v5239 = vand.u32 %v5238, 4294901760
    %v5240 = vsub.f32 %v5238, %v5239
    %v5241 = vand.u32 %v5240, 4294901760
    %5242 = vmatmul.mubr.f32.gmra.mrb[0].mxu0 %v5241
    %v5243 = vpop.f32.mrb[0].mxu0
    %v5244 = vadd.f32 0.0, %v5243
    %v5245 = vpop.f32.mrb[0].mxu0
    %5246 = vdwg.mxu0
    %5247 = vmatprep.subr.mxu0 0.0
    %v5248 = vand.u32 %v5141, 4294901760
    %v5249 = vsub.f32 %v5141, %v5248
    %v5250 = vand.u32 %v5249, 4294901760
    %v5251 = vsub.f32 %v5249, %v5250
    %v5252 = vand.u32 %v5251, 4294901760
    %5253 = vmatpush1.msra.mxu0 %v5252
    %5254 = vmatprep.subr.mxu0 0.0
    %v5255 = vand.u32 %v5148, 4294901760
    %v5256 = vsub.f32 %v5148, %v5255
    %v5257 = vand.u32 %v5256, 4294901760
    %v5258 = vsub.f32 %v5256, %v5257
    %v5259 = vand.u32 %v5258, 4294901760
    %5260 = vmatpush1.msra.mxu0 %v5259
    %5261 = vmatprep.subr.mxu0 0.0
    %5262 = vmatpush1.msra.mxu0 0.0
    %5263 = vmatprep.subr.mxu0 0.0
    %5264 = vmatpush1.msra.mxu0 0.0
    %5265 = vmatprep.subr.mxu0 0.0
    %5266 = vmatpush1.msra.mxu0 0.0
    %5267 = vmatprep.subr.mxu0 0.0
    %5268 = vmatpush1.msra.mxu0 0.0
    %5269 = vmatprep.subr.mxu0 0.0
    %5270 = vmatpush1.msra.mxu0 0.0
    %5271 = vmatprep.subr.mxu0 0.0
    %5272 = vmatpush1.msra.mxu0 0.0
    %5273 = vmatprep.subr.mxu0 0.0
    %5274 = vmatpush1.msra.mxu0 0.0
    %5275 = vmatprep.subr.mxu0 0.0
    %5276 = vmatpush1.msra.mxu0 0.0
    %5277 = vmatprep.subr.mxu0 0.0
    %5278 = vmatpush1.msra.mxu0 0.0
    %5279 = vmatprep.subr.mxu0 0.0
    %5280 = vmatpush1.msra.mxu0 0.0
    %5281 = vmatprep.subr.mxu0 0.0
    %5282 = vmatpush1.msra.mxu0 0.0
    %5283 = vmatprep.subr.mxu0 0.0
    %5284 = vmatpush1.msra.mxu0 0.0
    %5285 = vmatprep.subr.mxu0 0.0
    %5286 = vmatpush1.msra.mxu0 0.0
    %5287 = vmatprep.subr.mxu0 0.0
    %5288 = vmatpush1.msra.mxu0 0.0
    %5289 = vmatprep.subr.mxu0 0.0
    %5290 = vmatpush1.msra.mxu0 0.0
    %5291 = vmatprep.subr.mxu0 0.0
    %5292 = vmatpush1.msra.mxu0 0.0
    %5293 = vmatprep.subr.mxu0 0.0
    %5294 = vmatpush1.msra.mxu0 0.0
    %5295 = vmatprep.subr.mxu0 0.0
    %5296 = vmatpush1.msra.mxu0 0.0
    %5297 = vmatprep.subr.mxu0 0.0
    %5298 = vmatpush1.msra.mxu0 0.0
    %5299 = vmatprep.subr.mxu0 0.0
    %5300 = vmatpush1.msra.mxu0 0.0
    %5301 = vmatprep.subr.mxu0 0.0
    %5302 = vmatpush1.msra.mxu0 0.0
    %5303 = vmatprep.subr.mxu0 0.0
    %5304 = vmatpush1.msra.mxu0 0.0
    %5305 = vmatprep.subr.mxu0 0.0
    %5306 = vmatpush1.msra.mxu0 0.0
    %5307 = vmatprep.subr.mxu0 0.0
    %5308 = vmatpush1.msra.mxu0 0.0
    %5309 = vmatprep.subr.mxu0 0.0
    %5310 = vmatpush1.msra.mxu0 0.0
    %5311 = vmatprep.subr.mxu0 0.0
    %5312 = vmatpush1.msra.mxu0 0.0
    %5313 = vmatprep.subr.mxu0 0.0
    %5314 = vmatpush1.msra.mxu0 0.0
    %5315 = vmatprep.subr.mxu0 0.0
    %5316 = vmatpush1.msra.mxu0 0.0
    %5317 = vmatprep.subr.mxu0 0.0
    %5318 = vmatpush1.msra.mxu0 0.0
    %5319 = vmatprep.subr.mxu0 0.0
    %5320 = vmatpush1.msra.mxu0 0.0
    %5321 = vmatprep.mubr.f32.mxu0 0.0
    %v5322 = vand.u32 %v5155, 4294901760
    %5323 = vmatmul.mubr.f32.gmra.mrb[0].mxu0 %v5322
    %v5324 = vpop.f32.mrb[0].mxu0
    %v5325 = vadd.f32 %v5234, %v5324
    %v5326 = vpop.f32.mrb[0].mxu0
    %5327 = vmatprep.mubr.f32.mxu0 0.0
    %v5328 = vand.u32 %v5158, 4294901760
    %5329 = vmatmul.mubr.f32.gmra.mrb[0].mxu0 %v5328
    %v5330 = vpop.f32.mrb[0].mxu0
    %v5331 = vadd.f32 %v5244, %v5330
    %v5332 = vpop.f32.mrb[0].mxu0
    %5333 = vdwg.mxu0
    %5334 = vmatprep.subr.mxu0 0.0
    %v5335 = vand.u32 %v5141, 4294901760
    %v5336 = vsub.f32 %v5141, %v5335
    %5337 = vmatpush1.msra.mxu0 %v5336
    %5338 = vmatprep.subr.mxu0 0.0
    %v5339 = vand.u32 %v5148, 4294901760
    %v5340 = vsub.f32 %v5148, %v5339
    %5341 = vmatpush1.msra.mxu0 %v5340
    %5342 = vmatprep.subr.mxu0 0.0
    %5343 = vmatpush1.msra.mxu0 0.0
    %5344 = vmatprep.subr.mxu0 0.0
    %5345 = vmatpush1.msra.mxu0 0.0
    %5346 = vmatprep.subr.mxu0 0.0
    %5347 = vmatpush1.msra.mxu0 0.0
    %5348 = vmatprep.subr.mxu0 0.0
    %5349 = vmatpush1.msra.mxu0 0.0
    %5350 = vmatprep.subr.mxu0 0.0
    %5351 = vmatpush1.msra.mxu0 0.0
    %5352 = vmatprep.subr.mxu0 0.0
    %5353 = vmatpush1.msra.mxu0 0.0
    %5354 = vmatprep.subr.mxu0 0.0
    %5355 = vmatpush1.msra.mxu0 0.0
    %5356 = vmatprep.subr.mxu0 0.0
    %5357 = vmatpush1.msra.mxu0 0.0
    %5358 = vmatprep.subr.mxu0 0.0
    %5359 = vmatpush1.msra.mxu0 0.0
    %5360 = vmatprep.subr.mxu0 0.0
    %5361 = vmatpush1.msra.mxu0 0.0
    %5362 = vmatprep.subr.mxu0 0.0
    %5363 = vmatpush1.msra.mxu0 0.0
    %5364 = vmatprep.subr.mxu0 0.0
    %5365 = vmatpush1.msra.mxu0 0.0
    %5366 = vmatprep.subr.mxu0 0.0
    %5367 = vmatpush1.msra.mxu0 0.0
    %5368 = vmatprep.subr.mxu0 0.0
    %5369 = vmatpush1.msra.mxu0 0.0
    %5370 = vmatprep.subr.mxu0 0.0
    %5371 = vmatpush1.msra.mxu0 0.0
    %5372 = vmatprep.subr.mxu0 0.0
    %5373 = vmatpush1.msra.mxu0 0.0
    %5374 = vmatprep.subr.mxu0 0.0
    %5375 = vmatpush1.msra.mxu0 0.0
    %5376 = vmatprep.subr.mxu0 0.0
    %5377 = vmatpush1.msra.mxu0 0.0
    %5378 = vmatprep.subr.mxu0 0.0
    %5379 = vmatpush1.msra.mxu0 0.0
    %5380 = vmatprep.subr.mxu0 0.0
    %5381 = vmatpush1.msra.mxu0 0.0
    %5382 = vmatprep.subr.mxu0 0.0
    %5383 = vmatpush1.msra.mxu0 0.0
    %5384 = vmatprep.subr.mxu0 0.0
    %5385 = vmatpush1.msra.mxu0 0.0
    %5386 = vmatprep.subr.mxu0 0.0
    %5387 = vmatpush1.msra.mxu0 0.0
    %5388 = vmatprep.subr.mxu0 0.0
    %5389 = vmatpush1.msra.mxu0 0.0
    %5390 = vmatprep.subr.mxu0 0.0
    %5391 = vmatpush1.msra.mxu0 0.0
    %5392 = vmatprep.subr.mxu0 0.0
    %5393 = vmatpush1.msra.mxu0 0.0
    %5394 = vmatprep.subr.mxu0 0.0
    %5395 = vmatpush1.msra.mxu0 0.0
    %5396 = vmatprep.subr.mxu0 0.0
    %5397 = vmatpush1.msra.mxu0 0.0
    %5398 = vmatprep.subr.mxu0 0.0
    %5399 = vmatpush1.msra.mxu0 0.0
    %5400 = vmatprep.subr.mxu0 0.0
    %5401 = vmatpush1.msra.mxu0 0.0
    %5402 = vmatprep.mubr.f32.mxu0 0.0
    %v5403 = vand.u32 %v5155, 4294901760
    %v5404 = vsub.f32 %v5155, %v5403
    %5405 = vmatmul.mubr.f32.gmra.mrb[0].mxu0 %v5404
    %v5406 = vpop.f32.mrb[0].mxu0
    %v5407 = vadd.f32 %v5325, %v5406
    %v5408 = vpop.f32.mrb[0].mxu0
    %5409 = vmatprep.mubr.f32.mxu0 0.0
    %v5410 = vand.u32 %v5158, 4294901760
    %v5411 = vsub.f32 %v5158, %v5410
    %5412 = vmatmul.mubr.f32.gmra.mrb[0].mxu0 %v5411
    %v5413 = vpop.f32.mrb[0].mxu0
    %v5414 = vadd.f32 %v5331, %v5413
    %v5415 = vpop.f32.mrb[0].mxu0
    %5416 = vdwg.mxu0
    %5417 = vmatprep.subr.mxu0 0.0
    %v5418 = vand.u32 %v5141, 4294901760
    %5419 = vmatpush1.msra.mxu0 %v5418
    %5420 = vmatprep.subr.mxu0 0.0
    %v5421 = vand.u32 %v5148, 4294901760
    %5422 = vmatpush1.msra.mxu0 %v5421
    %5423 = vmatprep.subr.mxu0 0.0
    %5424 = vmatpush1.msra.mxu0 0.0
    %5425 = vmatprep.subr.mxu0 0.0
    %5426 = vmatpush1.msra.mxu0 0.0
    %5427 = vmatprep.subr.mxu0 0.0
    %5428 = vmatpush1.msra.mxu0 0.0
    %5429 = vmatprep.subr.mxu0 0.0
    %5430 = vmatpush1.msra.mxu0 0.0
    %5431 = vmatprep.subr.mxu0 0.0
    %5432 = vmatpush1.msra.mxu0 0.0
    %5433 = vmatprep.subr.mxu0 0.0
    %5434 = vmatpush1.msra.mxu0 0.0
    %5435 = vmatprep.subr.mxu0 0.0
    %5436 = vmatpush1.msra.mxu0 0.0
    %5437 = vmatprep.subr.mxu0 0.0
    %5438 = vmatpush1.msra.mxu0 0.0
    %5439 = vmatprep.subr.mxu0 0.0
    %5440 = vmatpush1.msra.mxu0 0.0
    %5441 = vmatprep.subr.mxu0 0.0
    %5442 = vmatpush1.msra.mxu0 0.0
    %5443 = vmatprep.subr.mxu0 0.0
    %5444 = vmatpush1.msra.mxu0 0.0
    %5445 = vmatprep.subr.mxu0 0.0
    %5446 = vmatpush1.msra.mxu0 0.0
    %5447 = vmatprep.subr.mxu0 0.0
    %5448 = vmatpush1.msra.mxu0 0.0
    %5449 = vmatprep.subr.mxu0 0.0
    %5450 = vmatpush1.msra.mxu0 0.0
    %5451 = vmatprep.subr.mxu0 0.0
    %5452 = vmatpush1.msra.mxu0 0.0
    %5453 = vmatprep.subr.mxu0 0.0
    %5454 = vmatpush1.msra.mxu0 0.0
    %5455 = vmatprep.subr.mxu0 0.0
    %5456 = vmatpush1.msra.mxu0 0.0
    %5457 = vmatprep.subr.mxu0 0.0
    %5458 = vmatpush1.msra.mxu0 0.0
    %5459 = vmatprep.subr.mxu0 0.0
    %5460 = vmatpush1.msra.mxu0 0.0
    %5461 = vmatprep.subr.mxu0 0.0
    %5462 = vmatpush1.msra.mxu0 0.0
    %5463 = vmatprep.subr.mxu0 0.0
    %5464 = vmatpush1.msra.mxu0 0.0
    %5465 = vmatprep.subr.mxu0 0.0
    %5466 = vmatpush1.msra.mxu0 0.0
    %5467 = vmatprep.subr.mxu0 0.0
    %5468 = vmatpush1.msra.mxu0 0.0
    %5469 = vmatprep.subr.mxu0 0.0
    %5470 = vmatpush1.msra.mxu0 0.0
    %5471 = vmatprep.subr.mxu0 0.0
    %5472 = vmatpush1.msra.mxu0 0.0
    %5473 = vmatprep.subr.mxu0 0.0
    %5474 = vmatpush1.msra.mxu0 0.0
    %5475 = vmatprep.subr.mxu0 0.0
    %5476 = vmatpush1.msra.mxu0 0.0
    %5477 = vmatprep.subr.mxu0 0.0
    %5478 = vmatpush1.msra.mxu0 0.0
    %5479 = vmatprep.subr.mxu0 0.0
    %5480 = vmatpush1.msra.mxu0 0.0
    %5481 = vmatprep.subr.mxu0 0.0
    %5482 = vmatpush1.msra.mxu0 0.0
    %5483 = vmatprep.mubr.f32.mxu0 0.0
    %v5484 = vand.u32 %v5155, 4294901760
    %v5485 = vsub.f32 %v5155, %v5484
    %v5486 = vand.u32 %v5485, 4294901760
    %5487 = vmatmul.mubr.f32.gmra.mrb[0].mxu0 %v5486
    %v5488 = vpop.f32.mrb[0].mxu0
    %v5489 = vadd.f32 %v5407, %v5488
    %v5490 = vpop.f32.mrb[0].mxu0
    %5491 = vmatprep.mubr.f32.mxu0 0.0
    %v5492 = vand.u32 %v5158, 4294901760
    %v5493 = vsub.f32 %v5158, %v5492
    %v5494 = vand.u32 %v5493, 4294901760
    %5495 = vmatmul.mubr.f32.gmra.mrb[0].mxu0 %v5494
    %v5496 = vpop.f32.mrb[0].mxu0
    %v5497 = vadd.f32 %v5414, %v5496
    %v5498 = vpop.f32.mrb[0].mxu0
    %5499 = vdwg.mxu0
    %5500 = vmatprep.subr.mxu0 0.0
    %v5501 = vand.u32 %v5141, 4294901760
    %v5502 = vsub.f32 %v5141, %v5501
    %v5503 = vand.u32 %v5502, 4294901760
    %5504 = vmatpush1.msra.mxu0 %v5503
    %5505 = vmatprep.subr.mxu0 0.0
    %v5506 = vand.u32 %v5148, 4294901760
    %v5507 = vsub.f32 %v5148, %v5506
    %v5508 = vand.u32 %v5507, 4294901760
    %5509 = vmatpush1.msra.mxu0 %v5508
    %5510 = vmatprep.subr.mxu0 0.0
    %5511 = vmatpush1.msra.mxu0 0.0
    %5512 = vmatprep.subr.mxu0 0.0
    %5513 = vmatpush1.msra.mxu0 0.0
    %5514 = vmatprep.subr.mxu0 0.0
    %5515 = vmatpush1.msra.mxu0 0.0
    %5516 = vmatprep.subr.mxu0 0.0
    %5517 = vmatpush1.msra.mxu0 0.0
    %5518 = vmatprep.subr.mxu0 0.0
    %5519 = vmatpush1.msra.mxu0 0.0
    %5520 = vmatprep.subr.mxu0 0.0
    %5521 = vmatpush1.msra.mxu0 0.0
    %5522 = vmatprep.subr.mxu0 0.0
    %5523 = vmatpush1.msra.mxu0 0.0
    %5524 = vmatprep.subr.mxu0 0.0
    %5525 = vmatpush1.msra.mxu0 0.0
    %5526 = vmatprep.subr.mxu0 0.0
    %5527 = vmatpush1.msra.mxu0 0.0
    %5528 = vmatprep.subr.mxu0 0.0
    %5529 = vmatpush1.msra.mxu0 0.0
    %5530 = vmatprep.subr.mxu0 0.0
    %5531 = vmatpush1.msra.mxu0 0.0
    %5532 = vmatprep.subr.mxu0 0.0
    %5533 = vmatpush1.msra.mxu0 0.0
    %5534 = vmatprep.subr.mxu0 0.0
    %5535 = vmatpush1.msra.mxu0 0.0
    %5536 = vmatprep.subr.mxu0 0.0
    %5537 = vmatpush1.msra.mxu0 0.0
    %5538 = vmatprep.subr.mxu0 0.0
    %5539 = vmatpush1.msra.mxu0 0.0
    %5540 = vmatprep.subr.mxu0 0.0
    %5541 = vmatpush1.msra.mxu0 0.0
    %5542 = vmatprep.subr.mxu0 0.0
    %5543 = vmatpush1.msra.mxu0 0.0
    %5544 = vmatprep.subr.mxu0 0.0
    %5545 = vmatpush1.msra.mxu0 0.0
    %5546 = vmatprep.subr.mxu0 0.0
    %5547 = vmatpush1.msra.mxu0 0.0
    %5548 = vmatprep.subr.mxu0 0.0
    %5549 = vmatpush1.msra.mxu0 0.0
    %5550 = vmatprep.subr.mxu0 0.0
    %5551 = vmatpush1.msra.mxu0 0.0
    %5552 = vmatprep.subr.mxu0 0.0
    %5553 = vmatpush1.msra.mxu0 0.0
    %5554 = vmatprep.subr.mxu0 0.0
    %5555 = vmatpush1.msra.mxu0 0.0
    %5556 = vmatprep.subr.mxu0 0.0
    %5557 = vmatpush1.msra.mxu0 0.0
    %5558 = vmatprep.subr.mxu0 0.0
    %5559 = vmatpush1.msra.mxu0 0.0
    %5560 = vmatprep.subr.mxu0 0.0
    %5561 = vmatpush1.msra.mxu0 0.0
    %5562 = vmatprep.subr.mxu0 0.0
    %5563 = vmatpush1.msra.mxu0 0.0
    %5564 = vmatprep.subr.mxu0 0.0
    %5565 = vmatpush1.msra.mxu0 0.0
    %5566 = vmatprep.subr.mxu0 0.0
    %5567 = vmatpush1.msra.mxu0 0.0
    %5568 = vmatprep.subr.mxu0 0.0
    %5569 = vmatpush1.msra.mxu0 0.0
    %5570 = vmatprep.mubr.f32.mxu0 0.0
    %v5571 = vand.u32 %v5155, 4294901760
    %5572 = vmatmul.mubr.f32.gmra.mrb[0].mxu0 %v5571
    %v5573 = vpop.f32.mrb[0].mxu0
    %v5574 = vadd.f32 %v5489, %v5573
    %v5575 = vpop.f32.mrb[0].mxu0
    %5576 = vmatprep.mubr.f32.mxu0 0.0
    %v5577 = vand.u32 %v5158, 4294901760
    %5578 = vmatmul.mubr.f32.gmra.mrb[0].mxu0 %v5577
    %v5579 = vpop.f32.mrb[0].mxu0
    %v5580 = vadd.f32 %v5497, %v5579
    %v5581 = vpop.f32.mrb[0].mxu0
    %5582 = vdwg.mxu0
    %5583 = vmatprep.subr.mxu0 0.0
    %v5584 = vand.u32 %v5141, 4294901760
    %5585 = vmatpush1.msra.mxu0 %v5584
    %5586 = vmatprep.subr.mxu0 0.0
    %v5587 = vand.u32 %v5148, 4294901760
    %5588 = vmatpush1.msra.mxu0 %v5587
    %5589 = vmatprep.subr.mxu0 0.0
    %5590 = vmatpush1.msra.mxu0 0.0
    %5591 = vmatprep.subr.mxu0 0.0
    %5592 = vmatpush1.msra.mxu0 0.0
    %5593 = vmatprep.subr.mxu0 0.0
    %5594 = vmatpush1.msra.mxu0 0.0
    %5595 = vmatprep.subr.mxu0 0.0
    %5596 = vmatpush1.msra.mxu0 0.0
    %5597 = vmatprep.subr.mxu0 0.0
    %5598 = vmatpush1.msra.mxu0 0.0
    %5599 = vmatprep.subr.mxu0 0.0
    %5600 = vmatpush1.msra.mxu0 0.0
    %5601 = vmatprep.subr.mxu0 0.0
    %5602 = vmatpush1.msra.mxu0 0.0
    %5603 = vmatprep.subr.mxu0 0.0
    %5604 = vmatpush1.msra.mxu0 0.0
    %5605 = vmatprep.subr.mxu0 0.0
    %5606 = vmatpush1.msra.mxu0 0.0
    %5607 = vmatprep.subr.mxu0 0.0
    %5608 = vmatpush1.msra.mxu0 0.0
    %5609 = vmatprep.subr.mxu0 0.0
    %5610 = vmatpush1.msra.mxu0 0.0
    %5611 = vmatprep.subr.mxu0 0.0
    %5612 = vmatpush1.msra.mxu0 0.0
    %5613 = vmatprep.subr.mxu0 0.0
    %5614 = vmatpush1.msra.mxu0 0.0
    %5615 = vmatprep.subr.mxu0 0.0
    %5616 = vmatpush1.msra.mxu0 0.0
    %5617 = vmatprep.subr.mxu0 0.0
    %5618 = vmatpush1.msra.mxu0 0.0
    %5619 = vmatprep.subr.mxu0 0.0
    %5620 = vmatpush1.msra.mxu0 0.0
    %5621 = vmatprep.subr.mxu0 0.0
    %5622 = vmatpush1.msra.mxu0 0.0
    %5623 = vmatprep.subr.mxu0 0.0
    %5624 = vmatpush1.msra.mxu0 0.0
    %5625 = vmatprep.subr.mxu0 0.0
    %5626 = vmatpush1.msra.mxu0 0.0
    %5627 = vmatprep.subr.mxu0 0.0
    %5628 = vmatpush1.msra.mxu0 0.0
    %5629 = vmatprep.subr.mxu0 0.0
    %5630 = vmatpush1.msra.mxu0 0.0
    %5631 = vmatprep.subr.mxu0 0.0
    %5632 = vmatpush1.msra.mxu0 0.0
    %5633 = vmatprep.subr.mxu0 0.0
    %5634 = vmatpush1.msra.mxu0 0.0
    %5635 = vmatprep.subr.mxu0 0.0
    %5636 = vmatpush1.msra.mxu0 0.0
    %5637 = vmatprep.subr.mxu0 0.0
    %5638 = vmatpush1.msra.mxu0 0.0
    %5639 = vmatprep.subr.mxu0 0.0
    %5640 = vmatpush1.msra.mxu0 0.0
    %5641 = vmatprep.subr.mxu0 0.0
    %5642 = vmatpush1.msra.mxu0 0.0
    %5643 = vmatprep.subr.mxu0 0.0
    %5644 = vmatpush1.msra.mxu0 0.0
    %5645 = vmatprep.subr.mxu0 0.0
    %5646 = vmatpush1.msra.mxu0 0.0
    %5647 = vmatprep.subr.mxu0 0.0
    %5648 = vmatpush1.msra.mxu0 0.0
    %5649 = vmatprep.mubr.f32.mxu0 0.0
    %v5650 = vand.u32 %v5155, 4294901760
    %5651 = vmatmul.mubr.f32.gmra.mrb[0].mxu0 %v5650
    %v5652 = vpop.f32.mrb[0].mxu0
    %v5653 = vadd.f32 %v5574, %v5652
    %v5654 = vpop.f32.mrb[0].mxu0
    %5655 = vmatprep.mubr.f32.mxu0 0.0
    %v5656 = vand.u32 %v5158, 4294901760
    %5657 = vmatmul.mubr.f32.gmra.mrb[0].mxu0 %v5656
    %v5658 = vpop.f32.mrb[0].mxu0
    %v5659 = vadd.f32 %v5580, %v5658
    %v5660 = vpop.f32.mrb[0].mxu0
    %5661 = vdwg.mxu0
    %v5662 = vsub.f32 %v5141, %v5653
    %v5663 = vsub.f32 %v5148, %v5659
    %v5664 = vmul.f32 %v5662, %v5662
    %v5665 = vmul.f32 %v5663, %v5663
    %5666 = vmatprep.subr.mxu0 0.0
    %v5667 = vand.u32 %v5664, 4294901760
    %5668 = vmatpush1.msra.mxu0 %v5667
    %5669 = vmatprep.subr.mxu0 0.0
    %v5670 = vand.u32 %v5665, 4294901760
    %5671 = vmatpush1.msra.mxu0 %v5670
    %5672 = vmatprep.subr.mxu0 0.0
    %5673 = vmatpush1.msra.mxu0 0.0
    %5674 = vmatprep.subr.mxu0 0.0
    %5675 = vmatpush1.msra.mxu0 0.0
    %5676 = vmatprep.subr.mxu0 0.0
    %5677 = vmatpush1.msra.mxu0 0.0
    %5678 = vmatprep.subr.mxu0 0.0
    %5679 = vmatpush1.msra.mxu0 0.0
    %5680 = vmatprep.subr.mxu0 0.0
    %5681 = vmatpush1.msra.mxu0 0.0
    %5682 = vmatprep.subr.mxu0 0.0
    %5683 = vmatpush1.msra.mxu0 0.0
    %5684 = vmatprep.subr.mxu0 0.0
    %5685 = vmatpush1.msra.mxu0 0.0
    %5686 = vmatprep.subr.mxu0 0.0
    %5687 = vmatpush1.msra.mxu0 0.0
    %5688 = vmatprep.subr.mxu0 0.0
    %5689 = vmatpush1.msra.mxu0 0.0
    %5690 = vmatprep.subr.mxu0 0.0
    %5691 = vmatpush1.msra.mxu0 0.0
    %5692 = vmatprep.subr.mxu0 0.0
    %5693 = vmatpush1.msra.mxu0 0.0
    %5694 = vmatprep.subr.mxu0 0.0
    %5695 = vmatpush1.msra.mxu0 0.0
    %5696 = vmatprep.subr.mxu0 0.0
    %5697 = vmatpush1.msra.mxu0 0.0
    %5698 = vmatprep.subr.mxu0 0.0
    %5699 = vmatpush1.msra.mxu0 0.0
    %5700 = vmatprep.subr.mxu0 0.0
    %5701 = vmatpush1.msra.mxu0 0.0
    %5702 = vmatprep.subr.mxu0 0.0
    %5703 = vmatpush1.msra.mxu0 0.0
    %5704 = vmatprep.subr.mxu0 0.0
    %5705 = vmatpush1.msra.mxu0 0.0
    %5706 = vmatprep.subr.mxu0 0.0
    %5707 = vmatpush1.msra.mxu0 0.0
    %5708 = vmatprep.subr.mxu0 0.0
    %5709 = vmatpush1.msra.mxu0 0.0
    %5710 = vmatprep.subr.mxu0 0.0
    %5711 = vmatpush1.msra.mxu0 0.0
    %5712 = vmatprep.subr.mxu0 0.0
    %5713 = vmatpush1.msra.mxu0 0.0
    %5714 = vmatprep.subr.mxu0 0.0
    %5715 = vmatpush1.msra.mxu0 0.0
    %5716 = vmatprep.subr.mxu0 0.0
    %5717 = vmatpush1.msra.mxu0 0.0
    %5718 = vmatprep.subr.mxu0 0.0
    %5719 = vmatpush1.msra.mxu0 0.0
    %5720 = vmatprep.subr.mxu0 0.0
    %5721 = vmatpush1.msra.mxu0 0.0
    %5722 = vmatprep.subr.mxu0 0.0
    %5723 = vmatpush1.msra.mxu0 0.0
    %5724 = vmatprep.subr.mxu0 0.0
    %5725 = vmatpush1.msra.mxu0 0.0
    %5726 = vmatprep.subr.mxu0 0.0
    %5727 = vmatpush1.msra.mxu0 0.0
    %5728 = vmatprep.subr.mxu0 0.0
    %5729 = vmatpush1.msra.mxu0 0.0
    %5730 = vmatprep.subr.mxu0 0.0
    %5731 = vmatpush1.msra.mxu0 0.0
    %5732 = vmatprep.mubr.f32.mxu0 0.0
    %v5733 = vand.u32 %v5155, 4294901760
    %v5734 = vsub.f32 %v5155, %v5733
    %v5735 = vand.u32 %v5734, 4294901760
    %v5736 = vsub.f32 %v5734, %v5735
    %v5737 = vand.u32 %v5736, 4294901760
    %5738 = vmatmul.mubr.f32.gmra.mrb[0].mxu0 %v5737
    %v5739 = vpop.f32.mrb[0].mxu0
    %v5740 = vadd.f32 1e-05, %v5739
    %v5741 = vpop.f32.mrb[0].mxu0
    %5742 = vmatprep.mubr.f32.mxu0 0.0
    %v5743 = vand.u32 %v5158, 4294901760
    %v5744 = vsub.f32 %v5158, %v5743
    %v5745 = vand.u32 %v5744, 4294901760
    %v5746 = vsub.f32 %v5744, %v5745
    %v5747 = vand.u32 %v5746, 4294901760
    %5748 = vmatmul.mubr.f32.gmra.mrb[0].mxu0 %v5747
    %v5749 = vpop.f32.mrb[0].mxu0
    %v5750 = vadd.f32 1e-05, %v5749
    %v5751 = vpop.f32.mrb[0].mxu0
    %5752 = vdwg.mxu0
    %5753 = vmatprep.subr.mxu0 0.0
    %v5754 = vand.u32 %v5664, 4294901760
    %v5755 = vsub.f32 %v5664, %v5754
    %v5756 = vand.u32 %v5755, 4294901760
    %v5757 = vsub.f32 %v5755, %v5756
    %v5758 = vand.u32 %v5757, 4294901760
    %5759 = vmatpush1.msra.mxu0 %v5758
    %5760 = vmatprep.subr.mxu0 0.0
    %v5761 = vand.u32 %v5665, 4294901760
    %v5762 = vsub.f32 %v5665, %v5761
    %v5763 = vand.u32 %v5762, 4294901760
    %v5764 = vsub.f32 %v5762, %v5763
    %v5765 = vand.u32 %v5764, 4294901760
    %5766 = vmatpush1.msra.mxu0 %v5765
    %5767 = vmatprep.subr.mxu0 0.0
    %5768 = vmatpush1.msra.mxu0 0.0
    %5769 = vmatprep.subr.mxu0 0.0
    %5770 = vmatpush1.msra.mxu0 0.0
    %5771 = vmatprep.subr.mxu0 0.0
    %5772 = vmatpush1.msra.mxu0 0.0
    %5773 = vmatprep.subr.mxu0 0.0
    %5774 = vmatpush1.msra.mxu0 0.0
    %5775 = vmatprep.subr.mxu0 0.0
    %5776 = vmatpush1.msra.mxu0 0.0
    %5777 = vmatprep.subr.mxu0 0.0
    %5778 = vmatpush1.msra.mxu0 0.0
    %5779 = vmatprep.subr.mxu0 0.0
    %5780 = vmatpush1.msra.mxu0 0.0
    %5781 = vmatprep.subr.mxu0 0.0
    %5782 = vmatpush1.msra.mxu0 0.0
    %5783 = vmatprep.subr.mxu0 0.0
    %5784 = vmatpush1.msra.mxu0 0.0
    %5785 = vmatprep.subr.mxu0 0.0
    %5786 = vmatpush1.msra.mxu0 0.0
    %5787 = vmatprep.subr.mxu0 0.0
    %5788 = vmatpush1.msra.mxu0 0.0
    %5789 = vmatprep.subr.mxu0 0.0
    %5790 = vmatpush1.msra.mxu0 0.0
    %5791 = vmatprep.subr.mxu0 0.0
    %5792 = vmatpush1.msra.mxu0 0.0
    %5793 = vmatprep.subr.mxu0 0.0
    %5794 = vmatpush1.msra.mxu0 0.0
    %5795 = vmatprep.subr.mxu0 0.0
    %5796 = vmatpush1.msra.mxu0 0.0
    %5797 = vmatprep.subr.mxu0 0.0
    %5798 = vmatpush1.msra.mxu0 0.0
    %5799 = vmatprep.subr.mxu0 0.0
    %5800 = vmatpush1.msra.mxu0 0.0
    %5801 = vmatprep.subr.mxu0 0.0
    %5802 = vmatpush1.msra.mxu0 0.0
    %5803 = vmatprep.subr.mxu0 0.0
    %5804 = vmatpush1.msra.mxu0 0.0
    %5805 = vmatprep.subr.mxu0 0.0
    %5806 = vmatpush1.msra.mxu0 0.0
    %5807 = vmatprep.subr.mxu0 0.0
    %5808 = vmatpush1.msra.mxu0 0.0
    %5809 = vmatprep.subr.mxu0 0.0
    %5810 = vmatpush1.msra.mxu0 0.0
    %5811 = vmatprep.subr.mxu0 0.0
    %5812 = vmatpush1.msra.mxu0 0.0
    %5813 = vmatprep.subr.mxu0 0.0
    %5814 = vmatpush1.msra.mxu0 0.0
    %5815 = vmatprep.subr.mxu0 0.0
    %5816 = vmatpush1.msra.mxu0 0.0
    %5817 = vmatprep.subr.mxu0 0.0
    %5818 = vmatpush1.msra.mxu0 0.0
    %5819 = vmatprep.subr.mxu0 0.0
    %5820 = vmatpush1.msra.mxu0 0.0
    %5821 = vmatprep.subr.mxu0 0.0
    %5822 = vmatpush1.msra.mxu0 0.0
    %5823 = vmatprep.subr.mxu0 0.0
    %5824 = vmatpush1.msra.mxu0 0.0
    %5825 = vmatprep.subr.mxu0 0.0
    %5826 = vmatpush1.msra.mxu0 0.0
    %5827 = vmatprep.mubr.f32.mxu0 0.0
    %v5828 = vand.u32 %v5155, 4294901760
    %5829 = vmatmul.mubr.f32.gmra.mrb[0].mxu0 %v5828
    %v5830 = vpop.f32.mrb[0].mxu0
    %v5831 = vadd.f32 %v5740, %v5830
    %v5832 = vpop.f32.mrb[0].mxu0
    %5833 = vmatprep.mubr.f32.mxu0 0.0
    %v5834 = vand.u32 %v5158, 4294901760
    %5835 = vmatmul.mubr.f32.gmra.mrb[0].mxu0 %v5834
    %v5836 = vpop.f32.mrb[0].mxu0
    %v5837 = vadd.f32 %v5750, %v5836
    %v5838 = vpop.f32.mrb[0].mxu0
    %5839 = vdwg.mxu0
    %5840 = vmatprep.subr.mxu0 0.0
    %v5841 = vand.u32 %v5664, 4294901760
    %v5842 = vsub.f32 %v5664, %v5841
    %5843 = vmatpush1.msra.mxu0 %v5842
    %5844 = vmatprep.subr.mxu0 0.0
    %v5845 = vand.u32 %v5665, 4294901760
    %v5846 = vsub.f32 %v5665, %v5845
    %5847 = vmatpush1.msra.mxu0 %v5846
    %5848 = vmatprep.subr.mxu0 0.0
    %5849 = vmatpush1.msra.mxu0 0.0
    %5850 = vmatprep.subr.mxu0 0.0
    %5851 = vmatpush1.msra.mxu0 0.0
    %5852 = vmatprep.subr.mxu0 0.0
    %5853 = vmatpush1.msra.mxu0 0.0
    %5854 = vmatprep.subr.mxu0 0.0
    %5855 = vmatpush1.msra.mxu0 0.0
    %5856 = vmatprep.subr.mxu0 0.0
    %5857 = vmatpush1.msra.mxu0 0.0
    %5858 = vmatprep.subr.mxu0 0.0
    %5859 = vmatpush1.msra.mxu0 0.0
    %5860 = vmatprep.subr.mxu0 0.0
    %5861 = vmatpush1.msra.mxu0 0.0
    %5862 = vmatprep.subr.mxu0 0.0
    %5863 = vmatpush1.msra.mxu0 0.0
    %5864 = vmatprep.subr.mxu0 0.0
    %5865 = vmatpush1.msra.mxu0 0.0
    %5866 = vmatprep.subr.mxu0 0.0
    %5867 = vmatpush1.msra.mxu0 0.0
    %5868 = vmatprep.subr.mxu0 0.0
    %5869 = vmatpush1.msra.mxu0 0.0
    %5870 = vmatprep.subr.mxu0 0.0
    %5871 = vmatpush1.msra.mxu0 0.0
    %5872 = vmatprep.subr.mxu0 0.0
    %5873 = vmatpush1.msra.mxu0 0.0
    %5874 = vmatprep.subr.mxu0 0.0
    %5875 = vmatpush1.msra.mxu0 0.0
    %5876 = vmatprep.subr.mxu0 0.0
    %5877 = vmatpush1.msra.mxu0 0.0
    %5878 = vmatprep.subr.mxu0 0.0
    %5879 = vmatpush1.msra.mxu0 0.0
    %5880 = vmatprep.subr.mxu0 0.0
    %5881 = vmatpush1.msra.mxu0 0.0
    %5882 = vmatprep.subr.mxu0 0.0
    %5883 = vmatpush1.msra.mxu0 0.0
    %5884 = vmatprep.subr.mxu0 0.0
    %5885 = vmatpush1.msra.mxu0 0.0
    %5886 = vmatprep.subr.mxu0 0.0
    %5887 = vmatpush1.msra.mxu0 0.0
    %5888 = vmatprep.subr.mxu0 0.0
    %5889 = vmatpush1.msra.mxu0 0.0
    %5890 = vmatprep.subr.mxu0 0.0
    %5891 = vmatpush1.msra.mxu0 0.0
    %5892 = vmatprep.subr.mxu0 0.0
    %5893 = vmatpush1.msra.mxu0 0.0
    %5894 = vmatprep.subr.mxu0 0.0
    %5895 = vmatpush1.msra.mxu0 0.0
    %5896 = vmatprep.subr.mxu0 0.0
    %5897 = vmatpush1.msra.mxu0 0.0
    %5898 = vmatprep.subr.mxu0 0.0
    %5899 = vmatpush1.msra.mxu0 0.0
    %5900 = vmatprep.subr.mxu0 0.0
    %5901 = vmatpush1.msra.mxu0 0.0
    %5902 = vmatprep.subr.mxu0 0.0
    %5903 = vmatpush1.msra.mxu0 0.0
    %5904 = vmatprep.subr.mxu0 0.0
    %5905 = vmatpush1.msra.mxu0 0.0
    %5906 = vmatprep.subr.mxu0 0.0
    %5907 = vmatpush1.msra.mxu0 0.0
    %5908 = vmatprep.mubr.f32.mxu0 0.0
    %v5909 = vand.u32 %v5155, 4294901760
    %v5910 = vsub.f32 %v5155, %v5909
    %5911 = vmatmul.mubr.f32.gmra.mrb[0].mxu0 %v5910
    %v5912 = vpop.f32.mrb[0].mxu0
    %v5913 = vadd.f32 %v5831, %v5912
    %v5914 = vpop.f32.mrb[0].mxu0
    %5915 = vmatprep.mubr.f32.mxu0 0.0
    %v5916 = vand.u32 %v5158, 4294901760
    %v5917 = vsub.f32 %v5158, %v5916
    %5918 = vmatmul.mubr.f32.gmra.mrb[0].mxu0 %v5917
    %v5919 = vpop.f32.mrb[0].mxu0
    %v5920 = vadd.f32 %v5837, %v5919
    %v5921 = vpop.f32.mrb[0].mxu0
    %5922 = vdwg.mxu0
    %5923 = vmatprep.subr.mxu0 0.0
    %v5924 = vand.u32 %v5664, 4294901760
    %5925 = vmatpush1.msra.mxu0 %v5924
    %5926 = vmatprep.subr.mxu0 0.0
    %v5927 = vand.u32 %v5665, 4294901760
    %5928 = vmatpush1.msra.mxu0 %v5927
    %5929 = vmatprep.subr.mxu0 0.0
    %5930 = vmatpush1.msra.mxu0 0.0
    %5931 = vmatprep.subr.mxu0 0.0
    %5932 = vmatpush1.msra.mxu0 0.0
    %5933 = vmatprep.subr.mxu0 0.0
    %5934 = vmatpush1.msra.mxu0 0.0
    %5935 = vmatprep.subr.mxu0 0.0
    %5936 = vmatpush1.msra.mxu0 0.0
    %5937 = vmatprep.subr.mxu0 0.0
    %5938 = vmatpush1.msra.mxu0 0.0
    %5939 = vmatprep.subr.mxu0 0.0
    %5940 = vmatpush1.msra.mxu0 0.0
    %5941 = vmatprep.subr.mxu0 0.0
    %5942 = vmatpush1.msra.mxu0 0.0
    %5943 = vmatprep.subr.mxu0 0.0
    %5944 = vmatpush1.msra.mxu0 0.0
    %5945 = vmatprep.subr.mxu0 0.0
    %5946 = vmatpush1.msra.mxu0 0.0
    %5947 = vmatprep.subr.mxu0 0.0
    %5948 = vmatpush1.msra.mxu0 0.0
    %5949 = vmatprep.subr.mxu0 0.0
    %5950 = vmatpush1.msra.mxu0 0.0
    %5951 = vmatprep.subr.mxu0 0.0
    %5952 = vmatpush1.msra.mxu0 0.0
    %5953 = vmatprep.subr.mxu0 0.0
    %5954 = vmatpush1.msra.mxu0 0.0
    %5955 = vmatprep.subr.mxu0 0.0
    %5956 = vmatpush1.msra.mxu0 0.0
    %5957 = vmatprep.subr.mxu0 0.0
    %5958 = vmatpush1.msra.mxu0 0.0
    %5959 = vmatprep.subr.mxu0 0.0
    %5960 = vmatpush1.msra.mxu0 0.0
    %5961 = vmatprep.subr.mxu0 0.0
    %5962 = vmatpush1.msra.mxu0 0.0
    %5963 = vmatprep.subr.mxu0 0.0
    %5964 = vmatpush1.msra.mxu0 0.0
    %5965 = vmatprep.subr.mxu0 0.0
    %5966 = vmatpush1.msra.mxu0 0.0
    %5967 = vmatprep.subr.mxu0 0.0
    %5968 = vmatpush1.msra.mxu0 0.0
    %5969 = vmatprep.subr.mxu0 0.0
    %5970 = vmatpush1.msra.mxu0 0.0
    %5971 = vmatprep.subr.mxu0 0.0
    %5972 = vmatpush1.msra.mxu0 0.0
    %5973 = vmatprep.subr.mxu0 0.0
    %5974 = vmatpush1.msra.mxu0 0.0
    %5975 = vmatprep.subr.mxu0 0.0
    %5976 = vmatpush1.msra.mxu0 0.0
    %5977 = vmatprep.subr.mxu0 0.0
    %5978 = vmatpush1.msra.mxu0 0.0
    %5979 = vmatprep.subr.mxu0 0.0
    %5980 = vmatpush1.msra.mxu0 0.0
    %5981 = vmatprep.subr.mxu0 0.0
    %5982 = vmatpush1.msra.mxu0 0.0
    %5983 = vmatprep.subr.mxu0 0.0
    %5984 = vmatpush1.msra.mxu0 0.0
    %5985 = vmatprep.subr.mxu0 0.0
    %5986 = vmatpush1.msra.mxu0 0.0
    %5987 = vmatprep.subr.mxu0 0.0
    %5988 = vmatpush1.msra.mxu0 0.0
    %5989 = vmatprep.mubr.f32.mxu0 0.0
    %v5990 = vand.u32 %v5155, 4294901760
    %v5991 = vsub.f32 %v5155, %v5990
    %v5992 = vand.u32 %v5991, 4294901760
    %5993 = vmatmul.mubr.f32.gmra.mrb[0].mxu0 %v5992
    %v5994 = vpop.f32.mrb[0].mxu0
    %v5995 = vadd.f32 %v5913, %v5994
    %v5996 = vpop.f32.mrb[0].mxu0
    %5997 = vmatprep.mubr.f32.mxu0 0.0
    %v5998 = vand.u32 %v5158, 4294901760
    %v5999 = vsub.f32 %v5158, %v5998
    %v6000 = vand.u32 %v5999, 4294901760
    %6001 = vmatmul.mubr.f32.gmra.mrb[0].mxu0 %v6000
    %v6002 = vpop.f32.mrb[0].mxu0
    %v6003 = vadd.f32 %v5920, %v6002
    %v6004 = vpop.f32.mrb[0].mxu0
    %6005 = vdwg.mxu0
    %6006 = vmatprep.subr.mxu0 0.0
    %v6007 = vand.u32 %v5664, 4294901760
    %v6008 = vsub.f32 %v5664, %v6007
    %v6009 = vand.u32 %v6008, 4294901760
    %6010 = vmatpush1.msra.mxu0 %v6009
    %6011 = vmatprep.subr.mxu0 0.0
    %v6012 = vand.u32 %v5665, 4294901760
    %v6013 = vsub.f32 %v5665, %v6012
    %v6014 = vand.u32 %v6013, 4294901760
    %6015 = vmatpush1.msra.mxu0 %v6014
    %6016 = vmatprep.subr.mxu0 0.0
    %6017 = vmatpush1.msra.mxu0 0.0
    %6018 = vmatprep.subr.mxu0 0.0
    %6019 = vmatpush1.msra.mxu0 0.0
    %6020 = vmatprep.subr.mxu0 0.0
    %6021 = vmatpush1.msra.mxu0 0.0
    %6022 = vmatprep.subr.mxu0 0.0
    %6023 = vmatpush1.msra.mxu0 0.0
    %6024 = vmatprep.subr.mxu0 0.0
    %6025 = vmatpush1.msra.mxu0 0.0
    %6026 = vmatprep.subr.mxu0 0.0
    %6027 = vmatpush1.msra.mxu0 0.0
    %6028 = vmatprep.subr.mxu0 0.0
    %6029 = vmatpush1.msra.mxu0 0.0
    %6030 = vmatprep.subr.mxu0 0.0
    %6031 = vmatpush1.msra.mxu0 0.0
    %6032 = vmatprep.subr.mxu0 0.0
    %6033 = vmatpush1.msra.mxu0 0.0
    %6034 = vmatprep.subr.mxu0 0.0
    %6035 = vmatpush1.msra.mxu0 0.0
    %6036 = vmatprep.subr.mxu0 0.0
    %6037 = vmatpush1.msra.mxu0 0.0
    %6038 = vmatprep.subr.mxu0 0.0
    %6039 = vmatpush1.msra.mxu0 0.0
    %6040 = vmatprep.subr.mxu0 0.0
    %6041 = vmatpush1.msra.mxu0 0.0
    %6042 = vmatprep.subr.mxu0 0.0
    %6043 = vmatpush1.msra.mxu0 0.0
    %6044 = vmatprep.subr.mxu0 0.0
    %6045 = vmatpush1.msra.mxu0 0.0
    %6046 = vmatprep.subr.mxu0 0.0
    %6047 = vmatpush1.msra.mxu0 0.0
    %6048 = vmatprep.subr.mxu0 0.0
    %6049 = vmatpush1.msra.mxu0 0.0
    %6050 = vmatprep.subr.mxu0 0.0
    %6051 = vmatpush1.msra.mxu0 0.0
    %6052 = vmatprep.subr.mxu0 0.0
    %6053 = vmatpush1.msra.mxu0 0.0
    %6054 = vmatprep.subr.mxu0 0.0
    %6055 = vmatpush1.msra.mxu0 0.0
    %6056 = vmatprep.subr.mxu0 0.0
    %6057 = vmatpush1.msra.mxu0 0.0
    %6058 = vmatprep.subr.mxu0 0.0
    %6059 = vmatpush1.msra.mxu0 0.0
    %6060 = vmatprep.subr.mxu0 0.0
    %6061 = vmatpush1.msra.mxu0 0.0
    %6062 = vmatprep.subr.mxu0 0.0
    %6063 = vmatpush1.msra.mxu0 0.0
    %6064 = vmatprep.subr.mxu0 0.0
    %6065 = vmatpush1.msra.mxu0 0.0
    %6066 = vmatprep.subr.mxu0 0.0
    %6067 = vmatpush1.msra.mxu0 0.0
    %6068 = vmatprep.subr.mxu0 0.0
    %6069 = vmatpush1.msra.mxu0 0.0
    %6070 = vmatprep.subr.mxu0 0.0
    %6071 = vmatpush1.msra.mxu0 0.0
    %6072 = vmatprep.subr.mxu0 0.0
    %6073 = vmatpush1.msra.mxu0 0.0
    %6074 = vmatprep.subr.mxu0 0.0
    %6075 = vmatpush1.msra.mxu0 0.0
    %6076 = vmatprep.mubr.f32.mxu0 0.0
    %v6077 = vand.u32 %v5155, 4294901760
    %6078 = vmatmul.mubr.f32.gmra.mrb[0].mxu0 %v6077
    %v6079 = vpop.f32.mrb[0].mxu0
    %v6080 = vadd.f32 %v5995, %v6079
    %v6081 = vpop.f32.mrb[0].mxu0
    %6082 = vmatprep.mubr.f32.mxu0 0.0
    %v6083 = vand.u32 %v5158, 4294901760
    %6084 = vmatmul.mubr.f32.gmra.mrb[0].mxu0 %v6083
    %v6085 = vpop.f32.mrb[0].mxu0
    %v6086 = vadd.f32 %v6003, %v6085
    %v6087 = vpop.f32.mrb[0].mxu0
    %6088 = vdwg.mxu0
    %6089 = vmatprep.subr.mxu0 0.0
    %v6090 = vand.u32 %v5664, 4294901760
    %6091 = vmatpush1.msra.mxu0 %v6090
    %6092 = vmatprep.subr.mxu0 0.0
    %v6093 = vand.u32 %v5665, 4294901760
    %6094 = vmatpush1.msra.mxu0 %v6093
    %6095 = vmatprep.subr.mxu0 0.0
    %6096 = vmatpush1.msra.mxu0 0.0
    %6097 = vmatprep.subr.mxu0 0.0
    %6098 = vmatpush1.msra.mxu0 0.0
    %6099 = vmatprep.subr.mxu0 0.0
    %6100 = vmatpush1.msra.mxu0 0.0
    %6101 = vmatprep.subr.mxu0 0.0
    %6102 = vmatpush1.msra.mxu0 0.0
    %6103 = vmatprep.subr.mxu0 0.0
    %6104 = vmatpush1.msra.mxu0 0.0
    %6105 = vmatprep.subr.mxu0 0.0
    %6106 = vmatpush1.msra.mxu0 0.0
    %6107 = vmatprep.subr.mxu0 0.0
    %6108 = vmatpush1.msra.mxu0 0.0
    %6109 = vmatprep.subr.mxu0 0.0
    %6110 = vmatpush1.msra.mxu0 0.0
    %6111 = vmatprep.subr.mxu0 0.0
    %6112 = vmatpush1.msra.mxu0 0.0
    %6113 = vmatprep.subr.mxu0 0.0
    %6114 = vmatpush1.msra.mxu0 0.0
    %6115 = vmatprep.subr.mxu0 0.0
    %6116 = vmatpush1.msra.mxu0 0.0
    %6117 = vmatprep.subr.mxu0 0.0
    %6118 = vmatpush1.msra.mxu0 0.0
    %6119 = vmatprep.subr.mxu0 0.0
    %6120 = vmatpush1.msra.mxu0 0.0
    %6121 = vmatprep.subr.mxu0 0.0
    %6122 = vmatpush1.msra.mxu0 0.0
    %6123 = vmatprep.subr.mxu0 0.0
    %6124 = vmatpush1.msra.mxu0 0.0
    %6125 = vmatprep.subr.mxu0 0.0
    %6126 = vmatpush1.msra.mxu0 0.0
    %6127 = vmatprep.subr.mxu0 0.0
    %6128 = vmatpush1.msra.mxu0 0.0
    %6129 = vmatprep.subr.mxu0 0.0
    %6130 = vmatpush1.msra.mxu0 0.0
    %6131 = vmatprep.subr.mxu0 0.0
    %6132 = vmatpush1.msra.mxu0 0.0
    %6133 = vmatprep.subr.mxu0 0.0
    %6134 = vmatpush1.msra.mxu0 0.0
    %6135 = vmatprep.subr.mxu0 0.0
    %6136 = vmatpush1.msra.mxu0 0.0
    %6137 = vmatprep.subr.mxu0 0.0
    %6138 = vmatpush1.msra.mxu0 0.0
    %6139 = vmatprep.subr.mxu0 0.0
    %6140 = vmatpush1.msra.mxu0 0.0
    %6141 = vmatprep.subr.mxu0 0.0
    %6142 = vmatpush1.msra.mxu0 0.0
    %6143 = vmatprep.subr.mxu0 0.0
    %6144 = vmatpush1.msra.mxu0 0.0
    %6145 = vmatprep.subr.mxu0 0.0
    %6146 = vmatpush1.msra.mxu0 0.0
    %6147 = vmatprep.subr.mxu0 0.0
    %6148 = vmatpush1.msra.mxu0 0.0
    %6149 = vmatprep.subr.mxu0 0.0
    %6150 = vmatpush1.msra.mxu0 0.0
    %6151 = vmatprep.subr.mxu0 0.0
    %6152 = vmatpush1.msra.mxu0 0.0
    %6153 = vmatprep.subr.mxu0 0.0
    %6154 = vmatpush1.msra.mxu0 0.0
    %6155 = vmatprep.mubr.f32.mxu0 0.0
    %v6156 = vand.u32 %v5155, 4294901760
    %6157 = vmatmul.mubr.f32.gmra.mrb[0].mxu0 %v6156
    %v6158 = vpop.f32.mrb[0].mxu0
    %v6159 = vadd.f32 %v6080, %v6158
    %v6160 = vpop.f32.mrb[0].mxu0
    %6161 = vmatprep.mubr.f32.mxu0 0.0
    %v6162 = vand.u32 %v5158, 4294901760
    %6163 = vmatmul.mubr.f32.gmra.mrb[0].mxu0 %v6162
    %v6164 = vpop.f32.mrb[0].mxu0
    %v6165 = vadd.f32 %v6086, %v6164
    %v6166 = vpop.f32.mrb[0].mxu0
    %6167 = vdwg.mxu0
    %v6168 = vrsqrt.pop %v6159
    %v6169 = vrsqrt.pop %v6165
    %v6170 = vmul.f32 %v5662, %v6168
    %v6171 = vmul.f32 %v5663, %v6169
    %6173 = vset.pattern.permute.xlu0 0
    %6174 = vperm.xlu0 %6173, %v5151
    %v6175 = vpop.permute.xlu0 %6174
    %6177 = vset.pattern.permute.xlu0 0
    %6178 = vperm.xlu0 %6177, %v5152
    %v6179 = vpop.permute.xlu0 %6178
    %6181 = vset.pattern.permute.xlu0 0
    %6182 = vperm.xlu0 %6181, %v5153
    %v6183 = vpop.permute.xlu0 %6182
    %vm6184 = vcmask 1044480
    %v6185 = vrot.slane %v6175, 3
    %v6186 = vrot.slane %v6179, 3
    %v6187 = vsel %vm6184, %v6185, %v6186
    %v6188 = vrot.slane %v6183, 3
    %v6189 = vsel %vm6184, %v6186, %v6188
    %v6192 = vmul.f32 %v6170, %v6187
    %v6193 = vmul.f32 %v6171, %v6189
    %6194 = vset.pattern.permute.xlu0 1
    %6195 = vperm.xlu0 %6194, %v5151
    %v6196 = vpop.permute.xlu0 %6195
    %6197 = vset.pattern.permute.xlu0 1
    %6198 = vperm.xlu0 %6197, %v5152
    %v6199 = vpop.permute.xlu0 %6198
    %6200 = vset.pattern.permute.xlu0 1
    %6201 = vperm.xlu0 %6200, %v5153
    %v6202 = vpop.permute.xlu0 %6201
    %v6203 = vrot.slane %v6196, 3
    %v6204 = vrot.slane %v6199, 3
    %v6205 = vsel %vm6184, %v6203, %v6204
    %v6206 = vrot.slane %v6202, 3
    %v6207 = vsel %vm6184, %v6204, %v6206
    %v6210 = vadd.f32 %v6192, %v6205
    %v6211 = vadd.f32 %v6193, %v6207
    %v6212 = vld [vmem:[%s2 + $0x10] sm:$0xff]
    %v6213 = vld [vmem:[%s2 + $0x82] ss:$0 sm:$0xff]
    %v6215 = vsel %vm327, %v319, 0
    %v6218 = vsel %vm327, %v320, 0
    %6220 = vmatprep.subr.mxu0 0.0
    %v6221 = vand.u32 %v6212, 4294901760
    %6222 = vmatpush1.msra.mxu0 %v6221
    %6223 = vmatprep.subr.mxu0 0.0
    %6224 = vmatpush1.msra.mxu0 0.0
    %6225 = vmatprep.subr.mxu0 0.0
    %6226 = vmatpush1.msra.mxu0 0.0
    %6227 = vmatprep.subr.mxu0 0.0
    %6228 = vmatpush1.msra.mxu0 0.0
    %6229 = vmatprep.subr.mxu0 0.0
    %6230 = vmatpush1.msra.mxu0 0.0
    %6231 = vmatprep.subr.mxu0 0.0
    %6232 = vmatpush1.msra.mxu0 0.0
    %6233 = vmatprep.subr.mxu0 0.0
    %6234 = vmatpush1.msra.mxu0 0.0
    %6235 = vmatprep.subr.mxu0 0.0
    %6236 = vmatpush1.msra.mxu0 0.0
    %6237 = vmatprep.subr.mxu0 0.0
    %6238 = vmatpush1.msra.mxu0 0.0
    %6239 = vmatprep.subr.mxu0 0.0
    %6240 = vmatpush1.msra.mxu0 0.0
    %6241 = vmatprep.subr.mxu0 0.0
    %6242 = vmatpush1.msra.mxu0 0.0
    %6243 = vmatprep.subr.mxu0 0.0
    %6244 = vmatpush1.msra.mxu0 0.0
    %6245 = vmatprep.subr.mxu0 0.0
    %6246 = vmatpush1.msra.mxu0 0.0
    %6247 = vmatprep.subr.mxu0 0.0
    %6248 = vmatpush1.msra.mxu0 0.0
    %6249 = vmatprep.subr.mxu0 0.0
    %6250 = vmatpush1.msra.mxu0 0.0
    %6251 = vmatprep.subr.mxu0 0.0
    %6252 = vmatpush1.msra.mxu0 0.0
    %6253 = vmatprep.subr.mxu0 0.0
    %6254 = vmatpush1.msra.mxu0 0.0
    %6255 = vmatprep.subr.mxu0 0.0
    %6256 = vmatpush1.msra.mxu0 0.0
    %6257 = vmatprep.subr.mxu0 0.0
    %6258 = vmatpush1.msra.mxu0 0.0
    %6259 = vmatprep.subr.mxu0 0.0
    %6260 = vmatpush1.msra.mxu0 0.0
    %6261 = vmatprep.subr.mxu0 0.0
    %6262 = vmatpush1.msra.mxu0 0.0
    %6263 = vmatprep.subr.mxu0 0.0
    %6264 = vmatpush1.msra.mxu0 0.0
    %6265 = vmatprep.subr.mxu0 0.0
    %6266 = vmatpush1.msra.mxu0 0.0
    %6267 = vmatprep.subr.mxu0 0.0
    %6268 = vmatpush1.msra.mxu0 0.0
    %6269 = vmatprep.subr.mxu0 0.0
    %6270 = vmatpush1.msra.mxu0 0.0
    %6271 = vmatprep.subr.mxu0 0.0
    %6272 = vmatpush1.msra.mxu0 0.0
    %6273 = vmatprep.subr.mxu0 0.0
    %6274 = vmatpush1.msra.mxu0 0.0
    %6275 = vmatprep.subr.mxu0 0.0
    %6276 = vmatpush1.msra.mxu0 0.0
    %6277 = vmatprep.subr.mxu0 0.0
    %6278 = vmatpush1.msra.mxu0 0.0
    %6279 = vmatprep.subr.mxu0 0.0
    %6280 = vmatpush1.msra.mxu0 0.0
    %6281 = vmatprep.subr.mxu0 0.0
    %6282 = vmatpush1.msra.mxu0 0.0
    %6283 = vmatprep.subr.mxu0 0.0
    %6284 = vmatpush1.msra.mxu0 0.0
    %6285 = vmatprep.mubr.f32.mxu0 0.0
    %v6286 = vand.u32 %v6215, 4294901760
    %v6287 = vsub.f32 %v6215, %v6286
    %v6288 = vand.u32 %v6287, 4294901760
    %v6289 = vsub.f32 %v6287, %v6288
    %v6290 = vand.u32 %v6289, 4294901760
    %6291 = vmatmul.mubr.f32.gmra.mrb[0].mxu0 %v6290
    %v6292 = vpop.f32.mrb[0].mxu0
    %v6293 = vadd.f32 %v6213, %v6292
    %v6294 = vpop.f32.mrb[0].mxu0
    %6295 = vmatprep.mubr.f32.mxu0 0.0
    %v6296 = vand.u32 %v6218, 4294901760
    %v6297 = vsub.f32 %v6218, %v6296
    %v6298 = vand.u32 %v6297, 4294901760
    %v6299 = vsub.f32 %v6297, %v6298
    %v6300 = vand.u32 %v6299, 4294901760
    %6301 = vmatmul.mubr.f32.gmra.mrb[0].mxu0 %v6300
    %v6302 = vpop.f32.mrb[0].mxu0
    %v6303 = vadd.f32 %v6213, %v6302
    %v6304 = vpop.f32.mrb[0].mxu0
    %6305 = vdwg.mxu0
    %6306 = vmatprep.subr.mxu0 0.0
    %v6307 = vand.u32 %v6212, 4294901760
    %v6308 = vsub.f32 %v6212, %v6307
    %v6309 = vand.u32 %v6308, 4294901760
    %v6310 = vsub.f32 %v6308, %v6309
    %v6311 = vand.u32 %v6310, 4294901760
    %6312 = vmatpush1.msra.mxu0 %v6311
    %6313 = vmatprep.subr.mxu0 0.0
    %6314 = vmatpush1.msra.mxu0 0.0
    %6315 = vmatprep.subr.mxu0 0.0
    %6316 = vmatpush1.msra.mxu0 0.0
    %6317 = vmatprep.subr.mxu0 0.0
    %6318 = vmatpush1.msra.mxu0 0.0
    %6319 = vmatprep.subr.mxu0 0.0
    %6320 = vmatpush1.msra.mxu0 0.0
    %6321 = vmatprep.subr.mxu0 0.0
    %6322 = vmatpush1.msra.mxu0 0.0
    %6323 = vmatprep.subr.mxu0 0.0
    %6324 = vmatpush1.msra.mxu0 0.0
    %6325 = vmatprep.subr.mxu0 0.0
    %6326 = vmatpush1.msra.mxu0 0.0
    %6327 = vmatprep.subr.mxu0 0.0
    %6328 = vmatpush1.msra.mxu0 0.0
    %6329 = vmatprep.subr.mxu0 0.0
    %6330 = vmatpush1.msra.mxu0 0.0
    %6331 = vmatprep.subr.mxu0 0.0
    %6332 = vmatpush1.msra.mxu0 0.0
    %6333 = vmatprep.subr.mxu0 0.0
    %6334 = vmatpush1.msra.mxu0 0.0
    %6335 = vmatprep.subr.mxu0 0.0
    %6336 = vmatpush1.msra.mxu0 0.0
    %6337 = vmatprep.subr.mxu0 0.0
    %6338 = vmatpush1.msra.mxu0 0.0
    %6339 = vmatprep.subr.mxu0 0.0
    %6340 = vmatpush1.msra.mxu0 0.0
    %6341 = vmatprep.subr.mxu0 0.0
    %6342 = vmatpush1.msra.mxu0 0.0
    %6343 = vmatprep.subr.mxu0 0.0
    %6344 = vmatpush1.msra.mxu0 0.0
    %6345 = vmatprep.subr.mxu0 0.0
    %6346 = vmatpush1.msra.mxu0 0.0
    %6347 = vmatprep.subr.mxu0 0.0
    %6348 = vmatpush1.msra.mxu0 0.0
    %6349 = vmatprep.subr.mxu0 0.0
    %6350 = vmatpush1.msra.mxu0 0.0
    %6351 = vmatprep.subr.mxu0 0.0
    %6352 = vmatpush1.msra.mxu0 0.0
    %6353 = vmatprep.subr.mxu0 0.0
    %6354 = vmatpush1.msra.mxu0 0.0
    %6355 = vmatprep.subr.mxu0 0.0
    %6356 = vmatpush1.msra.mxu0 0.0
    %6357 = vmatprep.subr.mxu0 0.0
    %6358 = vmatpush1.msra.mxu0 0.0
    %6359 = vmatprep.subr.mxu0 0.0
    %6360 = vmatpush1.msra.mxu0 0.0
    %6361 = vmatprep.subr.mxu0 0.0
    %6362 = vmatpush1.msra.mxu0 0.0
    %6363 = vmatprep.subr.mxu0 0.0
    %6364 = vmatpush1.msra.mxu0 0.0
    %6365 = vmatprep.subr.mxu0 0.0
    %6366 = vmatpush1.msra.mxu0 0.0
    %6367 = vmatprep.subr.mxu0 0.0
    %6368 = vmatpush1.msra.mxu0 0.0
    %6369 = vmatprep.subr.mxu0 0.0
    %6370 = vmatpush1.msra.mxu0 0.0
    %6371 = vmatprep.subr.mxu0 0.0
    %6372 = vmatpush1.msra.mxu0 0.0
    %6373 = vmatprep.subr.mxu0 0.0
    %6374 = vmatpush1.msra.mxu0 0.0
    %6375 = vmatprep.mubr.f32.mxu0 0.0
    %v6376 = vand.u32 %v6215, 4294901760
    %6377 = vmatmul.mubr.f32.gmra.mrb[0].mxu0 %v6376
    %v6378 = vpop.f32.mrb[0].mxu0
    %v6379 = vadd.f32 %v6293, %v6378
    %v6380 = vpop.f32.mrb[0].mxu0
    %6381 = vmatprep.mubr.f32.mxu0 0.0
    %v6382 = vand.u32 %v6218, 4294901760
    %6383 = vmatmul.mubr.f32.gmra.mrb[0].mxu0 %v6382
    %v6384 = vpop.f32.mrb[0].mxu0
    %v6385 = vadd.f32 %v6303, %v6384
    %v6386 = vpop.f32.mrb[0].mxu0
    %6387 = vdwg.mxu0
    %6388 = vmatprep.subr.mxu0 0.0
    %v6389 = vand.u32 %v6212, 4294901760
    %v6390 = vsub.f32 %v6212, %v6389
    %6391 = vmatpush1.msra.mxu0 %v6390
    %6392 = vmatprep.subr.mxu0 0.0
    %6393 = vmatpush1.msra.mxu0 0.0
    %6394 = vmatprep.subr.mxu0 0.0
    %6395 = vmatpush1.msra.mxu0 0.0
    %6396 = vmatprep.subr.mxu0 0.0
    %6397 = vmatpush1.msra.mxu0 0.0
    %6398 = vmatprep.subr.mxu0 0.0
    %6399 = vmatpush1.msra.mxu0 0.0
    %6400 = vmatprep.subr.mxu0 0.0
    %6401 = vmatpush1.msra.mxu0 0.0
    %6402 = vmatprep.subr.mxu0 0.0
    %6403 = vmatpush1.msra.mxu0 0.0
    %6404 = vmatprep.subr.mxu0 0.0
    %6405 = vmatpush1.msra.mxu0 0.0
    %6406 = vmatprep.subr.mxu0 0.0
    %6407 = vmatpush1.msra.mxu0 0.0
    %6408 = vmatprep.subr.mxu0 0.0
    %6409 = vmatpush1.msra.mxu0 0.0
    %6410 = vmatprep.subr.mxu0 0.0
    %6411 = vmatpush1.msra.mxu0 0.0
    %6412 = vmatprep.subr.mxu0 0.0
    %6413 = vmatpush1.msra.mxu0 0.0
    %6414 = vmatprep.subr.mxu0 0.0
    %6415 = vmatpush1.msra.mxu0 0.0
    %6416 = vmatprep.subr.mxu0 0.0
    %6417 = vmatpush1.msra.mxu0 0.0
    %6418 = vmatprep.subr.mxu0 0.0
    %6419 = vmatpush1.msra.mxu0 0.0
    %6420 = vmatprep.subr.mxu0 0.0
    %6421 = vmatpush1.msra.mxu0 0.0
    %6422 = vmatprep.subr.mxu0 0.0
    %6423 = vmatpush1.msra.mxu0 0.0
    %6424 = vmatprep.subr.mxu0 0.0
    %6425 = vmatpush1.msra.mxu0 0.0
    %6426 = vmatprep.subr.mxu0 0.0
    %6427 = vmatpush1.msra.mxu0 0.0
    %6428 = vmatprep.subr.mxu0 0.0
    %6429 = vmatpush1.msra.mxu0 0.0
    %6430 = vmatprep.subr.mxu0 0.0
    %6431 = vmatpush1.msra.mxu0 0.0
    %6432 = vmatprep.subr.mxu0 0.0
    %6433 = vmatpush1.msra.mxu0 0.0
    %6434 = vmatprep.subr.mxu0 0.0
    %6435 = vmatpush1.msra.mxu0 0.0
    %6436 = vmatprep.subr.mxu0 0.0
    %6437 = vmatpush1.msra.mxu0 0.0
    %6438 = vmatprep.subr.mxu0 0.0
    %6439 = vmatpush1.msra.mxu0 0.0
    %6440 = vmatprep.subr.mxu0 0.0
    %6441 = vmatpush1.msra.mxu0 0.0
    %6442 = vmatprep.subr.mxu0 0.0
    %6443 = vmatpush1.msra.mxu0 0.0
    %6444 = vmatprep.subr.mxu0 0.0
    %6445 = vmatpush1.msra.mxu0 0.0
    %6446 = vmatprep.subr.mxu0 0.0
    %6447 = vmatpush1.msra.mxu0 0.0
    %6448 = vmatprep.subr.mxu0 0.0
    %6449 = vmatpush1.msra.mxu0 0.0
    %6450 = vmatprep.subr.mxu0 0.0
    %6451 = vmatpush1.msra.mxu0 0.0
    %6452 = vmatprep.subr.mxu0 0.0
    %6453 = vmatpush1.msra.mxu0 0.0
    %6454 = vmatprep.mubr.f32.mxu0 0.0
    %v6455 = vand.u32 %v6215, 4294901760
    %v6456 = vsub.f32 %v6215, %v6455
    %6457 = vmatmul.mubr.f32.gmra.mrb[0].mxu0 %v6456
    %v6458 = vpop.f32.mrb[0].mxu0
    %v6459 = vadd.f32 %v6379, %v6458
    %v6460 = vpop.f32.mrb[0].mxu0
    %6461 = vmatprep.mubr.f32.mxu0 0.0
    %v6462 = vand.u32 %v6218, 4294901760
    %v6463 = vsub.f32 %v6218, %v6462
    %6464 = vmatmul.mubr.f32.gmra.mrb[0].mxu0 %v6463
    %v6465 = vpop.f32.mrb[0].mxu0
    %v6466 = vadd.f32 %v6385, %v6465
    %v6467 = vpop.f32.mrb[0].mxu0
    %6468 = vdwg.mxu0
    %6469 = vmatprep.subr.mxu0 0.0
    %v6470 = vand.u32 %v6212, 4294901760
    %6471 = vmatpush1.msra.mxu0 %v6470
    %6472 = vmatprep.subr.mxu0 0.0
    %6473 = vmatpush1.msra.mxu0 0.0
    %6474 = vmatprep.subr.mxu0 0.0
    %6475 = vmatpush1.msra.mxu0 0.0
    %6476 = vmatprep.subr.mxu0 0.0
    %6477 = vmatpush1.msra.mxu0 0.0
    %6478 = vmatprep.subr.mxu0 0.0
    %6479 = vmatpush1.msra.mxu0 0.0
    %6480 = vmatprep.subr.mxu0 0.0
    %6481 = vmatpush1.msra.mxu0 0.0
    %6482 = vmatprep.subr.mxu0 0.0
    %6483 = vmatpush1.msra.mxu0 0.0
    %6484 = vmatprep.subr.mxu0 0.0
    %6485 = vmatpush1.msra.mxu0 0.0
    %6486 = vmatprep.subr.mxu0 0.0
    %6487 = vmatpush1.msra.mxu0 0.0
    %6488 = vmatprep.subr.mxu0 0.0
    %6489 = vmatpush1.msra.mxu0 0.0
    %6490 = vmatprep.subr.mxu0 0.0
    %6491 = vmatpush1.msra.mxu0 0.0
    %6492 = vmatprep.subr.mxu0 0.0
    %6493 = vmatpush1.msra.mxu0 0.0
    %6494 = vmatprep.subr.mxu0 0.0
    %6495 = vmatpush1.msra.mxu0 0.0
    %6496 = vmatprep.subr.mxu0 0.0
    %6497 = vmatpush1.msra.mxu0 0.0
    %6498 = vmatprep.subr.mxu0 0.0
    %6499 = vmatpush1.msra.mxu0 0.0
    %6500 = vmatprep.subr.mxu0 0.0
    %6501 = vmatpush1.msra.mxu0 0.0
    %6502 = vmatprep.subr.mxu0 0.0
    %6503 = vmatpush1.msra.mxu0 0.0
    %6504 = vmatprep.subr.mxu0 0.0
    %6505 = vmatpush1.msra.mxu0 0.0
    %6506 = vmatprep.subr.mxu0 0.0
    %6507 = vmatpush1.msra.mxu0 0.0
    %6508 = vmatprep.subr.mxu0 0.0
    %6509 = vmatpush1.msra.mxu0 0.0
    %6510 = vmatprep.subr.mxu0 0.0
    %6511 = vmatpush1.msra.mxu0 0.0
    %6512 = vmatprep.subr.mxu0 0.0
    %6513 = vmatpush1.msra.mxu0 0.0
    %6514 = vmatprep.subr.mxu0 0.0
    %6515 = vmatpush1.msra.mxu0 0.0
    %6516 = vmatprep.subr.mxu0 0.0
    %6517 = vmatpush1.msra.mxu0 0.0
    %6518 = vmatprep.subr.mxu0 0.0
    %6519 = vmatpush1.msra.mxu0 0.0
    %6520 = vmatprep.subr.mxu0 0.0
    %6521 = vmatpush1.msra.mxu0 0.0
    %6522 = vmatprep.subr.mxu0 0.0
    %6523 = vmatpush1.msra.mxu0 0.0
    %6524 = vmatprep.subr.mxu0 0.0
    %6525 = vmatpush1.msra.mxu0 0.0
    %6526 = vmatprep.subr.mxu0 0.0
    %6527 = vmatpush1.msra.mxu0 0.0
    %6528 = vmatprep.subr.mxu0 0.0
    %6529 = vmatpush1.msra.mxu0 0.0
    %6530 = vmatprep.subr.mxu0 0.0
    %6531 = vmatpush1.msra.mxu0 0.0
    %6532 = vmatprep.subr.mxu0 0.0
    %6533 = vmatpush1.msra.mxu0 0.0
    %6534 = vmatprep.mubr.f32.mxu0 0.0
    %v6535 = vand.u32 %v6215, 4294901760
    %v6536 = vsub.f32 %v6215, %v6535
    %v6537 = vand.u32 %v6536, 4294901760
    %6538 = vmatmul.mubr.f32.gmra.mrb[0].mxu0 %v6537
    %v6539 = vpop.f32.mrb[0].mxu0
    %v6540 = vadd.f32 %v6459, %v6539
    %v6541 = vpop.f32.mrb[0].mxu0
    %6542 = vmatprep.mubr.f32.mxu0 0.0
    %v6543 = vand.u32 %v6218, 4294901760
    %v6544 = vsub.f32 %v6218, %v6543
    %v6545 = vand.u32 %v6544, 4294901760
    %6546 = vmatmul.mubr.f32.gmra.mrb[0].mxu0 %v6545
    %v6547 = vpop.f32.mrb[0].mxu0
    %v6548 = vadd.f32 %v6466, %v6547
    %v6549 = vpop.f32.mrb[0].mxu0
    %6550 = vdwg.mxu0
    %6551 = vmatprep.subr.mxu0 0.0
    %v6552 = vand.u32 %v6212, 4294901760
    %v6553 = vsub.f32 %v6212, %v6552
    %v6554 = vand.u32 %v6553, 4294901760
    %6555 = vmatpush1.msra.mxu0 %v6554
    %6556 = vmatprep.subr.mxu0 0.0
    %6557 = vmatpush1.msra.mxu0 0.0
    %6558 = vmatprep.subr.mxu0 0.0
    %6559 = vmatpush1.msra.mxu0 0.0
    %6560 = vmatprep.subr.mxu0 0.0
    %6561 = vmatpush1.msra.mxu0 0.0
    %6562 = vmatprep.subr.mxu0 0.0
    %6563 = vmatpush1.msra.mxu0 0.0
    %6564 = vmatprep.subr.mxu0 0.0
    %6565 = vmatpush1.msra.mxu0 0.0
    %6566 = vmatprep.subr.mxu0 0.0
    %6567 = vmatpush1.msra.mxu0 0.0
    %6568 = vmatprep.subr.mxu0 0.0
    %6569 = vmatpush1.msra.mxu0 0.0
    %6570 = vmatprep.subr.mxu0 0.0
    %6571 = vmatpush1.msra.mxu0 0.0
    %6572 = vmatprep.subr.mxu0 0.0
    %6573 = vmatpush1.msra.mxu0 0.0
    %6574 = vmatprep.subr.mxu0 0.0
    %6575 = vmatpush1.msra.mxu0 0.0
    %6576 = vmatprep.subr.mxu0 0.0
    %6577 = vmatpush1.msra.mxu0 0.0
    %6578 = vmatprep.subr.mxu0 0.0
    %6579 = vmatpush1.msra.mxu0 0.0
    %6580 = vmatprep.subr.mxu0 0.0
    %6581 = vmatpush1.msra.mxu0 0.0
    %6582 = vmatprep.subr.mxu0 0.0
    %6583 = vmatpush1.msra.mxu0 0.0
    %6584 = vmatprep.subr.mxu0 0.0
    %6585 = vmatpush1.msra.mxu0 0.0
    %6586 = vmatprep.subr.mxu0 0.0
    %6587 = vmatpush1.msra.mxu0 0.0
    %6588 = vmatprep.subr.mxu0 0.0
    %6589 = vmatpush1.msra.mxu0 0.0
    %6590 = vmatprep.subr.mxu0 0.0
    %6591 = vmatpush1.msra.mxu0 0.0
    %6592 = vmatprep.subr.mxu0 0.0
    %6593 = vmatpush1.msra.mxu0 0.0
    %6594 = vmatprep.subr.mxu0 0.0
    %6595 = vmatpush1.msra.mxu0 0.0
    %6596 = vmatprep.subr.mxu0 0.0
    %6597 = vmatpush1.msra.mxu0 0.0
    %6598 = vmatprep.subr.mxu0 0.0
    %6599 = vmatpush1.msra.mxu0 0.0
    %6600 = vmatprep.subr.mxu0 0.0
    %6601 = vmatpush1.msra.mxu0 0.0
    %6602 = vmatprep.subr.mxu0 0.0
    %6603 = vmatpush1.msra.mxu0 0.0
    %6604 = vmatprep.subr.mxu0 0.0
    %6605 = vmatpush1.msra.mxu0 0.0
    %6606 = vmatprep.subr.mxu0 0.0
    %6607 = vmatpush1.msra.mxu0 0.0
    %6608 = vmatprep.subr.mxu0 0.0
    %6609 = vmatpush1.msra.mxu0 0.0
    %6610 = vmatprep.subr.mxu0 0.0
    %6611 = vmatpush1.msra.mxu0 0.0
    %6612 = vmatprep.subr.mxu0 0.0
    %6613 = vmatpush1.msra.mxu0 0.0
    %6614 = vmatprep.subr.mxu0 0.0
    %6615 = vmatpush1.msra.mxu0 0.0
    %6616 = vmatprep.subr.mxu0 0.0
    %6617 = vmatpush1.msra.mxu0 0.0
    %6618 = vmatprep.mubr.f32.mxu0 0.0
    %v6619 = vand.u32 %v6215, 4294901760
    %6620 = vmatmul.mubr.f32.gmra.mrb[0].mxu0 %v6619
    %v6621 = vpop.f32.mrb[0].mxu0
    %v6622 = vadd.f32 %v6540, %v6621
    %v6623 = vpop.f32.mrb[0].mxu0
    %6624 = vmatprep.mubr.f32.mxu0 0.0
    %v6625 = vand.u32 %v6218, 4294901760
    %6626 = vmatmul.mubr.f32.gmra.mrb[0].mxu0 %v6625
    %v6627 = vpop.f32.mrb[0].mxu0
    %v6628 = vadd.f32 %v6548, %v6627
    %v6629 = vpop.f32.mrb[0].mxu0
    %6630 = vdwg.mxu0
    %6631 = vmatprep.subr.mxu0 0.0
    %v6632 = vand.u32 %v6212, 4294901760
    %6633 = vmatpush1.msra.mxu0 %v6632
    %6634 = vmatprep.subr.mxu0 0.0
    %6635 = vmatpush1.msra.mxu0 0.0
    %6636 = vmatprep.subr.mxu0 0.0
    %6637 = vmatpush1.msra.mxu0 0.0
    %6638 = vmatprep.subr.mxu0 0.0
    %6639 = vmatpush1.msra.mxu0 0.0
    %6640 = vmatprep.subr.mxu0 0.0
    %6641 = vmatpush1.msra.mxu0 0.0
    %6642 = vmatprep.subr.mxu0 0.0
    %6643 = vmatpush1.msra.mxu0 0.0
    %6644 = vmatprep.subr.mxu0 0.0
    %6645 = vmatpush1.msra.mxu0 0.0
    %6646 = vmatprep.subr.mxu0 0.0
    %6647 = vmatpush1.msra.mxu0 0.0
    %6648 = vmatprep.subr.mxu0 0.0
    %6649 = vmatpush1.msra.mxu0 0.0
    %6650 = vmatprep.subr.mxu0 0.0
    %6651 = vmatpush1.msra.mxu0 0.0
    %6652 = vmatprep.subr.mxu0 0.0
    %6653 = vmatpush1.msra.mxu0 0.0
    %6654 = vmatprep.subr.mxu0 0.0
    %6655 = vmatpush1.msra.mxu0 0.0
    %6656 = vmatprep.subr.mxu0 0.0
    %6657 = vmatpush1.msra.mxu0 0.0
    %6658 = vmatprep.subr.mxu0 0.0
    %6659 = vmatpush1.msra.mxu0 0.0
    %6660 = vmatprep.subr.mxu0 0.0
    %6661 = vmatpush1.msra.mxu0 0.0
    %6662 = vmatprep.subr.mxu0 0.0
    %6663 = vmatpush1.msra.mxu0 0.0
    %6664 = vmatprep.subr.mxu0 0.0
    %6665 = vmatpush1.msra.mxu0 0.0
    %6666 = vmatprep.subr.mxu0 0.0
    %6667 = vmatpush1.msra.mxu0 0.0
    %6668 = vmatprep.subr.mxu0 0.0
    %6669 = vmatpush1.msra.mxu0 0.0
    %6670 = vmatprep.subr.mxu0 0.0
    %6671 = vmatpush1.msra.mxu0 0.0
    %6672 = vmatprep.subr.mxu0 0.0
    %6673 = vmatpush1.msra.mxu0 0.0
    %6674 = vmatprep.subr.mxu0 0.0
    %6675 = vmatpush1.msra.mxu0 0.0
    %6676 = vmatprep.subr.mxu0 0.0
    %6677 = vmatpush1.msra.mxu0 0.0
    %6678 = vmatprep.subr.mxu0 0.0
    %6679 = vmatpush1.msra.mxu0 0.0
    %6680 = vmatprep.subr.mxu0 0.0
    %6681 = vmatpush1.msra.mxu0 0.0
    %6682 = vmatprep.subr.mxu0 0.0
    %6683 = vmatpush1.msra.mxu0 0.0
    %6684 = vmatprep.subr.mxu0 0.0
    %6685 = vmatpush1.msra.mxu0 0.0
    %6686 = vmatprep.subr.mxu0 0.0
    %6687 = vmatpush1.msra.mxu0 0.0
    %6688 = vmatprep.subr.mxu0 0.0
    %6689 = vmatpush1.msra.mxu0 0.0
    %6690 = vmatprep.subr.mxu0 0.0
    %6691 = vmatpush1.msra.mxu0 0.0
    %6692 = vmatprep.subr.mxu0 0.0
    %6693 = vmatpush1.msra.mxu0 0.0
    %6694 = vmatprep.subr.mxu0 0.0
    %6695 = vmatpush1.msra.mxu0 0.0
    %6696 = vmatprep.mubr.f32.mxu0 0.0
    %v6697 = vand.u32 %v6215, 4294901760
    %6698 = vmatmul.mubr.f32.gmra.mrb[0].mxu0 %v6697
    %v6699 = vpop.f32.mrb[0].mxu0
    %v6700 = vadd.f32 %v6622, %v6699
    %v6701 = vpop.f32.mrb[0].mxu0
    %6702 = vmatprep.mubr.f32.mxu0 0.0
    %v6703 = vand.u32 %v6218, 4294901760
    %6704 = vmatmul.mubr.f32.gmra.mrb[0].mxu0 %v6703
    %v6705 = vpop.f32.mrb[0].mxu0
    %v6706 = vadd.f32 %v6628, %v6705
    %v6707 = vpop.f32.mrb[0].mxu0
    %6708 = vdwg.mxu0
    %v6709 = vadd.f32 %v6700, %v6210
    %v6710 = vadd.f32 %v6706, %v6211
    %v6711 = vmax.f32 %v6709, 0.0
    %v6712 = vmax.f32 %v6710, 0.0
    %6713 = vmatprep.subr.mxu0 0.0
    %v6714 = vand.u32 %v6711, 4294901760
    %6715 = vmatpush1.msra.mxu0 %v6714
    %6716 = vmatprep.subr.mxu0 0.0
    %v6717 = vand.u32 %v6712, 4294901760
    %6718 = vmatpush1.msra.mxu0 %v6717
    %6719 = vmatprep.subr.mxu0 0.0
    %6720 = vmatpush1.msra.mxu0 0.0
    %6721 = vmatprep.subr.mxu0 0.0
    %6722 = vmatpush1.msra.mxu0 0.0
    %6723 = vmatprep.subr.mxu0 0.0
    %6724 = vmatpush1.msra.mxu0 0.0
    %6725 = vmatprep.subr.mxu0 0.0
    %6726 = vmatpush1.msra.mxu0 0.0
    %6727 = vmatprep.subr.mxu0 0.0
    %6728 = vmatpush1.msra.mxu0 0.0
    %6729 = vmatprep.subr.mxu0 0.0
    %6730 = vmatpush1.msra.mxu0 0.0
    %6731 = vmatprep.subr.mxu0 0.0
    %6732 = vmatpush1.msra.mxu0 0.0
    %6733 = vmatprep.subr.mxu0 0.0
    %6734 = vmatpush1.msra.mxu0 0.0
    %6735 = vmatprep.subr.mxu0 0.0
    %6736 = vmatpush1.msra.mxu0 0.0
    %6737 = vmatprep.subr.mxu0 0.0
    %6738 = vmatpush1.msra.mxu0 0.0
    %6739 = vmatprep.subr.mxu0 0.0
    %6740 = vmatpush1.msra.mxu0 0.0
    %6741 = vmatprep.subr.mxu0 0.0
    %6742 = vmatpush1.msra.mxu0 0.0
    %6743 = vmatprep.subr.mxu0 0.0
    %6744 = vmatpush1.msra.mxu0 0.0
    %6745 = vmatprep.subr.mxu0 0.0
    %6746 = vmatpush1.msra.mxu0 0.0
    %6747 = vmatprep.subr.mxu0 0.0
    %6748 = vmatpush1.msra.mxu0 0.0
    %6749 = vmatprep.subr.mxu0 0.0
    %6750 = vmatpush1.msra.mxu0 0.0
    %6751 = vmatprep.subr.mxu0 0.0
    %6752 = vmatpush1.msra.mxu0 0.0
    %6753 = vmatprep.subr.mxu0 0.0
    %6754 = vmatpush1.msra.mxu0 0.0
    %6755 = vmatprep.subr.mxu0 0.0
    %6756 = vmatpush1.msra.mxu0 0.0
    %6757 = vmatprep.subr.mxu0 0.0
    %6758 = vmatpush1.msra.mxu0 0.0
    %6759 = vmatprep.subr.mxu0 0.0
    %6760 = vmatpush1.msra.mxu0 0.0
    %6761 = vmatprep.subr.mxu0 0.0
    %6762 = vmatpush1.msra.mxu0 0.0
    %6763 = vmatprep.subr.mxu0 0.0
    %6764 = vmatpush1.msra.mxu0 0.0
    %6765 = vmatprep.subr.mxu0 0.0
    %6766 = vmatpush1.msra.mxu0 0.0
    %6767 = vmatprep.subr.mxu0 0.0
    %6768 = vmatpush1.msra.mxu0 0.0
    %6769 = vmatprep.subr.mxu0 0.0
    %6770 = vmatpush1.msra.mxu0 0.0
    %6771 = vmatprep.subr.mxu0 0.0
    %6772 = vmatpush1.msra.mxu0 0.0
    %6773 = vmatprep.subr.mxu0 0.0
    %6774 = vmatpush1.msra.mxu0 0.0
    %6775 = vmatprep.subr.mxu0 0.0
    %6776 = vmatpush1.msra.mxu0 0.0
    %6777 = vmatprep.subr.mxu0 0.0
    %6778 = vmatpush1.msra.mxu0 0.0
    %6779 = vmatprep.mubr.f32.mxu0 0.0
    %v6780 = vand.u32 %v5155, 4294901760
    %v6781 = vsub.f32 %v5155, %v6780
    %v6782 = vand.u32 %v6781, 4294901760
    %v6783 = vsub.f32 %v6781, %v6782
    %v6784 = vand.u32 %v6783, 4294901760
    %6785 = vmatmul.mubr.f32.gmra.mrb[0].mxu0 %v6784
    %v6786 = vpop.f32.mrb[0].mxu0
    %v6787 = vadd.f32 0.0, %v6786
    %v6788 = vpop.f32.mrb[0].mxu0
    %6789 = vmatprep.mubr.f32.mxu0 0.0
    %v6790 = vand.u32 %v5158, 4294901760
    %v6791 = vsub.f32 %v5158, %v6790
    %v6792 = vand.u32 %v6791, 4294901760
    %v6793 = vsub.f32 %v6791, %v6792
    %v6794 = vand.u32 %v6793, 4294901760
    %6795 = vmatmul.mubr.f32.gmra.mrb[0].mxu0 %v6794
    %v6796 = vpop.f32.mrb[0].mxu0
    %v6797 = vadd.f32 0.0, %v6796
    %v6798 = vpop.f32.mrb[0].mxu0
    %6799 = vdwg.mxu0
    %6800 = vmatprep.subr.mxu0 0.0
    %v6801 = vand.u32 %v6711, 4294901760
    %v6802 = vsub.f32 %v6711, %v6801
    %v6803 = vand.u32 %v6802, 4294901760
    %v6804 = vsub.f32 %v6802, %v6803
    %v6805 = vand.u32 %v6804, 4294901760
    %6806 = vmatpush1.msra.mxu0 %v6805
    %6807 = vmatprep.subr.mxu0 0.0
    %v6808 = vand.u32 %v6712, 4294901760
    %v6809 = vsub.f32 %v6712, %v6808
    %v6810 = vand.u32 %v6809, 4294901760
    %v6811 = vsub.f32 %v6809, %v6810
    %v6812 = vand.u32 %v6811, 4294901760
    %6813 = vmatpush1.msra.mxu0 %v6812
    %6814 = vmatprep.subr.mxu0 0.0
    %6815 = vmatpush1.msra.mxu0 0.0
    %6816 = vmatprep.subr.mxu0 0.0
    %6817 = vmatpush1.msra.mxu0 0.0
    %6818 = vmatprep.subr.mxu0 0.0
    %6819 = vmatpush1.msra.mxu0 0.0
    %6820 = vmatprep.subr.mxu0 0.0
    %6821 = vmatpush1.msra.mxu0 0.0
    %6822 = vmatprep.subr.mxu0 0.0
    %6823 = vmatpush1.msra.mxu0 0.0
    %6824 = vmatprep.subr.mxu0 0.0
    %6825 = vmatpush1.msra.mxu0 0.0
    %6826 = vmatprep.subr.mxu0 0.0
    %6827 = vmatpush1.msra.mxu0 0.0
    %6828 = vmatprep.subr.mxu0 0.0
    %6829 = vmatpush1.msra.mxu0 0.0
    %6830 = vmatprep.subr.mxu0 0.0
    %6831 = vmatpush1.msra.mxu0 0.0
    %6832 = vmatprep.subr.mxu0 0.0
    %6833 = vmatpush1.msra.mxu0 0.0
    %6834 = vmatprep.subr.mxu0 0.0
    %6835 = vmatpush1.msra.mxu0 0.0
    %6836 = vmatprep.subr.mxu0 0.0
    %6837 = vmatpush1.msra.mxu0 0.0
    %6838 = vmatprep.subr.mxu0 0.0
    %6839 = vmatpush1.msra.mxu0 0.0
    %6840 = vmatprep.subr.mxu0 0.0
    %6841 = vmatpush1.msra.mxu0 0.0
    %6842 = vmatprep.subr.mxu0 0.0
    %6843 = vmatpush1.msra.mxu0 0.0
    %6844 = vmatprep.subr.mxu0 0.0
    %6845 = vmatpush1.msra.mxu0 0.0
    %6846 = vmatprep.subr.mxu0 0.0
    %6847 = vmatpush1.msra.mxu0 0.0
    %6848 = vmatprep.subr.mxu0 0.0
    %6849 = vmatpush1.msra.mxu0 0.0
    %6850 = vmatprep.subr.mxu0 0.0
    %6851 = vmatpush1.msra.mxu0 0.0
    %6852 = vmatprep.subr.mxu0 0.0
    %6853 = vmatpush1.msra.mxu0 0.0
    %6854 = vmatprep.subr.mxu0 0.0
    %6855 = vmatpush1.msra.mxu0 0.0
    %6856 = vmatprep.subr.mxu0 0.0
    %6857 = vmatpush1.msra.mxu0 0.0
    %6858 = vmatprep.subr.mxu0 0.0
    %6859 = vmatpush1.msra.mxu0 0.0
    %6860 = vmatprep.subr.mxu0 0.0
    %6861 = vmatpush1.msra.mxu0 0.0
    %6862 = vmatprep.subr.mxu0 0.0
    %6863 = vmatpush1.msra.mxu0 0.0
    %6864 = vmatprep.subr.mxu0 0.0
    %6865 = vmatpush1.msra.mxu0 0.0
    %6866 = vmatprep.subr.mxu0 0.0
    %6867 = vmatpush1.msra.mxu0 0.0
    %6868 = vmatprep.subr.mxu0 0.0
    %6869 = vmatpush1.msra.mxu0 0.0
    %6870 = vmatprep.subr.mxu0 0.0
    %6871 = vmatpush1.msra.mxu0 0.0
    %6872 = vmatprep.subr.mxu0 0.0
    %6873 = vmatpush1.msra.mxu0 0.0
    %6874 = vmatprep.mubr.f32.mxu0 0.0
    %v6875 = vand.u32 %v5155, 4294901760
    %6876 = vmatmul.mubr.f32.gmra.mrb[0].mxu0 %v6875
    %v6877 = vpop.f32.mrb[0].mxu0
    %v6878 = vadd.f32 %v6787, %v6877
    %v6879 = vpop.f32.mrb[0].mxu0
    %6880 = vmatprep.mubr.f32.mxu0 0.0
    %v6881 = vand.u32 %v5158, 4294901760
    %6882 = vmatmul.mubr.f32.gmra.mrb[0].mxu0 %v6881
    %v6883 = vpop.f32.mrb[0].mxu0
    %v6884 = vadd.f32 %v6797, %v6883
    %v6885 = vpop.f32.mrb[0].mxu0
    %6886 = vdwg.mxu0
    %6887 = vmatprep.subr.mxu0 0.0
    %v6888 = vand.u32 %v6711, 4294901760
    %v6889 = vsub.f32 %v6711, %v6888
    %6890 = vmatpush1.msra.mxu0 %v6889
    %6891 = vmatprep.subr.mxu0 0.0
    %v6892 = vand.u32 %v6712, 4294901760
    %v6893 = vsub.f32 %v6712, %v6892
    %6894 = vmatpush1.msra.mxu0 %v6893
    %6895 = vmatprep.subr.mxu0 0.0
    %6896 = vmatpush1.msra.mxu0 0.0
    %6897 = vmatprep.subr.mxu0 0.0
    %6898 = vmatpush1.msra.mxu0 0.0
    %6899 = vmatprep.subr.mxu0 0.0
    %6900 = vmatpush1.msra.mxu0 0.0
    %6901 = vmatprep.subr.mxu0 0.0
    %6902 = vmatpush1.msra.mxu0 0.0
    %6903 = vmatprep.subr.mxu0 0.0
    %6904 = vmatpush1.msra.mxu0 0.0
    %6905 = vmatprep.subr.mxu0 0.0
    %6906 = vmatpush1.msra.mxu0 0.0
    %6907 = vmatprep.subr.mxu0 0.0
    %6908 = vmatpush1.msra.mxu0 0.0
    %6909 = vmatprep.subr.mxu0 0.0
    %6910 = vmatpush1.msra.mxu0 0.0
    %6911 = vmatprep.subr.mxu0 0.0
    %6912 = vmatpush1.msra.mxu0 0.0
    %6913 = vmatprep.subr.mxu0 0.0
    %6914 = vmatpush1.msra.mxu0 0.0
    %6915 = vmatprep.subr.mxu0 0.0
    %6916 = vmatpush1.msra.mxu0 0.0
    %6917 = vmatprep.subr.mxu0 0.0
    %6918 = vmatpush1.msra.mxu0 0.0
    %6919 = vmatprep.subr.mxu0 0.0
    %6920 = vmatpush1.msra.mxu0 0.0
    %6921 = vmatprep.subr.mxu0 0.0
    %6922 = vmatpush1.msra.mxu0 0.0
    %6923 = vmatprep.subr.mxu0 0.0
    %6924 = vmatpush1.msra.mxu0 0.0
    %6925 = vmatprep.subr.mxu0 0.0
    %6926 = vmatpush1.msra.mxu0 0.0
    %6927 = vmatprep.subr.mxu0 0.0
    %6928 = vmatpush1.msra.mxu0 0.0
    %6929 = vmatprep.subr.mxu0 0.0
    %6930 = vmatpush1.msra.mxu0 0.0
    %6931 = vmatprep.subr.mxu0 0.0
    %6932 = vmatpush1.msra.mxu0 0.0
    %6933 = vmatprep.subr.mxu0 0.0
    %6934 = vmatpush1.msra.mxu0 0.0
    %6935 = vmatprep.subr.mxu0 0.0
    %6936 = vmatpush1.msra.mxu0 0.0
    %6937 = vmatprep.subr.mxu0 0.0
    %6938 = vmatpush1.msra.mxu0 0.0
    %6939 = vmatprep.subr.mxu0 0.0
    %6940 = vmatpush1.msra.mxu0 0.0
    %6941 = vmatprep.subr.mxu0 0.0
    %6942 = vmatpush1.msra.mxu0 0.0
    %6943 = vmatprep.subr.mxu0 0.0
    %6944 = vmatpush1.msra.mxu0 0.0
    %6945 = vmatprep.subr.mxu0 0.0
    %6946 = vmatpush1.msra.mxu0 0.0
    %6947 = vmatprep.subr.mxu0 0.0
    %6948 = vmatpush1.msra.mxu0 0.0
    %6949 = vmatprep.subr.mxu0 0.0
    %6950 = vmatpush1.msra.mxu0 0.0
    %6951 = vmatprep.subr.mxu0 0.0
    %6952 = vmatpush1.msra.mxu0 0.0
    %6953 = vmatprep.subr.mxu0 0.0
    %6954 = vmatpush1.msra.mxu0 0.0
    %6955 = vmatprep.mubr.f32.mxu0 0.0
    %v6956 = vand.u32 %v5155, 4294901760
    %v6957 = vsub.f32 %v5155, %v6956
    %6958 = vmatmul.mubr.f32.gmra.mrb[0].mxu0 %v6957
    %v6959 = vpop.f32.mrb[0].mxu0
    %v6960 = vadd.f32 %v6878, %v6959
    %v6961 = vpop.f32.mrb[0].mxu0
    %6962 = vmatprep.mubr.f32.mxu0 0.0
    %v6963 = vand.u32 %v5158, 4294901760
    %v6964 = vsub.f32 %v5158, %v6963
    %6965 = vmatmul.mubr.f32.gmra.mrb[0].mxu0 %v6964
    %v6966 = vpop.f32.mrb[0].mxu0
    %v6967 = vadd.f32 %v6884, %v6966
    %v6968 = vpop.f32.mrb[0].mxu0
    %6969 = vdwg.mxu0
    %6970 = vmatprep.subr.mxu0 0.0
    %v6971 = vand.u32 %v6711, 4294901760
    %6972 = vmatpush1.msra.mxu0 %v6971
    %6973 = vmatprep.subr.mxu0 0.0
    %v6974 = vand.u32 %v6712, 4294901760
    %6975 = vmatpush1.msra.mxu0 %v6974
    %6976 = vmatprep.subr.mxu0 0.0
    %6977 = vmatpush1.msra.mxu0 0.0
    %6978 = vmatprep.subr.mxu0 0.0
    %6979 = vmatpush1.msra.mxu0 0.0
    %6980 = vmatprep.subr.mxu0 0.0
    %6981 = vmatpush1.msra.mxu0 0.0
    %6982 = vmatprep.subr.mxu0 0.0
    %6983 = vmatpush1.msra.mxu0 0.0
    %6984 = vmatprep.subr.mxu0 0.0
    %6985 = vmatpush1.msra.mxu0 0.0
    %6986 = vmatprep.subr.mxu0 0.0
    %6987 = vmatpush1.msra.mxu0 0.0
    %6988 = vmatprep.subr.mxu0 0.0
    %6989 = vmatpush1.msra.mxu0 0.0
    %6990 = vmatprep.subr.mxu0 0.0
    %6991 = vmatpush1.msra.mxu0 0.0
    %6992 = vmatprep.subr.mxu0 0.0
    %6993 = vmatpush1.msra.mxu0 0.0
    %6994 = vmatprep.subr.mxu0 0.0
    %6995 = vmatpush1.msra.mxu0 0.0
    %6996 = vmatprep.subr.mxu0 0.0
    %6997 = vmatpush1.msra.mxu0 0.0
    %6998 = vmatprep.subr.mxu0 0.0
    %6999 = vmatpush1.msra.mxu0 0.0
    %7000 = vmatprep.subr.mxu0 0.0
    %7001 = vmatpush1.msra.mxu0 0.0
    %7002 = vmatprep.subr.mxu0 0.0
    %7003 = vmatpush1.msra.mxu0 0.0
    %7004 = vmatprep.subr.mxu0 0.0
    %7005 = vmatpush1.msra.mxu0 0.0
    %7006 = vmatprep.subr.mxu0 0.0
    %7007 = vmatpush1.msra.mxu0 0.0
    %7008 = vmatprep.subr.mxu0 0.0
    %7009 = vmatpush1.msra.mxu0 0.0
    %7010 = vmatprep.subr.mxu0 0.0
    %7011 = vmatpush1.msra.mxu0 0.0
    %7012 = vmatprep.subr.mxu0 0.0
    %7013 = vmatpush1.msra.mxu0 0.0
    %7014 = vmatprep.subr.mxu0 0.0
    %7015 = vmatpush1.msra.mxu0 0.0
    %7016 = vmatprep.subr.mxu0 0.0
    %7017 = vmatpush1.msra.mxu0 0.0
    %7018 = vmatprep.subr.mxu0 0.0
    %7019 = vmatpush1.msra.mxu0 0.0
    %7020 = vmatprep.subr.mxu0 0.0
    %7021 = vmatpush1.msra.mxu0 0.0
    %7022 = vmatprep.subr.mxu0 0.0
    %7023 = vmatpush1.msra.mxu0 0.0
    %7024 = vmatprep.subr.mxu0 0.0
    %7025 = vmatpush1.msra.mxu0 0.0
    %7026 = vmatprep.subr.mxu0 0.0
    %7027 = vmatpush1.msra.mxu0 0.0
    %7028 = vmatprep.subr.mxu0 0.0
    %7029 = vmatpush1.msra.mxu0 0.0
    %7030 = vmatprep.subr.mxu0 0.0
    %7031 = vmatpush1.msra.mxu0 0.0
    %7032 = vmatprep.subr.mxu0 0.0
    %7033 = vmatpush1.msra.mxu0 0.0
    %7034 = vmatprep.subr.mxu0 0.0
    %7035 = vmatpush1.msra.mxu0 0.0
    %7036 = vmatprep.mubr.f32.mxu0 0.0
    %v7037 = vand.u32 %v5155, 4294901760
    %v7038 = vsub.f32 %v5155, %v7037
    %v7039 = vand.u32 %v7038, 4294901760
    %7040 = vmatmul.mubr.f32.gmra.mrb[0].mxu0 %v7039
    %v7041 = vpop.f32.mrb[0].mxu0
    %v7042 = vadd.f32 %v6960, %v7041
    %v7043 = vpop.f32.mrb[0].mxu0
    %7044 = vmatprep.mubr.f32.mxu0 0.0
    %v7045 = vand.u32 %v5158, 4294901760
    %v7046 = vsub.f32 %v5158, %v7045
    %v7047 = vand.u32 %v7046, 4294901760
    %7048 = vmatmul.mubr.f32.gmra.mrb[0].mxu0 %v7047
    %v7049 = vpop.f32.mrb[0].mxu0
    %v7050 = vadd.f32 %v6967, %v7049
    %v7051 = vpop.f32.mrb[0].mxu0
    %7052 = vdwg.mxu0
    %7053 = vmatprep.subr.mxu0 0.0
    %v7054 = vand.u32 %v6711, 4294901760
    %v7055 = vsub.f32 %v6711, %v7054
    %v7056 = vand.u32 %v7055, 4294901760
    %7057 = vmatpush1.msra.mxu0 %v7056
    %7058 = vmatprep.subr.mxu0 0.0
    %v7059 = vand.u32 %v6712, 4294901760
    %v7060 = vsub.f32 %v6712, %v7059
    %v7061 = vand.u32 %v7060, 4294901760
    %7062 = vmatpush1.msra.mxu0 %v7061
    %7063 = vmatprep.subr.mxu0 0.0
    %7064 = vmatpush1.msra.mxu0 0.0
    %7065 = vmatprep.subr.mxu0 0.0
    %7066 = vmatpush1.msra.mxu0 0.0
    %7067 = vmatprep.subr.mxu0 0.0
    %7068 = vmatpush1.msra.mxu0 0.0
    %7069 = vmatprep.subr.mxu0 0.0
    %7070 = vmatpush1.msra.mxu0 0.0
    %7071 = vmatprep.subr.mxu0 0.0
    %7072 = vmatpush1.msra.mxu0 0.0
    %7073 = vmatprep.subr.mxu0 0.0
    %7074 = vmatpush1.msra.mxu0 0.0
    %7075 = vmatprep.subr.mxu0 0.0
    %7076 = vmatpush1.msra.mxu0 0.0
    %7077 = vmatprep.subr.mxu0 0.0
    %7078 = vmatpush1.msra.mxu0 0.0
    %7079 = vmatprep.subr.mxu0 0.0
    %7080 = vmatpush1.msra.mxu0 0.0
    %7081 = vmatprep.subr.mxu0 0.0
    %7082 = vmatpush1.msra.mxu0 0.0
    %7083 = vmatprep.subr.mxu0 0.0
    %7084 = vmatpush1.msra.mxu0 0.0
    %7085 = vmatprep.subr.mxu0 0.0
    %7086 = vmatpush1.msra.mxu0 0.0
    %7087 = vmatprep.subr.mxu0 0.0
    %7088 = vmatpush1.msra.mxu0 0.0
    %7089 = vmatprep.subr.mxu0 0.0
    %7090 = vmatpush1.msra.mxu0 0.0
    %7091 = vmatprep.subr.mxu0 0.0
    %7092 = vmatpush1.msra.mxu0 0.0
    %7093 = vmatprep.subr.mxu0 0.0
    %7094 = vmatpush1.msra.mxu0 0.0
    %7095 = vmatprep.subr.mxu0 0.0
    %7096 = vmatpush1.msra.mxu0 0.0
    %7097 = vmatprep.subr.mxu0 0.0
    %7098 = vmatpush1.msra.mxu0 0.0
    %7099 = vmatprep.subr.mxu0 0.0
    %7100 = vmatpush1.msra.mxu0 0.0
    %7101 = vmatprep.subr.mxu0 0.0
    %7102 = vmatpush1.msra.mxu0 0.0
    %7103 = vmatprep.subr.mxu0 0.0
    %7104 = vmatpush1.msra.mxu0 0.0
    %7105 = vmatprep.subr.mxu0 0.0
    %7106 = vmatpush1.msra.mxu0 0.0
    %7107 = vmatprep.subr.mxu0 0.0
    %7108 = vmatpush1.msra.mxu0 0.0
    %7109 = vmatprep.subr.mxu0 0.0
    %7110 = vmatpush1.msra.mxu0 0.0
    %7111 = vmatprep.subr.mxu0 0.0
    %7112 = vmatpush1.msra.mxu0 0.0
    %7113 = vmatprep.subr.mxu0 0.0
    %7114 = vmatpush1.msra.mxu0 0.0
    %7115 = vmatprep.subr.mxu0 0.0
    %7116 = vmatpush1.msra.mxu0 0.0
    %7117 = vmatprep.subr.mxu0 0.0
    %7118 = vmatpush1.msra.mxu0 0.0
    %7119 = vmatprep.subr.mxu0 0.0
    %7120 = vmatpush1.msra.mxu0 0.0
    %7121 = vmatprep.subr.mxu0 0.0
    %7122 = vmatpush1.msra.mxu0 0.0
    %7123 = vmatprep.mubr.f32.mxu0 0.0
    %v7124 = vand.u32 %v5155, 4294901760
    %7125 = vmatmul.mubr.f32.gmra.mrb[0].mxu0 %v7124
    %v7126 = vpop.f32.mrb[0].mxu0
    %v7127 = vadd.f32 %v7042, %v7126
    %v7128 = vpop.f32.mrb[0].mxu0
    %7129 = vmatprep.mubr.f32.mxu0 0.0
    %v7130 = vand.u32 %v5158, 4294901760
    %7131 = vmatmul.mubr.f32.gmra.mrb[0].mxu0 %v7130
    %v7132 = vpop.f32.mrb[0].mxu0
    %v7133 = vadd.f32 %v7050, %v7132
    %v7134 = vpop.f32.mrb[0].mxu0
    %7135 = vdwg.mxu0
    %7136 = vmatprep.subr.mxu0 0.0
    %v7137 = vand.u32 %v6711, 4294901760
    %7138 = vmatpush1.msra.mxu0 %v7137
    %7139 = vmatprep.subr.mxu0 0.0
    %v7140 = vand.u32 %v6712, 4294901760
    %7141 = vmatpush1.msra.mxu0 %v7140
    %7142 = vmatprep.subr.mxu0 0.0
    %7143 = vmatpush1.msra.mxu0 0.0
    %7144 = vmatprep.subr.mxu0 0.0
    %7145 = vmatpush1.msra.mxu0 0.0
    %7146 = vmatprep.subr.mxu0 0.0
    %7147 = vmatpush1.msra.mxu0 0.0
    %7148 = vmatprep.subr.mxu0 0.0
    %7149 = vmatpush1.msra.mxu0 0.0
    %7150 = vmatprep.subr.mxu0 0.0
    %7151 = vmatpush1.msra.mxu0 0.0
    %7152 = vmatprep.subr.mxu0 0.0
    %7153 = vmatpush1.msra.mxu0 0.0
    %7154 = vmatprep.subr.mxu0 0.0
    %7155 = vmatpush1.msra.mxu0 0.0
    %7156 = vmatprep.subr.mxu0 0.0
    %7157 = vmatpush1.msra.mxu0 0.0
    %7158 = vmatprep.subr.mxu0 0.0
    %7159 = vmatpush1.msra.mxu0 0.0
    %7160 = vmatprep.subr.mxu0 0.0
    %7161 = vmatpush1.msra.mxu0 0.0
    %7162 = vmatprep.subr.mxu0 0.0
    %7163 = vmatpush1.msra.mxu0 0.0
    %7164 = vmatprep.subr.mxu0 0.0
    %7165 = vmatpush1.msra.mxu0 0.0
    %7166 = vmatprep.subr.mxu0 0.0
    %7167 = vmatpush1.msra.mxu0 0.0
    %7168 = vmatprep.subr.mxu0 0.0
    %7169 = vmatpush1.msra.mxu0 0.0
    %7170 = vmatprep.subr.mxu0 0.0
    %7171 = vmatpush1.msra.mxu0 0.0
    %7172 = vmatprep.subr.mxu0 0.0
    %7173 = vmatpush1.msra.mxu0 0.0
    %7174 = vmatprep.subr.mxu0 0.0
    %7175 = vmatpush1.msra.mxu0 0.0
    %7176 = vmatprep.subr.mxu0 0.0
    %7177 = vmatpush1.msra.mxu0 0.0
    %7178 = vmatprep.subr.mxu0 0.0
    %7179 = vmatpush1.msra.mxu0 0.0
    %7180 = vmatprep.subr.mxu0 0.0
    %7181 = vmatpush1.msra.mxu0 0.0
    %7182 = vmatprep.subr.mxu0 0.0
    %7183 = vmatpush1.msra.mxu0 0.0
    %7184 = vmatprep.subr.mxu0 0.0
    %7185 = vmatpush1.msra.mxu0 0.0
    %7186 = vmatprep.subr.mxu0 0.0
    %7187 = vmatpush1.msra.mxu0 0.0
    %7188 = vmatprep.subr.mxu0 0.0
    %7189 = vmatpush1.msra.mxu0 0.0
    %7190 = vmatprep.subr.mxu0 0.0
    %7191 = vmatpush1.msra.mxu0 0.0
    %7192 = vmatprep.subr.mxu0 0.0
    %7193 = vmatpush1.msra.mxu0 0.0
    %7194 = vmatprep.subr.mxu0 0.0
    %7195 = vmatpush1.msra.mxu0 0.0
    %7196 = vmatprep.subr.mxu0 0.0
    %7197 = vmatpush1.msra.mxu0 0.0
    %7198 = vmatprep.subr.mxu0 0.0
    %7199 = vmatpush1.msra.mxu0 0.0
    %7200 = vmatprep.subr.mxu0 0.0
    %7201 = vmatpush1.msra.mxu0 0.0
    %7202 = vmatprep.mubr.f32.mxu0 0.0
    %v7203 = vand.u32 %v5155, 4294901760
    %7204 = vmatmul.mubr.f32.gmra.mrb[0].mxu0 %v7203
    %v7205 = vpop.f32.mrb[0].mxu0
    %v7206 = vadd.f32 %v7127, %v7205
    %v7207 = vpop.f32.mrb[0].mxu0
    %7208 = vmatprep.mubr.f32.mxu0 0.0
    %v7209 = vand.u32 %v5158, 4294901760
    %7210 = vmatmul.mubr.f32.gmra.mrb[0].mxu0 %v7209
    %v7211 = vpop.f32.mrb[0].mxu0
    %v7212 = vadd.f32 %v7133, %v7211
    %v7213 = vpop.f32.mrb[0].mxu0
    %7214 = vdwg.mxu0
    %v7215 = vsub.f32 %v6711, %v7206
    %v7216 = vsub.f32 %v6712, %v7212
    %v7217 = vmul.f32 %v7215, %v7215
    %v7218 = vmul.f32 %v7216, %v7216
    %7219 = vmatprep.subr.mxu0 0.0
    %v7220 = vand.u32 %v7217, 4294901760
    %7221 = vmatpush1.msra.mxu0 %v7220
    %7222 = vmatprep.subr.mxu0 0.0
    %v7223 = vand.u32 %v7218, 4294901760
    %7224 = vmatpush1.msra.mxu0 %v7223
    %7225 = vmatprep.subr.mxu0 0.0
    %7226 = vmatpush1.msra.mxu0 0.0
    %7227 = vmatprep.subr.mxu0 0.0
    %7228 = vmatpush1.msra.mxu0 0.0
    %7229 = vmatprep.subr.mxu0 0.0
    %7230 = vmatpush1.msra.mxu0 0.0
    %7231 = vmatprep.subr.mxu0 0.0
    %7232 = vmatpush1.msra.mxu0 0.0
    %7233 = vmatprep.subr.mxu0 0.0
    %7234 = vmatpush1.msra.mxu0 0.0
    %7235 = vmatprep.subr.mxu0 0.0
    %7236 = vmatpush1.msra.mxu0 0.0
    %7237 = vmatprep.subr.mxu0 0.0
    %7238 = vmatpush1.msra.mxu0 0.0
    %7239 = vmatprep.subr.mxu0 0.0
    %7240 = vmatpush1.msra.mxu0 0.0
    %7241 = vmatprep.subr.mxu0 0.0
    %7242 = vmatpush1.msra.mxu0 0.0
    %7243 = vmatprep.subr.mxu0 0.0
    %7244 = vmatpush1.msra.mxu0 0.0
    %7245 = vmatprep.subr.mxu0 0.0
    %7246 = vmatpush1.msra.mxu0 0.0
    %7247 = vmatprep.subr.mxu0 0.0
    %7248 = vmatpush1.msra.mxu0 0.0
    %7249 = vmatprep.subr.mxu0 0.0
    %7250 = vmatpush1.msra.mxu0 0.0
    %7251 = vmatprep.subr.mxu0 0.0
    %7252 = vmatpush1.msra.mxu0 0.0
    %7253 = vmatprep.subr.mxu0 0.0
    %7254 = vmatpush1.msra.mxu0 0.0
    %7255 = vmatprep.subr.mxu0 0.0
    %7256 = vmatpush1.msra.mxu0 0.0
    %7257 = vmatprep.subr.mxu0 0.0
    %7258 = vmatpush1.msra.mxu0 0.0
    %7259 = vmatprep.subr.mxu0 0.0
    %7260 = vmatpush1.msra.mxu0 0.0
    %7261 = vmatprep.subr.mxu0 0.0
    %7262 = vmatpush1.msra.mxu0 0.0
    %7263 = vmatprep.subr.mxu0 0.0
    %7264 = vmatpush1.msra.mxu0 0.0
    %7265 = vmatprep.subr.mxu0 0.0
    %7266 = vmatpush1.msra.mxu0 0.0
    %7267 = vmatprep.subr.mxu0 0.0
    %7268 = vmatpush1.msra.mxu0 0.0
    %7269 = vmatprep.subr.mxu0 0.0
    %7270 = vmatpush1.msra.mxu0 0.0
    %7271 = vmatprep.subr.mxu0 0.0
    %7272 = vmatpush1.msra.mxu0 0.0
    %7273 = vmatprep.subr.mxu0 0.0
    %7274 = vmatpush1.msra.mxu0 0.0
    %7275 = vmatprep.subr.mxu0 0.0
    %7276 = vmatpush1.msra.mxu0 0.0
    %7277 = vmatprep.subr.mxu0 0.0
    %7278 = vmatpush1.msra.mxu0 0.0
    %7279 = vmatprep.subr.mxu0 0.0
    %7280 = vmatpush1.msra.mxu0 0.0
    %7281 = vmatprep.subr.mxu0 0.0
    %7282 = vmatpush1.msra.mxu0 0.0
    %7283 = vmatprep.subr.mxu0 0.0
    %7284 = vmatpush1.msra.mxu0 0.0
    %7285 = vmatprep.mubr.f32.mxu0 0.0
    %v7286 = vand.u32 %v5155, 4294901760
    %v7287 = vsub.f32 %v5155, %v7286
    %v7288 = vand.u32 %v7287, 4294901760
    %v7289 = vsub.f32 %v7287, %v7288
    %v7290 = vand.u32 %v7289, 4294901760
    %7291 = vmatmul.mubr.f32.gmra.mrb[0].mxu0 %v7290
    %v7292 = vpop.f32.mrb[0].mxu0
    %v7293 = vadd.f32 1e-05, %v7292
    %v7294 = vpop.f32.mrb[0].mxu0
    %7295 = vmatprep.mubr.f32.mxu0 0.0
    %v7296 = vand.u32 %v5158, 4294901760
    %v7297 = vsub.f32 %v5158, %v7296
    %v7298 = vand.u32 %v7297, 4294901760
    %v7299 = vsub.f32 %v7297, %v7298
    %v7300 = vand.u32 %v7299, 4294901760
    %7301 = vmatmul.mubr.f32.gmra.mrb[0].mxu0 %v7300
    %v7302 = vpop.f32.mrb[0].mxu0
    %v7303 = vadd.f32 1e-05, %v7302
    %v7304 = vpop.f32.mrb[0].mxu0
    %7305 = vdwg.mxu0
    %7306 = vmatprep.subr.mxu0 0.0
    %v7307 = vand.u32 %v7217, 4294901760
    %v7308 = vsub.f32 %v7217, %v7307
    %v7309 = vand.u32 %v7308, 4294901760
    %v7310 = vsub.f32 %v7308, %v7309
    %v7311 = vand.u32 %v7310, 4294901760
    %7312 = vmatpush1.msra.mxu0 %v7311
    %7313 = vmatprep.subr.mxu0 0.0
    %v7314 = vand.u32 %v7218, 4294901760
    %v7315 = vsub.f32 %v7218, %v7314
    %v7316 = vand.u32 %v7315, 4294901760
    %v7317 = vsub.f32 %v7315, %v7316
    %v7318 = vand.u32 %v7317, 4294901760
    %7319 = vmatpush1.msra.mxu0 %v7318
    %7320 = vmatprep.subr.mxu0 0.0
    %7321 = vmatpush1.msra.mxu0 0.0
    %7322 = vmatprep.subr.mxu0 0.0
    %7323 = vmatpush1.msra.mxu0 0.0
    %7324 = vmatprep.subr.mxu0 0.0
    %7325 = vmatpush1.msra.mxu0 0.0
    %7326 = vmatprep.subr.mxu0 0.0
    %7327 = vmatpush1.msra.mxu0 0.0
    %7328 = vmatprep.subr.mxu0 0.0
    %7329 = vmatpush1.msra.mxu0 0.0
    %7330 = vmatprep.subr.mxu0 0.0
    %7331 = vmatpush1.msra.mxu0 0.0
    %7332 = vmatprep.subr.mxu0 0.0
    %7333 = vmatpush1.msra.mxu0 0.0
    %7334 = vmatprep.subr.mxu0 0.0
    %7335 = vmatpush1.msra.mxu0 0.0
    %7336 = vmatprep.subr.mxu0 0.0
    %7337 = vmatpush1.msra.mxu0 0.0
    %7338 = vmatprep.subr.mxu0 0.0
    %7339 = vmatpush1.msra.mxu0 0.0
    %7340 = vmatprep.subr.mxu0 0.0
    %7341 = vmatpush1.msra.mxu0 0.0
    %7342 = vmatprep.subr.mxu0 0.0
    %7343 = vmatpush1.msra.mxu0 0.0
    %7344 = vmatprep.subr.mxu0 0.0
    %7345 = vmatpush1.msra.mxu0 0.0
    %7346 = vmatprep.subr.mxu0 0.0
    %7347 = vmatpush1.msra.mxu0 0.0
    %7348 = vmatprep.subr.mxu0 0.0
    %7349 = vmatpush1.msra.mxu0 0.0
    %7350 = vmatprep.subr.mxu0 0.0
    %7351 = vmatpush1.msra.mxu0 0.0
    %7352 = vmatprep.subr.mxu0 0.0
    %7353 = vmatpush1.msra.mxu0 0.0
    %7354 = vmatprep.subr.mxu0 0.0
    %7355 = vmatpush1.msra.mxu0 0.0
    %7356 = vmatprep.subr.mxu0 0.0
    %7357 = vmatpush1.msra.mxu0 0.0
    %7358 = vmatprep.subr.mxu0 0.0
    %7359 = vmatpush1.msra.mxu0 0.0
    %7360 = vmatprep.subr.mxu0 0.0
    %7361 = vmatpush1.msra.mxu0 0.0
    %7362 = vmatprep.subr.mxu0 0.0
    %7363 = vmatpush1.msra.mxu0 0.0
    %7364 = vmatprep.subr.mxu0 0.0
    %7365 = vmatpush1.msra.mxu0 0.0
    %7366 = vmatprep.subr.mxu0 0.0
    %7367 = vmatpush1.msra.mxu0 0.0
    %7368 = vmatprep.subr.mxu0 0.0
    %7369 = vmatpush1.msra.mxu0 0.0
    %7370 = vmatprep.subr.mxu0 0.0
    %7371 = vmatpush1.msra.mxu0 0.0
    %7372 = vmatprep.subr.mxu0 0.0
    %7373 = vmatpush1.msra.mxu0 0.0
    %7374 = vmatprep.subr.mxu0 0.0
    %7375 = vmatpush1.msra.mxu0 0.0
    %7376 = vmatprep.subr.mxu0 0.0
    %7377 = vmatpush1.msra.mxu0 0.0
    %7378 = vmatprep.subr.mxu0 0.0
    %7379 = vmatpush1.msra.mxu0 0.0
    %7380 = vmatprep.mubr.f32.mxu0 0.0
    %v7381 = vand.u32 %v5155, 4294901760
    %7382 = vmatmul.mubr.f32.gmra.mrb[0].mxu0 %v7381
    %v7383 = vpop.f32.mrb[0].mxu0
    %v7384 = vadd.f32 %v7293, %v7383
    %v7385 = vpop.f32.mrb[0].mxu0
    %7386 = vmatprep.mubr.f32.mxu0 0.0
    %v7387 = vand.u32 %v5158, 4294901760
    %7388 = vmatmul.mubr.f32.gmra.mrb[0].mxu0 %v7387
    %v7389 = vpop.f32.mrb[0].mxu0
    %v7390 = vadd.f32 %v7303, %v7389
    %v7391 = vpop.f32.mrb[0].mxu0
    %7392 = vdwg.mxu0
    %7393 = vmatprep.subr.mxu0 0.0
    %v7394 = vand.u32 %v7217, 4294901760
    %v7395 = vsub.f32 %v7217, %v7394
    %7396 = vmatpush1.msra.mxu0 %v7395
    %7397 = vmatprep.subr.mxu0 0.0
    %v7398 = vand.u32 %v7218, 4294901760
    %v7399 = vsub.f32 %v7218, %v7398
    %7400 = vmatpush1.msra.mxu0 %v7399
    %7401 = vmatprep.subr.mxu0 0.0
    %7402 = vmatpush1.msra.mxu0 0.0
    %7403 = vmatprep.subr.mxu0 0.0
    %7404 = vmatpush1.msra.mxu0 0.0
    %7405 = vmatprep.subr.mxu0 0.0
    %7406 = vmatpush1.msra.mxu0 0.0
    %7407 = vmatprep.subr.mxu0 0.0
    %7408 = vmatpush1.msra.mxu0 0.0
    %7409 = vmatprep.subr.mxu0 0.0
    %7410 = vmatpush1.msra.mxu0 0.0
    %7411 = vmatprep.subr.mxu0 0.0
    %7412 = vmatpush1.msra.mxu0 0.0
    %7413 = vmatprep.subr.mxu0 0.0
    %7414 = vmatpush1.msra.mxu0 0.0
    %7415 = vmatprep.subr.mxu0 0.0
    %7416 = vmatpush1.msra.mxu0 0.0
    %7417 = vmatprep.subr.mxu0 0.0
    %7418 = vmatpush1.msra.mxu0 0.0
    %7419 = vmatprep.subr.mxu0 0.0
    %7420 = vmatpush1.msra.mxu0 0.0
    %7421 = vmatprep.subr.mxu0 0.0
    %7422 = vmatpush1.msra.mxu0 0.0
    %7423 = vmatprep.subr.mxu0 0.0
    %7424 = vmatpush1.msra.mxu0 0.0
    %7425 = vmatprep.subr.mxu0 0.0
    %7426 = vmatpush1.msra.mxu0 0.0
    %7427 = vmatprep.subr.mxu0 0.0
    %7428 = vmatpush1.msra.mxu0 0.0
    %7429 = vmatprep.subr.mxu0 0.0
    %7430 = vmatpush1.msra.mxu0 0.0
    %7431 = vmatprep.subr.mxu0 0.0
    %7432 = vmatpush1.msra.mxu0 0.0
    %7433 = vmatprep.subr.mxu0 0.0
    %7434 = vmatpush1.msra.mxu0 0.0
    %7435 = vmatprep.subr.mxu0 0.0
    %7436 = vmatpush1.msra.mxu0 0.0
    %7437 = vmatprep.subr.mxu0 0.0
    %7438 = vmatpush1.msra.mxu0 0.0
    %7439 = vmatprep.subr.mxu0 0.0
    %7440 = vmatpush1.msra.mxu0 0.0
    %7441 = vmatprep.subr.mxu0 0.0
    %7442 = vmatpush1.msra.mxu0 0.0
    %7443 = vmatprep.subr.mxu0 0.0
    %7444 = vmatpush1.msra.mxu0 0.0
    %7445 = vmatprep.subr.mxu0 0.0
    %7446 = vmatpush1.msra.mxu0 0.0
    %7447 = vmatprep.subr.mxu0 0.0
    %7448 = vmatpush1.msra.mxu0 0.0
    %7449 = vmatprep.subr.mxu0 0.0
    %7450 = vmatpush1.msra.mxu0 0.0
    %7451 = vmatprep.subr.mxu0 0.0
    %7452 = vmatpush1.msra.mxu0 0.0
    %7453 = vmatprep.subr.mxu0 0.0
    %7454 = vmatpush1.msra.mxu0 0.0
    %7455 = vmatprep.subr.mxu0 0.0
    %7456 = vmatpush1.msra.mxu0 0.0
    %7457 = vmatprep.subr.mxu0 0.0
    %7458 = vmatpush1.msra.mxu0 0.0
    %7459 = vmatprep.subr.mxu0 0.0
    %7460 = vmatpush1.msra.mxu0 0.0
    %7461 = vmatprep.mubr.f32.mxu0 0.0
    %v7462 = vand.u32 %v5155, 4294901760
    %v7463 = vsub.f32 %v5155, %v7462
    %7464 = vmatmul.mubr.f32.gmra.mrb[0].mxu0 %v7463
    %v7465 = vpop.f32.mrb[0].mxu0
    %v7466 = vadd.f32 %v7384, %v7465
    %v7467 = vpop.f32.mrb[0].mxu0
    %7468 = vmatprep.mubr.f32.mxu0 0.0
    %v7469 = vand.u32 %v5158, 4294901760
    %v7470 = vsub.f32 %v5158, %v7469
    %7471 = vmatmul.mubr.f32.gmra.mrb[0].mxu0 %v7470
    %v7472 = vpop.f32.mrb[0].mxu0
    %v7473 = vadd.f32 %v7390, %v7472
    %v7474 = vpop.f32.mrb[0].mxu0
    %7475 = vdwg.mxu0
    %7476 = vmatprep.subr.mxu0 0.0
    %v7477 = vand.u32 %v7217, 4294901760
    %7478 = vmatpush1.msra.mxu0 %v7477
    %7479 = vmatprep.subr.mxu0 0.0
    %v7480 = vand.u32 %v7218, 4294901760
    %7481 = vmatpush1.msra.mxu0 %v7480
    %7482 = vmatprep.subr.mxu0 0.0
    %7483 = vmatpush1.msra.mxu0 0.0
    %7484 = vmatprep.subr.mxu0 0.0
    %7485 = vmatpush1.msra.mxu0 0.0
    %7486 = vmatprep.subr.mxu0 0.0
    %7487 = vmatpush1.msra.mxu0 0.0
    %7488 = vmatprep.subr.mxu0 0.0
    %7489 = vmatpush1.msra.mxu0 0.0
    %7490 = vmatprep.subr.mxu0 0.0
    %7491 = vmatpush1.msra.mxu0 0.0
    %7492 = vmatprep.subr.mxu0 0.0
    %7493 = vmatpush1.msra.mxu0 0.0
    %7494 = vmatprep.subr.mxu0 0.0
    %7495 = vmatpush1.msra.mxu0 0.0
    %7496 = vmatprep.subr.mxu0 0.0
    %7497 = vmatpush1.msra.mxu0 0.0
    %7498 = vmatprep.subr.mxu0 0.0
    %7499 = vmatpush1.msra.mxu0 0.0
    %7500 = vmatprep.subr.mxu0 0.0
    %7501 = vmatpush1.msra.mxu0 0.0
    %7502 = vmatprep.subr.mxu0 0.0
    %7503 = vmatpush1.msra.mxu0 0.0
    %7504 = vmatprep.subr.mxu0 0.0
    %7505 = vmatpush1.msra.mxu0 0.0
    %7506 = vmatprep.subr.mxu0 0.0
    %7507 = vmatpush1.msra.mxu0 0.0
    %7508 = vmatprep.subr.mxu0 0.0
    %7509 = vmatpush1.msra.mxu0 0.0
    %7510 = vmatprep.subr.mxu0 0.0
    %7511 = vmatpush1.msra.mxu0 0.0
    %7512 = vmatprep.subr.mxu0 0.0
    %7513 = vmatpush1.msra.mxu0 0.0
    %7514 = vmatprep.subr.mxu0 0.0
    %7515 = vmatpush1.msra.mxu0 0.0
    %7516 = vmatprep.subr.mxu0 0.0
    %7517 = vmatpush1.msra.mxu0 0.0
    %7518 = vmatprep.subr.mxu0 0.0
    %7519 = vmatpush1.msra.mxu0 0.0
    %7520 = vmatprep.subr.mxu0 0.0
    %7521 = vmatpush1.msra.mxu0 0.0
    %7522 = vmatprep.subr.mxu0 0.0
    %7523 = vmatpush1.msra.mxu0 0.0
    %7524 = vmatprep.subr.mxu0 0.0
    %7525 = vmatpush1.msra.mxu0 0.0
    %7526 = vmatprep.subr.mxu0 0.0
    %7527 = vmatpush1.msra.mxu0 0.0
    %7528 = vmatprep.subr.mxu0 0.0
    %7529 = vmatpush1.msra.mxu0 0.0
    %7530 = vmatprep.subr.mxu0 0.0
    %7531 = vmatpush1.msra.mxu0 0.0
    %7532 = vmatprep.subr.mxu0 0.0
    %7533 = vmatpush1.msra.mxu0 0.0
    %7534 = vmatprep.subr.mxu0 0.0
    %7535 = vmatpush1.msra.mxu0 0.0
    %7536 = vmatprep.subr.mxu0 0.0
    %7537 = vmatpush1.msra.mxu0 0.0
    %7538 = vmatprep.subr.mxu0 0.0
    %7539 = vmatpush1.msra.mxu0 0.0
    %7540 = vmatprep.subr.mxu0 0.0
    %7541 = vmatpush1.msra.mxu0 0.0
    %7542 = vmatprep.mubr.f32.mxu0 0.0
    %v7543 = vand.u32 %v5155, 4294901760
    %v7544 = vsub.f32 %v5155, %v7543
    %v7545 = vand.u32 %v7544, 4294901760
    %7546 = vmatmul.mubr.f32.gmra.mrb[0].mxu0 %v7545
    %v7547 = vpop.f32.mrb[0].mxu0
    %v7548 = vadd.f32 %v7466, %v7547
    %v7549 = vpop.f32.mrb[0].mxu0
    %7550 = vmatprep.mubr.f32.mxu0 0.0
    %v7551 = vand.u32 %v5158, 4294901760
    %v7552 = vsub.f32 %v5158, %v7551
    %v7553 = vand.u32 %v7552, 4294901760
    %7554 = vmatmul.mubr.f32.gmra.mrb[0].mxu0 %v7553
    %v7555 = vpop.f32.mrb[0].mxu0
    %v7556 = vadd.f32 %v7473, %v7555
    %v7557 = vpop.f32.mrb[0].mxu0
    %7558 = vdwg.mxu0
    %7559 = vmatprep.subr.mxu0 0.0
    %v7560 = vand.u32 %v7217, 4294901760
    %v7561 = vsub.f32 %v7217, %v7560
    %v7562 = vand.u32 %v7561, 4294901760
    %7563 = vmatpush1.msra.mxu0 %v7562
    %7564 = vmatprep.subr.mxu0 0.0
    %v7565 = vand.u32 %v7218, 4294901760
    %v7566 = vsub.f32 %v7218, %v7565
    %v7567 = vand.u32 %v7566, 4294901760
    %7568 = vmatpush1.msra.mxu0 %v7567
    %7569 = vmatprep.subr.mxu0 0.0
    %7570 = vmatpush1.msra.mxu0 0.0
    %7571 = vmatprep.subr.mxu0 0.0
    %7572 = vmatpush1.msra.mxu0 0.0
    %7573 = vmatprep.subr.mxu0 0.0
    %7574 = vmatpush1.msra.mxu0 0.0
    %7575 = vmatprep.subr.mxu0 0.0
    %7576 = vmatpush1.msra.mxu0 0.0
    %7577 = vmatprep.subr.mxu0 0.0
    %7578 = vmatpush1.msra.mxu0 0.0
    %7579 = vmatprep.subr.mxu0 0.0
    %7580 = vmatpush1.msra.mxu0 0.0
    %7581 = vmatprep.subr.mxu0 0.0
    %7582 = vmatpush1.msra.mxu0 0.0
    %7583 = vmatprep.subr.mxu0 0.0
    %7584 = vmatpush1.msra.mxu0 0.0
    %7585 = vmatprep.subr.mxu0 0.0
    %7586 = vmatpush1.msra.mxu0 0.0
    %7587 = vmatprep.subr.mxu0 0.0
    %7588 = vmatpush1.msra.mxu0 0.0
    %7589 = vmatprep.subr.mxu0 0.0
    %7590 = vmatpush1.msra.mxu0 0.0
    %7591 = vmatprep.subr.mxu0 0.0
    %7592 = vmatpush1.msra.mxu0 0.0
    %7593 = vmatprep.subr.mxu0 0.0
    %7594 = vmatpush1.msra.mxu0 0.0
    %7595 = vmatprep.subr.mxu0 0.0
    %7596 = vmatpush1.msra.mxu0 0.0
    %7597 = vmatprep.subr.mxu0 0.0
    %7598 = vmatpush1.msra.mxu0 0.0
    %7599 = vmatprep.subr.mxu0 0.0
    %7600 = vmatpush1.msra.mxu0 0.0
    %7601 = vmatprep.subr.mxu0 0.0
    %7602 = vmatpush1.msra.mxu0 0.0
    %7603 = vmatprep.subr.mxu0 0.0
    %7604 = vmatpush1.msra.mxu0 0.0
    %7605 = vmatprep.subr.mxu0 0.0
    %7606 = vmatpush1.msra.mxu0 0.0
    %7607 = vmatprep.subr.mxu0 0.0
    %7608 = vmatpush1.msra.mxu0 0.0
    %7609 = vmatprep.subr.mxu0 0.0
    %7610 = vmatpush1.msra.mxu0 0.0
    %7611 = vmatprep.subr.mxu0 0.0
    %7612 = vmatpush1.msra.mxu0 0.0
    %7613 = vmatprep.subr.mxu0 0.0
    %7614 = vmatpush1.msra.mxu0 0.0
    %7615 = vmatprep.subr.mxu0 0.0
    %7616 = vmatpush1.msra.mxu0 0.0
    %7617 = vmatprep.subr.mxu0 0.0
    %7618 = vmatpush1.msra.mxu0 0.0
    %7619 = vmatprep.subr.mxu0 0.0
    %7620 = vmatpush1.msra.mxu0 0.0
    %7621 = vmatprep.subr.mxu0 0.0
    %7622 = vmatpush1.msra.mxu0 0.0
    %7623 = vmatprep.subr.mxu0 0.0
    %7624 = vmatpush1.msra.mxu0 0.0
    %7625 = vmatprep.subr.mxu0 0.0
    %7626 = vmatpush1.msra.mxu0 0.0
    %7627 = vmatprep.subr.mxu0 0.0
    %7628 = vmatpush1.msra.mxu0 0.0
    %7629 = vmatprep.mubr.f32.mxu0 0.0
    %v7630 = vand.u32 %v5155, 4294901760
    %7631 = vmatmul.mubr.f32.gmra.mrb[0].mxu0 %v7630
    %v7632 = vpop.f32.mrb[0].mxu0
    %v7633 = vadd.f32 %v7548, %v7632
    %v7634 = vpop.f32.mrb[0].mxu0
    %7635 = vmatprep.mubr.f32.mxu0 0.0
    %v7636 = vand.u32 %v5158, 4294901760
    %7637 = vmatmul.mubr.f32.gmra.mrb[0].mxu0 %v7636
    %v7638 = vpop.f32.mrb[0].mxu0
    %v7639 = vadd.f32 %v7556, %v7638
    %v7640 = vpop.f32.mrb[0].mxu0
    %7641 = vdwg.mxu0
    %7642 = vmatprep.subr.mxu0 0.0
    %v7643 = vand.u32 %v7217, 4294901760
    %7644 = vmatpush1.msra.mxu0 %v7643
    %7645 = vmatprep.subr.mxu0 0.0
    %v7646 = vand.u32 %v7218, 4294901760
    %7647 = vmatpush1.msra.mxu0 %v7646
    %7648 = vmatprep.subr.mxu0 0.0
    %7649 = vmatpush1.msra.mxu0 0.0
    %7650 = vmatprep.subr.mxu0 0.0
    %7651 = vmatpush1.msra.mxu0 0.0
    %7652 = vmatprep.subr.mxu0 0.0
    %7653 = vmatpush1.msra.mxu0 0.0
    %7654 = vmatprep.subr.mxu0 0.0
    %7655 = vmatpush1.msra.mxu0 0.0
    %7656 = vmatprep.subr.mxu0 0.0
    %7657 = vmatpush1.msra.mxu0 0.0
    %7658 = vmatprep.subr.mxu0 0.0
    %7659 = vmatpush1.msra.mxu0 0.0
    %7660 = vmatprep.subr.mxu0 0.0
    %7661 = vmatpush1.msra.mxu0 0.0
    %7662 = vmatprep.subr.mxu0 0.0
    %7663 = vmatpush1.msra.mxu0 0.0
    %7664 = vmatprep.subr.mxu0 0.0
    %7665 = vmatpush1.msra.mxu0 0.0
    %7666 = vmatprep.subr.mxu0 0.0
    %7667 = vmatpush1.msra.mxu0 0.0
    %7668 = vmatprep.subr.mxu0 0.0
    %7669 = vmatpush1.msra.mxu0 0.0
    %7670 = vmatprep.subr.mxu0 0.0
    %7671 = vmatpush1.msra.mxu0 0.0
    %7672 = vmatprep.subr.mxu0 0.0
    %7673 = vmatpush1.msra.mxu0 0.0
    %7674 = vmatprep.subr.mxu0 0.0
    %7675 = vmatpush1.msra.mxu0 0.0
    %7676 = vmatprep.subr.mxu0 0.0
    %7677 = vmatpush1.msra.mxu0 0.0
    %7678 = vmatprep.subr.mxu0 0.0
    %7679 = vmatpush1.msra.mxu0 0.0
    %7680 = vmatprep.subr.mxu0 0.0
    %7681 = vmatpush1.msra.mxu0 0.0
    %7682 = vmatprep.subr.mxu0 0.0
    %7683 = vmatpush1.msra.mxu0 0.0
    %7684 = vmatprep.subr.mxu0 0.0
    %7685 = vmatpush1.msra.mxu0 0.0
    %7686 = vmatprep.subr.mxu0 0.0
    %7687 = vmatpush1.msra.mxu0 0.0
    %7688 = vmatprep.subr.mxu0 0.0
    %7689 = vmatpush1.msra.mxu0 0.0
    %7690 = vmatprep.subr.mxu0 0.0
    %7691 = vmatpush1.msra.mxu0 0.0
    %7692 = vmatprep.subr.mxu0 0.0
    %7693 = vmatpush1.msra.mxu0 0.0
    %7694 = vmatprep.subr.mxu0 0.0
    %7695 = vmatpush1.msra.mxu0 0.0
    %7696 = vmatprep.subr.mxu0 0.0
    %7697 = vmatpush1.msra.mxu0 0.0
    %7698 = vmatprep.subr.mxu0 0.0
    %7699 = vmatpush1.msra.mxu0 0.0
    %7700 = vmatprep.subr.mxu0 0.0
    %7701 = vmatpush1.msra.mxu0 0.0
    %7702 = vmatprep.subr.mxu0 0.0
    %7703 = vmatpush1.msra.mxu0 0.0
    %7704 = vmatprep.subr.mxu0 0.0
    %7705 = vmatpush1.msra.mxu0 0.0
    %7706 = vmatprep.subr.mxu0 0.0
    %7707 = vmatpush1.msra.mxu0 0.0
    %7708 = vmatprep.mubr.f32.mxu0 0.0
    %v7709 = vand.u32 %v5155, 4294901760
    %7710 = vmatmul.mubr.f32.gmra.mrb[0].mxu0 %v7709
    %v7711 = vpop.f32.mrb[0].mxu0
    %v7712 = vadd.f32 %v7633, %v7711
    %v7713 = vpop.f32.mrb[0].mxu0
    %7714 = vmatprep.mubr.f32.mxu0 0.0
    %v7715 = vand.u32 %v5158, 4294901760
    %7716 = vmatmul.mubr.f32.gmra.mrb[0].mxu0 %v7715
    %v7717 = vpop.f32.mrb[0].mxu0
    %v7718 = vadd.f32 %v7639, %v7717
    %v7719 = vpop.f32.mrb[0].mxu0
    %7720 = vdwg.mxu0
    %v7721 = vrsqrt.pop %v7712
    %v7722 = vrsqrt.pop %v7718
    %v7723 = vmul.f32 %v7215, %v7721
    %v7724 = vmul.f32 %v7216, %v7722
    %7725 = vset.pattern.permute.xlu0 2
    %7726 = vperm.xlu0 %7725, %v5151
    %v7727 = vpop.permute.xlu0 %7726
    %7728 = vset.pattern.permute.xlu0 2
    %7729 = vperm.xlu0 %7728, %v5152
    %v7730 = vpop.permute.xlu0 %7729
    %7731 = vset.pattern.permute.xlu0 2
    %7732 = vperm.xlu0 %7731, %v5153
    %v7733 = vpop.permute.xlu0 %7732
    %v7734 = vrot.slane %v7727, 3
    %v7735 = vrot.slane %v7730, 3
    %v7736 = vsel %vm6184, %v7734, %v7735
    %v7737 = vrot.slane %v7733, 3
    %v7738 = vsel %vm6184, %v7735, %v7737
    %v7741 = vmul.f32 %v7723, %v7736
    %v7742 = vmul.f32 %v7724, %v7738
    %7743 = vset.pattern.permute.xlu0 3
    %7744 = vperm.xlu0 %7743, %v5151
    %v7745 = vpop.permute.xlu0 %7744
    %7746 = vset.pattern.permute.xlu0 3
    %7747 = vperm.xlu0 %7746, %v5152
    %v7748 = vpop.permute.xlu0 %7747
    %7749 = vset.pattern.permute.xlu0 3
    %7750 = vperm.xlu0 %7749, %v5153
    %v7751 = vpop.permute.xlu0 %7750
    %v7752 = vrot.slane %v7745, 3
    %v7753 = vrot.slane %v7748, 3
    %v7754 = vsel %vm6184, %v7752, %v7753
    %v7755 = vrot.slane %v7751, 3
    %v7756 = vsel %vm6184, %v7753, %v7755
    %v7759 = vadd.f32 %v7741, %v7754
    %v7760 = vadd.f32 %v7742, %v7756
    %vm7761 = vcmask 261120
    %7762 = vst.msk [vmem:[%s4] sm:$0xff] %vm7761, %v7759
    %7763 = vst.msk [vmem:[%s4 + $0x8] sm:$0xff] %vm7761, %v7760
    // Predicated region
    $region22: #{forward.1} parent=1 // pred_check
      _
    $region23: #{forward.1} parent=1 // pred_check_branch
      %7765 = sbr.rel (0) target = $region25
    $region24: #{forward.1} parent=1 // pred_region
      _
    $region25: #{forward.1} parent=1 // pred_fallthru
      _
    // Predicated region
    $region26: #{forward.1} parent=1 // pred_check
      _
    $region27: #{forward.1} parent=1 // pred_check_branch
      %7767 = sbr.rel (0) target = $region29
    $region28: #{forward.1} parent=1 // pred_region
      _
    $region29: #{forward.1} parent=1 // pred_fallthru
      _
    %7768 = vsyncpa [#allocation3], 1

</llo_original>
